<compile_context>
chip_gen: v7x
topology: tpu7x:2x2x1
jax: 0.10.0
libtpu: 0.0.40
codegen_flags: <defaults>
</compile_context>

<pallas_src>
import jax
import jax.numpy as jnp
import numpy as np
from jax.experimental import pallas as pl
from jax.experimental.pallas import tpu as pltpu

IMG_SIZE = (16, 16)
IMG_CHANNEL = 1
HIDDEN_DIM = 32
REF_DIM = 32


# ----------------------------------------------------------------------------
# Fused Pallas kernel: whole VAE forward, activations never leave VMEM
# ----------------------------------------------------------------------------

def _fused_vae_kernel(
        x1_ref, w1_ref, s1_ref,
        g2_ref, w2_ref, s2_ref,
        g3_ref, w3_ref, s3_ref,
        fm_ref, wp_ref, bp_ref,
        wd1_ref, sd1_ref, em_ref,
        gd2_ref, wd2_ref, sd2_ref, dts2_ref,
        gd3_ref, wd3_ref, sd3_ref, dts3_ref,
        gd4_ref, wd4_ref, sd4_ref,
        proj_ref, y4_ref):
    bf16 = jnp.bfloat16

    def mm(a, b):
        return jnp.dot(a, b, preferred_element_type=jnp.float32)

    def im2col(a, g_ref):
        # a: (P_in, C) bf16 activation; g_ref: (T, P_out, P_in) 0/1 gathers.
        # One tap == one tiny MXU matmul (exact row copy); concat along lanes.
        taps = [mm(g_ref[t], a) for t in range(g_ref.shape[0])]
        return jnp.concatenate(taps, axis=-1).astype(bf16)     # (P_out, T*C)

    def block_scatter(a, d_ref, c):
        # Re-layout (P_in, n_blocks*c) -> (P_out, c): row/phase scatter done
        # as a sum of matmuls with 0/1 matrices (depth-to-space, unflatten).
        out = mm(d_ref[0], a[:, :c])
        for k in range(1, d_ref.shape[0]):
            out = out + mm(d_ref[k], a[:, k * c:(k + 1) * c])
        return out.astype(bf16)                                 # (P_out, c)

    leaky = lambda v: jnp.where(v > 0, v, 0.2 * v)              # LeakyReLU(0.2)

    # ------------------------- encoder -------------------------
    a1 = leaky(mm(x1_ref[...], w1_ref[...]) + s1_ref[...]).astype(bf16)         # (B*64, 32)
    a2 = leaky(mm(im2col(a1, g2_ref), w2_ref[...]) + s2_ref[...]).astype(bf16)  # (B*16, 64)
    a3 = leaky(mm(im2col(a2, g3_ref), w3_ref[...]) + s3_ref[...]).astype(bf16)  # (B*4, 128)

    # -------------- flatten (h, w, c) + projection --------------
    flat = jnp.concatenate([mm(fm_ref[k], a3) for k in range(fm_ref.shape[0])],
                           axis=-1).astype(bf16)                                # (B, 512)
    proj = mm(flat, wp_ref[...]) + bp_ref[...]                                  # (B, 64) f32
    proj_ref[...] = proj

    # ------------------------- decoder -------------------------
    # eval-mode reparameterization: z = mu  (static lane slice, no padded W)
    z = proj[:, :HIDDEN_DIM].astype(bf16)                                       # (B, 32)
    c_d1 = wd1_ref.shape[1] // em_ref.shape[0]                                  # 128
    h1 = jnp.maximum(mm(z, wd1_ref[...]) + sd1_ref[...], 0.0)                   # (B, 512)
    a_d1 = block_scatter(h1.astype(bf16), em_ref, c_d1)                         # (B*4, 128)

    c2 = wd2_ref.shape[1] // 4
    y2 = jnp.maximum(mm(im2col(a_d1, gd2_ref), wd2_ref[...]) + sd2_ref[...], 0.0)
    a_d2 = block_scatter(y2.astype(bf16), dts2_ref, c2)                         # (B*16, 64)

    c3 = wd3_ref.shape[1] // 4
    y3 = jnp.maximum(mm(im2col(a_d2, gd3_ref), wd3_ref[...]) + sd3_ref[...], 0.0)
    a_d3 = block_scatter(y3.astype(bf16), dts3_ref, c3)                         # (B*64, 32)

    y4 = jax.nn.sigmoid(mm(im2col(a_d3, gd4_ref), wd4_ref[...]) + sd4_ref[...])
    y4_ref[...] = y4                                                            # (B*64, 4)


# ----------------------------------------------------------------------------
# Wrapper
# ----------------------------------------------------------------------------

_ARG_ORDER = ("w1", "s1", "g2", "w2", "s2", "g3", "w3", "s3",
              "fm", "wp", "bp", "wd1", "sd1", "em",
              "gd2", "wd2", "sd2", "dts2",
              "gd3", "wd3", "sd3", "dts3",
              "gd4", "wd4", "sd4")


def _full_spec(shape):
    zeros = (0,) * len(shape)
    return pl.BlockSpec(tuple(shape), lambda i, _z=zeros: _z)


def _im2col_nhwc(x, k, s, p):
    """x: (B, H, W, C) -> (B*Ho*Wo, k*k*C); K ordering (dh, dw, c)."""
    B, H, W, C = x.shape
    xp = jnp.pad(x, ((0, 0), (p, p), (p, p), (0, 0)))
    Ho = (H + 2 * p - k) // s + 1
    Wo = (W + 2 * p - k) // s + 1
    cols = []
    for dh in range(k):
        for dw in range(k):
            cols.append(xp[:, dh:dh + s * Ho:s, dw:dw + s * Wo:s, :])
    X = jnp.concatenate(cols, axis=-1)
    return X.reshape(B * Ho * Wo, k * k * C)


@jax.jit
def vae_forward(x, prep):
    B = x.shape[0]
    H, W = IMG_SIZE
    Hh, Wh = H // 2, W // 2

    # Only XLA-side transform on the input: NCHW->NHWC + im2col of the raw
    # 1-channel image (8 KiB); everything else happens inside the kernel.
    h = jnp.transpose(x, (0, 2, 3, 1))
    x1 = _im2col_nhwc(h, 4, 2, 1).astype(jnp.bfloat16)          # (B*64, 16)

    args = (x1,) + tuple(prep[k] for k in _ARG_ORDER)
    out_shapes = (jax.ShapeDtypeStruct((B, 2 * HIDDEN_DIM), jnp.float32),
                  jax.ShapeDtypeStruct((B * Hh * Wh, 4), jnp.float32))

    n_bytes = sum(a.size * a.dtype.itemsize for a in args)
    n_bytes += sum(int(np.prod(s.shape)) * np.dtype(s.dtype).itemsize
                   for s in out_shapes)

    proj, y4 = pl.pallas_call(
        _fused_vae_kernel,
        out_shape=out_shapes,
        grid=(1,),
        in_specs=[_full_spec(a.shape) for a in args],
        out_specs=tuple(_full_spec(s.shape) for s in out_shapes),
        compiler_params=pltpu.CompilerParams(
            dimension_semantics=("arbitrary",)),
        cost_estimate=pl.CostEstimate(
            flops=int(16_000_000 * B),
            transcendentals=int(B * Hh * Wh * 4),
            bytes_accessed=int(n_bytes)),
    )(*args)

    mu, log_var = proj[:, :HIDDEN_DIM], proj[:, HIDDEN_DIM:]
    # final sub-pixel phase interleave of the tiny (B*64, 4) kernel output
    rec = y4.reshape(B, Hh, Wh, 2, 2).transpose(0, 1, 3, 2, 4).reshape(B, H, W)
    return rec[:, None, :, :], mu, log_var


# ----------------------------------------------------------------------------
# Parameters: torch-layout init + one-time prep into matmul-ready constants
# ----------------------------------------------------------------------------

def _bn_fold(key, c):
    k1, k2, k3, k4 = jax.random.split(key, 4)
    gamma = 1.0 + 0.1 * jax.random.normal(k1, (c,))
    beta = 0.1 * jax.random.normal(k2, (c,))
    mean = 0.1 * jax.random.normal(k3, (c,))
    var = 0.5 + jax.random.uniform(k4, (c,))
    scale = gamma / jnp.sqrt(var + 1e-5)
    shift = beta - mean * scale
    return scale, shift


def init_params(key):
    ks = jax.random.split(key, 16)
    kd = IMG_SIZE[0] // 8
    s = 0.05
    return {
        "w_e1": s * jax.random.normal(ks[0], (REF_DIM, IMG_CHANNEL, 4, 4)),
        "bn_e1": _bn_fold(ks[1], REF_DIM),
        "w_e2": s * jax.random.normal(ks[2], (REF_DIM * 2, REF_DIM, 4, 4)),
        "bn_e2": _bn_fold(ks[3], REF_DIM * 2),
        "w_e3": s * jax.random.normal(ks[4], (REF_DIM * 4, REF_DIM * 2, 4, 4)),
        "bn_e3": _bn_fold(ks[5], REF_DIM * 4),
        "w_p": s * jax.random.normal(
            ks[6], (HIDDEN_DIM * 2, REF_DIM * 4 * kd * (IMG_SIZE[1] // 8))),
        "b_p": s * jax.random.normal(ks[7], (HIDDEN_DIM * 2,)),
        "w_d1": s * jax.random.normal(ks[8], (HIDDEN_DIM, REF_DIM * 4, kd, kd)),
        "bn_d1": _bn_fold(ks[9], REF_DIM * 4),
        "w_d2": s * jax.random.normal(ks[10], (REF_DIM * 4, REF_DIM * 2, 4, 4)),
        "bn_d2": _bn_fold(ks[11], REF_DIM * 2),
        "w_d3": s * jax.random.normal(ks[12], (REF_DIM * 2, REF_DIM, 4, 4)),
        "bn_d3": _bn_fold(ks[13], REF_DIM),
        "w_d4": s * jax.random.normal(ks[14], (REF_DIM, IMG_CHANNEL, 4, 4)),
        "b_d4": s * jax.random.normal(ks[15], (IMG_CHANNEL,)),
    }


def _conv_matrix(w, scale):
    """OIHW conv weight -> (k*k*Cin, Cout) im2col matrix, BN scale folded."""
    w = np.asarray(w, np.float32) * np.asarray(scale, np.float32)[:, None, None, None]
    Cout, Cin, k, _ = w.shape
    return w.transpose(2, 3, 1, 0).reshape(k * k * Cin, Cout)


# (phase a, 3x3 tap dh) -> original 4x4 ConvTranspose(4,2,1) tap kh (else 0)
_PHASE_TAP = {(0, 0): 3, (0, 1): 1, (1, 1): 2, (1, 2): 0}


def _convT_phase_matrix(w, scale):
    """(Cin, Cout, 4, 4) ConvTranspose(4,2,1) -> (9*Cin, 4*Cout) sub-pixel W."""
    w = np.asarray(w, np.float32) * np.asarray(scale, np.float32)[None, :, None, None]
    Cin, Cout = w.shape[:2]
    wm = np.zeros((3, 3, Cin, 4, Cout), np.float32)
    for a in (0, 1):
        for b in (0, 1):
            for dh in (0, 1, 2):
                kh = _PHASE_TAP.get((a, dh))
                if kh is None:
                    continue
                for dw in (0, 1, 2):
                    kw = _PHASE_TAP.get((b, dw))
                    if kw is None:
                        continue
                    wm[dh, dw, :, a * 2 + b, :] = w[:, :, kh, kw]
    return wm.reshape(9 * Cin, 4 * Cout)


def _conv_gather(B, H, W, k, s, p):
    """Per-tap 0/1 gather matrices: (k*k, B*Ho*Wo, B*H*W); pad rows are zero."""
    Ho = (H + 2 * p - k) // s + 1
    Wo = (W + 2 * p - k) // s + 1
    G = np.zeros((k * k, B * Ho * Wo, B * H * W), np.float32)
    for b in range(B):
        for oh in range(Ho):
            for ow in range(Wo):
                po = (b * Ho + oh) * Wo + ow
                for dh in range(k):
                    ih = s * oh + dh - p
                    if not (0 <= ih < H):
                        continue
                    for dw in range(k):
                        iw = s * ow + dw - p
                        if not (0 <= iw < W):
                            continue
                        G[dh * k + dw, po, (b * H + ih) * W + iw] = 1.0
    return G


def _dts_mats(B, H, W):
    """Depth-to-space phase scatters: (4, B*2H*2W, B*H*W); phase = a*2 + b."""
    D = np.zeros((4, B * 4 * H * W, B * H * W), np.float32)
    for b in range(B):
        for i in range(H):
            for j in range(W):
                pi = (b * H + i) * W + j
                for a in range(2):
                    for c in range(2):
                        po = (b * 2 * H + 2 * i + a) * (2 * W) + 2 * j + c
                        D[a * 2 + c, po, pi] = 1.0
    return D


def _flatten_mats(B, S):
    """(S, B, B*S): flat block k of image b <- activation row b*S + k."""
    F = np.zeros((S, B, B * S), np.float32)
    for k in range(S):
        for b in range(B):
            F[k, b, b * S + k] = 1.0
    return F


def _expand_mats(B, S):
    """(S, B*S, B): activation row b*S + k <- channel block k of image b."""
    E = np.zeros((S, B * S, B), np.float32)
    for k in range(S):
        for b in range(B):
            E[k, b * S + k, b] = 1.0
    return E


def prepare_params(p, batch):
    """One-time host-side prep into bf16 matmul weights + f32 shifts + gathers."""
    B = batch
    kd = IMG_SIZE[0] // 8                       # 2
    bf = lambda a: jnp.asarray(a, jnp.bfloat16)
    f32 = lambda a: jnp.asarray(a, jnp.float32)

    sc_e1, sh_e1 = p["bn_e1"]; sc_e2, sh_e2 = p["bn_e2"]; sc_e3, sh_e3 = p["bn_e3"]
    sc_d1, sh_d1 = p["bn_d1"]; sc_d2, sh_d2 = p["bn_d2"]; sc_d3, sh_d3 = p["bn_d3"]

    prep = {
        # encoder conv matrices (BN scale folded) + shifts
        "w1": bf(_conv_matrix(p["w_e1"], sc_e1)),
        "s1": f32(np.asarray(sh_e1).reshape(1, -1)),
        "w2": bf(_conv_matrix(p["w_e2"], sc_e2)),
        "s2": f32(np.asarray(sh_e2).reshape(1, -1)),
        "w3": bf(_conv_matrix(p["w_e3"], sc_e3)),
        "s3": f32(np.asarray(sh_e3).reshape(1, -1)),
        # in-kernel im2col gathers for encoder layers 2 and 3
        "g2": bf(_conv_gather(B, 8, 8, 4, 2, 1)),
        "g3": bf(_conv_gather(B, 4, 4, 4, 2, 1)),
        # flatten / unflatten scatters
        "fm": bf(_flatten_mats(B, kd * kd)),
        "em": bf(_expand_mats(B, kd * kd)),
        # decoder sub-pixel gathers + depth-to-space scatters
        "gd2": bf(_conv_gather(B, kd, kd, 3, 1, 1)),
        "dts2": bf(_dts_mats(B, kd, kd)),
        "gd3": bf(_conv_gather(B, 2 * kd, 2 * kd, 3, 1, 1)),
        "dts3": bf(_dts_mats(B, 2 * kd, 2 * kd)),
        "gd4": bf(_conv_gather(B, 4 * kd, 4 * kd, 3, 1, 1)),
    }

    # projection Linear: torch (c,h,w) in-feature order -> our (h,w,c) flatten
    wp = np.asarray(p["w_p"], np.float32).reshape(HIDDEN_DIM * 2, REF_DIM * 4, kd, kd)
    wp = wp.transpose(2, 3, 1, 0).reshape(kd * kd * REF_DIM * 4, HIDDEN_DIM * 2)
    prep["wp"] = bf(wp)
    prep["bp"] = f32(np.asarray(p["b_p"]).reshape(1, -1))

    # decoder layer 1: ConvT(hidden, 4*ref, kd, 1, 0) on 1x1 input -> matmul
    wd1 = np.asarray(p["w_d1"], np.float32) * np.asarray(sc_d1, np.float32)[None, :, None, None]
    wd1 = wd1.transpose(0, 2, 3, 1).reshape(HIDDEN_DIM, kd * kd * REF_DIM * 4)
    prep["wd1"] = bf(wd1)
    prep["sd1"] = f32(np.tile(np.asarray(sh_d1, np.float32), kd * kd).reshape(1, -1))

    # decoder layers 2/3: sub-pixel ConvTranspose matrices (BN folded)
    prep["wd2"] = bf(_convT_phase_matrix(p["w_d2"], sc_d2))
    prep["sd2"] = f32(np.tile(np.asarray(sh_d2, np.float32), 4).reshape(1, -1))
    prep["wd3"] = bf(_convT_phase_matrix(p["w_d3"], sc_d3))
    prep["sd3"] = f32(np.tile(np.asarray(sh_d3, np.float32), 4).reshape(1, -1))

    # final layer: sub-pixel matrix (no BN), per-phase bias shift
    prep["wd4"] = bf(_convT_phase_matrix(p["w_d4"], np.ones((IMG_CHANNEL,))))
    prep["sd4"] = f32(np.tile(np.asarray(p["b_d4"], np.float32), 4).reshape(1, -1))
    return prep


# ----------------------------------------------------------------------------
# Pure-JAX f32 reference (matches the PyTorch module in eval mode)
# ----------------------------------------------------------------------------

def vae_reference(x, p):
    def bn(y, sc_sh):
        sc, sh = sc_sh
        return y * sc + sh

    def conv(y, w, stride):                       # w: OIHW
        return jax.lax.conv_general_dilated(
            y, jnp.transpose(w, (2, 3, 1, 0)), (stride, stride),
            [(1, 1), (1, 1)], dimension_numbers=("NHWC", "HWIO", "NHWC"))

    def convT(y, w):                              # w: (Cin, Cout, 4, 4), s=2, p=1
        wf = jnp.transpose(w[:, :, ::-1, ::-1], (2, 3, 0, 1))
        return jax.lax.conv_general_dilated(
            y, wf, (1, 1), [(2, 2), (2, 2)], lhs_dilation=(2, 2),
            dimension_numbers=("NHWC", "HWIO", "NHWC"))

    lrelu = lambda v: jnp.where(v > 0, v, 0.2 * v)
    relu = lambda v: jnp.maximum(v, 0.0)

    B = x.shape[0]
    h = jnp.transpose(x, (0, 2, 3, 1))
    h = lrelu(bn(conv(h, p["w_e1"], 2), p["bn_e1"]))
    h = lrelu(bn(conv(h, p["w_e2"], 2), p["bn_e2"]))
    h = lrelu(bn(conv(h, p["w_e3"], 2), p["bn_e3"]))
    flat = jnp.transpose(h, (0, 3, 1, 2)).reshape(B, -1)        # torch (c,h,w)
    proj = flat @ p["w_p"].T + p["b_p"]
    mu, log_var = proj[:, :HIDDEN_DIM], proj[:, HIDDEN_DIM:]
    z = mu                                                      # eval mode
    h = jnp.einsum("bi,iohw->bhwo", z, p["w_d1"])               # ConvT on 1x1
    h = relu(bn(h, p["bn_d1"]))
    h = relu(bn(convT(h, p["w_d2"]), p["bn_d2"]))
    h = relu(bn(convT(h, p["w_d3"]), p["bn_d3"]))
    h = jax.nn.sigmoid(convT(h, p["w_d4"]) + p["b_d4"])
    return jnp.transpose(h, (0, 3, 1, 2)), mu, log_var


# ----------------------------------------------------------------------------

if __name__ == "__main__":
    key = jax.random.PRNGKey(0)
    k_param, k_x = jax.random.split(key)
    params = init_params(k_param)
    B = 2
    prep = prepare_params(params, B)               # one-time, outside the jit
    x = jax.random.uniform(k_x, (B, IMG_CHANNEL, IMG_SIZE[0], IMG_SIZE[1]),
                           dtype=jnp.float32)

    rec, mu, log_var = vae_forward(x, prep)
    jax.block_until_ready((rec, mu, log_var))

    assert rec.shape == (B, 1, IMG_SIZE[0], IMG_SIZE[1])
    assert mu.shape == (B, HIDDEN_DIM) and log_var.shape == (B, HIDDEN_DIM)
    assert bool(jnp.all(jnp.isfinite(rec)))
    assert bool(jnp.all((rec >= 0.0) & (rec <= 1.0)))

    # tolerance check against the pure-JAX f32 reference (bf16 MXU operands)
    rec_r, mu_r, lv_r = vae_reference(x, params)
    assert float(jnp.max(jnp.abs(rec - rec_r))) < 8e-2
    assert float(jnp.max(jnp.abs(mu - mu_r))) < 8e-2
    assert float(jnp.max(jnp.abs(log_var - lv_r))) < 8e-2

    print("KERNEL_OK")
</pallas_src>

<mosaic_0001>
module attributes {stable_mosaic.version = 11 : i64} {
  func.func @_fused_vae_kernel(%arg0: i32, %arg1: memref<128x16xbf16, #tpu.memory_space<vmem>>, %arg2: memref<16x32xbf16, #tpu.memory_space<vmem>>, %arg3: memref<1x32xf32, #tpu.memory_space<vmem>>, %arg4: memref<16x32x128xbf16, #tpu.memory_space<vmem>>, %arg5: memref<512x64xbf16, #tpu.memory_space<vmem>>, %arg6: memref<1x64xf32, #tpu.memory_space<vmem>>, %arg7: memref<16x8x32xbf16, #tpu.memory_space<vmem>>, %arg8: memref<1024x128xbf16, #tpu.memory_space<vmem>>, %arg9: memref<1x128xf32, #tpu.memory_space<vmem>>, %arg10: memref<4x2x8xbf16, #tpu.memory_space<vmem>>, %arg11: memref<512x64xbf16, #tpu.memory_space<vmem>>, %arg12: memref<1x64xf32, #tpu.memory_space<vmem>>, %arg13: memref<32x512xbf16, #tpu.memory_space<vmem>>, %arg14: memref<1x512xf32, #tpu.memory_space<vmem>>, %arg15: memref<4x8x2xbf16, #tpu.memory_space<vmem>>, %arg16: memref<9x8x8xbf16, #tpu.memory_space<vmem>>, %arg17: memref<1152x256xbf16, #tpu.memory_space<vmem>>, %arg18: memref<1x256xf32, #tpu.memory_space<vmem>>, %arg19: memref<4x32x8xbf16, #tpu.memory_space<vmem>>, %arg20: memref<9x32x32xbf16, #tpu.memory_space<vmem>>, %arg21: memref<576x128xbf16, #tpu.memory_space<vmem>>, %arg22: memref<1x128xf32, #tpu.memory_space<vmem>>, %arg23: memref<4x128x32xbf16, #tpu.memory_space<vmem>>, %arg24: memref<9x128x128xbf16, #tpu.memory_space<vmem>>, %arg25: memref<288x4xbf16, #tpu.memory_space<vmem>>, %arg26: memref<1x4xf32, #tpu.memory_space<vmem>>, %arg27: memref<2x64xf32, #tpu.memory_space<vmem>>, %arg28: memref<128x4xf32, #tpu.memory_space<vmem>>) attributes {dimension_semantics = [#tpu.dimension_semantics<arbitrary>], iteration_bounds = array<i64: 1>, scalar_prefetch = 0 : i64, scratch_operands = 0 : i64, tpu.core_type = #tpu.core_type<tc>, window_params = [{pipeline_mode = #tpu.pipeline_mode<synchronous>, transform_indices = @transform_0, window_bounds = array<i64: 128, 16>}, {pipeline_mode = #tpu.pipeline_mode<synchronous>, transform_indices = @transform_1, window_bounds = array<i64: 16, 32>}, {pipeline_mode = #tpu.pipeline_mode<synchronous>, transform_indices = @transform_2, window_bounds = array<i64: 1, 32>}, {pipeline_mode = #tpu.pipeline_mode<synchronous>, transform_indices = @transform_3, window_bounds = array<i64: 16, 32, 128>}, {pipeline_mode = #tpu.pipeline_mode<synchronous>, transform_indices = @transform_4, window_bounds = array<i64: 512, 64>}, {pipeline_mode = #tpu.pipeline_mode<synchronous>, transform_indices = @transform_5, window_bounds = array<i64: 1, 64>}, {pipeline_mode = #tpu.pipeline_mode<synchronous>, transform_indices = @transform_6, window_bounds = array<i64: 16, 8, 32>}, {pipeline_mode = #tpu.pipeline_mode<synchronous>, transform_indices = @transform_7, window_bounds = array<i64: 1024, 128>}, {pipeline_mode = #tpu.pipeline_mode<synchronous>, transform_indices = @transform_8, window_bounds = array<i64: 1, 128>}, {pipeline_mode = #tpu.pipeline_mode<synchronous>, transform_indices = @transform_9, window_bounds = array<i64: 4, 2, 8>}, {pipeline_mode = #tpu.pipeline_mode<synchronous>, transform_indices = @transform_10, window_bounds = array<i64: 512, 64>}, {pipeline_mode = #tpu.pipeline_mode<synchronous>, transform_indices = @transform_11, window_bounds = array<i64: 1, 64>}, {pipeline_mode = #tpu.pipeline_mode<synchronous>, transform_indices = @transform_12, window_bounds = array<i64: 32, 512>}, {pipeline_mode = #tpu.pipeline_mode<synchronous>, transform_indices = @transform_13, window_bounds = array<i64: 1, 512>}, {pipeline_mode = #tpu.pipeline_mode<synchronous>, transform_indices = @transform_14, window_bounds = array<i64: 4, 8, 2>}, {pipeline_mode = #tpu.pipeline_mode<synchronous>, transform_indices = @transform_15, window_bounds = array<i64: 9, 8, 8>}, {pipeline_mode = #tpu.pipeline_mode<synchronous>, transform_indices = @transform_16, window_bounds = array<i64: 1152, 256>}, {pipeline_mode = #tpu.pipeline_mode<synchronous>, transform_indices = @transform_17, window_bounds = array<i64: 1, 256>}, {pipeline_mode = #tpu.pipeline_mode<synchronous>, transform_indices = @transform_18, window_bounds = array<i64: 4, 32, 8>}, {pipeline_mode = #tpu.pipeline_mode<synchronous>, transform_indices = @transform_19, window_bounds = array<i64: 9, 32, 32>}, {pipeline_mode = #tpu.pipeline_mode<synchronous>, transform_indices = @transform_20, window_bounds = array<i64: 576, 128>}, {pipeline_mode = #tpu.pipeline_mode<synchronous>, transform_indices = @transform_21, window_bounds = array<i64: 1, 128>}, {pipeline_mode = #tpu.pipeline_mode<synchronous>, transform_indices = @transform_22, window_bounds = array<i64: 4, 128, 32>}, {pipeline_mode = #tpu.pipeline_mode<synchronous>, transform_indices = @transform_23, window_bounds = array<i64: 9, 128, 128>}, {pipeline_mode = #tpu.pipeline_mode<synchronous>, transform_indices = @transform_24, window_bounds = array<i64: 288, 4>}, {pipeline_mode = #tpu.pipeline_mode<synchronous>, transform_indices = @transform_25, window_bounds = array<i64: 1, 4>}, {pipeline_mode = #tpu.pipeline_mode<synchronous>, transform_indices = @transform_26, window_bounds = array<i64: 2, 64>}, {pipeline_mode = #tpu.pipeline_mode<synchronous>, transform_indices = @transform_27, window_bounds = array<i64: 128, 4>}]} {
    %c0 = arith.constant 0 : index
    %c0_0 = arith.constant 0 : index
    %0 = vector.load %arg1[%c0, %c0_0] : memref<128x16xbf16, #tpu.memory_space<vmem>>, vector<128x16xbf16>
    %c0_1 = arith.constant 0 : index
    %c0_2 = arith.constant 0 : index
    %1 = vector.load %arg2[%c0_1, %c0_2] : memref<16x32xbf16, #tpu.memory_space<vmem>>, vector<16x32xbf16>
    %cst = arith.constant dense<0.000000e+00> : vector<128x32xf32>
    %2 = tpu.matmul %0, %1, %cst {dimension_numbers = #tpu.dot_dimension_numbers<[1], [0], [0], [1], [0, 0, 1, 1], [], []>} : vector<128x16xbf16>, vector<16x32xbf16>, vector<128x32xf32> -> vector<128x32xf32>
    %c0_3 = arith.constant 0 : index
    %c0_4 = arith.constant 0 : index
    %3 = vector.load %arg3[%c0_3, %c0_4] : memref<1x32xf32, #tpu.memory_space<vmem>>, vector<1x32xf32>
    %4 = vector.broadcast %3 : vector<1x32xf32> to vector<128x32xf32>
    %5 = arith.addf %2, %4 : vector<128x32xf32>
    %cst_5 = arith.constant 0.000000e+00 : f32
    %6 = vector.broadcast %cst_5 : f32 to vector<128x32xf32>
    %7 = arith.cmpf ogt, %5, %6 : vector<128x32xf32>
    %cst_6 = arith.constant 2.000000e-01 : f32
    %8 = vector.broadcast %cst_6 : f32 to vector<128x32xf32>
    %9 = arith.mulf %8, %5 : vector<128x32xf32>
    %10 = arith.select %7, %5, %9 : vector<128x32xi1>, vector<128x32xf32>
    %11 = arith.truncf %10 : vector<128x32xf32> to vector<128x32xbf16>
    %c0_7 = arith.constant 0 : index
    %c0_8 = arith.constant 0 : index
    %c0_9 = arith.constant 0 : index
    %12 = vector.load %arg4[%c0_7, %c0_8, %c0_9] : memref<16x32x128xbf16, #tpu.memory_space<vmem>>, vector<1x32x128xbf16>
    %13 = vector.shape_cast %12 : vector<1x32x128xbf16> to vector<32x128xbf16>
    %cst_10 = arith.constant dense<0.000000e+00> : vector<32x32xf32>
    %14 = tpu.matmul %13, %11, %cst_10 {dimension_numbers = #tpu.dot_dimension_numbers<[1], [0], [0], [1], [0, 0, 1, 1], [], []>} : vector<32x128xbf16>, vector<128x32xbf16>, vector<32x32xf32> -> vector<32x32xf32>
    %c1 = arith.constant 1 : index
    %c0_11 = arith.constant 0 : index
    %c0_12 = arith.constant 0 : index
    %15 = vector.load %arg4[%c1, %c0_11, %c0_12] : memref<16x32x128xbf16, #tpu.memory_space<vmem>>, vector<1x32x128xbf16>
    %16 = vector.shape_cast %15 : vector<1x32x128xbf16> to vector<32x128xbf16>
    %cst_13 = arith.constant dense<0.000000e+00> : vector<32x32xf32>
    %17 = tpu.matmul %16, %11, %cst_13 {dimension_numbers = #tpu.dot_dimension_numbers<[1], [0], [0], [1], [0, 0, 1, 1], [], []>} : vector<32x128xbf16>, vector<128x32xbf16>, vector<32x32xf32> -> vector<32x32xf32>
    %c2 = arith.constant 2 : index
    %c0_14 = arith.constant 0 : index
    %c0_15 = arith.constant 0 : index
    %18 = vector.load %arg4[%c2, %c0_14, %c0_15] : memref<16x32x128xbf16, #tpu.memory_space<vmem>>, vector<1x32x128xbf16>
    %19 = vector.shape_cast %18 : vector<1x32x128xbf16> to vector<32x128xbf16>
    %cst_16 = arith.constant dense<0.000000e+00> : vector<32x32xf32>
    %20 = tpu.matmul %19, %11, %cst_16 {dimension_numbers = #tpu.dot_dimension_numbers<[1], [0], [0], [1], [0, 0, 1, 1], [], []>} : vector<32x128xbf16>, vector<128x32xbf16>, vector<32x32xf32> -> vector<32x32xf32>
    %c3 = arith.constant 3 : index
    %c0_17 = arith.constant 0 : index
    %c0_18 = arith.constant 0 : index
    %21 = vector.load %arg4[%c3, %c0_17, %c0_18] : memref<16x32x128xbf16, #tpu.memory_space<vmem>>, vector<1x32x128xbf16>
    %22 = vector.shape_cast %21 : vector<1x32x128xbf16> to vector<32x128xbf16>
    %cst_19 = arith.constant dense<0.000000e+00> : vector<32x32xf32>
    %23 = tpu.matmul %22, %11, %cst_19 {dimension_numbers = #tpu.dot_dimension_numbers<[1], [0], [0], [1], [0, 0, 1, 1], [], []>} : vector<32x128xbf16>, vector<128x32xbf16>, vector<32x32xf32> -> vector<32x32xf32>
    %c4 = arith.constant 4 : index
    %c0_20 = arith.constant 0 : index
    %c0_21 = arith.constant 0 : index
    %24 = vector.load %arg4[%c4, %c0_20, %c0_21] : memref<16x32x128xbf16, #tpu.memory_space<vmem>>, vector<1x32x128xbf16>
    %25 = vector.shape_cast %24 : vector<1x32x128xbf16> to vector<32x128xbf16>
    %cst_22 = arith.constant dense<0.000000e+00> : vector<32x32xf32>
    %26 = tpu.matmul %25, %11, %cst_22 {dimension_numbers = #tpu.dot_dimension_numbers<[1], [0], [0], [1], [0, 0, 1, 1], [], []>} : vector<32x128xbf16>, vector<128x32xbf16>, vector<32x32xf32> -> vector<32x32xf32>
    %c5 = arith.constant 5 : index
    %c0_23 = arith.constant 0 : index
    %c0_24 = arith.constant 0 : index
    %27 = vector.load %arg4[%c5, %c0_23, %c0_24] : memref<16x32x128xbf16, #tpu.memory_space<vmem>>, vector<1x32x128xbf16>
    %28 = vector.shape_cast %27 : vector<1x32x128xbf16> to vector<32x128xbf16>
    %cst_25 = arith.constant dense<0.000000e+00> : vector<32x32xf32>
    %29 = tpu.matmul %28, %11, %cst_25 {dimension_numbers = #tpu.dot_dimension_numbers<[1], [0], [0], [1], [0, 0, 1, 1], [], []>} : vector<32x128xbf16>, vector<128x32xbf16>, vector<32x32xf32> -> vector<32x32xf32>
    %c6 = arith.constant 6 : index
    %c0_26 = arith.constant 0 : index
    %c0_27 = arith.constant 0 : index
    %30 = vector.load %arg4[%c6, %c0_26, %c0_27] : memref<16x32x128xbf16, #tpu.memory_space<vmem>>, vector<1x32x128xbf16>
    %31 = vector.shape_cast %30 : vector<1x32x128xbf16> to vector<32x128xbf16>
    %cst_28 = arith.constant dense<0.000000e+00> : vector<32x32xf32>
    %32 = tpu.matmul %31, %11, %cst_28 {dimension_numbers = #tpu.dot_dimension_numbers<[1], [0], [0], [1], [0, 0, 1, 1], [], []>} : vector<32x128xbf16>, vector<128x32xbf16>, vector<32x32xf32> -> vector<32x32xf32>
    %c7 = arith.constant 7 : index
    %c0_29 = arith.constant 0 : index
    %c0_30 = arith.constant 0 : index
    %33 = vector.load %arg4[%c7, %c0_29, %c0_30] : memref<16x32x128xbf16, #tpu.memory_space<vmem>>, vector<1x32x128xbf16>
    %34 = vector.shape_cast %33 : vector<1x32x128xbf16> to vector<32x128xbf16>
    %cst_31 = arith.constant dense<0.000000e+00> : vector<32x32xf32>
    %35 = tpu.matmul %34, %11, %cst_31 {dimension_numbers = #tpu.dot_dimension_numbers<[1], [0], [0], [1], [0, 0, 1, 1], [], []>} : vector<32x128xbf16>, vector<128x32xbf16>, vector<32x32xf32> -> vector<32x32xf32>
    %c8 = arith.constant 8 : index
    %c0_32 = arith.constant 0 : index
    %c0_33 = arith.constant 0 : index
    %36 = vector.load %arg4[%c8, %c0_32, %c0_33] : memref<16x32x128xbf16, #tpu.memory_space<vmem>>, vector<1x32x128xbf16>
    %37 = vector.shape_cast %36 : vector<1x32x128xbf16> to vector<32x128xbf16>
    %cst_34 = arith.constant dense<0.000000e+00> : vector<32x32xf32>
    %38 = tpu.matmul %37, %11, %cst_34 {dimension_numbers = #tpu.dot_dimension_numbers<[1], [0], [0], [1], [0, 0, 1, 1], [], []>} : vector<32x128xbf16>, vector<128x32xbf16>, vector<32x32xf32> -> vector<32x32xf32>
    %c9 = arith.constant 9 : index
    %c0_35 = arith.constant 0 : index
    %c0_36 = arith.constant 0 : index
    %39 = vector.load %arg4[%c9, %c0_35, %c0_36] : memref<16x32x128xbf16, #tpu.memory_space<vmem>>, vector<1x32x128xbf16>
    %40 = vector.shape_cast %39 : vector<1x32x128xbf16> to vector<32x128xbf16>
    %cst_37 = arith.constant dense<0.000000e+00> : vector<32x32xf32>
    %41 = tpu.matmul %40, %11, %cst_37 {dimension_numbers = #tpu.dot_dimension_numbers<[1], [0], [0], [1], [0, 0, 1, 1], [], []>} : vector<32x128xbf16>, vector<128x32xbf16>, vector<32x32xf32> -> vector<32x32xf32>
    %c10 = arith.constant 10 : index
    %c0_38 = arith.constant 0 : index
    %c0_39 = arith.constant 0 : index
    %42 = vector.load %arg4[%c10, %c0_38, %c0_39] : memref<16x32x128xbf16, #tpu.memory_space<vmem>>, vector<1x32x128xbf16>
    %43 = vector.shape_cast %42 : vector<1x32x128xbf16> to vector<32x128xbf16>
    %cst_40 = arith.constant dense<0.000000e+00> : vector<32x32xf32>
    %44 = tpu.matmul %43, %11, %cst_40 {dimension_numbers = #tpu.dot_dimension_numbers<[1], [0], [0], [1], [0, 0, 1, 1], [], []>} : vector<32x128xbf16>, vector<128x32xbf16>, vector<32x32xf32> -> vector<32x32xf32>
    %c11 = arith.constant 11 : index
    %c0_41 = arith.constant 0 : index
    %c0_42 = arith.constant 0 : index
    %45 = vector.load %arg4[%c11, %c0_41, %c0_42] : memref<16x32x128xbf16, #tpu.memory_space<vmem>>, vector<1x32x128xbf16>
    %46 = vector.shape_cast %45 : vector<1x32x128xbf16> to vector<32x128xbf16>
    %cst_43 = arith.constant dense<0.000000e+00> : vector<32x32xf32>
    %47 = tpu.matmul %46, %11, %cst_43 {dimension_numbers = #tpu.dot_dimension_numbers<[1], [0], [0], [1], [0, 0, 1, 1], [], []>} : vector<32x128xbf16>, vector<128x32xbf16>, vector<32x32xf32> -> vector<32x32xf32>
    %c12 = arith.constant 12 : index
    %c0_44 = arith.constant 0 : index
    %c0_45 = arith.constant 0 : index
    %48 = vector.load %arg4[%c12, %c0_44, %c0_45] : memref<16x32x128xbf16, #tpu.memory_space<vmem>>, vector<1x32x128xbf16>
    %49 = vector.shape_cast %48 : vector<1x32x128xbf16> to vector<32x128xbf16>
    %cst_46 = arith.constant dense<0.000000e+00> : vector<32x32xf32>
    %50 = tpu.matmul %49, %11, %cst_46 {dimension_numbers = #tpu.dot_dimension_numbers<[1], [0], [0], [1], [0, 0, 1, 1], [], []>} : vector<32x128xbf16>, vector<128x32xbf16>, vector<32x32xf32> -> vector<32x32xf32>
    %c13 = arith.constant 13 : index
    %c0_47 = arith.constant 0 : index
    %c0_48 = arith.constant 0 : index
    %51 = vector.load %arg4[%c13, %c0_47, %c0_48] : memref<16x32x128xbf16, #tpu.memory_space<vmem>>, vector<1x32x128xbf16>
    %52 = vector.shape_cast %51 : vector<1x32x128xbf16> to vector<32x128xbf16>
    %cst_49 = arith.constant dense<0.000000e+00> : vector<32x32xf32>
    %53 = tpu.matmul %52, %11, %cst_49 {dimension_numbers = #tpu.dot_dimension_numbers<[1], [0], [0], [1], [0, 0, 1, 1], [], []>} : vector<32x128xbf16>, vector<128x32xbf16>, vector<32x32xf32> -> vector<32x32xf32>
    %c14 = arith.constant 14 : index
    %c0_50 = arith.constant 0 : index
    %c0_51 = arith.constant 0 : index
    %54 = vector.load %arg4[%c14, %c0_50, %c0_51] : memref<16x32x128xbf16, #tpu.memory_space<vmem>>, vector<1x32x128xbf16>
    %55 = vector.shape_cast %54 : vector<1x32x128xbf16> to vector<32x128xbf16>
    %cst_52 = arith.constant dense<0.000000e+00> : vector<32x32xf32>
    %56 = tpu.matmul %55, %11, %cst_52 {dimension_numbers = #tpu.dot_dimension_numbers<[1], [0], [0], [1], [0, 0, 1, 1], [], []>} : vector<32x128xbf16>, vector<128x32xbf16>, vector<32x32xf32> -> vector<32x32xf32>
    %c15 = arith.constant 15 : index
    %c0_53 = arith.constant 0 : index
    %c0_54 = arith.constant 0 : index
    %57 = vector.load %arg4[%c15, %c0_53, %c0_54] : memref<16x32x128xbf16, #tpu.memory_space<vmem>>, vector<1x32x128xbf16>
    %58 = vector.shape_cast %57 : vector<1x32x128xbf16> to vector<32x128xbf16>
    %cst_55 = arith.constant dense<0.000000e+00> : vector<32x32xf32>
    %59 = tpu.matmul %58, %11, %cst_55 {dimension_numbers = #tpu.dot_dimension_numbers<[1], [0], [0], [1], [0, 0, 1, 1], [], []>} : vector<32x128xbf16>, vector<128x32xbf16>, vector<32x32xf32> -> vector<32x32xf32>
    %60 = tpu.concatenate %14, %17, %20, %23, %26, %29, %32, %35, %38, %41, %44, %47, %50, %53, %56, %59 in 1 : vector<32x32xf32>, vector<32x32xf32>, vector<32x32xf32>, vector<32x32xf32>, vector<32x32xf32>, vector<32x32xf32>, vector<32x32xf32>, vector<32x32xf32>, vector<32x32xf32>, vector<32x32xf32>, vector<32x32xf32>, vector<32x32xf32>, vector<32x32xf32>, vector<32x32xf32>, vector<32x32xf32>, vector<32x32xf32> -> vector<32x512xf32>
    %61 = arith.truncf %60 : vector<32x512xf32> to vector<32x512xbf16>
    %c0_56 = arith.constant 0 : index
    %c0_57 = arith.constant 0 : index
    %62 = vector.load %arg5[%c0_56, %c0_57] : memref<512x64xbf16, #tpu.memory_space<vmem>>, vector<512x64xbf16>
    %cst_58 = arith.constant dense<0.000000e+00> : vector<32x64xf32>
    %63 = tpu.matmul %61, %62, %cst_58 {dimension_numbers = #tpu.dot_dimension_numbers<[1], [0], [0], [1], [0, 0, 1, 1], [], []>} : vector<32x512xbf16>, vector<512x64xbf16>, vector<32x64xf32> -> vector<32x64xf32>
    %c0_59 = arith.constant 0 : index
    %c0_60 = arith.constant 0 : index
    %64 = vector.load %arg6[%c0_59, %c0_60] : memref<1x64xf32, #tpu.memory_space<vmem>>, vector<1x64xf32>
    %65 = vector.broadcast %64 : vector<1x64xf32> to vector<32x64xf32>
    %66 = arith.addf %63, %65 : vector<32x64xf32>
    %cst_61 = arith.constant 0.000000e+00 : f32
    %67 = vector.broadcast %cst_61 : f32 to vector<32x64xf32>
    %68 = arith.cmpf ogt, %66, %67 : vector<32x64xf32>
    %cst_62 = arith.constant 2.000000e-01 : f32
    %69 = vector.broadcast %cst_62 : f32 to vector<32x64xf32>
    %70 = arith.mulf %69, %66 : vector<32x64xf32>
    %71 = arith.select %68, %66, %70 : vector<32x64xi1>, vector<32x64xf32>
    %72 = arith.truncf %71 : vector<32x64xf32> to vector<32x64xbf16>
    %c0_63 = arith.constant 0 : index
    %c0_64 = arith.constant 0 : index
    %c0_65 = arith.constant 0 : index
    %73 = vector.load %arg7[%c0_63, %c0_64, %c0_65] : memref<16x8x32xbf16, #tpu.memory_space<vmem>>, vector<1x8x32xbf16>
    %74 = vector.shape_cast %73 : vector<1x8x32xbf16> to vector<8x32xbf16>
    %cst_66 = arith.constant dense<0.000000e+00> : vector<8x64xf32>
    %75 = tpu.matmul %74, %72, %cst_66 {dimension_numbers = #tpu.dot_dimension_numbers<[1], [0], [0], [1], [0, 0, 1, 1], [], []>} : vector<8x32xbf16>, vector<32x64xbf16>, vector<8x64xf32> -> vector<8x64xf32>
    %c1_67 = arith.constant 1 : index
    %c0_68 = arith.constant 0 : index
    %c0_69 = arith.constant 0 : index
    %76 = vector.load %arg7[%c1_67, %c0_68, %c0_69] : memref<16x8x32xbf16, #tpu.memory_space<vmem>>, vector<1x8x32xbf16>
    %77 = vector.shape_cast %76 : vector<1x8x32xbf16> to vector<8x32xbf16>
    %cst_70 = arith.constant dense<0.000000e+00> : vector<8x64xf32>
    %78 = tpu.matmul %77, %72, %cst_70 {dimension_numbers = #tpu.dot_dimension_numbers<[1], [0], [0], [1], [0, 0, 1, 1], [], []>} : vector<8x32xbf16>, vector<32x64xbf16>, vector<8x64xf32> -> vector<8x64xf32>
    %c2_71 = arith.constant 2 : index
    %c0_72 = arith.constant 0 : index
    %c0_73 = arith.constant 0 : index
    %79 = vector.load %arg7[%c2_71, %c0_72, %c0_73] : memref<16x8x32xbf16, #tpu.memory_space<vmem>>, vector<1x8x32xbf16>
    %80 = vector.shape_cast %79 : vector<1x8x32xbf16> to vector<8x32xbf16>
    %cst_74 = arith.constant dense<0.000000e+00> : vector<8x64xf32>
    %81 = tpu.matmul %80, %72, %cst_74 {dimension_numbers = #tpu.dot_dimension_numbers<[1], [0], [0], [1], [0, 0, 1, 1], [], []>} : vector<8x32xbf16>, vector<32x64xbf16>, vector<8x64xf32> -> vector<8x64xf32>
    %c3_75 = arith.constant 3 : index
    %c0_76 = arith.constant 0 : index
    %c0_77 = arith.constant 0 : index
    %82 = vector.load %arg7[%c3_75, %c0_76, %c0_77] : memref<16x8x32xbf16, #tpu.memory_space<vmem>>, vector<1x8x32xbf16>
    %83 = vector.shape_cast %82 : vector<1x8x32xbf16> to vector<8x32xbf16>
    %cst_78 = arith.constant dense<0.000000e+00> : vector<8x64xf32>
    %84 = tpu.matmul %83, %72, %cst_78 {dimension_numbers = #tpu.dot_dimension_numbers<[1], [0], [0], [1], [0, 0, 1, 1], [], []>} : vector<8x32xbf16>, vector<32x64xbf16>, vector<8x64xf32> -> vector<8x64xf32>
    %c4_79 = arith.constant 4 : index
    %c0_80 = arith.constant 0 : index
    %c0_81 = arith.constant 0 : index
    %85 = vector.load %arg7[%c4_79, %c0_80, %c0_81] : memref<16x8x32xbf16, #tpu.memory_space<vmem>>, vector<1x8x32xbf16>
    %86 = vector.shape_cast %85 : vector<1x8x32xbf16> to vector<8x32xbf16>
    %cst_82 = arith.constant dense<0.000000e+00> : vector<8x64xf32>
    %87 = tpu.matmul %86, %72, %cst_82 {dimension_numbers = #tpu.dot_dimension_numbers<[1], [0], [0], [1], [0, 0, 1, 1], [], []>} : vector<8x32xbf16>, vector<32x64xbf16>, vector<8x64xf32> -> vector<8x64xf32>
    %c5_83 = arith.constant 5 : index
    %c0_84 = arith.constant 0 : index
    %c0_85 = arith.constant 0 : index
    %88 = vector.load %arg7[%c5_83, %c0_84, %c0_85] : memref<16x8x32xbf16, #tpu.memory_space<vmem>>, vector<1x8x32xbf16>
    %89 = vector.shape_cast %88 : vector<1x8x32xbf16> to vector<8x32xbf16>
    %cst_86 = arith.constant dense<0.000000e+00> : vector<8x64xf32>
    %90 = tpu.matmul %89, %72, %cst_86 {dimension_numbers = #tpu.dot_dimension_numbers<[1], [0], [0], [1], [0, 0, 1, 1], [], []>} : vector<8x32xbf16>, vector<32x64xbf16>, vector<8x64xf32> -> vector<8x64xf32>
    %c6_87 = arith.constant 6 : index
    %c0_88 = arith.constant 0 : index
    %c0_89 = arith.constant 0 : index
    %91 = vector.load %arg7[%c6_87, %c0_88, %c0_89] : memref<16x8x32xbf16, #tpu.memory_space<vmem>>, vector<1x8x32xbf16>
    %92 = vector.shape_cast %91 : vector<1x8x32xbf16> to vector<8x32xbf16>
    %cst_90 = arith.constant dense<0.000000e+00> : vector<8x64xf32>
    %93 = tpu.matmul %92, %72, %cst_90 {dimension_numbers = #tpu.dot_dimension_numbers<[1], [0], [0], [1], [0, 0, 1, 1], [], []>} : vector<8x32xbf16>, vector<32x64xbf16>, vector<8x64xf32> -> vector<8x64xf32>
    %c7_91 = arith.constant 7 : index
    %c0_92 = arith.constant 0 : index
    %c0_93 = arith.constant 0 : index
    %94 = vector.load %arg7[%c7_91, %c0_92, %c0_93] : memref<16x8x32xbf16, #tpu.memory_space<vmem>>, vector<1x8x32xbf16>
    %95 = vector.shape_cast %94 : vector<1x8x32xbf16> to vector<8x32xbf16>
    %cst_94 = arith.constant dense<0.000000e+00> : vector<8x64xf32>
    %96 = tpu.matmul %95, %72, %cst_94 {dimension_numbers = #tpu.dot_dimension_numbers<[1], [0], [0], [1], [0, 0, 1, 1], [], []>} : vector<8x32xbf16>, vector<32x64xbf16>, vector<8x64xf32> -> vector<8x64xf32>
    %c8_95 = arith.constant 8 : index
    %c0_96 = arith.constant 0 : index
    %c0_97 = arith.constant 0 : index
    %97 = vector.load %arg7[%c8_95, %c0_96, %c0_97] : memref<16x8x32xbf16, #tpu.memory_space<vmem>>, vector<1x8x32xbf16>
    %98 = vector.shape_cast %97 : vector<1x8x32xbf16> to vector<8x32xbf16>
    %cst_98 = arith.constant dense<0.000000e+00> : vector<8x64xf32>
    %99 = tpu.matmul %98, %72, %cst_98 {dimension_numbers = #tpu.dot_dimension_numbers<[1], [0], [0], [1], [0, 0, 1, 1], [], []>} : vector<8x32xbf16>, vector<32x64xbf16>, vector<8x64xf32> -> vector<8x64xf32>
    %c9_99 = arith.constant 9 : index
    %c0_100 = arith.constant 0 : index
    %c0_101 = arith.constant 0 : index
    %100 = vector.load %arg7[%c9_99, %c0_100, %c0_101] : memref<16x8x32xbf16, #tpu.memory_space<vmem>>, vector<1x8x32xbf16>
    %101 = vector.shape_cast %100 : vector<1x8x32xbf16> to vector<8x32xbf16>
    %cst_102 = arith.constant dense<0.000000e+00> : vector<8x64xf32>
    %102 = tpu.matmul %101, %72, %cst_102 {dimension_numbers = #tpu.dot_dimension_numbers<[1], [0], [0], [1], [0, 0, 1, 1], [], []>} : vector<8x32xbf16>, vector<32x64xbf16>, vector<8x64xf32> -> vector<8x64xf32>
    %c10_103 = arith.constant 10 : index
    %c0_104 = arith.constant 0 : index
    %c0_105 = arith.constant 0 : index
    %103 = vector.load %arg7[%c10_103, %c0_104, %c0_105] : memref<16x8x32xbf16, #tpu.memory_space<vmem>>, vector<1x8x32xbf16>
    %104 = vector.shape_cast %103 : vector<1x8x32xbf16> to vector<8x32xbf16>
    %cst_106 = arith.constant dense<0.000000e+00> : vector<8x64xf32>
    %105 = tpu.matmul %104, %72, %cst_106 {dimension_numbers = #tpu.dot_dimension_numbers<[1], [0], [0], [1], [0, 0, 1, 1], [], []>} : vector<8x32xbf16>, vector<32x64xbf16>, vector<8x64xf32> -> vector<8x64xf32>
    %c11_107 = arith.constant 11 : index
    %c0_108 = arith.constant 0 : index
    %c0_109 = arith.constant 0 : index
    %106 = vector.load %arg7[%c11_107, %c0_108, %c0_109] : memref<16x8x32xbf16, #tpu.memory_space<vmem>>, vector<1x8x32xbf16>
    %107 = vector.shape_cast %106 : vector<1x8x32xbf16> to vector<8x32xbf16>
    %cst_110 = arith.constant dense<0.000000e+00> : vector<8x64xf32>
    %108 = tpu.matmul %107, %72, %cst_110 {dimension_numbers = #tpu.dot_dimension_numbers<[1], [0], [0], [1], [0, 0, 1, 1], [], []>} : vector<8x32xbf16>, vector<32x64xbf16>, vector<8x64xf32> -> vector<8x64xf32>
    %c12_111 = arith.constant 12 : index
    %c0_112 = arith.constant 0 : index
    %c0_113 = arith.constant 0 : index
    %109 = vector.load %arg7[%c12_111, %c0_112, %c0_113] : memref<16x8x32xbf16, #tpu.memory_space<vmem>>, vector<1x8x32xbf16>
    %110 = vector.shape_cast %109 : vector<1x8x32xbf16> to vector<8x32xbf16>
    %cst_114 = arith.constant dense<0.000000e+00> : vector<8x64xf32>
    %111 = tpu.matmul %110, %72, %cst_114 {dimension_numbers = #tpu.dot_dimension_numbers<[1], [0], [0], [1], [0, 0, 1, 1], [], []>} : vector<8x32xbf16>, vector<32x64xbf16>, vector<8x64xf32> -> vector<8x64xf32>
    %c13_115 = arith.constant 13 : index
    %c0_116 = arith.constant 0 : index
    %c0_117 = arith.constant 0 : index
    %112 = vector.load %arg7[%c13_115, %c0_116, %c0_117] : memref<16x8x32xbf16, #tpu.memory_space<vmem>>, vector<1x8x32xbf16>
    %113 = vector.shape_cast %112 : vector<1x8x32xbf16> to vector<8x32xbf16>
    %cst_118 = arith.constant dense<0.000000e+00> : vector<8x64xf32>
    %114 = tpu.matmul %113, %72, %cst_118 {dimension_numbers = #tpu.dot_dimension_numbers<[1], [0], [0], [1], [0, 0, 1, 1], [], []>} : vector<8x32xbf16>, vector<32x64xbf16>, vector<8x64xf32> -> vector<8x64xf32>
    %c14_119 = arith.constant 14 : index
    %c0_120 = arith.constant 0 : index
    %c0_121 = arith.constant 0 : index
    %115 = vector.load %arg7[%c14_119, %c0_120, %c0_121] : memref<16x8x32xbf16, #tpu.memory_space<vmem>>, vector<1x8x32xbf16>
    %116 = vector.shape_cast %115 : vector<1x8x32xbf16> to vector<8x32xbf16>
    %cst_122 = arith.constant dense<0.000000e+00> : vector<8x64xf32>
    %117 = tpu.matmul %116, %72, %cst_122 {dimension_numbers = #tpu.dot_dimension_numbers<[1], [0], [0], [1], [0, 0, 1, 1], [], []>} : vector<8x32xbf16>, vector<32x64xbf16>, vector<8x64xf32> -> vector<8x64xf32>
    %c15_123 = arith.constant 15 : index
    %c0_124 = arith.constant 0 : index
    %c0_125 = arith.constant 0 : index
    %118 = vector.load %arg7[%c15_123, %c0_124, %c0_125] : memref<16x8x32xbf16, #tpu.memory_space<vmem>>, vector<1x8x32xbf16>
    %119 = vector.shape_cast %118 : vector<1x8x32xbf16> to vector<8x32xbf16>
    %cst_126 = arith.constant dense<0.000000e+00> : vector<8x64xf32>
    %120 = tpu.matmul %119, %72, %cst_126 {dimension_numbers = #tpu.dot_dimension_numbers<[1], [0], [0], [1], [0, 0, 1, 1], [], []>} : vector<8x32xbf16>, vector<32x64xbf16>, vector<8x64xf32> -> vector<8x64xf32>
    %121 = tpu.concatenate %75, %78, %81, %84, %87, %90, %93, %96, %99, %102, %105, %108, %111, %114, %117, %120 in 1 : vector<8x64xf32>, vector<8x64xf32>, vector<8x64xf32>, vector<8x64xf32>, vector<8x64xf32>, vector<8x64xf32>, vector<8x64xf32>, vector<8x64xf32>, vector<8x64xf32>, vector<8x64xf32>, vector<8x64xf32>, vector<8x64xf32>, vector<8x64xf32>, vector<8x64xf32>, vector<8x64xf32>, vector<8x64xf32> -> vector<8x1024xf32>
    %122 = arith.truncf %121 : vector<8x1024xf32> to vector<8x1024xbf16>
    %c0_127 = arith.constant 0 : index
    %c0_128 = arith.constant 0 : index
    %123 = vector.load %arg8[%c0_127, %c0_128] : memref<1024x128xbf16, #tpu.memory_space<vmem>>, vector<1024x128xbf16>
    %cst_129 = arith.constant dense<0.000000e+00> : vector<8x128xf32>
    %124 = tpu.matmul %122, %123, %cst_129 {dimension_numbers = #tpu.dot_dimension_numbers<[1], [0], [0], [1], [0, 0, 1, 1], [], []>} : vector<8x1024xbf16>, vector<1024x128xbf16>, vector<8x128xf32> -> vector<8x128xf32>
    %c0_130 = arith.constant 0 : index
    %c0_131 = arith.constant 0 : index
    %125 = vector.load %arg9[%c0_130, %c0_131] : memref<1x128xf32, #tpu.memory_space<vmem>>, vector<1x128xf32>
    %126 = vector.broadcast %125 : vector<1x128xf32> to vector<8x128xf32>
    %127 = arith.addf %124, %126 : vector<8x128xf32>
    %cst_132 = arith.constant 0.000000e+00 : f32
    %128 = vector.broadcast %cst_132 : f32 to vector<8x128xf32>
    %129 = arith.cmpf ogt, %127, %128 : vector<8x128xf32>
    %cst_133 = arith.constant 2.000000e-01 : f32
    %130 = vector.broadcast %cst_133 : f32 to vector<8x128xf32>
    %131 = arith.mulf %130, %127 : vector<8x128xf32>
    %132 = arith.select %129, %127, %131 : vector<8x128xi1>, vector<8x128xf32>
    %133 = arith.truncf %132 : vector<8x128xf32> to vector<8x128xbf16>
    %c0_134 = arith.constant 0 : index
    %c0_135 = arith.constant 0 : index
    %c0_136 = arith.constant 0 : index
    %134 = vector.load %arg10[%c0_134, %c0_135, %c0_136] : memref<4x2x8xbf16, #tpu.memory_space<vmem>>, vector<1x2x8xbf16>
    %135 = vector.shape_cast %134 : vector<1x2x8xbf16> to vector<2x8xbf16>
    %cst_137 = arith.constant dense<0.000000e+00> : vector<2x128xf32>
    %136 = tpu.matmul %135, %133, %cst_137 {dimension_numbers = #tpu.dot_dimension_numbers<[1], [0], [0], [1], [0, 0, 1, 1], [], []>} : vector<2x8xbf16>, vector<8x128xbf16>, vector<2x128xf32> -> vector<2x128xf32>
    %c1_138 = arith.constant 1 : index
    %c0_139 = arith.constant 0 : index
    %c0_140 = arith.constant 0 : index
    %137 = vector.load %arg10[%c1_138, %c0_139, %c0_140] : memref<4x2x8xbf16, #tpu.memory_space<vmem>>, vector<1x2x8xbf16>
    %138 = vector.shape_cast %137 : vector<1x2x8xbf16> to vector<2x8xbf16>
    %cst_141 = arith.constant dense<0.000000e+00> : vector<2x128xf32>
    %139 = tpu.matmul %138, %133, %cst_141 {dimension_numbers = #tpu.dot_dimension_numbers<[1], [0], [0], [1], [0, 0, 1, 1], [], []>} : vector<2x8xbf16>, vector<8x128xbf16>, vector<2x128xf32> -> vector<2x128xf32>
    %c2_142 = arith.constant 2 : index
    %c0_143 = arith.constant 0 : index
    %c0_144 = arith.constant 0 : index
    %140 = vector.load %arg10[%c2_142, %c0_143, %c0_144] : memref<4x2x8xbf16, #tpu.memory_space<vmem>>, vector<1x2x8xbf16>
    %141 = vector.shape_cast %140 : vector<1x2x8xbf16> to vector<2x8xbf16>
    %cst_145 = arith.constant dense<0.000000e+00> : vector<2x128xf32>
    %142 = tpu.matmul %141, %133, %cst_145 {dimension_numbers = #tpu.dot_dimension_numbers<[1], [0], [0], [1], [0, 0, 1, 1], [], []>} : vector<2x8xbf16>, vector<8x128xbf16>, vector<2x128xf32> -> vector<2x128xf32>
    %c3_146 = arith.constant 3 : index
    %c0_147 = arith.constant 0 : index
    %c0_148 = arith.constant 0 : index
    %143 = vector.load %arg10[%c3_146, %c0_147, %c0_148] : memref<4x2x8xbf16, #tpu.memory_space<vmem>>, vector<1x2x8xbf16>
    %144 = vector.shape_cast %143 : vector<1x2x8xbf16> to vector<2x8xbf16>
    %cst_149 = arith.constant dense<0.000000e+00> : vector<2x128xf32>
    %145 = tpu.matmul %144, %133, %cst_149 {dimension_numbers = #tpu.dot_dimension_numbers<[1], [0], [0], [1], [0, 0, 1, 1], [], []>} : vector<2x8xbf16>, vector<8x128xbf16>, vector<2x128xf32> -> vector<2x128xf32>
    %146 = tpu.concatenate %136, %139, %142, %145 in 1 : vector<2x128xf32>, vector<2x128xf32>, vector<2x128xf32>, vector<2x128xf32> -> vector<2x512xf32>
    %147 = arith.truncf %146 : vector<2x512xf32> to vector<2x512xbf16>
    %c0_150 = arith.constant 0 : index
    %c0_151 = arith.constant 0 : index
    %148 = vector.load %arg11[%c0_150, %c0_151] : memref<512x64xbf16, #tpu.memory_space<vmem>>, vector<512x64xbf16>
    %cst_152 = arith.constant dense<0.000000e+00> : vector<2x64xf32>
    %149 = tpu.matmul %147, %148, %cst_152 {dimension_numbers = #tpu.dot_dimension_numbers<[1], [0], [0], [1], [0, 0, 1, 1], [], []>} : vector<2x512xbf16>, vector<512x64xbf16>, vector<2x64xf32> -> vector<2x64xf32>
    %c0_153 = arith.constant 0 : index
    %c0_154 = arith.constant 0 : index
    %150 = vector.load %arg12[%c0_153, %c0_154] : memref<1x64xf32, #tpu.memory_space<vmem>>, vector<1x64xf32>
    %151 = vector.broadcast %150 : vector<1x64xf32> to vector<2x64xf32>
    %152 = arith.addf %149, %151 : vector<2x64xf32>
    %c0_155 = arith.constant 0 : index
    %c0_156 = arith.constant 0 : index
    %153 = vector.load %arg27[%c0_155, %c0_156] : memref<2x64xf32, #tpu.memory_space<vmem>>, vector<2x64xf32>
    tpu.vector_store %arg27[%c0_155, %c0_156], %152 {strides = array<i32>} : memref<2x64xf32, #tpu.memory_space<vmem>>, vector<2x64xf32>,
    %154 = vector.extract_strided_slice %152 {offsets = [0, 0], sizes = [2, 32], strides = [1, 1]} : vector<2x64xf32> to vector<2x32xf32>
    %155 = arith.truncf %154 : vector<2x32xf32> to vector<2x32xbf16>
    %c0_157 = arith.constant 0 : index
    %c0_158 = arith.constant 0 : index
    %156 = vector.load %arg13[%c0_157, %c0_158] : memref<32x512xbf16, #tpu.memory_space<vmem>>, vector<32x512xbf16>
    %cst_159 = arith.constant dense<0.000000e+00> : vector<2x512xf32>
    %157 = tpu.matmul %155, %156, %cst_159 {dimension_numbers = #tpu.dot_dimension_numbers<[1], [0], [0], [1], [0, 0, 1, 1], [], []>} : vector<2x32xbf16>, vector<32x512xbf16>, vector<2x512xf32> -> vector<2x512xf32>
    %c0_160 = arith.constant 0 : index
    %c0_161 = arith.constant 0 : index
    %158 = vector.load %arg14[%c0_160, %c0_161] : memref<1x512xf32, #tpu.memory_space<vmem>>, vector<1x512xf32>
    %159 = vector.broadcast %158 : vector<1x512xf32> to vector<2x512xf32>
    %160 = arith.addf %157, %159 : vector<2x512xf32>
    %cst_162 = arith.constant 0.000000e+00 : f32
    %161 = vector.broadcast %cst_162 : f32 to vector<2x512xf32>
    %162 = arith.maximumf %160, %161 : vector<2x512xf32>
    %163 = arith.truncf %162 : vector<2x512xf32> to vector<2x512xbf16>
    %c0_163 = arith.constant 0 : index
    %c0_164 = arith.constant 0 : index
    %c0_165 = arith.constant 0 : index
    %164 = vector.load %arg15[%c0_163, %c0_164, %c0_165] : memref<4x8x2xbf16, #tpu.memory_space<vmem>>, vector<1x8x2xbf16>
    %165 = vector.shape_cast %164 : vector<1x8x2xbf16> to vector<8x2xbf16>
    %166 = vector.extract_strided_slice %163 {offsets = [0, 0], sizes = [2, 128], strides = [1, 1]} : vector<2x512xbf16> to vector<2x128xbf16>
    %cst_166 = arith.constant dense<0.000000e+00> : vector<8x128xf32>
    %167 = tpu.matmul %165, %166, %cst_166 {dimension_numbers = #tpu.dot_dimension_numbers<[1], [0], [0], [1], [0, 0, 1, 1], [], []>} : vector<8x2xbf16>, vector<2x128xbf16>, vector<8x128xf32> -> vector<8x128xf32>
    %c1_167 = arith.constant 1 : index
    %c0_168 = arith.constant 0 : index
    %c0_169 = arith.constant 0 : index
    %168 = vector.load %arg15[%c1_167, %c0_168, %c0_169] : memref<4x8x2xbf16, #tpu.memory_space<vmem>>, vector<1x8x2xbf16>
    %169 = vector.shape_cast %168 : vector<1x8x2xbf16> to vector<8x2xbf16>
    %170 = vector.extract_strided_slice %163 {offsets = [0, 128], sizes = [2, 128], strides = [1, 1]} : vector<2x512xbf16> to vector<2x128xbf16>
    %cst_170 = arith.constant dense<0.000000e+00> : vector<8x128xf32>
    %171 = tpu.matmul %169, %170, %cst_170 {dimension_numbers = #tpu.dot_dimension_numbers<[1], [0], [0], [1], [0, 0, 1, 1], [], []>} : vector<8x2xbf16>, vector<2x128xbf16>, vector<8x128xf32> -> vector<8x128xf32>
    %172 = arith.addf %167, %171 : vector<8x128xf32>
    %c2_171 = arith.constant 2 : index
    %c0_172 = arith.constant 0 : index
    %c0_173 = arith.constant 0 : index
    %173 = vector.load %arg15[%c2_171, %c0_172, %c0_173] : memref<4x8x2xbf16, #tpu.memory_space<vmem>>, vector<1x8x2xbf16>
    %174 = vector.shape_cast %173 : vector<1x8x2xbf16> to vector<8x2xbf16>
    %175 = vector.extract_strided_slice %163 {offsets = [0, 256], sizes = [2, 128], strides = [1, 1]} : vector<2x512xbf16> to vector<2x128xbf16>
    %cst_174 = arith.constant dense<0.000000e+00> : vector<8x128xf32>
    %176 = tpu.matmul %174, %175, %cst_174 {dimension_numbers = #tpu.dot_dimension_numbers<[1], [0], [0], [1], [0, 0, 1, 1], [], []>} : vector<8x2xbf16>, vector<2x128xbf16>, vector<8x128xf32> -> vector<8x128xf32>
    %177 = arith.addf %172, %176 : vector<8x128xf32>
    %c3_175 = arith.constant 3 : index
    %c0_176 = arith.constant 0 : index
    %c0_177 = arith.constant 0 : index
    %178 = vector.load %arg15[%c3_175, %c0_176, %c0_177] : memref<4x8x2xbf16, #tpu.memory_space<vmem>>, vector<1x8x2xbf16>
    %179 = vector.shape_cast %178 : vector<1x8x2xbf16> to vector<8x2xbf16>
    %180 = vector.extract_strided_slice %163 {offsets = [0, 384], sizes = [2, 128], strides = [1, 1]} : vector<2x512xbf16> to vector<2x128xbf16>
    %cst_178 = arith.constant dense<0.000000e+00> : vector<8x128xf32>
    %181 = tpu.matmul %179, %180, %cst_178 {dimension_numbers = #tpu.dot_dimension_numbers<[1], [0], [0], [1], [0, 0, 1, 1], [], []>} : vector<8x2xbf16>, vector<2x128xbf16>, vector<8x128xf32> -> vector<8x128xf32>
    %182 = arith.addf %177, %181 : vector<8x128xf32>
    %183 = arith.truncf %182 : vector<8x128xf32> to vector<8x128xbf16>
    %c0_179 = arith.constant 0 : index
    %c0_180 = arith.constant 0 : index
    %c0_181 = arith.constant 0 : index
    %184 = vector.load %arg16[%c0_179, %c0_180, %c0_181] : memref<9x8x8xbf16, #tpu.memory_space<vmem>>, vector<1x8x8xbf16>
    %185 = vector.shape_cast %184 : vector<1x8x8xbf16> to vector<8x8xbf16>
    %cst_182 = arith.constant dense<0.000000e+00> : vector<8x128xf32>
    %186 = tpu.matmul %185, %183, %cst_182 {dimension_numbers = #tpu.dot_dimension_numbers<[1], [0], [0], [1], [0, 0, 1, 1], [], []>} : vector<8x8xbf16>, vector<8x128xbf16>, vector<8x128xf32> -> vector<8x128xf32>
    %c1_183 = arith.constant 1 : index
    %c0_184 = arith.constant 0 : index
    %c0_185 = arith.constant 0 : index
    %187 = vector.load %arg16[%c1_183, %c0_184, %c0_185] : memref<9x8x8xbf16, #tpu.memory_space<vmem>>, vector<1x8x8xbf16>
    %188 = vector.shape_cast %187 : vector<1x8x8xbf16> to vector<8x8xbf16>
    %cst_186 = arith.constant dense<0.000000e+00> : vector<8x128xf32>
    %189 = tpu.matmul %188, %183, %cst_186 {dimension_numbers = #tpu.dot_dimension_numbers<[1], [0], [0], [1], [0, 0, 1, 1], [], []>} : vector<8x8xbf16>, vector<8x128xbf16>, vector<8x128xf32> -> vector<8x128xf32>
    %c2_187 = arith.constant 2 : index
    %c0_188 = arith.constant 0 : index
    %c0_189 = arith.constant 0 : index
    %190 = vector.load %arg16[%c2_187, %c0_188, %c0_189] : memref<9x8x8xbf16, #tpu.memory_space<vmem>>, vector<1x8x8xbf16>
    %191 = vector.shape_cast %190 : vector<1x8x8xbf16> to vector<8x8xbf16>
    %cst_190 = arith.constant dense<0.000000e+00> : vector<8x128xf32>
    %192 = tpu.matmul %191, %183, %cst_190 {dimension_numbers = #tpu.dot_dimension_numbers<[1], [0], [0], [1], [0, 0, 1, 1], [], []>} : vector<8x8xbf16>, vector<8x128xbf16>, vector<8x128xf32> -> vector<8x128xf32>
    %c3_191 = arith.constant 3 : index
    %c0_192 = arith.constant 0 : index
    %c0_193 = arith.constant 0 : index
    %193 = vector.load %arg16[%c3_191, %c0_192, %c0_193] : memref<9x8x8xbf16, #tpu.memory_space<vmem>>, vector<1x8x8xbf16>
    %194 = vector.shape_cast %193 : vector<1x8x8xbf16> to vector<8x8xbf16>
    %cst_194 = arith.constant dense<0.000000e+00> : vector<8x128xf32>
    %195 = tpu.matmul %194, %183, %cst_194 {dimension_numbers = #tpu.dot_dimension_numbers<[1], [0], [0], [1], [0, 0, 1, 1], [], []>} : vector<8x8xbf16>, vector<8x128xbf16>, vector<8x128xf32> -> vector<8x128xf32>
    %c4_195 = arith.constant 4 : index
    %c0_196 = arith.constant 0 : index
    %c0_197 = arith.constant 0 : index
    %196 = vector.load %arg16[%c4_195, %c0_196, %c0_197] : memref<9x8x8xbf16, #tpu.memory_space<vmem>>, vector<1x8x8xbf16>
    %197 = vector.shape_cast %196 : vector<1x8x8xbf16> to vector<8x8xbf16>
    %cst_198 = arith.constant dense<0.000000e+00> : vector<8x128xf32>
    %198 = tpu.matmul %197, %183, %cst_198 {dimension_numbers = #tpu.dot_dimension_numbers<[1], [0], [0], [1], [0, 0, 1, 1], [], []>} : vector<8x8xbf16>, vector<8x128xbf16>, vector<8x128xf32> -> vector<8x128xf32>
    %c5_199 = arith.constant 5 : index
    %c0_200 = arith.constant 0 : index
    %c0_201 = arith.constant 0 : index
    %199 = vector.load %arg16[%c5_199, %c0_200, %c0_201] : memref<9x8x8xbf16, #tpu.memory_space<vmem>>, vector<1x8x8xbf16>
    %200 = vector.shape_cast %199 : vector<1x8x8xbf16> to vector<8x8xbf16>
    %cst_202 = arith.constant dense<0.000000e+00> : vector<8x128xf32>
    %201 = tpu.matmul %200, %183, %cst_202 {dimension_numbers = #tpu.dot_dimension_numbers<[1], [0], [0], [1], [0, 0, 1, 1], [], []>} : vector<8x8xbf16>, vector<8x128xbf16>, vector<8x128xf32> -> vector<8x128xf32>
    %c6_203 = arith.constant 6 : index
    %c0_204 = arith.constant 0 : index
    %c0_205 = arith.constant 0 : index
    %202 = vector.load %arg16[%c6_203, %c0_204, %c0_205] : memref<9x8x8xbf16, #tpu.memory_space<vmem>>, vector<1x8x8xbf16>
    %203 = vector.shape_cast %202 : vector<1x8x8xbf16> to vector<8x8xbf16>
    %cst_206 = arith.constant dense<0.000000e+00> : vector<8x128xf32>
    %204 = tpu.matmul %203, %183, %cst_206 {dimension_numbers = #tpu.dot_dimension_numbers<[1], [0], [0], [1], [0, 0, 1, 1], [], []>} : vector<8x8xbf16>, vector<8x128xbf16>, vector<8x128xf32> -> vector<8x128xf32>
    %c7_207 = arith.constant 7 : index
    %c0_208 = arith.constant 0 : index
    %c0_209 = arith.constant 0 : index
    %205 = vector.load %arg16[%c7_207, %c0_208, %c0_209] : memref<9x8x8xbf16, #tpu.memory_space<vmem>>, vector<1x8x8xbf16>
    %206 = vector.shape_cast %205 : vector<1x8x8xbf16> to vector<8x8xbf16>
    %cst_210 = arith.constant dense<0.000000e+00> : vector<8x128xf32>
    %207 = tpu.matmul %206, %183, %cst_210 {dimension_numbers = #tpu.dot_dimension_numbers<[1], [0], [0], [1], [0, 0, 1, 1], [], []>} : vector<8x8xbf16>, vector<8x128xbf16>, vector<8x128xf32> -> vector<8x128xf32>
    %c8_211 = arith.constant 8 : index
    %c0_212 = arith.constant 0 : index
    %c0_213 = arith.constant 0 : index
    %208 = vector.load %arg16[%c8_211, %c0_212, %c0_213] : memref<9x8x8xbf16, #tpu.memory_space<vmem>>, vector<1x8x8xbf16>
    %209 = vector.shape_cast %208 : vector<1x8x8xbf16> to vector<8x8xbf16>
    %cst_214 = arith.constant dense<0.000000e+00> : vector<8x128xf32>
    %210 = tpu.matmul %209, %183, %cst_214 {dimension_numbers = #tpu.dot_dimension_numbers<[1], [0], [0], [1], [0, 0, 1, 1], [], []>} : vector<8x8xbf16>, vector<8x128xbf16>, vector<8x128xf32> -> vector<8x128xf32>
    %211 = tpu.concatenate %186, %189, %192, %195, %198, %201, %204, %207, %210 in 1 : vector<8x128xf32>, vector<8x128xf32>, vector<8x128xf32>, vector<8x128xf32>, vector<8x128xf32>, vector<8x128xf32>, vector<8x128xf32>, vector<8x128xf32>, vector<8x128xf32> -> vector<8x1152xf32>
    %212 = arith.truncf %211 : vector<8x1152xf32> to vector<8x1152xbf16>
    %c0_215 = arith.constant 0 : index
    %c0_216 = arith.constant 0 : index
    %213 = vector.load %arg17[%c0_215, %c0_216] : memref<1152x256xbf16, #tpu.memory_space<vmem>>, vector<1152x256xbf16>
    %cst_217 = arith.constant dense<0.000000e+00> : vector<8x256xf32>
    %214 = tpu.matmul %212, %213, %cst_217 {dimension_numbers = #tpu.dot_dimension_numbers<[1], [0], [0], [1], [0, 0, 1, 1], [], []>} : vector<8x1152xbf16>, vector<1152x256xbf16>, vector<8x256xf32> -> vector<8x256xf32>
    %c0_218 = arith.constant 0 : index
    %c0_219 = arith.constant 0 : index
    %215 = vector.load %arg18[%c0_218, %c0_219] : memref<1x256xf32, #tpu.memory_space<vmem>>, vector<1x256xf32>
    %216 = vector.broadcast %215 : vector<1x256xf32> to vector<8x256xf32>
    %217 = arith.addf %214, %216 : vector<8x256xf32>
    %cst_220 = arith.constant 0.000000e+00 : f32
    %218 = vector.broadcast %cst_220 : f32 to vector<8x256xf32>
    %219 = arith.maximumf %217, %218 : vector<8x256xf32>
    %220 = arith.truncf %219 : vector<8x256xf32> to vector<8x256xbf16>
    %c0_221 = arith.constant 0 : index
    %c0_222 = arith.constant 0 : index
    %c0_223 = arith.constant 0 : index
    %221 = vector.load %arg19[%c0_221, %c0_222, %c0_223] : memref<4x32x8xbf16, #tpu.memory_space<vmem>>, vector<1x32x8xbf16>
    %222 = vector.shape_cast %221 : vector<1x32x8xbf16> to vector<32x8xbf16>
    %223 = vector.extract_strided_slice %220 {offsets = [0, 0], sizes = [8, 64], strides = [1, 1]} : vector<8x256xbf16> to vector<8x64xbf16>
    %cst_224 = arith.constant dense<0.000000e+00> : vector<32x64xf32>
    %224 = tpu.matmul %222, %223, %cst_224 {dimension_numbers = #tpu.dot_dimension_numbers<[1], [0], [0], [1], [0, 0, 1, 1], [], []>} : vector<32x8xbf16>, vector<8x64xbf16>, vector<32x64xf32> -> vector<32x64xf32>
    %c1_225 = arith.constant 1 : index
    %c0_226 = arith.constant 0 : index
    %c0_227 = arith.constant 0 : index
    %225 = vector.load %arg19[%c1_225, %c0_226, %c0_227] : memref<4x32x8xbf16, #tpu.memory_space<vmem>>, vector<1x32x8xbf16>
    %226 = vector.shape_cast %225 : vector<1x32x8xbf16> to vector<32x8xbf16>
    %227 = vector.extract_strided_slice %220 {offsets = [0, 64], sizes = [8, 64], strides = [1, 1]} : vector<8x256xbf16> to vector<8x64xbf16>
    %cst_228 = arith.constant dense<0.000000e+00> : vector<32x64xf32>
    %228 = tpu.matmul %226, %227, %cst_228 {dimension_numbers = #tpu.dot_dimension_numbers<[1], [0], [0], [1], [0, 0, 1, 1], [], []>} : vector<32x8xbf16>, vector<8x64xbf16>, vector<32x64xf32> -> vector<32x64xf32>
    %229 = arith.addf %224, %228 : vector<32x64xf32>
    %c2_229 = arith.constant 2 : index
    %c0_230 = arith.constant 0 : index
    %c0_231 = arith.constant 0 : index
    %230 = vector.load %arg19[%c2_229, %c0_230, %c0_231] : memref<4x32x8xbf16, #tpu.memory_space<vmem>>, vector<1x32x8xbf16>
    %231 = vector.shape_cast %230 : vector<1x32x8xbf16> to vector<32x8xbf16>
    %232 = vector.extract_strided_slice %220 {offsets = [0, 128], sizes = [8, 64], strides = [1, 1]} : vector<8x256xbf16> to vector<8x64xbf16>
    %cst_232 = arith.constant dense<0.000000e+00> : vector<32x64xf32>
    %233 = tpu.matmul %231, %232, %cst_232 {dimension_numbers = #tpu.dot_dimension_numbers<[1], [0], [0], [1], [0, 0, 1, 1], [], []>} : vector<32x8xbf16>, vector<8x64xbf16>, vector<32x64xf32> -> vector<32x64xf32>
    %234 = arith.addf %229, %233 : vector<32x64xf32>
    %c3_233 = arith.constant 3 : index
    %c0_234 = arith.constant 0 : index
    %c0_235 = arith.constant 0 : index
    %235 = vector.load %arg19[%c3_233, %c0_234, %c0_235] : memref<4x32x8xbf16, #tpu.memory_space<vmem>>, vector<1x32x8xbf16>
    %236 = vector.shape_cast %235 : vector<1x32x8xbf16> to vector<32x8xbf16>
    %237 = vector.extract_strided_slice %220 {offsets = [0, 192], sizes = [8, 64], strides = [1, 1]} : vector<8x256xbf16> to vector<8x64xbf16>
    %cst_236 = arith.constant dense<0.000000e+00> : vector<32x64xf32>
    %238 = tpu.matmul %236, %237, %cst_236 {dimension_numbers = #tpu.dot_dimension_numbers<[1], [0], [0], [1], [0, 0, 1, 1], [], []>} : vector<32x8xbf16>, vector<8x64xbf16>, vector<32x64xf32> -> vector<32x64xf32>
    %239 = arith.addf %234, %238 : vector<32x64xf32>
    %240 = arith.truncf %239 : vector<32x64xf32> to vector<32x64xbf16>
    %c0_237 = arith.constant 0 : index
    %c0_238 = arith.constant 0 : index
    %c0_239 = arith.constant 0 : index
    %241 = vector.load %arg20[%c0_237, %c0_238, %c0_239] : memref<9x32x32xbf16, #tpu.memory_space<vmem>>, vector<1x32x32xbf16>
    %242 = vector.shape_cast %241 : vector<1x32x32xbf16> to vector<32x32xbf16>
    %cst_240 = arith.constant dense<0.000000e+00> : vector<32x64xf32>
    %243 = tpu.matmul %242, %240, %cst_240 {dimension_numbers = #tpu.dot_dimension_numbers<[1], [0], [0], [1], [0, 0, 1, 1], [], []>} : vector<32x32xbf16>, vector<32x64xbf16>, vector<32x64xf32> -> vector<32x64xf32>
    %c1_241 = arith.constant 1 : index
    %c0_242 = arith.constant 0 : index
    %c0_243 = arith.constant 0 : index
    %244 = vector.load %arg20[%c1_241, %c0_242, %c0_243] : memref<9x32x32xbf16, #tpu.memory_space<vmem>>, vector<1x32x32xbf16>
    %245 = vector.shape_cast %244 : vector<1x32x32xbf16> to vector<32x32xbf16>
    %cst_244 = arith.constant dense<0.000000e+00> : vector<32x64xf32>
    %246 = tpu.matmul %245, %240, %cst_244 {dimension_numbers = #tpu.dot_dimension_numbers<[1], [0], [0], [1], [0, 0, 1, 1], [], []>} : vector<32x32xbf16>, vector<32x64xbf16>, vector<32x64xf32> -> vector<32x64xf32>
    %c2_245 = arith.constant 2 : index
    %c0_246 = arith.constant 0 : index
    %c0_247 = arith.constant 0 : index
    %247 = vector.load %arg20[%c2_245, %c0_246, %c0_247] : memref<9x32x32xbf16, #tpu.memory_space<vmem>>, vector<1x32x32xbf16>
    %248 = vector.shape_cast %247 : vector<1x32x32xbf16> to vector<32x32xbf16>
    %cst_248 = arith.constant dense<0.000000e+00> : vector<32x64xf32>
    %249 = tpu.matmul %248, %240, %cst_248 {dimension_numbers = #tpu.dot_dimension_numbers<[1], [0], [0], [1], [0, 0, 1, 1], [], []>} : vector<32x32xbf16>, vector<32x64xbf16>, vector<32x64xf32> -> vector<32x64xf32>
    %c3_249 = arith.constant 3 : index
    %c0_250 = arith.constant 0 : index
    %c0_251 = arith.constant 0 : index
    %250 = vector.load %arg20[%c3_249, %c0_250, %c0_251] : memref<9x32x32xbf16, #tpu.memory_space<vmem>>, vector<1x32x32xbf16>
    %251 = vector.shape_cast %250 : vector<1x32x32xbf16> to vector<32x32xbf16>
    %cst_252 = arith.constant dense<0.000000e+00> : vector<32x64xf32>
    %252 = tpu.matmul %251, %240, %cst_252 {dimension_numbers = #tpu.dot_dimension_numbers<[1], [0], [0], [1], [0, 0, 1, 1], [], []>} : vector<32x32xbf16>, vector<32x64xbf16>, vector<32x64xf32> -> vector<32x64xf32>
    %c4_253 = arith.constant 4 : index
    %c0_254 = arith.constant 0 : index
    %c0_255 = arith.constant 0 : index
    %253 = vector.load %arg20[%c4_253, %c0_254, %c0_255] : memref<9x32x32xbf16, #tpu.memory_space<vmem>>, vector<1x32x32xbf16>
    %254 = vector.shape_cast %253 : vector<1x32x32xbf16> to vector<32x32xbf16>
    %cst_256 = arith.constant dense<0.000000e+00> : vector<32x64xf32>
    %255 = tpu.matmul %254, %240, %cst_256 {dimension_numbers = #tpu.dot_dimension_numbers<[1], [0], [0], [1], [0, 0, 1, 1], [], []>} : vector<32x32xbf16>, vector<32x64xbf16>, vector<32x64xf32> -> vector<32x64xf32>
    %c5_257 = arith.constant 5 : index
    %c0_258 = arith.constant 0 : index
    %c0_259 = arith.constant 0 : index
    %256 = vector.load %arg20[%c5_257, %c0_258, %c0_259] : memref<9x32x32xbf16, #tpu.memory_space<vmem>>, vector<1x32x32xbf16>
    %257 = vector.shape_cast %256 : vector<1x32x32xbf16> to vector<32x32xbf16>
    %cst_260 = arith.constant dense<0.000000e+00> : vector<32x64xf32>
    %258 = tpu.matmul %257, %240, %cst_260 {dimension_numbers = #tpu.dot_dimension_numbers<[1], [0], [0], [1], [0, 0, 1, 1], [], []>} : vector<32x32xbf16>, vector<32x64xbf16>, vector<32x64xf32> -> vector<32x64xf32>
    %c6_261 = arith.constant 6 : index
    %c0_262 = arith.constant 0 : index
    %c0_263 = arith.constant 0 : index
    %259 = vector.load %arg20[%c6_261, %c0_262, %c0_263] : memref<9x32x32xbf16, #tpu.memory_space<vmem>>, vector<1x32x32xbf16>
    %260 = vector.shape_cast %259 : vector<1x32x32xbf16> to vector<32x32xbf16>
    %cst_264 = arith.constant dense<0.000000e+00> : vector<32x64xf32>
    %261 = tpu.matmul %260, %240, %cst_264 {dimension_numbers = #tpu.dot_dimension_numbers<[1], [0], [0], [1], [0, 0, 1, 1], [], []>} : vector<32x32xbf16>, vector<32x64xbf16>, vector<32x64xf32> -> vector<32x64xf32>
    %c7_265 = arith.constant 7 : index
    %c0_266 = arith.constant 0 : index
    %c0_267 = arith.constant 0 : index
    %262 = vector.load %arg20[%c7_265, %c0_266, %c0_267] : memref<9x32x32xbf16, #tpu.memory_space<vmem>>, vector<1x32x32xbf16>
    %263 = vector.shape_cast %262 : vector<1x32x32xbf16> to vector<32x32xbf16>
    %cst_268 = arith.constant dense<0.000000e+00> : vector<32x64xf32>
    %264 = tpu.matmul %263, %240, %cst_268 {dimension_numbers = #tpu.dot_dimension_numbers<[1], [0], [0], [1], [0, 0, 1, 1], [], []>} : vector<32x32xbf16>, vector<32x64xbf16>, vector<32x64xf32> -> vector<32x64xf32>
    %c8_269 = arith.constant 8 : index
    %c0_270 = arith.constant 0 : index
    %c0_271 = arith.constant 0 : index
    %265 = vector.load %arg20[%c8_269, %c0_270, %c0_271] : memref<9x32x32xbf16, #tpu.memory_space<vmem>>, vector<1x32x32xbf16>
    %266 = vector.shape_cast %265 : vector<1x32x32xbf16> to vector<32x32xbf16>
    %cst_272 = arith.constant dense<0.000000e+00> : vector<32x64xf32>
    %267 = tpu.matmul %266, %240, %cst_272 {dimension_numbers = #tpu.dot_dimension_numbers<[1], [0], [0], [1], [0, 0, 1, 1], [], []>} : vector<32x32xbf16>, vector<32x64xbf16>, vector<32x64xf32> -> vector<32x64xf32>
    %268 = tpu.concatenate %243, %246, %249, %252, %255, %258, %261, %264, %267 in 1 : vector<32x64xf32>, vector<32x64xf32>, vector<32x64xf32>, vector<32x64xf32>, vector<32x64xf32>, vector<32x64xf32>, vector<32x64xf32>, vector<32x64xf32>, vector<32x64xf32> -> vector<32x576xf32>
    %269 = arith.truncf %268 : vector<32x576xf32> to vector<32x576xbf16>
    %c0_273 = arith.constant 0 : index
    %c0_274 = arith.constant 0 : index
    %270 = vector.load %arg21[%c0_273, %c0_274] : memref<576x128xbf16, #tpu.memory_space<vmem>>, vector<576x128xbf16>
    %cst_275 = arith.constant dense<0.000000e+00> : vector<32x128xf32>
    %271 = tpu.matmul %269, %270, %cst_275 {dimension_numbers = #tpu.dot_dimension_numbers<[1], [0], [0], [1], [0, 0, 1, 1], [], []>} : vector<32x576xbf16>, vector<576x128xbf16>, vector<32x128xf32> -> vector<32x128xf32>
    %c0_276 = arith.constant 0 : index
    %c0_277 = arith.constant 0 : index
    %272 = vector.load %arg22[%c0_276, %c0_277] : memref<1x128xf32, #tpu.memory_space<vmem>>, vector<1x128xf32>
    %273 = vector.broadcast %272 : vector<1x128xf32> to vector<32x128xf32>
    %274 = arith.addf %271, %273 : vector<32x128xf32>
    %cst_278 = arith.constant 0.000000e+00 : f32
    %275 = vector.broadcast %cst_278 : f32 to vector<32x128xf32>
    %276 = arith.maximumf %274, %275 : vector<32x128xf32>
    %277 = arith.truncf %276 : vector<32x128xf32> to vector<32x128xbf16>
    %c0_279 = arith.constant 0 : index
    %c0_280 = arith.constant 0 : index
    %c0_281 = arith.constant 0 : index
    %278 = vector.load %arg23[%c0_279, %c0_280, %c0_281] : memref<4x128x32xbf16, #tpu.memory_space<vmem>>, vector<1x128x32xbf16>
    %279 = vector.shape_cast %278 : vector<1x128x32xbf16> to vector<128x32xbf16>
    %280 = vector.extract_strided_slice %277 {offsets = [0, 0], sizes = [32, 32], strides = [1, 1]} : vector<32x128xbf16> to vector<32x32xbf16>
    %cst_282 = arith.constant dense<0.000000e+00> : vector<128x32xf32>
    %281 = tpu.matmul %279, %280, %cst_282 {dimension_numbers = #tpu.dot_dimension_numbers<[1], [0], [0], [1], [0, 0, 1, 1], [], []>} : vector<128x32xbf16>, vector<32x32xbf16>, vector<128x32xf32> -> vector<128x32xf32>
    %c1_283 = arith.constant 1 : index
    %c0_284 = arith.constant 0 : index
    %c0_285 = arith.constant 0 : index
    %282 = vector.load %arg23[%c1_283, %c0_284, %c0_285] : memref<4x128x32xbf16, #tpu.memory_space<vmem>>, vector<1x128x32xbf16>
    %283 = vector.shape_cast %282 : vector<1x128x32xbf16> to vector<128x32xbf16>
    %284 = vector.extract_strided_slice %277 {offsets = [0, 32], sizes = [32, 32], strides = [1, 1]} : vector<32x128xbf16> to vector<32x32xbf16>
    %cst_286 = arith.constant dense<0.000000e+00> : vector<128x32xf32>
    %285 = tpu.matmul %283, %284, %cst_286 {dimension_numbers = #tpu.dot_dimension_numbers<[1], [0], [0], [1], [0, 0, 1, 1], [], []>} : vector<128x32xbf16>, vector<32x32xbf16>, vector<128x32xf32> -> vector<128x32xf32>
    %286 = arith.addf %281, %285 : vector<128x32xf32>
    %c2_287 = arith.constant 2 : index
    %c0_288 = arith.constant 0 : index
    %c0_289 = arith.constant 0 : index
    %287 = vector.load %arg23[%c2_287, %c0_288, %c0_289] : memref<4x128x32xbf16, #tpu.memory_space<vmem>>, vector<1x128x32xbf16>
    %288 = vector.shape_cast %287 : vector<1x128x32xbf16> to vector<128x32xbf16>
    %289 = vector.extract_strided_slice %277 {offsets = [0, 64], sizes = [32, 32], strides = [1, 1]} : vector<32x128xbf16> to vector<32x32xbf16>
    %cst_290 = arith.constant dense<0.000000e+00> : vector<128x32xf32>
    %290 = tpu.matmul %288, %289, %cst_290 {dimension_numbers = #tpu.dot_dimension_numbers<[1], [0], [0], [1], [0, 0, 1, 1], [], []>} : vector<128x32xbf16>, vector<32x32xbf16>, vector<128x32xf32> -> vector<128x32xf32>
    %291 = arith.addf %286, %290 : vector<128x32xf32>
    %c3_291 = arith.constant 3 : index
    %c0_292 = arith.constant 0 : index
    %c0_293 = arith.constant 0 : index
    %292 = vector.load %arg23[%c3_291, %c0_292, %c0_293] : memref<4x128x32xbf16, #tpu.memory_space<vmem>>, vector<1x128x32xbf16>
    %293 = vector.shape_cast %292 : vector<1x128x32xbf16> to vector<128x32xbf16>
    %294 = vector.extract_strided_slice %277 {offsets = [0, 96], sizes = [32, 32], strides = [1, 1]} : vector<32x128xbf16> to vector<32x32xbf16>
    %cst_294 = arith.constant dense<0.000000e+00> : vector<128x32xf32>
    %295 = tpu.matmul %293, %294, %cst_294 {dimension_numbers = #tpu.dot_dimension_numbers<[1], [0], [0], [1], [0, 0, 1, 1], [], []>} : vector<128x32xbf16>, vector<32x32xbf16>, vector<128x32xf32> -> vector<128x32xf32>
    %296 = arith.addf %291, %295 : vector<128x32xf32>
    %297 = arith.truncf %296 : vector<128x32xf32> to vector<128x32xbf16>
    %c0_295 = arith.constant 0 : index
    %c0_296 = arith.constant 0 : index
    %c0_297 = arith.constant 0 : index
    %298 = vector.load %arg24[%c0_295, %c0_296, %c0_297] : memref<9x128x128xbf16, #tpu.memory_space<vmem>>, vector<1x128x128xbf16>
    %299 = vector.shape_cast %298 : vector<1x128x128xbf16> to vector<128x128xbf16>
    %cst_298 = arith.constant dense<0.000000e+00> : vector<128x32xf32>
    %300 = tpu.matmul %299, %297, %cst_298 {dimension_numbers = #tpu.dot_dimension_numbers<[1], [0], [0], [1], [0, 0, 1, 1], [], []>} : vector<128x128xbf16>, vector<128x32xbf16>, vector<128x32xf32> -> vector<128x32xf32>
    %c1_299 = arith.constant 1 : index
    %c0_300 = arith.constant 0 : index
    %c0_301 = arith.constant 0 : index
    %301 = vector.load %arg24[%c1_299, %c0_300, %c0_301] : memref<9x128x128xbf16, #tpu.memory_space<vmem>>, vector<1x128x128xbf16>
    %302 = vector.shape_cast %301 : vector<1x128x128xbf16> to vector<128x128xbf16>
    %cst_302 = arith.constant dense<0.000000e+00> : vector<128x32xf32>
    %303 = tpu.matmul %302, %297, %cst_302 {dimension_numbers = #tpu.dot_dimension_numbers<[1], [0], [0], [1], [0, 0, 1, 1], [], []>} : vector<128x128xbf16>, vector<128x32xbf16>, vector<128x32xf32> -> vector<128x32xf32>
    %c2_303 = arith.constant 2 : index
    %c0_304 = arith.constant 0 : index
    %c0_305 = arith.constant 0 : index
    %304 = vector.load %arg24[%c2_303, %c0_304, %c0_305] : memref<9x128x128xbf16, #tpu.memory_space<vmem>>, vector<1x128x128xbf16>
    %305 = vector.shape_cast %304 : vector<1x128x128xbf16> to vector<128x128xbf16>
    %cst_306 = arith.constant dense<0.000000e+00> : vector<128x32xf32>
    %306 = tpu.matmul %305, %297, %cst_306 {dimension_numbers = #tpu.dot_dimension_numbers<[1], [0], [0], [1], [0, 0, 1, 1], [], []>} : vector<128x128xbf16>, vector<128x32xbf16>, vector<128x32xf32> -> vector<128x32xf32>
    %c3_307 = arith.constant 3 : index
    %c0_308 = arith.constant 0 : index
    %c0_309 = arith.constant 0 : index
    %307 = vector.load %arg24[%c3_307, %c0_308, %c0_309] : memref<9x128x128xbf16, #tpu.memory_space<vmem>>, vector<1x128x128xbf16>
    %308 = vector.shape_cast %307 : vector<1x128x128xbf16> to vector<128x128xbf16>
    %cst_310 = arith.constant dense<0.000000e+00> : vector<128x32xf32>
    %309 = tpu.matmul %308, %297, %cst_310 {dimension_numbers = #tpu.dot_dimension_numbers<[1], [0], [0], [1], [0, 0, 1, 1], [], []>} : vector<128x128xbf16>, vector<128x32xbf16>, vector<128x32xf32> -> vector<128x32xf32>
    %c4_311 = arith.constant 4 : index
    %c0_312 = arith.constant 0 : index
    %c0_313 = arith.constant 0 : index
    %310 = vector.load %arg24[%c4_311, %c0_312, %c0_313] : memref<9x128x128xbf16, #tpu.memory_space<vmem>>, vector<1x128x128xbf16>
    %311 = vector.shape_cast %310 : vector<1x128x128xbf16> to vector<128x128xbf16>
    %cst_314 = arith.constant dense<0.000000e+00> : vector<128x32xf32>
    %312 = tpu.matmul %311, %297, %cst_314 {dimension_numbers = #tpu.dot_dimension_numbers<[1], [0], [0], [1], [0, 0, 1, 1], [], []>} : vector<128x128xbf16>, vector<128x32xbf16>, vector<128x32xf32> -> vector<128x32xf32>
    %c5_315 = arith.constant 5 : index
    %c0_316 = arith.constant 0 : index
    %c0_317 = arith.constant 0 : index
    %313 = vector.load %arg24[%c5_315, %c0_316, %c0_317] : memref<9x128x128xbf16, #tpu.memory_space<vmem>>, vector<1x128x128xbf16>
    %314 = vector.shape_cast %313 : vector<1x128x128xbf16> to vector<128x128xbf16>
    %cst_318 = arith.constant dense<0.000000e+00> : vector<128x32xf32>
    %315 = tpu.matmul %314, %297, %cst_318 {dimension_numbers = #tpu.dot_dimension_numbers<[1], [0], [0], [1], [0, 0, 1, 1], [], []>} : vector<128x128xbf16>, vector<128x32xbf16>, vector<128x32xf32> -> vector<128x32xf32>
    %c6_319 = arith.constant 6 : index
    %c0_320 = arith.constant 0 : index
    %c0_321 = arith.constant 0 : index
    %316 = vector.load %arg24[%c6_319, %c0_320, %c0_321] : memref<9x128x128xbf16, #tpu.memory_space<vmem>>, vector<1x128x128xbf16>
    %317 = vector.shape_cast %316 : vector<1x128x128xbf16> to vector<128x128xbf16>
    %cst_322 = arith.constant dense<0.000000e+00> : vector<128x32xf32>
    %318 = tpu.matmul %317, %297, %cst_322 {dimension_numbers = #tpu.dot_dimension_numbers<[1], [0], [0], [1], [0, 0, 1, 1], [], []>} : vector<128x128xbf16>, vector<128x32xbf16>, vector<128x32xf32> -> vector<128x32xf32>
    %c7_323 = arith.constant 7 : index
    %c0_324 = arith.constant 0 : index
    %c0_325 = arith.constant 0 : index
    %319 = vector.load %arg24[%c7_323, %c0_324, %c0_325] : memref<9x128x128xbf16, #tpu.memory_space<vmem>>, vector<1x128x128xbf16>
    %320 = vector.shape_cast %319 : vector<1x128x128xbf16> to vector<128x128xbf16>
    %cst_326 = arith.constant dense<0.000000e+00> : vector<128x32xf32>
    %321 = tpu.matmul %320, %297, %cst_326 {dimension_numbers = #tpu.dot_dimension_numbers<[1], [0], [0], [1], [0, 0, 1, 1], [], []>} : vector<128x128xbf16>, vector<128x32xbf16>, vector<128x32xf32> -> vector<128x32xf32>
    %c8_327 = arith.constant 8 : index
    %c0_328 = arith.constant 0 : index
    %c0_329 = arith.constant 0 : index
    %322 = vector.load %arg24[%c8_327, %c0_328, %c0_329] : memref<9x128x128xbf16, #tpu.memory_space<vmem>>, vector<1x128x128xbf16>
    %323 = vector.shape_cast %322 : vector<1x128x128xbf16> to vector<128x128xbf16>
    %cst_330 = arith.constant dense<0.000000e+00> : vector<128x32xf32>
    %324 = tpu.matmul %323, %297, %cst_330 {dimension_numbers = #tpu.dot_dimension_numbers<[1], [0], [0], [1], [0, 0, 1, 1], [], []>} : vector<128x128xbf16>, vector<128x32xbf16>, vector<128x32xf32> -> vector<128x32xf32>
    %325 = tpu.concatenate %300, %303, %306, %309, %312, %315, %318, %321, %324 in 1 : vector<128x32xf32>, vector<128x32xf32>, vector<128x32xf32>, vector<128x32xf32>, vector<128x32xf32>, vector<128x32xf32>, vector<128x32xf32>, vector<128x32xf32>, vector<128x32xf32> -> vector<128x288xf32>
    %326 = arith.truncf %325 : vector<128x288xf32> to vector<128x288xbf16>
    %c0_331 = arith.constant 0 : index
    %c0_332 = arith.constant 0 : index
    %327 = vector.load %arg25[%c0_331, %c0_332] : memref<288x4xbf16, #tpu.memory_space<vmem>>, vector<288x4xbf16>
    %cst_333 = arith.constant dense<0.000000e+00> : vector<128x4xf32>
    %328 = tpu.matmul %326, %327, %cst_333 {dimension_numbers = #tpu.dot_dimension_numbers<[1], [0], [0], [1], [0, 0, 1, 1], [], []>} : vector<128x288xbf16>, vector<288x4xbf16>, vector<128x4xf32> -> vector<128x4xf32>
    %c0_334 = arith.constant 0 : index
    %c0_335 = arith.constant 0 : index
    %329 = vector.load %arg26[%c0_334, %c0_335] : memref<1x4xf32, #tpu.memory_space<vmem>>, vector<1x4xf32>
    %330 = vector.broadcast %329 : vector<1x4xf32> to vector<128x4xf32>
    %331 = arith.addf %328, %330 : vector<128x4xf32>
    %332 = arith.negf %331 : vector<128x4xf32>
    %333 = math.exp %332 : vector<128x4xf32>
    %cst_336 = arith.constant 1.000000e+00 : f32
    %334 = vector.broadcast %cst_336 : f32 to vector<128x4xf32>
    %335 = arith.addf %334, %333 : vector<128x4xf32>
    %336 = arith.divf %334, %335 : vector<128x4xf32>
    %c0_337 = arith.constant 0 : index
    %c0_338 = arith.constant 0 : index
    %337 = vector.load %arg28[%c0_337, %c0_338] : memref<128x4xf32, #tpu.memory_space<vmem>>, vector<128x4xf32>
    tpu.vector_store %arg28[%c0_337, %c0_338], %336 {strides = array<i32>} : memref<128x4xf32, #tpu.memory_space<vmem>>, vector<128x4xf32>,
    return
  }
  func.func @transform_0(%arg0: i32) -> (i32, i32) {
    %c0_i32 = arith.constant 0 : i32
    %c0_i32_0 = arith.constant 0 : i32
    %c0_i32_1 = arith.constant 0 : i32
    return %c0_i32, %c0_i32_0 : i32, i32
  }
  func.func @transform_1(%arg0: i32) -> (i32, i32) {
    %c0_i32 = arith.constant 0 : i32
    %c0_i32_0 = arith.constant 0 : i32
    %c0_i32_1 = arith.constant 0 : i32
    return %c0_i32, %c0_i32_0 : i32, i32
  }
  func.func @transform_2(%arg0: i32) -> (i32, i32) {
    %c0_i32 = arith.constant 0 : i32
    %c0_i32_0 = arith.constant 0 : i32
    %c0_i32_1 = arith.constant 0 : i32
    return %c0_i32, %c0_i32_0 : i32, i32
  }
  func.func @transform_3(%arg0: i32) -> (i32, i32, i32) {
    %c0_i32 = arith.constant 0 : i32
    %c0_i32_0 = arith.constant 0 : i32
    %c0_i32_1 = arith.constant 0 : i32
    %c0_i32_2 = arith.constant 0 : i32
    return %c0_i32, %c0_i32_0, %c0_i32_1 : i32, i32, i32
  }
  func.func @transform_4(%arg0: i32) -> (i32, i32) {
    %c0_i32 = arith.constant 0 : i32
    %c0_i32_0 = arith.constant 0 : i32
    %c0_i32_1 = arith.constant 0 : i32
    return %c0_i32, %c0_i32_0 : i32, i32
  }
  func.func @transform_5(%arg0: i32) -> (i32, i32) {
    %c0_i32 = arith.constant 0 : i32
    %c0_i32_0 = arith.constant 0 : i32
    %c0_i32_1 = arith.constant 0 : i32
    return %c0_i32, %c0_i32_0 : i32, i32
  }
  func.func @transform_6(%arg0: i32) -> (i32, i32, i32) {
    %c0_i32 = arith.constant 0 : i32
    %c0_i32_0 = arith.constant 0 : i32
    %c0_i32_1 = arith.constant 0 : i32
    %c0_i32_2 = arith.constant 0 : i32
    return %c0_i32, %c0_i32_0, %c0_i32_1 : i32, i32, i32
  }
  func.func @transform_7(%arg0: i32) -> (i32, i32) {
    %c0_i32 = arith.constant 0 : i32
    %c0_i32_0 = arith.constant 0 : i32
    %c0_i32_1 = arith.constant 0 : i32
    return %c0_i32, %c0_i32_0 : i32, i32
  }
  func.func @transform_8(%arg0: i32) -> (i32, i32) {
    %c0_i32 = arith.constant 0 : i32
    %c0_i32_0 = arith.constant 0 : i32
    %c0_i32_1 = arith.constant 0 : i32
    return %c0_i32, %c0_i32_0 : i32, i32
  }
  func.func @transform_9(%arg0: i32) -> (i32, i32, i32) {
    %c0_i32 = arith.constant 0 : i32
    %c0_i32_0 = arith.constant 0 : i32
    %c0_i32_1 = arith.constant 0 : i32
    %c0_i32_2 = arith.constant 0 : i32
    return %c0_i32, %c0_i32_0, %c0_i32_1 : i32, i32, i32
  }
  func.func @transform_10(%arg0: i32) -> (i32, i32) {
    %c0_i32 = arith.constant 0 : i32
    %c0_i32_0 = arith.constant 0 : i32
    %c0_i32_1 = arith.constant 0 : i32
    return %c0_i32, %c0_i32_0 : i32, i32
  }
  func.func @transform_11(%arg0: i32) -> (i32, i32) {
    %c0_i32 = arith.constant 0 : i32
    %c0_i32_0 = arith.constant 0 : i32
    %c0_i32_1 = arith.constant 0 : i32
    return %c0_i32, %c0_i32_0 : i32, i32
  }
  func.func @transform_12(%arg0: i32) -> (i32, i32) {
    %c0_i32 = arith.constant 0 : i32
    %c0_i32_0 = arith.constant 0 : i32
    %c0_i32_1 = arith.constant 0 : i32
    return %c0_i32, %c0_i32_0 : i32, i32
  }
  func.func @transform_13(%arg0: i32) -> (i32, i32) {
    %c0_i32 = arith.constant 0 : i32
    %c0_i32_0 = arith.constant 0 : i32
    %c0_i32_1 = arith.constant 0 : i32
    return %c0_i32, %c0_i32_0 : i32, i32
  }
  func.func @transform_14(%arg0: i32) -> (i32, i32, i32) {
    %c0_i32 = arith.constant 0 : i32
    %c0_i32_0 = arith.constant 0 : i32
    %c0_i32_1 = arith.constant 0 : i32
    %c0_i32_2 = arith.constant 0 : i32
    return %c0_i32, %c0_i32_0, %c0_i32_1 : i32, i32, i32
  }
  func.func @transform_15(%arg0: i32) -> (i32, i32, i32) {
    %c0_i32 = arith.constant 0 : i32
    %c0_i32_0 = arith.constant 0 : i32
    %c0_i32_1 = arith.constant 0 : i32
    %c0_i32_2 = arith.constant 0 : i32
    return %c0_i32, %c0_i32_0, %c0_i32_1 : i32, i32, i32
  }
  func.func @transform_16(%arg0: i32) -> (i32, i32) {
    %c0_i32 = arith.constant 0 : i32
    %c0_i32_0 = arith.constant 0 : i32
    %c0_i32_1 = arith.constant 0 : i32
    return %c0_i32, %c0_i32_0 : i32, i32
  }
  func.func @transform_17(%arg0: i32) -> (i32, i32) {
    %c0_i32 = arith.constant 0 : i32
    %c0_i32_0 = arith.constant 0 : i32
    %c0_i32_1 = arith.constant 0 : i32
    return %c0_i32, %c0_i32_0 : i32, i32
  }
  func.func @transform_18(%arg0: i32) -> (i32, i32, i32) {
    %c0_i32 = arith.constant 0 : i32
    %c0_i32_0 = arith.constant 0 : i32
    %c0_i32_1 = arith.constant 0 : i32
    %c0_i32_2 = arith.constant 0 : i32
    return %c0_i32, %c0_i32_0, %c0_i32_1 : i32, i32, i32
  }
  func.func @transform_19(%arg0: i32) -> (i32, i32, i32) {
    %c0_i32 = arith.constant 0 : i32
    %c0_i32_0 = arith.constant 0 : i32
    %c0_i32_1 = arith.constant 0 : i32
    %c0_i32_2 = arith.constant 0 : i32
    return %c0_i32, %c0_i32_0, %c0_i32_1 : i32, i32, i32
  }
  func.func @transform_20(%arg0: i32) -> (i32, i32) {
    %c0_i32 = arith.constant 0 : i32
    %c0_i32_0 = arith.constant 0 : i32
    %c0_i32_1 = arith.constant 0 : i32
    return %c0_i32, %c0_i32_0 : i32, i32
  }
  func.func @transform_21(%arg0: i32) -> (i32, i32) {
    %c0_i32 = arith.constant 0 : i32
    %c0_i32_0 = arith.constant 0 : i32
    %c0_i32_1 = arith.constant 0 : i32
    return %c0_i32, %c0_i32_0 : i32, i32
  }
  func.func @transform_22(%arg0: i32) -> (i32, i32, i32) {
    %c0_i32 = arith.constant 0 : i32
    %c0_i32_0 = arith.constant 0 : i32
    %c0_i32_1 = arith.constant 0 : i32
    %c0_i32_2 = arith.constant 0 : i32
    return %c0_i32, %c0_i32_0, %c0_i32_1 : i32, i32, i32
  }
  func.func @transform_23(%arg0: i32) -> (i32, i32, i32) {
    %c0_i32 = arith.constant 0 : i32
    %c0_i32_0 = arith.constant 0 : i32
    %c0_i32_1 = arith.constant 0 : i32
    %c0_i32_2 = arith.constant 0 : i32
    return %c0_i32, %c0_i32_0, %c0_i32_1 : i32, i32, i32
  }
  func.func @transform_24(%arg0: i32) -> (i32, i32) {
    %c0_i32 = arith.constant 0 : i32
    %c0_i32_0 = arith.constant 0 : i32
    %c0_i32_1 = arith.constant 0 : i32
    return %c0_i32, %c0_i32_0 : i32, i32
  }
  func.func @transform_25(%arg0: i32) -> (i32, i32) {
    %c0_i32 = arith.constant 0 : i32
    %c0_i32_0 = arith.constant 0 : i32
    %c0_i32_1 = arith.constant 0 : i32
    return %c0_i32, %c0_i32_0 : i32, i32
  }
  func.func @transform_26(%arg0: i32) -> (i32, i32) {
    %c0_i32 = arith.constant 0 : i32
    %c0_i32_0 = arith.constant 0 : i32
    %c0_i32_1 = arith.constant 0 : i32
    return %c0_i32, %c0_i32_0 : i32, i32
  }
  func.func @transform_27(%arg0: i32) -> (i32, i32) {
    %c0_i32 = arith.constant 0 : i32
    %c0_i32_0 = arith.constant 0 : i32
    %c0_i32_1 = arith.constant 0 : i32
    return %c0_i32, %c0_i32_0 : i32, i32
  }
}

</mosaic_0001>

<llo_original>
// kernel: vae_forward.1
$region0: #{vae_forward.1}
  #allocation0 [shape = 'u32[]', space=smem, size = 0x4, offset = 0x4, fixed_abs, tag = 'smem constant byte address 0x4 - core index']
  #allocation1 [shape = 'u32[144,128]{1,0:T(1,128)}', space=vmem, size = 0x12000, scoped, tag = 'internal scratch']
  %s0 = inlined_call_operand.vmem [shape: bf16[128,16], index: 0, kind: input, shape index: {}]
  %s1 = inlined_call_operand.vmem [shape: bf16[16,32], index: 1, kind: input, shape index: {}]
  %s2 = inlined_call_operand.hbm [shape: f32[1,32], index: 2, kind: input, shape index: {}]
  %s3 = inlined_call_operand.hbm [shape: bf16[16,32,128], index: 3, kind: input, shape index: {}]
  %s4 = inlined_call_operand.vmem [shape: bf16[512,64], index: 4, kind: input, shape index: {}]
  %s5 = inlined_call_operand.hbm [shape: f32[1,64], index: 5, kind: input, shape index: {}]
  %s6 = inlined_call_operand.hbm [shape: bf16[16,8,32], index: 6, kind: input, shape index: {}]
  %s7 = inlined_call_operand.vmem [shape: bf16[1024,128], index: 7, kind: input, shape index: {}]
  %s8 = inlined_call_operand.hbm [shape: f32[1,128], index: 8, kind: input, shape index: {}]
  %s9 = inlined_call_operand.vmem [shape: bf16[4,2,8], index: 9, kind: input, shape index: {}]
  %s10 = inlined_call_operand.vmem [shape: bf16[512,64], index: 10, kind: input, shape index: {}]
  %s11 = inlined_call_operand.hbm [shape: f32[1,64], index: 11, kind: input, shape index: {}]
  %s12 = inlined_call_operand.hbm [shape: bf16[32,512], index: 12, kind: input, shape index: {}]
  %s13 = inlined_call_operand.hbm [shape: f32[1,512], index: 13, kind: input, shape index: {}]
  %s14 = inlined_call_operand.vmem [shape: bf16[4,8,2], index: 14, kind: input, shape index: {}]
  %s15 = inlined_call_operand.vmem [shape: bf16[9,8,8], index: 15, kind: input, shape index: {}]
  %s16 = inlined_call_operand.vmem [shape: bf16[1152,256], index: 16, kind: input, shape index: {}]
  %s17 = inlined_call_operand.vmem [shape: f32[1,256], index: 17, kind: input, shape index: {}]
  %s18 = inlined_call_operand.vmem [shape: bf16[4,32,8], index: 18, kind: input, shape index: {}]
  %s19 = inlined_call_operand.hbm [shape: bf16[9,32,32], index: 19, kind: input, shape index: {}]
  %s20 = inlined_call_operand.hbm [shape: bf16[576,128], index: 20, kind: input, shape index: {}]
  %s21 = inlined_call_operand.hbm [shape: f32[1,128], index: 21, kind: input, shape index: {}]
  %s22 = inlined_call_operand.vmem [shape: bf16[4,128,32], index: 22, kind: input, shape index: {}]
  %s23 = inlined_call_operand.vmem [shape: bf16[9,128,128], index: 23, kind: input, shape index: {}]
  %s24 = inlined_call_operand.vmem [shape: bf16[288,4], index: 24, kind: input, shape index: {}]
  %s25 = inlined_call_operand.hbm [shape: f32[1,4], index: 25, kind: input, shape index: {}]
  %s26 = inlined_call_operand.vmem [shape: f32[2,64], index: 26, kind: output, shape index: {0}]
  %s27 = inlined_call_operand.vmem [shape: f32[128,4], index: 27, kind: output, shape index: {1}]
  %28 = xla_tuple %s26, %s27
  %s29 = sld [smem:[#allocation0]]
  $region170: #{vae_forward.1} parent=0
    _
  %s31 = ssub.s32 1, %s29
  %s32 = scalar_select 0, %s31, %s29
  $region1: #{vae_forward.1} parent=0
    #allocation2 [shape = 'u8[512]{0}', space=vmem, size = 0x400, scoped, tag = 'input window, operand 2, single buffered']
    #allocation3 [shape = 's32[1]{0}', space=sflag, size = 0x4, scoped, tag = 'scoped memory for vae_forward.1']
    #allocation4 [shape = 'u8[131072]{0}', space=vmem, size = 0x20000, scoped, tag = 'input window, operand 3, single buffered']
    #allocation5 [shape = 's32[1]{0}', space=sflag, size = 0x4, scoped, tag = 'scoped memory for vae_forward.1']
    #allocation6 [shape = 'u8[512]{0}', space=vmem, size = 0x400, scoped, tag = 'input window, operand 5, single buffered']
    #allocation7 [shape = 'u8[32768]{0}', space=vmem, size = 0x8000, scoped, tag = 'input window, operand 6, single buffered']
    #allocation8 [shape = 's32[1]{0}', space=sflag, size = 0x4, scoped, tag = 'scoped memory for vae_forward.1']
    #allocation9 [shape = 'u8[512]{0}', space=vmem, size = 0x400, scoped, tag = 'input window, operand 8, single buffered']
    #allocation10 [shape = 'u8[512]{0}', space=vmem, size = 0x400, scoped, tag = 'input window, operand 11, single buffered']
    #allocation11 [shape = 's32[1]{0}', space=sflag, size = 0x4, scoped, tag = 'scoped memory for vae_forward.1']
    #allocation12 [shape = 'u8[32768]{0}', space=vmem, size = 0x8000, scoped, tag = 'input window, operand 12, single buffered']
    #allocation13 [shape = 'u8[2048]{0}', space=vmem, size = 0x800, scoped, tag = 'input window, operand 13, single buffered']
    #allocation14 [shape = 's32[1]{0}', space=sflag, size = 0x4, scoped, tag = 'scoped memory for vae_forward.1']
    #allocation15 [shape = 'u8[73728]{0}', space=vmem, size = 0x12000, scoped, tag = 'input window, operand 19, single buffered']
    #allocation16 [shape = 'u8[147456]{0}', space=vmem, size = 0x24000, scoped, tag = 'input window, operand 20, single buffered']
    #allocation17 [shape = 's32[1]{0}', space=sflag, size = 0x4, scoped, tag = 'scoped memory for vae_forward.1']
    #allocation18 [shape = 'u8[512]{0}', space=vmem, size = 0x400, scoped, tag = 'input window, operand 21, single buffered']
    #allocation19 [shape = 'u8[512]{0}', space=vmem, size = 0x400, scoped, tag = 'input window, operand 25, single buffered']
    #allocation20 [shape = 's32[1]{0}', space=sflag, size = 0x4, scoped, tag = 'scoped memory for vae_forward.1']
    %33 = vsyncpa [#allocation3], 0
    %34 = vsyncpa [#allocation5], 0
    %35 = vsyncpa [#allocation8], 0
    %36 = vsyncpa [#allocation11], 0
    %37 = vsyncpa [#allocation14], 0
    %38 = vsyncpa [#allocation17], 0
    %39 = vsyncpa [#allocation20], 0
    // Predicated region
    $region2: #{vae_forward.1} parent=1 // pred_check
      _
    $region3: #{vae_forward.1} parent=1 // pred_check_branch
      %41 = sbr.rel (0) target = $region5
    $region4: #{vae_forward.1} parent=1 // pred_region
      _
    $region5: #{vae_forward.1} parent=1 // pred_fallthru
      _
    // Predicated region
    $region6: #{vae_forward.1} parent=1 // pred_check
      _
    $region7: #{vae_forward.1} parent=1 // pred_check_branch
      %43 = sbr.rel (0) target = $region9
    $region8: #{vae_forward.1} parent=1 // pred_region
      _
    $region9: #{vae_forward.1} parent=1 // pred_fallthru
      _
    // Predicated region
    $region10: #{vae_forward.1} parent=1 // pred_check
      _
    $region11: #{vae_forward.1} parent=1 // pred_check_branch
      %45 = sbr.rel (0) target = $region13
    $region12: #{vae_forward.1} parent=1 // pred_region
      %s47 = ssub.s32 16, 16
      %48 = vsyncadd [#allocation3], %s47
      %s50 = sshll.u32 [#allocation2], 4
      %s51 = int_to_ptr.vmem [resolvable:$true] %s50
      %53 = dma.hbm_to_vmem [thread:$0]  %s2, 16, %s51, [#allocation3]
    $region13: #{vae_forward.1} parent=1 // pred_fallthru
      _
    // Predicated region
    $region14: #{vae_forward.1} parent=1 // pred_check
      _
    $region15: #{vae_forward.1} parent=1 // pred_check_branch
      %55 = sbr.rel (0) target = $region17
    $region16: #{vae_forward.1} parent=1 // pred_region
      %s57 = ssub.s32 4096, 4096
      %58 = vsyncadd [#allocation5], %s57
      %s59 = sshll.u32 [#allocation4], 4
      %s60 = int_to_ptr.vmem [resolvable:$true] %s59
      %65 = dma.hbm_to_vmem [thread:$0]  %s3, 4096, %s60, [#allocation5], 64, 64, 4
    $region17: #{vae_forward.1} parent=1 // pred_fallthru
      _
    // Predicated region
    $region18: #{vae_forward.1} parent=1 // pred_check
      _
    $region19: #{vae_forward.1} parent=1 // pred_check_branch
      %67 = sbr.rel (0) target = $region21
    $region20: #{vae_forward.1} parent=1 // pred_region
      _
    $region21: #{vae_forward.1} parent=1 // pred_fallthru
      _
    // Predicated region
    $region22: #{vae_forward.1} parent=1 // pred_check
      _
    $region23: #{vae_forward.1} parent=1 // pred_check_branch
      %69 = sbr.rel (0) target = $region25
    $region24: #{vae_forward.1} parent=1 // pred_region
      %s71 = ssub.s32 16, 16
      %72 = vsyncadd [#allocation5], %s71
      %s74 = sshll.u32 [#allocation6], 4
      %s75 = int_to_ptr.vmem [resolvable:$true] %s74
      %77 = dma.hbm_to_vmem [thread:$0]  %s5, 16, %s75, [#allocation5]
    $region25: #{vae_forward.1} parent=1 // pred_fallthru
      _
    // Predicated region
    $region26: #{vae_forward.1} parent=1 // pred_check
      _
    $region27: #{vae_forward.1} parent=1 // pred_check_branch
      %79 = sbr.rel (0) target = $region29
    $region28: #{vae_forward.1} parent=1 // pred_region
      %s81 = ssub.s32 1024, 1024
      %82 = vsyncadd [#allocation8], %s81
      %s83 = sshll.u32 [#allocation7], 4
      %s84 = int_to_ptr.vmem [resolvable:$true] %s83
      %89 = dma.hbm_to_vmem [thread:$0]  %s6, 1024, %s84, [#allocation8], 64, 64, 4
    $region29: #{vae_forward.1} parent=1 // pred_fallthru
      _
    // Predicated region
    $region30: #{vae_forward.1} parent=1 // pred_check
      _
    $region31: #{vae_forward.1} parent=1 // pred_check_branch
      %91 = sbr.rel (0) target = $region33
    $region32: #{vae_forward.1} parent=1 // pred_region
      _
    $region33: #{vae_forward.1} parent=1 // pred_fallthru
      _
    // Predicated region
    $region34: #{vae_forward.1} parent=1 // pred_check
      _
    $region35: #{vae_forward.1} parent=1 // pred_check_branch
      %93 = sbr.rel (0) target = $region37
    $region36: #{vae_forward.1} parent=1 // pred_region
      %s95 = ssub.s32 16, 16
      %96 = vsyncadd [#allocation8], %s95
      %s98 = sshll.u32 [#allocation9], 4
      %s99 = int_to_ptr.vmem [resolvable:$true] %s98
      %101 = dma.hbm_to_vmem [thread:$0]  %s8, 16, %s99, [#allocation8]
    $region37: #{vae_forward.1} parent=1 // pred_fallthru
      _
    // Predicated region
    $region38: #{vae_forward.1} parent=1 // pred_check
      _
    $region39: #{vae_forward.1} parent=1 // pred_check_branch
      %103 = sbr.rel (0) target = $region41
    $region40: #{vae_forward.1} parent=1 // pred_region
      _
    $region41: #{vae_forward.1} parent=1 // pred_fallthru
      _
    // Predicated region
    $region42: #{vae_forward.1} parent=1 // pred_check
      _
    $region43: #{vae_forward.1} parent=1 // pred_check_branch
      %105 = sbr.rel (0) target = $region45
    $region44: #{vae_forward.1} parent=1 // pred_region
      _
    $region45: #{vae_forward.1} parent=1 // pred_fallthru
      _
    // Predicated region
    $region46: #{vae_forward.1} parent=1 // pred_check
      _
    $region47: #{vae_forward.1} parent=1 // pred_check_branch
      %107 = sbr.rel (0) target = $region49
    $region48: #{vae_forward.1} parent=1 // pred_region
      %s109 = ssub.s32 16, 16
      %110 = vsyncadd [#allocation11], %s109
      %s112 = sshll.u32 [#allocation10], 4
      %s113 = int_to_ptr.vmem [resolvable:$true] %s112
      %115 = dma.hbm_to_vmem [thread:$0]  %s11, 16, %s113, [#allocation11]
    $region49: #{vae_forward.1} parent=1 // pred_fallthru
      _
    // Predicated region
    $region50: #{vae_forward.1} parent=1 // pred_check
      _
    $region51: #{vae_forward.1} parent=1 // pred_check_branch
      %117 = sbr.rel (0) target = $region53
    $region52: #{vae_forward.1} parent=1 // pred_region
      %s119 = ssub.s32 1024, 1024
      %120 = vsyncadd [#allocation11], %s119
      %s121 = sshll.u32 [#allocation12], 4
      %s122 = int_to_ptr.vmem [resolvable:$true] %s121
      %127 = dma.hbm_to_vmem [thread:$0]  %s12, 1024, %s122, [#allocation11], 256, 256, 16
    $region53: #{vae_forward.1} parent=1 // pred_fallthru
      _
    // Predicated region
    $region54: #{vae_forward.1} parent=1 // pred_check
      _
    $region55: #{vae_forward.1} parent=1 // pred_check_branch
      %129 = sbr.rel (0) target = $region57
    $region56: #{vae_forward.1} parent=1 // pred_region
      %s131 = ssub.s32 64, 64
      %132 = vsyncadd [#allocation14], %s131
      %s134 = sshll.u32 [#allocation13], 4
      %s135 = int_to_ptr.vmem [resolvable:$true] %s134
      %137 = dma.hbm_to_vmem [thread:$0]  %s13, 64, %s135, [#allocation14]
    $region57: #{vae_forward.1} parent=1 // pred_fallthru
      _
    // Predicated region
    $region58: #{vae_forward.1} parent=1 // pred_check
      _
    $region59: #{vae_forward.1} parent=1 // pred_check_branch
      %139 = sbr.rel (0) target = $region61
    $region60: #{vae_forward.1} parent=1 // pred_region
      _
    $region61: #{vae_forward.1} parent=1 // pred_fallthru
      _
    // Predicated region
    $region62: #{vae_forward.1} parent=1 // pred_check
      _
    $region63: #{vae_forward.1} parent=1 // pred_check_branch
      %141 = sbr.rel (0) target = $region65
    $region64: #{vae_forward.1} parent=1 // pred_region
      _
    $region65: #{vae_forward.1} parent=1 // pred_fallthru
      _
    // Predicated region
    $region66: #{vae_forward.1} parent=1 // pred_check
      _
    $region67: #{vae_forward.1} parent=1 // pred_check_branch
      %143 = sbr.rel (0) target = $region69
    $region68: #{vae_forward.1} parent=1 // pred_region
      _
    $region69: #{vae_forward.1} parent=1 // pred_fallthru
      _
    // Predicated region
    $region70: #{vae_forward.1} parent=1 // pred_check
      _
    $region71: #{vae_forward.1} parent=1 // pred_check_branch
      %145 = sbr.rel (0) target = $region73
    $region72: #{vae_forward.1} parent=1 // pred_region
      _
    $region73: #{vae_forward.1} parent=1 // pred_fallthru
      _
    // Predicated region
    $region74: #{vae_forward.1} parent=1 // pred_check
      _
    $region75: #{vae_forward.1} parent=1 // pred_check_branch
      %147 = sbr.rel (0) target = $region77
    $region76: #{vae_forward.1} parent=1 // pred_region
      _
    $region77: #{vae_forward.1} parent=1 // pred_fallthru
      _
    // Predicated region
    $region78: #{vae_forward.1} parent=1 // pred_check
      _
    $region79: #{vae_forward.1} parent=1 // pred_check_branch
      %149 = sbr.rel (0) target = $region81
    $region80: #{vae_forward.1} parent=1 // pred_region
      %s151 = ssub.s32 2304, 2304
      %152 = vsyncadd [#allocation14], %s151
      %s153 = sshll.u32 [#allocation15], 4
      %s154 = int_to_ptr.vmem [resolvable:$true] %s153
      %159 = dma.hbm_to_vmem [thread:$0]  %s19, 2304, %s154, [#allocation14], 64, 64, 4
    $region81: #{vae_forward.1} parent=1 // pred_fallthru
      _
    // Predicated region
    $region82: #{vae_forward.1} parent=1 // pred_check
      _
    $region83: #{vae_forward.1} parent=1 // pred_check_branch
      %161 = sbr.rel (0) target = $region85
    $region84: #{vae_forward.1} parent=1 // pred_region
      %s163 = ssub.s32 4608, 4608
      %164 = vsyncadd [#allocation17], %s163
      %s165 = sshll.u32 [#allocation16], 4
      %s166 = int_to_ptr.vmem [resolvable:$true] %s165
      %171 = dma.hbm_to_vmem [thread:$0]  %s20, 4608, %s166, [#allocation17], 64, 64, 4
    $region85: #{vae_forward.1} parent=1 // pred_fallthru
      _
    // Predicated region
    $region86: #{vae_forward.1} parent=1 // pred_check
      _
    $region87: #{vae_forward.1} parent=1 // pred_check_branch
      %173 = sbr.rel (0) target = $region89
    $region88: #{vae_forward.1} parent=1 // pred_region
      %s175 = ssub.s32 16, 16
      %176 = vsyncadd [#allocation17], %s175
      %s178 = sshll.u32 [#allocation18], 4
      %s179 = int_to_ptr.vmem [resolvable:$true] %s178
      %181 = dma.hbm_to_vmem [thread:$0]  %s21, 16, %s179, [#allocation17]
    $region89: #{vae_forward.1} parent=1 // pred_fallthru
      _
    // Predicated region
    $region90: #{vae_forward.1} parent=1 // pred_check
      _
    $region91: #{vae_forward.1} parent=1 // pred_check_branch
      %183 = sbr.rel (0) target = $region93
    $region92: #{vae_forward.1} parent=1 // pred_region
      _
    $region93: #{vae_forward.1} parent=1 // pred_fallthru
      _
    // Predicated region
    $region94: #{vae_forward.1} parent=1 // pred_check
      _
    $region95: #{vae_forward.1} parent=1 // pred_check_branch
      %185 = sbr.rel (0) target = $region97
    $region96: #{vae_forward.1} parent=1 // pred_region
      _
    $region97: #{vae_forward.1} parent=1 // pred_fallthru
      _
    // Predicated region
    $region98: #{vae_forward.1} parent=1 // pred_check
      _
    $region99: #{vae_forward.1} parent=1 // pred_check_branch
      %187 = sbr.rel (0) target = $region101
    $region100: #{vae_forward.1} parent=1 // pred_region
      _
    $region101: #{vae_forward.1} parent=1 // pred_fallthru
      _
    // Predicated region
    $region102: #{vae_forward.1} parent=1 // pred_check
      _
    $region103: #{vae_forward.1} parent=1 // pred_check_branch
      %189 = sbr.rel (0) target = $region105
    $region104: #{vae_forward.1} parent=1 // pred_region
      %s191 = ssub.s32 16, 16
      %192 = vsyncadd [#allocation20], %s191
      %s194 = sshll.u32 [#allocation19], 4
      %s195 = int_to_ptr.vmem [resolvable:$true] %s194
      %197 = dma.hbm_to_vmem [thread:$0]  %s25, 16, %s195, [#allocation20]
    $region105: #{vae_forward.1} parent=1 // pred_fallthru
      _
    // Predicated region
    $region106: #{vae_forward.1} parent=1 // pred_check
      _
    $region107: #{vae_forward.1} parent=1 // pred_check_branch
      %199 = sbr.rel (0) target = $region109
    $region108: #{vae_forward.1} parent=1 // pred_region
      %200 = dma.done [#allocation3], 16
    $region109: #{vae_forward.1} parent=1 // pred_fallthru
      _
    // Predicated region
    $region110: #{vae_forward.1} parent=1 // pred_check
      _
    $region111: #{vae_forward.1} parent=1 // pred_check_branch
      %202 = sbr.rel (0) target = $region113
    $region112: #{vae_forward.1} parent=1 // pred_region
      %203 = dma.done [#allocation5], 4096
    $region113: #{vae_forward.1} parent=1 // pred_fallthru
      _
    // Predicated region
    $region114: #{vae_forward.1} parent=1 // pred_check
      _
    $region115: #{vae_forward.1} parent=1 // pred_check_branch
      %205 = sbr.rel (0) target = $region117
    $region116: #{vae_forward.1} parent=1 // pred_region
      %206 = dma.done [#allocation5], 16
    $region117: #{vae_forward.1} parent=1 // pred_fallthru
      _
    // Predicated region
    $region118: #{vae_forward.1} parent=1 // pred_check
      _
    $region119: #{vae_forward.1} parent=1 // pred_check_branch
      %208 = sbr.rel (0) target = $region121
    $region120: #{vae_forward.1} parent=1 // pred_region
      %209 = dma.done [#allocation8], 1024
    $region121: #{vae_forward.1} parent=1 // pred_fallthru
      _
    // Predicated region
    $region122: #{vae_forward.1} parent=1 // pred_check
      _
    $region123: #{vae_forward.1} parent=1 // pred_check_branch
      %211 = sbr.rel (0) target = $region125
    $region124: #{vae_forward.1} parent=1 // pred_region
      %212 = dma.done [#allocation8], 16
    $region125: #{vae_forward.1} parent=1 // pred_fallthru
      _
    // Predicated region
    $region126: #{vae_forward.1} parent=1 // pred_check
      _
    $region127: #{vae_forward.1} parent=1 // pred_check_branch
      %214 = sbr.rel (0) target = $region129
    $region128: #{vae_forward.1} parent=1 // pred_region
      %215 = dma.done [#allocation11], 16
    $region129: #{vae_forward.1} parent=1 // pred_fallthru
      _
    // Predicated region
    $region130: #{vae_forward.1} parent=1 // pred_check
      _
    $region131: #{vae_forward.1} parent=1 // pred_check_branch
      %217 = sbr.rel (0) target = $region133
    $region132: #{vae_forward.1} parent=1 // pred_region
      %218 = dma.done [#allocation11], 1024
    $region133: #{vae_forward.1} parent=1 // pred_fallthru
      _
    // Predicated region
    $region134: #{vae_forward.1} parent=1 // pred_check
      _
    $region135: #{vae_forward.1} parent=1 // pred_check_branch
      %220 = sbr.rel (0) target = $region137
    $region136: #{vae_forward.1} parent=1 // pred_region
      %221 = dma.done [#allocation14], 64
    $region137: #{vae_forward.1} parent=1 // pred_fallthru
      _
    // Predicated region
    $region138: #{vae_forward.1} parent=1 // pred_check
      _
    $region139: #{vae_forward.1} parent=1 // pred_check_branch
      %223 = sbr.rel (0) target = $region141
    $region140: #{vae_forward.1} parent=1 // pred_region
      %224 = dma.done [#allocation14], 2304
    $region141: #{vae_forward.1} parent=1 // pred_fallthru
      _
    // Predicated region
    $region142: #{vae_forward.1} parent=1 // pred_check
      _
    $region143: #{vae_forward.1} parent=1 // pred_check_branch
      %226 = sbr.rel (0) target = $region145
    $region144: #{vae_forward.1} parent=1 // pred_region
      %227 = dma.done [#allocation17], 4608
    $region145: #{vae_forward.1} parent=1 // pred_fallthru
      _
    // Predicated region
    $region146: #{vae_forward.1} parent=1 // pred_check
      _
    $region147: #{vae_forward.1} parent=1 // pred_check_branch
      %229 = sbr.rel (0) target = $region149
    $region148: #{vae_forward.1} parent=1 // pred_region
      %230 = dma.done [#allocation17], 16
    $region149: #{vae_forward.1} parent=1 // pred_fallthru
      _
    // Predicated region
    $region150: #{vae_forward.1} parent=1 // pred_check
      _
    $region151: #{vae_forward.1} parent=1 // pred_check_branch
      %232 = sbr.rel (0) target = $region153
    $region152: #{vae_forward.1} parent=1 // pred_region
      %233 = dma.done [#allocation20], 16
    $region153: #{vae_forward.1} parent=1 // pred_fallthru
      _
    %v235 = vld [vmem:[%s0] sm:$0xf]
    %v236 = vld [vmem:[%s0 + $0x4] sm:$0xf]
    %v237 = vld [vmem:[%s0 + $0x8] sm:$0xf]
    %v238 = vld [vmem:[%s0 + $0xc] sm:$0xf]
    %v239 = vld [vmem:[%s0 + $0x10] sm:$0xf]
    %v240 = vld [vmem:[%s0 + $0x14] sm:$0xf]
    %v241 = vld [vmem:[%s0 + $0x18] sm:$0xf]
    %v242 = vld [vmem:[%s0 + $0x1c] sm:$0xf]
    %v243 = vld [vmem:[%s0 + $0x20] sm:$0xf]
    %v244 = vld [vmem:[%s0 + $0x24] sm:$0xf]
    %v245 = vld [vmem:[%s0 + $0x28] sm:$0xf]
    %v246 = vld [vmem:[%s0 + $0x2c] sm:$0xf]
    %v247 = vld [vmem:[%s0 + $0x30] sm:$0xf]
    %v248 = vld [vmem:[%s0 + $0x34] sm:$0xf]
    %v249 = vld [vmem:[%s0 + $0x38] sm:$0xf]
    %v250 = vld [vmem:[%s0 + $0x3c] sm:$0xf]
    %v251 = vld [vmem:[%s1] sm:$0xf]
    %v252 = vld [vmem:[%s1 + $0x4] sm:$0xf]
    %v253 = vld [vmem:[#allocation2] sm:$0x1]
    %v255 = vlaneseq
    %v256 = vshrl.u32 %v255, 7
    %v257 = vsub.s32 0, %v256
    %v258 = vrot.slane %v253, %v257
    %v276 = vunpack.c.l.b16 %v235
    %v277 = vunpack.c.l.b16 %v236
    %v278 = vunpack.c.l.b16 %v237
    %v279 = vunpack.c.l.b16 %v238
    %v280 = vunpack.c.l.b16 %v239
    %v281 = vunpack.c.l.b16 %v240
    %v282 = vunpack.c.l.b16 %v241
    %v283 = vunpack.c.l.b16 %v242
    %v284 = vunpack.c.l.b16 %v243
    %v285 = vunpack.c.l.b16 %v244
    %v286 = vunpack.c.l.b16 %v245
    %v287 = vunpack.c.l.b16 %v246
    %v288 = vunpack.c.l.b16 %v247
    %v289 = vunpack.c.l.b16 %v248
    %v290 = vunpack.c.l.b16 %v249
    %v291 = vunpack.c.l.b16 %v250
    %v292 = vpack.c.b16 %v277, %v276
    %v293 = vpack.c.b16 %v279, %v278
    %v294 = vpack.c.b16 %v281, %v280
    %v295 = vpack.c.b16 %v283, %v282
    %v296 = vpack.c.b16 %v285, %v284
    %v297 = vpack.c.b16 %v287, %v286
    %v298 = vpack.c.b16 %v289, %v288
    %v299 = vpack.c.b16 %v291, %v290
    %v302 = vunpack.c.l.b16 %v251
    %v303 = vunpack.c.l.b16 %v252
    %v304 = vpack.c.b16 %v303, %v302
    %vm306 = vcmask 130048
    %v308 = vsel %vm306, %v292, 0
    %v311 = vsel %vm306, %v293, 0
    %v314 = vsel %vm306, %v294, 0
    %v317 = vsel %vm306, %v295, 0
    %v320 = vsel %vm306, %v296, 0
    %v323 = vsel %vm306, %v297, 0
    %v326 = vsel %vm306, %v298, 0
    %v329 = vsel %vm306, %v299, 0
    %331 = vmatprep.subr.bf16.mxu0 0
    %332 = vmatpush1.bf16.msra.mxu0 %v304
    %333 = vmatprep.subr.bf16.mxu0 0
    %334 = vmatpush1.bf16.msra.mxu0 0
    %335 = vmatprep.subr.bf16.mxu0 0
    %336 = vmatpush1.bf16.msra.mxu0 0
    %337 = vmatprep.subr.bf16.mxu0 0
    %338 = vmatpush1.bf16.msra.mxu0 0
    %339 = vmatprep.subr.bf16.mxu0 0
    %340 = vmatpush1.bf16.msra.mxu0 0
    %341 = vmatprep.subr.bf16.mxu0 0
    %342 = vmatpush1.bf16.msra.mxu0 0
    %343 = vmatprep.subr.bf16.mxu0 0
    %344 = vmatpush1.bf16.msra.mxu0 0
    %345 = vmatprep.subr.bf16.mxu0 0
    %346 = vmatpush1.bf16.msra.mxu0 0
    %347 = vmatprep.subr.bf16.mxu0 0
    %348 = vmatpush1.bf16.msra.mxu0 0
    %349 = vmatprep.subr.bf16.mxu0 0
    %350 = vmatpush1.bf16.msra.mxu0 0
    %351 = vmatprep.subr.bf16.mxu0 0
    %352 = vmatpush1.bf16.msra.mxu0 0
    %353 = vmatprep.subr.bf16.mxu0 0
    %354 = vmatpush1.bf16.msra.mxu0 0
    %355 = vmatprep.subr.bf16.mxu0 0
    %356 = vmatpush1.bf16.msra.mxu0 0
    %357 = vmatprep.subr.bf16.mxu0 0
    %358 = vmatpush1.bf16.msra.mxu0 0
    %359 = vmatprep.subr.bf16.mxu0 0
    %360 = vmatpush1.bf16.msra.mxu0 0
    %361 = vmatprep.subr.bf16.mxu0 0
    %362 = vmatpush1.bf16.msra.mxu0 0
    %363 = vmatprep.mubr.bf16.mxu0 0
    %364 = vmatmul.mubr.bf16.gmra.mrb[0].mxu0 %v308
    %v365 = vpop.f32.mrb[0].mxu0
    %v366 = vadd.f32 %v258, %v365
    %v367 = vpop.f32.mrb[0].mxu0
    %v368 = vpop.f32.mrb[0].mxu0
    %v369 = vadd.f32 %v258, %v368
    %v370 = vpop.f32.mrb[0].mxu0
    %371 = vmatprep.mubr.bf16.mxu0 0
    %372 = vmatmul.mubr.bf16.gmra.mrb[0].mxu0 %v311
    %v373 = vpop.f32.mrb[0].mxu0
    %v374 = vadd.f32 %v258, %v373
    %v375 = vpop.f32.mrb[0].mxu0
    %v376 = vpop.f32.mrb[0].mxu0
    %v377 = vadd.f32 %v258, %v376
    %v378 = vpop.f32.mrb[0].mxu0
    %379 = vmatprep.mubr.bf16.mxu0 0
    %380 = vmatmul.mubr.bf16.gmra.mrb[0].mxu0 %v314
    %v381 = vpop.f32.mrb[0].mxu0
    %v382 = vadd.f32 %v258, %v381
    %v383 = vpop.f32.mrb[0].mxu0
    %v384 = vpop.f32.mrb[0].mxu0
    %v385 = vadd.f32 %v258, %v384
    %v386 = vpop.f32.mrb[0].mxu0
    %387 = vmatprep.mubr.bf16.mxu0 0
    %388 = vmatmul.mubr.bf16.gmra.mrb[0].mxu0 %v317
    %v389 = vpop.f32.mrb[0].mxu0
    %v390 = vadd.f32 %v258, %v389
    %v391 = vpop.f32.mrb[0].mxu0
    %v392 = vpop.f32.mrb[0].mxu0
    %v393 = vadd.f32 %v258, %v392
    %v394 = vpop.f32.mrb[0].mxu0
    %395 = vmatprep.mubr.bf16.mxu0 0
    %396 = vmatmul.mubr.bf16.gmra.mrb[0].mxu0 %v320
    %v397 = vpop.f32.mrb[0].mxu0
    %v398 = vadd.f32 %v258, %v397
    %v399 = vpop.f32.mrb[0].mxu0
    %v400 = vpop.f32.mrb[0].mxu0
    %v401 = vadd.f32 %v258, %v400
    %v402 = vpop.f32.mrb[0].mxu0
    %403 = vmatprep.mubr.bf16.mxu0 0
    %404 = vmatmul.mubr.bf16.gmra.mrb[0].mxu0 %v323
    %v405 = vpop.f32.mrb[0].mxu0
    %v406 = vadd.f32 %v258, %v405
    %v407 = vpop.f32.mrb[0].mxu0
    %v408 = vpop.f32.mrb[0].mxu0
    %v409 = vadd.f32 %v258, %v408
    %v410 = vpop.f32.mrb[0].mxu0
    %411 = vmatprep.mubr.bf16.mxu0 0
    %412 = vmatmul.mubr.bf16.gmra.mrb[0].mxu0 %v326
    %v413 = vpop.f32.mrb[0].mxu0
    %v414 = vadd.f32 %v258, %v413
    %v415 = vpop.f32.mrb[0].mxu0
    %v416 = vpop.f32.mrb[0].mxu0
    %v417 = vadd.f32 %v258, %v416
    %v418 = vpop.f32.mrb[0].mxu0
    %419 = vmatprep.mubr.bf16.mxu0 0
    %420 = vmatmul.mubr.bf16.gmra.mrb[0].mxu0 %v329
    %v421 = vpop.f32.mrb[0].mxu0
    %v422 = vadd.f32 %v258, %v421
    %v423 = vpop.f32.mrb[0].mxu0
    %v424 = vpop.f32.mrb[0].mxu0
    %v425 = vadd.f32 %v258, %v424
    %v426 = vpop.f32.mrb[0].mxu0
    %427 = vdwg.mxu0
    %vm428 = vcmp.gt.f32.partialorder %v366, 0.0
    %vm429 = vcmp.gt.f32.partialorder %v369, 0.0
    %vm430 = vcmp.gt.f32.partialorder %v374, 0.0
    %vm431 = vcmp.gt.f32.partialorder %v377, 0.0
    %vm432 = vcmp.gt.f32.partialorder %v382, 0.0
    %vm433 = vcmp.gt.f32.partialorder %v385, 0.0
    %vm434 = vcmp.gt.f32.partialorder %v390, 0.0
    %vm435 = vcmp.gt.f32.partialorder %v393, 0.0
    %vm436 = vcmp.gt.f32.partialorder %v398, 0.0
    %vm437 = vcmp.gt.f32.partialorder %v401, 0.0
    %vm438 = vcmp.gt.f32.partialorder %v406, 0.0
    %vm439 = vcmp.gt.f32.partialorder %v409, 0.0
    %vm440 = vcmp.gt.f32.partialorder %v414, 0.0
    %vm441 = vcmp.gt.f32.partialorder %v417, 0.0
    %vm442 = vcmp.gt.f32.partialorder %v422, 0.0
    %vm443 = vcmp.gt.f32.partialorder %v425, 0.0
    %v444 = vmul.f32 %v366, 0.2
    %v445 = vmul.f32 %v369, 0.2
    %v446 = vmul.f32 %v374, 0.2
    %v447 = vmul.f32 %v377, 0.2
    %v448 = vmul.f32 %v382, 0.2
    %v449 = vmul.f32 %v385, 0.2
    %v450 = vmul.f32 %v390, 0.2
    %v451 = vmul.f32 %v393, 0.2
    %v452 = vmul.f32 %v398, 0.2
    %v453 = vmul.f32 %v401, 0.2
    %v454 = vmul.f32 %v406, 0.2
    %v455 = vmul.f32 %v409, 0.2
    %v456 = vmul.f32 %v414, 0.2
    %v457 = vmul.f32 %v417, 0.2
    %v458 = vmul.f32 %v422, 0.2
    %v459 = vmul.f32 %v425, 0.2
    %v460 = vsel %vm428, %v366, %v444
    %v461 = vsel %vm429, %v369, %v445
    %v462 = vsel %vm430, %v374, %v446
    %v463 = vsel %vm431, %v377, %v447
    %v464 = vsel %vm432, %v382, %v448
    %v465 = vsel %vm433, %v385, %v449
    %v466 = vsel %vm434, %v390, %v450
    %v467 = vsel %vm435, %v393, %v451
    %v468 = vsel %vm436, %v398, %v452
    %v469 = vsel %vm437, %v401, %v453
    %v470 = vsel %vm438, %v406, %v454
    %v471 = vsel %vm439, %v409, %v455
    %v472 = vsel %vm440, %v414, %v456
    %v473 = vsel %vm441, %v417, %v457
    %v474 = vsel %vm442, %v422, %v458
    %v475 = vsel %vm443, %v425, %v459
    %v476 = vpack.c.bf16 %v461, %v460
    %v477 = vpack.c.bf16 %v463, %v462
    %v478 = vpack.c.bf16 %v465, %v464
    %v479 = vpack.c.bf16 %v467, %v466
    %v480 = vpack.c.bf16 %v469, %v468
    %v481 = vpack.c.bf16 %v471, %v470
    %v482 = vpack.c.bf16 %v473, %v472
    %v483 = vpack.c.bf16 %v475, %v474
    %v484 = vld [vmem:[#allocation4] sm:$0xf]
    %v485 = vld [vmem:[#allocation4 + $0x4] sm:$0xf]
    %v486 = vld [vmem:[#allocation4 + $0x8] sm:$0xf]
    %v487 = vld [vmem:[#allocation4 + $0xc] sm:$0xf]
    %v492 = vunpack.c.l.b16 %v484
    %v493 = vunpack.c.l.b16 %v485
    %v494 = vunpack.c.l.b16 %v486
    %v495 = vunpack.c.l.b16 %v487
    %v496 = vpack.c.b16 %v493, %v492
    %v497 = vpack.c.b16 %v495, %v494
    %500 = vmatprep.subr.bf16.mxu0 0
    %501 = vmatpush1.bf16.msra.mxu0 %v476
    %502 = vmatprep.subr.bf16.mxu0 0
    %503 = vmatpush1.bf16.msra.mxu0 %v477
    %504 = vmatprep.subr.bf16.mxu0 0
    %505 = vmatpush1.bf16.msra.mxu0 %v478
    %506 = vmatprep.subr.bf16.mxu0 0
    %507 = vmatpush1.bf16.msra.mxu0 %v479
    %508 = vmatprep.subr.bf16.mxu0 0
    %509 = vmatpush1.bf16.msra.mxu0 %v480
    %510 = vmatprep.subr.bf16.mxu0 0
    %511 = vmatpush1.bf16.msra.mxu0 %v481
    %512 = vmatprep.subr.bf16.mxu0 0
    %513 = vmatpush1.bf16.msra.mxu0 %v482
    %514 = vmatprep.subr.bf16.mxu0 0
    %515 = vmatpush1.bf16.msra.mxu0 %v483
    %516 = vmatprep.subr.bf16.mxu0 0
    %517 = vmatpush1.bf16.msra.mxu0 0
    %518 = vmatprep.subr.bf16.mxu0 0
    %519 = vmatpush1.bf16.msra.mxu0 0
    %520 = vmatprep.subr.bf16.mxu0 0
    %521 = vmatpush1.bf16.msra.mxu0 0
    %522 = vmatprep.subr.bf16.mxu0 0
    %523 = vmatpush1.bf16.msra.mxu0 0
    %524 = vmatprep.subr.bf16.mxu0 0
    %525 = vmatpush1.bf16.msra.mxu0 0
    %526 = vmatprep.subr.bf16.mxu0 0
    %527 = vmatpush1.bf16.msra.mxu0 0
    %528 = vmatprep.subr.bf16.mxu0 0
    %529 = vmatpush1.bf16.msra.mxu0 0
    %530 = vmatprep.subr.bf16.mxu0 0
    %531 = vmatpush1.bf16.msra.mxu0 0
    %532 = vmatprep.mubr.bf16.mxu0 0
    %533 = vmatmul.mubr.bf16.gmra.mrb[0].mxu0 %v496
    %v534 = vpop.f32.mrb[0].mxu0
    %v535 = vadd.f32 0.0, %v534
    %v536 = vpop.f32.mrb[0].mxu0
    %v537 = vpop.f32.mrb[0].mxu0
    %v538 = vadd.f32 0.0, %v537
    %v539 = vpop.f32.mrb[0].mxu0
    %540 = vmatprep.mubr.bf16.mxu0 0
    %541 = vmatmul.mubr.bf16.gmra.mrb[0].mxu0 %v497
    %v542 = vpop.f32.mrb[0].mxu0
    %v543 = vadd.f32 0.0, %v542
    %v544 = vpop.f32.mrb[0].mxu0
    %v545 = vpop.f32.mrb[0].mxu0
    %v546 = vadd.f32 0.0, %v545
    %v547 = vpop.f32.mrb[0].mxu0
    %548 = vdwg.mxu0
    %s549 = scalar_lea.vmem [#allocation4], 16
    %v550 = vld [vmem:[%s549] sm:$0xf]
    %v551 = vld [vmem:[%s549 + $0x4] sm:$0xf]
    %v552 = vld [vmem:[%s549 + $0x8] sm:$0xf]
    %v553 = vld [vmem:[%s549 + $0xc] sm:$0xf]
    %v558 = vunpack.c.l.b16 %v550
    %v559 = vunpack.c.l.b16 %v551
    %v560 = vunpack.c.l.b16 %v552
    %v561 = vunpack.c.l.b16 %v553
    %v562 = vpack.c.b16 %v559, %v558
    %v563 = vpack.c.b16 %v561, %v560
    %566 = vmatprep.subr.bf16.mxu0 0
    %567 = vmatpush1.bf16.msra.mxu0 %v476
    %568 = vmatprep.subr.bf16.mxu0 0
    %569 = vmatpush1.bf16.msra.mxu0 %v477
    %570 = vmatprep.subr.bf16.mxu0 0
    %571 = vmatpush1.bf16.msra.mxu0 %v478
    %572 = vmatprep.subr.bf16.mxu0 0
    %573 = vmatpush1.bf16.msra.mxu0 %v479
    %574 = vmatprep.subr.bf16.mxu0 0
    %575 = vmatpush1.bf16.msra.mxu0 %v480
    %576 = vmatprep.subr.bf16.mxu0 0
    %577 = vmatpush1.bf16.msra.mxu0 %v481
    %578 = vmatprep.subr.bf16.mxu0 0
    %579 = vmatpush1.bf16.msra.mxu0 %v482
    %580 = vmatprep.subr.bf16.mxu0 0
    %581 = vmatpush1.bf16.msra.mxu0 %v483
    %582 = vmatprep.subr.bf16.mxu0 0
    %583 = vmatpush1.bf16.msra.mxu0 0
    %584 = vmatprep.subr.bf16.mxu0 0
    %585 = vmatpush1.bf16.msra.mxu0 0
    %586 = vmatprep.subr.bf16.mxu0 0
    %587 = vmatpush1.bf16.msra.mxu0 0
    %588 = vmatprep.subr.bf16.mxu0 0
    %589 = vmatpush1.bf16.msra.mxu0 0
    %590 = vmatprep.subr.bf16.mxu0 0
    %591 = vmatpush1.bf16.msra.mxu0 0
    %592 = vmatprep.subr.bf16.mxu0 0
    %593 = vmatpush1.bf16.msra.mxu0 0
    %594 = vmatprep.subr.bf16.mxu0 0
    %595 = vmatpush1.bf16.msra.mxu0 0
    %596 = vmatprep.subr.bf16.mxu0 0
    %597 = vmatpush1.bf16.msra.mxu0 0
    %598 = vmatprep.mubr.bf16.mxu0 0
    %599 = vmatmul.mubr.bf16.gmra.mrb[0].mxu0 %v562
    %v600 = vpop.f32.mrb[0].mxu0
    %v601 = vadd.f32 0.0, %v600
    %v602 = vpop.f32.mrb[0].mxu0
    %v603 = vpop.f32.mrb[0].mxu0
    %v604 = vadd.f32 0.0, %v603
    %v605 = vpop.f32.mrb[0].mxu0
    %606 = vmatprep.mubr.bf16.mxu0 0
    %607 = vmatmul.mubr.bf16.gmra.mrb[0].mxu0 %v563
    %v608 = vpop.f32.mrb[0].mxu0
    %v609 = vadd.f32 0.0, %v608
    %v610 = vpop.f32.mrb[0].mxu0
    %v611 = vpop.f32.mrb[0].mxu0
    %v612 = vadd.f32 0.0, %v611
    %v613 = vpop.f32.mrb[0].mxu0
    %614 = vdwg.mxu0
    %s615 = scalar_lea.vmem [#allocation4], 32
    %v616 = vld [vmem:[%s615] sm:$0xf]
    %v617 = vld [vmem:[%s615 + $0x4] sm:$0xf]
    %v618 = vld [vmem:[%s615 + $0x8] sm:$0xf]
    %v619 = vld [vmem:[%s615 + $0xc] sm:$0xf]
    %v624 = vunpack.c.l.b16 %v616
    %v625 = vunpack.c.l.b16 %v617
    %v626 = vunpack.c.l.b16 %v618
    %v627 = vunpack.c.l.b16 %v619
    %v628 = vpack.c.b16 %v625, %v624
    %v629 = vpack.c.b16 %v627, %v626
    %632 = vmatprep.subr.bf16.mxu0 0
    %633 = vmatpush1.bf16.msra.mxu0 %v476
    %634 = vmatprep.subr.bf16.mxu0 0
    %635 = vmatpush1.bf16.msra.mxu0 %v477
    %636 = vmatprep.subr.bf16.mxu0 0
    %637 = vmatpush1.bf16.msra.mxu0 %v478
    %638 = vmatprep.subr.bf16.mxu0 0
    %639 = vmatpush1.bf16.msra.mxu0 %v479
    %640 = vmatprep.subr.bf16.mxu0 0
    %641 = vmatpush1.bf16.msra.mxu0 %v480
    %642 = vmatprep.subr.bf16.mxu0 0
    %643 = vmatpush1.bf16.msra.mxu0 %v481
    %644 = vmatprep.subr.bf16.mxu0 0
    %645 = vmatpush1.bf16.msra.mxu0 %v482
    %646 = vmatprep.subr.bf16.mxu0 0
    %647 = vmatpush1.bf16.msra.mxu0 %v483
    %648 = vmatprep.subr.bf16.mxu0 0
    %649 = vmatpush1.bf16.msra.mxu0 0
    %650 = vmatprep.subr.bf16.mxu0 0
    %651 = vmatpush1.bf16.msra.mxu0 0
    %652 = vmatprep.subr.bf16.mxu0 0
    %653 = vmatpush1.bf16.msra.mxu0 0
    %654 = vmatprep.subr.bf16.mxu0 0
    %655 = vmatpush1.bf16.msra.mxu0 0
    %656 = vmatprep.subr.bf16.mxu0 0
    %657 = vmatpush1.bf16.msra.mxu0 0
    %658 = vmatprep.subr.bf16.mxu0 0
    %659 = vmatpush1.bf16.msra.mxu0 0
    %660 = vmatprep.subr.bf16.mxu0 0
    %661 = vmatpush1.bf16.msra.mxu0 0
    %662 = vmatprep.subr.bf16.mxu0 0
    %663 = vmatpush1.bf16.msra.mxu0 0
    %664 = vmatprep.mubr.bf16.mxu0 0
    %665 = vmatmul.mubr.bf16.gmra.mrb[0].mxu0 %v628
    %v666 = vpop.f32.mrb[0].mxu0
    %v667 = vadd.f32 0.0, %v666
    %v668 = vpop.f32.mrb[0].mxu0
    %v669 = vpop.f32.mrb[0].mxu0
    %v670 = vadd.f32 0.0, %v669
    %v671 = vpop.f32.mrb[0].mxu0
    %672 = vmatprep.mubr.bf16.mxu0 0
    %673 = vmatmul.mubr.bf16.gmra.mrb[0].mxu0 %v629
    %v674 = vpop.f32.mrb[0].mxu0
    %v675 = vadd.f32 0.0, %v674
    %v676 = vpop.f32.mrb[0].mxu0
    %v677 = vpop.f32.mrb[0].mxu0
    %v678 = vadd.f32 0.0, %v677
    %v679 = vpop.f32.mrb[0].mxu0
    %680 = vdwg.mxu0
    %s681 = scalar_lea.vmem [#allocation4], 48
    %v682 = vld [vmem:[%s681] sm:$0xf]
    %v683 = vld [vmem:[%s681 + $0x4] sm:$0xf]
    %v684 = vld [vmem:[%s681 + $0x8] sm:$0xf]
    %v685 = vld [vmem:[%s681 + $0xc] sm:$0xf]
    %v690 = vunpack.c.l.b16 %v682
    %v691 = vunpack.c.l.b16 %v683
    %v692 = vunpack.c.l.b16 %v684
    %v693 = vunpack.c.l.b16 %v685
    %v694 = vpack.c.b16 %v691, %v690
    %v695 = vpack.c.b16 %v693, %v692
    %698 = vmatprep.subr.bf16.mxu0 0
    %699 = vmatpush1.bf16.msra.mxu0 %v476
    %700 = vmatprep.subr.bf16.mxu0 0
    %701 = vmatpush1.bf16.msra.mxu0 %v477
    %702 = vmatprep.subr.bf16.mxu0 0
    %703 = vmatpush1.bf16.msra.mxu0 %v478
    %704 = vmatprep.subr.bf16.mxu0 0
    %705 = vmatpush1.bf16.msra.mxu0 %v479
    %706 = vmatprep.subr.bf16.mxu0 0
    %707 = vmatpush1.bf16.msra.mxu0 %v480
    %708 = vmatprep.subr.bf16.mxu0 0
    %709 = vmatpush1.bf16.msra.mxu0 %v481
    %710 = vmatprep.subr.bf16.mxu0 0
    %711 = vmatpush1.bf16.msra.mxu0 %v482
    %712 = vmatprep.subr.bf16.mxu0 0
    %713 = vmatpush1.bf16.msra.mxu0 %v483
    %714 = vmatprep.subr.bf16.mxu0 0
    %715 = vmatpush1.bf16.msra.mxu0 0
    %716 = vmatprep.subr.bf16.mxu0 0
    %717 = vmatpush1.bf16.msra.mxu0 0
    %718 = vmatprep.subr.bf16.mxu0 0
    %719 = vmatpush1.bf16.msra.mxu0 0
    %720 = vmatprep.subr.bf16.mxu0 0
    %721 = vmatpush1.bf16.msra.mxu0 0
    %722 = vmatprep.subr.bf16.mxu0 0
    %723 = vmatpush1.bf16.msra.mxu0 0
    %724 = vmatprep.subr.bf16.mxu0 0
    %725 = vmatpush1.bf16.msra.mxu0 0
    %726 = vmatprep.subr.bf16.mxu0 0
    %727 = vmatpush1.bf16.msra.mxu0 0
    %728 = vmatprep.subr.bf16.mxu0 0
    %729 = vmatpush1.bf16.msra.mxu0 0
    %730 = vmatprep.mubr.bf16.mxu0 0
    %731 = vmatmul.mubr.bf16.gmra.mrb[0].mxu0 %v694
    %v732 = vpop.f32.mrb[0].mxu0
    %v733 = vadd.f32 0.0, %v732
    %v734 = vpop.f32.mrb[0].mxu0
    %v735 = vpop.f32.mrb[0].mxu0
    %v736 = vadd.f32 0.0, %v735
    %v737 = vpop.f32.mrb[0].mxu0
    %738 = vmatprep.mubr.bf16.mxu0 0
    %739 = vmatmul.mubr.bf16.gmra.mrb[0].mxu0 %v695
    %v740 = vpop.f32.mrb[0].mxu0
    %v741 = vadd.f32 0.0, %v740
    %v742 = vpop.f32.mrb[0].mxu0
    %v743 = vpop.f32.mrb[0].mxu0
    %v744 = vadd.f32 0.0, %v743
    %v745 = vpop.f32.mrb[0].mxu0
    %746 = vdwg.mxu0
    %s747 = scalar_lea.vmem [#allocation4], 64
    %v748 = vld [vmem:[%s747] sm:$0xf]
    %v749 = vld [vmem:[%s747 + $0x4] sm:$0xf]
    %v750 = vld [vmem:[%s747 + $0x8] sm:$0xf]
    %v751 = vld [vmem:[%s747 + $0xc] sm:$0xf]
    %v756 = vunpack.c.l.b16 %v748
    %v757 = vunpack.c.l.b16 %v749
    %v758 = vunpack.c.l.b16 %v750
    %v759 = vunpack.c.l.b16 %v751
    %v760 = vpack.c.b16 %v757, %v756
    %v761 = vpack.c.b16 %v759, %v758
    %764 = vmatprep.subr.bf16.mxu0 0
    %765 = vmatpush1.bf16.msra.mxu0 %v476
    %766 = vmatprep.subr.bf16.mxu0 0
    %767 = vmatpush1.bf16.msra.mxu0 %v477
    %768 = vmatprep.subr.bf16.mxu0 0
    %769 = vmatpush1.bf16.msra.mxu0 %v478
    %770 = vmatprep.subr.bf16.mxu0 0
    %771 = vmatpush1.bf16.msra.mxu0 %v479
    %772 = vmatprep.subr.bf16.mxu0 0
    %773 = vmatpush1.bf16.msra.mxu0 %v480
    %774 = vmatprep.subr.bf16.mxu0 0
    %775 = vmatpush1.bf16.msra.mxu0 %v481
    %776 = vmatprep.subr.bf16.mxu0 0
    %777 = vmatpush1.bf16.msra.mxu0 %v482
    %778 = vmatprep.subr.bf16.mxu0 0
    %779 = vmatpush1.bf16.msra.mxu0 %v483
    %780 = vmatprep.subr.bf16.mxu0 0
    %781 = vmatpush1.bf16.msra.mxu0 0
    %782 = vmatprep.subr.bf16.mxu0 0
    %783 = vmatpush1.bf16.msra.mxu0 0
    %784 = vmatprep.subr.bf16.mxu0 0
    %785 = vmatpush1.bf16.msra.mxu0 0
    %786 = vmatprep.subr.bf16.mxu0 0
    %787 = vmatpush1.bf16.msra.mxu0 0
    %788 = vmatprep.subr.bf16.mxu0 0
    %789 = vmatpush1.bf16.msra.mxu0 0
    %790 = vmatprep.subr.bf16.mxu0 0
    %791 = vmatpush1.bf16.msra.mxu0 0
    %792 = vmatprep.subr.bf16.mxu0 0
    %793 = vmatpush1.bf16.msra.mxu0 0
    %794 = vmatprep.subr.bf16.mxu0 0
    %795 = vmatpush1.bf16.msra.mxu0 0
    %796 = vmatprep.mubr.bf16.mxu0 0
    %797 = vmatmul.mubr.bf16.gmra.mrb[0].mxu0 %v760
    %v798 = vpop.f32.mrb[0].mxu0
    %v799 = vadd.f32 0.0, %v798
    %v800 = vpop.f32.mrb[0].mxu0
    %v801 = vpop.f32.mrb[0].mxu0
    %v802 = vadd.f32 0.0, %v801
    %v803 = vpop.f32.mrb[0].mxu0
    %804 = vmatprep.mubr.bf16.mxu0 0
    %805 = vmatmul.mubr.bf16.gmra.mrb[0].mxu0 %v761
    %v806 = vpop.f32.mrb[0].mxu0
    %v807 = vadd.f32 0.0, %v806
    %v808 = vpop.f32.mrb[0].mxu0
    %v809 = vpop.f32.mrb[0].mxu0
    %v810 = vadd.f32 0.0, %v809
    %v811 = vpop.f32.mrb[0].mxu0
    %812 = vdwg.mxu0
    %s813 = scalar_lea.vmem [#allocation4], 80
    %v814 = vld [vmem:[%s813] sm:$0xf]
    %v815 = vld [vmem:[%s813 + $0x4] sm:$0xf]
    %v816 = vld [vmem:[%s813 + $0x8] sm:$0xf]
    %v817 = vld [vmem:[%s813 + $0xc] sm:$0xf]
    %v822 = vunpack.c.l.b16 %v814
    %v823 = vunpack.c.l.b16 %v815
    %v824 = vunpack.c.l.b16 %v816
    %v825 = vunpack.c.l.b16 %v817
    %v826 = vpack.c.b16 %v823, %v822
    %v827 = vpack.c.b16 %v825, %v824
    %830 = vmatprep.subr.bf16.mxu0 0
    %831 = vmatpush1.bf16.msra.mxu0 %v476
    %832 = vmatprep.subr.bf16.mxu0 0
    %833 = vmatpush1.bf16.msra.mxu0 %v477
    %834 = vmatprep.subr.bf16.mxu0 0
    %835 = vmatpush1.bf16.msra.mxu0 %v478
    %836 = vmatprep.subr.bf16.mxu0 0
    %837 = vmatpush1.bf16.msra.mxu0 %v479
    %838 = vmatprep.subr.bf16.mxu0 0
    %839 = vmatpush1.bf16.msra.mxu0 %v480
    %840 = vmatprep.subr.bf16.mxu0 0
    %841 = vmatpush1.bf16.msra.mxu0 %v481
    %842 = vmatprep.subr.bf16.mxu0 0
    %843 = vmatpush1.bf16.msra.mxu0 %v482
    %844 = vmatprep.subr.bf16.mxu0 0
    %845 = vmatpush1.bf16.msra.mxu0 %v483
    %846 = vmatprep.subr.bf16.mxu0 0
    %847 = vmatpush1.bf16.msra.mxu0 0
    %848 = vmatprep.subr.bf16.mxu0 0
    %849 = vmatpush1.bf16.msra.mxu0 0
    %850 = vmatprep.subr.bf16.mxu0 0
    %851 = vmatpush1.bf16.msra.mxu0 0
    %852 = vmatprep.subr.bf16.mxu0 0
    %853 = vmatpush1.bf16.msra.mxu0 0
    %854 = vmatprep.subr.bf16.mxu0 0
    %855 = vmatpush1.bf16.msra.mxu0 0
    %856 = vmatprep.subr.bf16.mxu0 0
    %857 = vmatpush1.bf16.msra.mxu0 0
    %858 = vmatprep.subr.bf16.mxu0 0
    %859 = vmatpush1.bf16.msra.mxu0 0
    %860 = vmatprep.subr.bf16.mxu0 0
    %861 = vmatpush1.bf16.msra.mxu0 0
    %862 = vmatprep.mubr.bf16.mxu0 0
    %863 = vmatmul.mubr.bf16.gmra.mrb[0].mxu0 %v826
    %v864 = vpop.f32.mrb[0].mxu0
    %v865 = vadd.f32 0.0, %v864
    %v866 = vpop.f32.mrb[0].mxu0
    %v867 = vpop.f32.mrb[0].mxu0
    %v868 = vadd.f32 0.0, %v867
    %v869 = vpop.f32.mrb[0].mxu0
    %870 = vmatprep.mubr.bf16.mxu0 0
    %871 = vmatmul.mubr.bf16.gmra.mrb[0].mxu0 %v827
    %v872 = vpop.f32.mrb[0].mxu0
    %v873 = vadd.f32 0.0, %v872
    %v874 = vpop.f32.mrb[0].mxu0
    %v875 = vpop.f32.mrb[0].mxu0
    %v876 = vadd.f32 0.0, %v875
    %v877 = vpop.f32.mrb[0].mxu0
    %878 = vdwg.mxu0
    %s879 = scalar_lea.vmem [#allocation4], 96
    %v880 = vld [vmem:[%s879] sm:$0xf]
    %v881 = vld [vmem:[%s879 + $0x4] sm:$0xf]
    %v882 = vld [vmem:[%s879 + $0x8] sm:$0xf]
    %v883 = vld [vmem:[%s879 + $0xc] sm:$0xf]
    %v888 = vunpack.c.l.b16 %v880
    %v889 = vunpack.c.l.b16 %v881
    %v890 = vunpack.c.l.b16 %v882
    %v891 = vunpack.c.l.b16 %v883
    %v892 = vpack.c.b16 %v889, %v888
    %v893 = vpack.c.b16 %v891, %v890
    %896 = vmatprep.subr.bf16.mxu0 0
    %897 = vmatpush1.bf16.msra.mxu0 %v476
    %898 = vmatprep.subr.bf16.mxu0 0
    %899 = vmatpush1.bf16.msra.mxu0 %v477
    %900 = vmatprep.subr.bf16.mxu0 0
    %901 = vmatpush1.bf16.msra.mxu0 %v478
    %902 = vmatprep.subr.bf16.mxu0 0
    %903 = vmatpush1.bf16.msra.mxu0 %v479
    %904 = vmatprep.subr.bf16.mxu0 0
    %905 = vmatpush1.bf16.msra.mxu0 %v480
    %906 = vmatprep.subr.bf16.mxu0 0
    %907 = vmatpush1.bf16.msra.mxu0 %v481
    %908 = vmatprep.subr.bf16.mxu0 0
    %909 = vmatpush1.bf16.msra.mxu0 %v482
    %910 = vmatprep.subr.bf16.mxu0 0
    %911 = vmatpush1.bf16.msra.mxu0 %v483
    %912 = vmatprep.subr.bf16.mxu0 0
    %913 = vmatpush1.bf16.msra.mxu0 0
    %914 = vmatprep.subr.bf16.mxu0 0
    %915 = vmatpush1.bf16.msra.mxu0 0
    %916 = vmatprep.subr.bf16.mxu0 0
    %917 = vmatpush1.bf16.msra.mxu0 0
    %918 = vmatprep.subr.bf16.mxu0 0
    %919 = vmatpush1.bf16.msra.mxu0 0
    %920 = vmatprep.subr.bf16.mxu0 0
    %921 = vmatpush1.bf16.msra.mxu0 0
    %922 = vmatprep.subr.bf16.mxu0 0
    %923 = vmatpush1.bf16.msra.mxu0 0
    %924 = vmatprep.subr.bf16.mxu0 0
    %925 = vmatpush1.bf16.msra.mxu0 0
    %926 = vmatprep.subr.bf16.mxu0 0
    %927 = vmatpush1.bf16.msra.mxu0 0
    %928 = vmatprep.mubr.bf16.mxu0 0
    %929 = vmatmul.mubr.bf16.gmra.mrb[0].mxu0 %v892
    %v930 = vpop.f32.mrb[0].mxu0
    %v931 = vadd.f32 0.0, %v930
    %v932 = vpop.f32.mrb[0].mxu0
    %v933 = vpop.f32.mrb[0].mxu0
    %v934 = vadd.f32 0.0, %v933
    %v935 = vpop.f32.mrb[0].mxu0
    %936 = vmatprep.mubr.bf16.mxu0 0
    %937 = vmatmul.mubr.bf16.gmra.mrb[0].mxu0 %v893
    %v938 = vpop.f32.mrb[0].mxu0
    %v939 = vadd.f32 0.0, %v938
    %v940 = vpop.f32.mrb[0].mxu0
    %v941 = vpop.f32.mrb[0].mxu0
    %v942 = vadd.f32 0.0, %v941
    %v943 = vpop.f32.mrb[0].mxu0
    %944 = vdwg.mxu0
    %s945 = scalar_lea.vmem [#allocation4], 112
    %v946 = vld [vmem:[%s945] sm:$0xf]
    %v947 = vld [vmem:[%s945 + $0x4] sm:$0xf]
    %v948 = vld [vmem:[%s945 + $0x8] sm:$0xf]
    %v949 = vld [vmem:[%s945 + $0xc] sm:$0xf]
    %v954 = vunpack.c.l.b16 %v946
    %v955 = vunpack.c.l.b16 %v947
    %v956 = vunpack.c.l.b16 %v948
    %v957 = vunpack.c.l.b16 %v949
    %v958 = vpack.c.b16 %v955, %v954
    %v959 = vpack.c.b16 %v957, %v956
    %962 = vmatprep.subr.bf16.mxu0 0
    %963 = vmatpush1.bf16.msra.mxu0 %v476
    %964 = vmatprep.subr.bf16.mxu0 0
    %965 = vmatpush1.bf16.msra.mxu0 %v477
    %966 = vmatprep.subr.bf16.mxu0 0
    %967 = vmatpush1.bf16.msra.mxu0 %v478
    %968 = vmatprep.subr.bf16.mxu0 0
    %969 = vmatpush1.bf16.msra.mxu0 %v479
    %970 = vmatprep.subr.bf16.mxu0 0
    %971 = vmatpush1.bf16.msra.mxu0 %v480
    %972 = vmatprep.subr.bf16.mxu0 0
    %973 = vmatpush1.bf16.msra.mxu0 %v481
    %974 = vmatprep.subr.bf16.mxu0 0
    %975 = vmatpush1.bf16.msra.mxu0 %v482
    %976 = vmatprep.subr.bf16.mxu0 0
    %977 = vmatpush1.bf16.msra.mxu0 %v483
    %978 = vmatprep.subr.bf16.mxu0 0
    %979 = vmatpush1.bf16.msra.mxu0 0
    %980 = vmatprep.subr.bf16.mxu0 0
    %981 = vmatpush1.bf16.msra.mxu0 0
    %982 = vmatprep.subr.bf16.mxu0 0
    %983 = vmatpush1.bf16.msra.mxu0 0
    %984 = vmatprep.subr.bf16.mxu0 0
    %985 = vmatpush1.bf16.msra.mxu0 0
    %986 = vmatprep.subr.bf16.mxu0 0
    %987 = vmatpush1.bf16.msra.mxu0 0
    %988 = vmatprep.subr.bf16.mxu0 0
    %989 = vmatpush1.bf16.msra.mxu0 0
    %990 = vmatprep.subr.bf16.mxu0 0
    %991 = vmatpush1.bf16.msra.mxu0 0
    %992 = vmatprep.subr.bf16.mxu0 0
    %993 = vmatpush1.bf16.msra.mxu0 0
    %994 = vmatprep.mubr.bf16.mxu0 0
    %995 = vmatmul.mubr.bf16.gmra.mrb[0].mxu0 %v958
    %v996 = vpop.f32.mrb[0].mxu0
    %v997 = vadd.f32 0.0, %v996
    %v998 = vpop.f32.mrb[0].mxu0
    %v999 = vpop.f32.mrb[0].mxu0
    %v1000 = vadd.f32 0.0, %v999
    %v1001 = vpop.f32.mrb[0].mxu0
    %1002 = vmatprep.mubr.bf16.mxu0 0
    %1003 = vmatmul.mubr.bf16.gmra.mrb[0].mxu0 %v959
    %v1004 = vpop.f32.mrb[0].mxu0
    %v1005 = vadd.f32 0.0, %v1004
    %v1006 = vpop.f32.mrb[0].mxu0
    %v1007 = vpop.f32.mrb[0].mxu0
    %v1008 = vadd.f32 0.0, %v1007
    %v1009 = vpop.f32.mrb[0].mxu0
    %1010 = vdwg.mxu0
    %s1011 = scalar_lea.vmem [#allocation4], 128
    %v1012 = vld [vmem:[%s1011] sm:$0xf]
    %v1013 = vld [vmem:[%s1011 + $0x4] sm:$0xf]
    %v1014 = vld [vmem:[%s1011 + $0x8] sm:$0xf]
    %v1015 = vld [vmem:[%s1011 + $0xc] sm:$0xf]
    %v1020 = vunpack.c.l.b16 %v1012
    %v1021 = vunpack.c.l.b16 %v1013
    %v1022 = vunpack.c.l.b16 %v1014
    %v1023 = vunpack.c.l.b16 %v1015
    %v1024 = vpack.c.b16 %v1021, %v1020
    %v1025 = vpack.c.b16 %v1023, %v1022
    %1028 = vmatprep.subr.bf16.mxu0 0
    %1029 = vmatpush1.bf16.msra.mxu0 %v476
    %1030 = vmatprep.subr.bf16.mxu0 0
    %1031 = vmatpush1.bf16.msra.mxu0 %v477
    %1032 = vmatprep.subr.bf16.mxu0 0
    %1033 = vmatpush1.bf16.msra.mxu0 %v478
    %1034 = vmatprep.subr.bf16.mxu0 0
    %1035 = vmatpush1.bf16.msra.mxu0 %v479
    %1036 = vmatprep.subr.bf16.mxu0 0
    %1037 = vmatpush1.bf16.msra.mxu0 %v480
    %1038 = vmatprep.subr.bf16.mxu0 0
    %1039 = vmatpush1.bf16.msra.mxu0 %v481
    %1040 = vmatprep.subr.bf16.mxu0 0
    %1041 = vmatpush1.bf16.msra.mxu0 %v482
    %1042 = vmatprep.subr.bf16.mxu0 0
    %1043 = vmatpush1.bf16.msra.mxu0 %v483
    %1044 = vmatprep.subr.bf16.mxu0 0
    %1045 = vmatpush1.bf16.msra.mxu0 0
    %1046 = vmatprep.subr.bf16.mxu0 0
    %1047 = vmatpush1.bf16.msra.mxu0 0
    %1048 = vmatprep.subr.bf16.mxu0 0
    %1049 = vmatpush1.bf16.msra.mxu0 0
    %1050 = vmatprep.subr.bf16.mxu0 0
    %1051 = vmatpush1.bf16.msra.mxu0 0
    %1052 = vmatprep.subr.bf16.mxu0 0
    %1053 = vmatpush1.bf16.msra.mxu0 0
    %1054 = vmatprep.subr.bf16.mxu0 0
    %1055 = vmatpush1.bf16.msra.mxu0 0
    %1056 = vmatprep.subr.bf16.mxu0 0
    %1057 = vmatpush1.bf16.msra.mxu0 0
    %1058 = vmatprep.subr.bf16.mxu0 0
    %1059 = vmatpush1.bf16.msra.mxu0 0
    %1060 = vmatprep.mubr.bf16.mxu0 0
    %1061 = vmatmul.mubr.bf16.gmra.mrb[0].mxu0 %v1024
    %v1062 = vpop.f32.mrb[0].mxu0
    %v1063 = vadd.f32 0.0, %v1062
    %v1064 = vpop.f32.mrb[0].mxu0
    %v1065 = vpop.f32.mrb[0].mxu0
    %v1066 = vadd.f32 0.0, %v1065
    %v1067 = vpop.f32.mrb[0].mxu0
    %1068 = vmatprep.mubr.bf16.mxu0 0
    %1069 = vmatmul.mubr.bf16.gmra.mrb[0].mxu0 %v1025
    %v1070 = vpop.f32.mrb[0].mxu0
    %v1071 = vadd.f32 0.0, %v1070
    %v1072 = vpop.f32.mrb[0].mxu0
    %v1073 = vpop.f32.mrb[0].mxu0
    %v1074 = vadd.f32 0.0, %v1073
    %v1075 = vpop.f32.mrb[0].mxu0
    %1076 = vdwg.mxu0
    %s1077 = scalar_lea.vmem [#allocation4], 144
    %v1078 = vld [vmem:[%s1077] sm:$0xf]
    %v1079 = vld [vmem:[%s1077 + $0x4] sm:$0xf]
    %v1080 = vld [vmem:[%s1077 + $0x8] sm:$0xf]
    %v1081 = vld [vmem:[%s1077 + $0xc] sm:$0xf]
    %v1086 = vunpack.c.l.b16 %v1078
    %v1087 = vunpack.c.l.b16 %v1079
    %v1088 = vunpack.c.l.b16 %v1080
    %v1089 = vunpack.c.l.b16 %v1081
    %v1090 = vpack.c.b16 %v1087, %v1086
    %v1091 = vpack.c.b16 %v1089, %v1088
    %1094 = vmatprep.subr.bf16.mxu0 0
    %1095 = vmatpush1.bf16.msra.mxu0 %v476
    %1096 = vmatprep.subr.bf16.mxu0 0
    %1097 = vmatpush1.bf16.msra.mxu0 %v477
    %1098 = vmatprep.subr.bf16.mxu0 0
    %1099 = vmatpush1.bf16.msra.mxu0 %v478
    %1100 = vmatprep.subr.bf16.mxu0 0
    %1101 = vmatpush1.bf16.msra.mxu0 %v479
    %1102 = vmatprep.subr.bf16.mxu0 0
    %1103 = vmatpush1.bf16.msra.mxu0 %v480
    %1104 = vmatprep.subr.bf16.mxu0 0
    %1105 = vmatpush1.bf16.msra.mxu0 %v481
    %1106 = vmatprep.subr.bf16.mxu0 0
    %1107 = vmatpush1.bf16.msra.mxu0 %v482
    %1108 = vmatprep.subr.bf16.mxu0 0
    %1109 = vmatpush1.bf16.msra.mxu0 %v483
    %1110 = vmatprep.subr.bf16.mxu0 0
    %1111 = vmatpush1.bf16.msra.mxu0 0
    %1112 = vmatprep.subr.bf16.mxu0 0
    %1113 = vmatpush1.bf16.msra.mxu0 0
    %1114 = vmatprep.subr.bf16.mxu0 0
    %1115 = vmatpush1.bf16.msra.mxu0 0
    %1116 = vmatprep.subr.bf16.mxu0 0
    %1117 = vmatpush1.bf16.msra.mxu0 0
    %1118 = vmatprep.subr.bf16.mxu0 0
    %1119 = vmatpush1.bf16.msra.mxu0 0
    %1120 = vmatprep.subr.bf16.mxu0 0
    %1121 = vmatpush1.bf16.msra.mxu0 0
    %1122 = vmatprep.subr.bf16.mxu0 0
    %1123 = vmatpush1.bf16.msra.mxu0 0
    %1124 = vmatprep.subr.bf16.mxu0 0
    %1125 = vmatpush1.bf16.msra.mxu0 0
    %1126 = vmatprep.mubr.bf16.mxu0 0
    %1127 = vmatmul.mubr.bf16.gmra.mrb[0].mxu0 %v1090
    %v1128 = vpop.f32.mrb[0].mxu0
    %v1129 = vadd.f32 0.0, %v1128
    %v1130 = vpop.f32.mrb[0].mxu0
    %v1131 = vpop.f32.mrb[0].mxu0
    %v1132 = vadd.f32 0.0, %v1131
    %v1133 = vpop.f32.mrb[0].mxu0
    %1134 = vmatprep.mubr.bf16.mxu0 0
    %1135 = vmatmul.mubr.bf16.gmra.mrb[0].mxu0 %v1091
    %v1136 = vpop.f32.mrb[0].mxu0
    %v1137 = vadd.f32 0.0, %v1136
    %v1138 = vpop.f32.mrb[0].mxu0
    %v1139 = vpop.f32.mrb[0].mxu0
    %v1140 = vadd.f32 0.0, %v1139
    %v1141 = vpop.f32.mrb[0].mxu0
    %1142 = vdwg.mxu0
    %s1143 = scalar_lea.vmem [#allocation4], 160
    %v1144 = vld [vmem:[%s1143] sm:$0xf]
    %v1145 = vld [vmem:[%s1143 + $0x4] sm:$0xf]
    %v1146 = vld [vmem:[%s1143 + $0x8] sm:$0xf]
    %v1147 = vld [vmem:[%s1143 + $0xc] sm:$0xf]
    %v1152 = vunpack.c.l.b16 %v1144
    %v1153 = vunpack.c.l.b16 %v1145
    %v1154 = vunpack.c.l.b16 %v1146
    %v1155 = vunpack.c.l.b16 %v1147
    %v1156 = vpack.c.b16 %v1153, %v1152
    %v1157 = vpack.c.b16 %v1155, %v1154
    %1160 = vmatprep.subr.bf16.mxu0 0
    %1161 = vmatpush1.bf16.msra.mxu0 %v476
    %1162 = vmatprep.subr.bf16.mxu0 0
    %1163 = vmatpush1.bf16.msra.mxu0 %v477
    %1164 = vmatprep.subr.bf16.mxu0 0
    %1165 = vmatpush1.bf16.msra.mxu0 %v478
    %1166 = vmatprep.subr.bf16.mxu0 0
    %1167 = vmatpush1.bf16.msra.mxu0 %v479
    %1168 = vmatprep.subr.bf16.mxu0 0
    %1169 = vmatpush1.bf16.msra.mxu0 %v480
    %1170 = vmatprep.subr.bf16.mxu0 0
    %1171 = vmatpush1.bf16.msra.mxu0 %v481
    %1172 = vmatprep.subr.bf16.mxu0 0
    %1173 = vmatpush1.bf16.msra.mxu0 %v482
    %1174 = vmatprep.subr.bf16.mxu0 0
    %1175 = vmatpush1.bf16.msra.mxu0 %v483
    %1176 = vmatprep.subr.bf16.mxu0 0
    %1177 = vmatpush1.bf16.msra.mxu0 0
    %1178 = vmatprep.subr.bf16.mxu0 0
    %1179 = vmatpush1.bf16.msra.mxu0 0
    %1180 = vmatprep.subr.bf16.mxu0 0
    %1181 = vmatpush1.bf16.msra.mxu0 0
    %1182 = vmatprep.subr.bf16.mxu0 0
    %1183 = vmatpush1.bf16.msra.mxu0 0
    %1184 = vmatprep.subr.bf16.mxu0 0
    %1185 = vmatpush1.bf16.msra.mxu0 0
    %1186 = vmatprep.subr.bf16.mxu0 0
    %1187 = vmatpush1.bf16.msra.mxu0 0
    %1188 = vmatprep.subr.bf16.mxu0 0
    %1189 = vmatpush1.bf16.msra.mxu0 0
    %1190 = vmatprep.subr.bf16.mxu0 0
    %1191 = vmatpush1.bf16.msra.mxu0 0
    %1192 = vmatprep.mubr.bf16.mxu0 0
    %1193 = vmatmul.mubr.bf16.gmra.mrb[0].mxu0 %v1156
    %v1194 = vpop.f32.mrb[0].mxu0
    %v1195 = vadd.f32 0.0, %v1194
    %v1196 = vpop.f32.mrb[0].mxu0
    %v1197 = vpop.f32.mrb[0].mxu0
    %v1198 = vadd.f32 0.0, %v1197
    %v1199 = vpop.f32.mrb[0].mxu0
    %1200 = vmatprep.mubr.bf16.mxu0 0
    %1201 = vmatmul.mubr.bf16.gmra.mrb[0].mxu0 %v1157
    %v1202 = vpop.f32.mrb[0].mxu0
    %v1203 = vadd.f32 0.0, %v1202
    %v1204 = vpop.f32.mrb[0].mxu0
    %v1205 = vpop.f32.mrb[0].mxu0
    %v1206 = vadd.f32 0.0, %v1205
    %v1207 = vpop.f32.mrb[0].mxu0
    %1208 = vdwg.mxu0
    %s1209 = scalar_lea.vmem [#allocation4], 176
    %v1210 = vld [vmem:[%s1209] sm:$0xf]
    %v1211 = vld [vmem:[%s1209 + $0x4] sm:$0xf]
    %v1212 = vld [vmem:[%s1209 + $0x8] sm:$0xf]
    %v1213 = vld [vmem:[%s1209 + $0xc] sm:$0xf]
    %v1218 = vunpack.c.l.b16 %v1210
    %v1219 = vunpack.c.l.b16 %v1211
    %v1220 = vunpack.c.l.b16 %v1212
    %v1221 = vunpack.c.l.b16 %v1213
    %v1222 = vpack.c.b16 %v1219, %v1218
    %v1223 = vpack.c.b16 %v1221, %v1220
    %1226 = vmatprep.subr.bf16.mxu0 0
    %1227 = vmatpush1.bf16.msra.mxu0 %v476
    %1228 = vmatprep.subr.bf16.mxu0 0
    %1229 = vmatpush1.bf16.msra.mxu0 %v477
    %1230 = vmatprep.subr.bf16.mxu0 0
    %1231 = vmatpush1.bf16.msra.mxu0 %v478
    %1232 = vmatprep.subr.bf16.mxu0 0
    %1233 = vmatpush1.bf16.msra.mxu0 %v479
    %1234 = vmatprep.subr.bf16.mxu0 0
    %1235 = vmatpush1.bf16.msra.mxu0 %v480
    %1236 = vmatprep.subr.bf16.mxu0 0
    %1237 = vmatpush1.bf16.msra.mxu0 %v481
    %1238 = vmatprep.subr.bf16.mxu0 0
    %1239 = vmatpush1.bf16.msra.mxu0 %v482
    %1240 = vmatprep.subr.bf16.mxu0 0
    %1241 = vmatpush1.bf16.msra.mxu0 %v483
    %1242 = vmatprep.subr.bf16.mxu0 0
    %1243 = vmatpush1.bf16.msra.mxu0 0
    %1244 = vmatprep.subr.bf16.mxu0 0
    %1245 = vmatpush1.bf16.msra.mxu0 0
    %1246 = vmatprep.subr.bf16.mxu0 0
    %1247 = vmatpush1.bf16.msra.mxu0 0
    %1248 = vmatprep.subr.bf16.mxu0 0
    %1249 = vmatpush1.bf16.msra.mxu0 0
    %1250 = vmatprep.subr.bf16.mxu0 0
    %1251 = vmatpush1.bf16.msra.mxu0 0
    %1252 = vmatprep.subr.bf16.mxu0 0
    %1253 = vmatpush1.bf16.msra.mxu0 0
    %1254 = vmatprep.subr.bf16.mxu0 0
    %1255 = vmatpush1.bf16.msra.mxu0 0
    %1256 = vmatprep.subr.bf16.mxu0 0
    %1257 = vmatpush1.bf16.msra.mxu0 0
    %1258 = vmatprep.mubr.bf16.mxu0 0
    %1259 = vmatmul.mubr.bf16.gmra.mrb[0].mxu0 %v1222
    %v1260 = vpop.f32.mrb[0].mxu0
    %v1261 = vadd.f32 0.0, %v1260
    %v1262 = vpop.f32.mrb[0].mxu0
    %v1263 = vpop.f32.mrb[0].mxu0
    %v1264 = vadd.f32 0.0, %v1263
    %v1265 = vpop.f32.mrb[0].mxu0
    %1266 = vmatprep.mubr.bf16.mxu0 0
    %1267 = vmatmul.mubr.bf16.gmra.mrb[0].mxu0 %v1223
    %v1268 = vpop.f32.mrb[0].mxu0
    %v1269 = vadd.f32 0.0, %v1268
    %v1270 = vpop.f32.mrb[0].mxu0
    %v1271 = vpop.f32.mrb[0].mxu0
    %v1272 = vadd.f32 0.0, %v1271
    %v1273 = vpop.f32.mrb[0].mxu0
    %1274 = vdwg.mxu0
    %s1275 = scalar_lea.vmem [#allocation4], 192
    %v1276 = vld [vmem:[%s1275] sm:$0xf]
    %v1277 = vld [vmem:[%s1275 + $0x4] sm:$0xf]
    %v1278 = vld [vmem:[%s1275 + $0x8] sm:$0xf]
    %v1279 = vld [vmem:[%s1275 + $0xc] sm:$0xf]
    %v1284 = vunpack.c.l.b16 %v1276
    %v1285 = vunpack.c.l.b16 %v1277
    %v1286 = vunpack.c.l.b16 %v1278
    %v1287 = vunpack.c.l.b16 %v1279
    %v1288 = vpack.c.b16 %v1285, %v1284
    %v1289 = vpack.c.b16 %v1287, %v1286
    %1292 = vmatprep.subr.bf16.mxu0 0
    %1293 = vmatpush1.bf16.msra.mxu0 %v476
    %1294 = vmatprep.subr.bf16.mxu0 0
    %1295 = vmatpush1.bf16.msra.mxu0 %v477
    %1296 = vmatprep.subr.bf16.mxu0 0
    %1297 = vmatpush1.bf16.msra.mxu0 %v478
    %1298 = vmatprep.subr.bf16.mxu0 0
    %1299 = vmatpush1.bf16.msra.mxu0 %v479
    %1300 = vmatprep.subr.bf16.mxu0 0
    %1301 = vmatpush1.bf16.msra.mxu0 %v480
    %1302 = vmatprep.subr.bf16.mxu0 0
    %1303 = vmatpush1.bf16.msra.mxu0 %v481
    %1304 = vmatprep.subr.bf16.mxu0 0
    %1305 = vmatpush1.bf16.msra.mxu0 %v482
    %1306 = vmatprep.subr.bf16.mxu0 0
    %1307 = vmatpush1.bf16.msra.mxu0 %v483
    %1308 = vmatprep.subr.bf16.mxu0 0
    %1309 = vmatpush1.bf16.msra.mxu0 0
    %1310 = vmatprep.subr.bf16.mxu0 0
    %1311 = vmatpush1.bf16.msra.mxu0 0
    %1312 = vmatprep.subr.bf16.mxu0 0
    %1313 = vmatpush1.bf16.msra.mxu0 0
    %1314 = vmatprep.subr.bf16.mxu0 0
    %1315 = vmatpush1.bf16.msra.mxu0 0
    %1316 = vmatprep.subr.bf16.mxu0 0
    %1317 = vmatpush1.bf16.msra.mxu0 0
    %1318 = vmatprep.subr.bf16.mxu0 0
    %1319 = vmatpush1.bf16.msra.mxu0 0
    %1320 = vmatprep.subr.bf16.mxu0 0
    %1321 = vmatpush1.bf16.msra.mxu0 0
    %1322 = vmatprep.subr.bf16.mxu0 0
    %1323 = vmatpush1.bf16.msra.mxu0 0
    %1324 = vmatprep.mubr.bf16.mxu0 0
    %1325 = vmatmul.mubr.bf16.gmra.mrb[0].mxu0 %v1288
    %v1326 = vpop.f32.mrb[0].mxu0
    %v1327 = vadd.f32 0.0, %v1326
    %v1328 = vpop.f32.mrb[0].mxu0
    %v1329 = vpop.f32.mrb[0].mxu0
    %v1330 = vadd.f32 0.0, %v1329
    %v1331 = vpop.f32.mrb[0].mxu0
    %1332 = vmatprep.mubr.bf16.mxu0 0
    %1333 = vmatmul.mubr.bf16.gmra.mrb[0].mxu0 %v1289
    %v1334 = vpop.f32.mrb[0].mxu0
    %v1335 = vadd.f32 0.0, %v1334
    %v1336 = vpop.f32.mrb[0].mxu0
    %v1337 = vpop.f32.mrb[0].mxu0
    %v1338 = vadd.f32 0.0, %v1337
    %v1339 = vpop.f32.mrb[0].mxu0
    %1340 = vdwg.mxu0
    %s1341 = scalar_lea.vmem [#allocation4], 208
    %v1342 = vld [vmem:[%s1341] sm:$0xf]
    %v1343 = vld [vmem:[%s1341 + $0x4] sm:$0xf]
    %v1344 = vld [vmem:[%s1341 + $0x8] sm:$0xf]
    %v1345 = vld [vmem:[%s1341 + $0xc] sm:$0xf]
    %v1350 = vunpack.c.l.b16 %v1342
    %v1351 = vunpack.c.l.b16 %v1343
    %v1352 = vunpack.c.l.b16 %v1344
    %v1353 = vunpack.c.l.b16 %v1345
    %v1354 = vpack.c.b16 %v1351, %v1350
    %v1355 = vpack.c.b16 %v1353, %v1352
    %1358 = vmatprep.subr.bf16.mxu0 0
    %1359 = vmatpush1.bf16.msra.mxu0 %v476
    %1360 = vmatprep.subr.bf16.mxu0 0
    %1361 = vmatpush1.bf16.msra.mxu0 %v477
    %1362 = vmatprep.subr.bf16.mxu0 0
    %1363 = vmatpush1.bf16.msra.mxu0 %v478
    %1364 = vmatprep.subr.bf16.mxu0 0
    %1365 = vmatpush1.bf16.msra.mxu0 %v479
    %1366 = vmatprep.subr.bf16.mxu0 0
    %1367 = vmatpush1.bf16.msra.mxu0 %v480
    %1368 = vmatprep.subr.bf16.mxu0 0
    %1369 = vmatpush1.bf16.msra.mxu0 %v481
    %1370 = vmatprep.subr.bf16.mxu0 0
    %1371 = vmatpush1.bf16.msra.mxu0 %v482
    %1372 = vmatprep.subr.bf16.mxu0 0
    %1373 = vmatpush1.bf16.msra.mxu0 %v483
    %1374 = vmatprep.subr.bf16.mxu0 0
    %1375 = vmatpush1.bf16.msra.mxu0 0
    %1376 = vmatprep.subr.bf16.mxu0 0
    %1377 = vmatpush1.bf16.msra.mxu0 0
    %1378 = vmatprep.subr.bf16.mxu0 0
    %1379 = vmatpush1.bf16.msra.mxu0 0
    %1380 = vmatprep.subr.bf16.mxu0 0
    %1381 = vmatpush1.bf16.msra.mxu0 0
    %1382 = vmatprep.subr.bf16.mxu0 0
    %1383 = vmatpush1.bf16.msra.mxu0 0
    %1384 = vmatprep.subr.bf16.mxu0 0
    %1385 = vmatpush1.bf16.msra.mxu0 0
    %1386 = vmatprep.subr.bf16.mxu0 0
    %1387 = vmatpush1.bf16.msra.mxu0 0
    %1388 = vmatprep.subr.bf16.mxu0 0
    %1389 = vmatpush1.bf16.msra.mxu0 0
    %1390 = vmatprep.mubr.bf16.mxu0 0
    %1391 = vmatmul.mubr.bf16.gmra.mrb[0].mxu0 %v1354
    %v1392 = vpop.f32.mrb[0].mxu0
    %v1393 = vadd.f32 0.0, %v1392
    %v1394 = vpop.f32.mrb[0].mxu0
    %v1395 = vpop.f32.mrb[0].mxu0
    %v1396 = vadd.f32 0.0, %v1395
    %v1397 = vpop.f32.mrb[0].mxu0
    %1398 = vmatprep.mubr.bf16.mxu0 0
    %1399 = vmatmul.mubr.bf16.gmra.mrb[0].mxu0 %v1355
    %v1400 = vpop.f32.mrb[0].mxu0
    %v1401 = vadd.f32 0.0, %v1400
    %v1402 = vpop.f32.mrb[0].mxu0
    %v1403 = vpop.f32.mrb[0].mxu0
    %v1404 = vadd.f32 0.0, %v1403
    %v1405 = vpop.f32.mrb[0].mxu0
    %1406 = vdwg.mxu0
    %s1407 = scalar_lea.vmem [#allocation4], 224
    %v1408 = vld [vmem:[%s1407] sm:$0xf]
    %v1409 = vld [vmem:[%s1407 + $0x4] sm:$0xf]
    %v1410 = vld [vmem:[%s1407 + $0x8] sm:$0xf]
    %v1411 = vld [vmem:[%s1407 + $0xc] sm:$0xf]
    %v1416 = vunpack.c.l.b16 %v1408
    %v1417 = vunpack.c.l.b16 %v1409
    %v1418 = vunpack.c.l.b16 %v1410
    %v1419 = vunpack.c.l.b16 %v1411
    %v1420 = vpack.c.b16 %v1417, %v1416
    %v1421 = vpack.c.b16 %v1419, %v1418
    %1424 = vmatprep.subr.bf16.mxu0 0
    %1425 = vmatpush1.bf16.msra.mxu0 %v476
    %1426 = vmatprep.subr.bf16.mxu0 0
    %1427 = vmatpush1.bf16.msra.mxu0 %v477
    %1428 = vmatprep.subr.bf16.mxu0 0
    %1429 = vmatpush1.bf16.msra.mxu0 %v478
    %1430 = vmatprep.subr.bf16.mxu0 0
    %1431 = vmatpush1.bf16.msra.mxu0 %v479
    %1432 = vmatprep.subr.bf16.mxu0 0
    %1433 = vmatpush1.bf16.msra.mxu0 %v480
    %1434 = vmatprep.subr.bf16.mxu0 0
    %1435 = vmatpush1.bf16.msra.mxu0 %v481
    %1436 = vmatprep.subr.bf16.mxu0 0
    %1437 = vmatpush1.bf16.msra.mxu0 %v482
    %1438 = vmatprep.subr.bf16.mxu0 0
    %1439 = vmatpush1.bf16.msra.mxu0 %v483
    %1440 = vmatprep.subr.bf16.mxu0 0
    %1441 = vmatpush1.bf16.msra.mxu0 0
    %1442 = vmatprep.subr.bf16.mxu0 0
    %1443 = vmatpush1.bf16.msra.mxu0 0
    %1444 = vmatprep.subr.bf16.mxu0 0
    %1445 = vmatpush1.bf16.msra.mxu0 0
    %1446 = vmatprep.subr.bf16.mxu0 0
    %1447 = vmatpush1.bf16.msra.mxu0 0
    %1448 = vmatprep.subr.bf16.mxu0 0
    %1449 = vmatpush1.bf16.msra.mxu0 0
    %1450 = vmatprep.subr.bf16.mxu0 0
    %1451 = vmatpush1.bf16.msra.mxu0 0
    %1452 = vmatprep.subr.bf16.mxu0 0
    %1453 = vmatpush1.bf16.msra.mxu0 0
    %1454 = vmatprep.subr.bf16.mxu0 0
    %1455 = vmatpush1.bf16.msra.mxu0 0
    %1456 = vmatprep.mubr.bf16.mxu0 0
    %1457 = vmatmul.mubr.bf16.gmra.mrb[0].mxu0 %v1420
    %v1458 = vpop.f32.mrb[0].mxu0
    %v1459 = vadd.f32 0.0, %v1458
    %v1460 = vpop.f32.mrb[0].mxu0
    %v1461 = vpop.f32.mrb[0].mxu0
    %v1462 = vadd.f32 0.0, %v1461
    %v1463 = vpop.f32.mrb[0].mxu0
    %1464 = vmatprep.mubr.bf16.mxu0 0
    %1465 = vmatmul.mubr.bf16.gmra.mrb[0].mxu0 %v1421
    %v1466 = vpop.f32.mrb[0].mxu0
    %v1467 = vadd.f32 0.0, %v1466
    %v1468 = vpop.f32.mrb[0].mxu0
    %v1469 = vpop.f32.mrb[0].mxu0
    %v1470 = vadd.f32 0.0, %v1469
    %v1471 = vpop.f32.mrb[0].mxu0
    %1472 = vdwg.mxu0
    %s1473 = scalar_lea.vmem [#allocation4], 240
    %v1474 = vld [vmem:[%s1473] sm:$0xf]
    %v1475 = vld [vmem:[%s1473 + $0x4] sm:$0xf]
    %v1476 = vld [vmem:[%s1473 + $0x8] sm:$0xf]
    %v1477 = vld [vmem:[%s1473 + $0xc] sm:$0xf]
    %v1482 = vunpack.c.l.b16 %v1474
    %v1483 = vunpack.c.l.b16 %v1475
    %v1484 = vunpack.c.l.b16 %v1476
    %v1485 = vunpack.c.l.b16 %v1477
    %v1486 = vpack.c.b16 %v1483, %v1482
    %v1487 = vpack.c.b16 %v1485, %v1484
    %1490 = vmatprep.subr.bf16.mxu0 0
    %1491 = vmatpush1.bf16.msra.mxu0 %v476
    %1492 = vmatprep.subr.bf16.mxu0 0
    %1493 = vmatpush1.bf16.msra.mxu0 %v477
    %1494 = vmatprep.subr.bf16.mxu0 0
    %1495 = vmatpush1.bf16.msra.mxu0 %v478
    %1496 = vmatprep.subr.bf16.mxu0 0
    %1497 = vmatpush1.bf16.msra.mxu0 %v479
    %1498 = vmatprep.subr.bf16.mxu0 0
    %1499 = vmatpush1.bf16.msra.mxu0 %v480
    %1500 = vmatprep.subr.bf16.mxu0 0
    %1501 = vmatpush1.bf16.msra.mxu0 %v481
    %1502 = vmatprep.subr.bf16.mxu0 0
    %1503 = vmatpush1.bf16.msra.mxu0 %v482
    %1504 = vmatprep.subr.bf16.mxu0 0
    %1505 = vmatpush1.bf16.msra.mxu0 %v483
    %1506 = vmatprep.subr.bf16.mxu0 0
    %1507 = vmatpush1.bf16.msra.mxu0 0
    %1508 = vmatprep.subr.bf16.mxu0 0
    %1509 = vmatpush1.bf16.msra.mxu0 0
    %1510 = vmatprep.subr.bf16.mxu0 0
    %1511 = vmatpush1.bf16.msra.mxu0 0
    %1512 = vmatprep.subr.bf16.mxu0 0
    %1513 = vmatpush1.bf16.msra.mxu0 0
    %1514 = vmatprep.subr.bf16.mxu0 0
    %1515 = vmatpush1.bf16.msra.mxu0 0
    %1516 = vmatprep.subr.bf16.mxu0 0
    %1517 = vmatpush1.bf16.msra.mxu0 0
    %1518 = vmatprep.subr.bf16.mxu0 0
    %1519 = vmatpush1.bf16.msra.mxu0 0
    %1520 = vmatprep.subr.bf16.mxu0 0
    %1521 = vmatpush1.bf16.msra.mxu0 0
    %1522 = vmatprep.mubr.bf16.mxu0 0
    %1523 = vmatmul.mubr.bf16.gmra.mrb[0].mxu0 %v1486
    %v1524 = vpop.f32.mrb[0].mxu0
    %v1525 = vadd.f32 0.0, %v1524
    %v1526 = vpop.f32.mrb[0].mxu0
    %v1527 = vpop.f32.mrb[0].mxu0
    %v1528 = vadd.f32 0.0, %v1527
    %v1529 = vpop.f32.mrb[0].mxu0
    %1530 = vmatprep.mubr.bf16.mxu0 0
    %1531 = vmatmul.mubr.bf16.gmra.mrb[0].mxu0 %v1487
    %v1532 = vpop.f32.mrb[0].mxu0
    %v1533 = vadd.f32 0.0, %v1532
    %v1534 = vpop.f32.mrb[0].mxu0
    %v1535 = vpop.f32.mrb[0].mxu0
    %v1536 = vadd.f32 0.0, %v1535
    %v1537 = vpop.f32.mrb[0].mxu0
    %1538 = vdwg.mxu0
    %1543 = vrot.lane.b32.xlu0 %v601, 32
    %v1544 = vpop.permute.xlu0 %1543
    %1545 = vrot.lane.b32.xlu0 %v604, 32
    %v1546 = vpop.permute.xlu0 %1545
    %1547 = vrot.lane.b32.xlu0 %v609, 32
    %v1548 = vpop.permute.xlu0 %1547
    %1549 = vrot.lane.b32.xlu0 %v612, 32
    %v1550 = vpop.permute.xlu0 %1549
    %1559 = vrot.lane.b32.xlu0 %v667, 64
    %v1560 = vpop.permute.xlu0 %1559
    %1561 = vrot.lane.b32.xlu0 %v670, 64
    %v1562 = vpop.permute.xlu0 %1561
    %1563 = vrot.lane.b32.xlu0 %v675, 64
    %v1564 = vpop.permute.xlu0 %1563
    %1565 = vrot.lane.b32.xlu0 %v678, 64
    %v1566 = vpop.permute.xlu0 %1565
    %1575 = vrot.lane.b32.xlu0 %v733, 96
    %v1576 = vpop.permute.xlu0 %1575
    %1577 = vrot.lane.b32.xlu0 %v736, 96
    %v1578 = vpop.permute.xlu0 %1577
    %1579 = vrot.lane.b32.xlu0 %v741, 96
    %v1580 = vpop.permute.xlu0 %1579
    %1581 = vrot.lane.b32.xlu0 %v744, 96
    %v1582 = vpop.permute.xlu0 %1581
    %1591 = vrot.lane.b32.xlu0 %v865, 32
    %v1592 = vpop.permute.xlu0 %1591
    %1593 = vrot.lane.b32.xlu0 %v868, 32
    %v1594 = vpop.permute.xlu0 %1593
    %1595 = vrot.lane.b32.xlu0 %v873, 32
    %v1596 = vpop.permute.xlu0 %1595
    %1597 = vrot.lane.b32.xlu0 %v876, 32
    %v1598 = vpop.permute.xlu0 %1597
    %1607 = vrot.lane.b32.xlu0 %v931, 64
    %v1608 = vpop.permute.xlu0 %1607
    %1609 = vrot.lane.b32.xlu0 %v934, 64
    %v1610 = vpop.permute.xlu0 %1609
    %1611 = vrot.lane.b32.xlu0 %v939, 64
    %v1612 = vpop.permute.xlu0 %1611
    %1613 = vrot.lane.b32.xlu0 %v942, 64
    %v1614 = vpop.permute.xlu0 %1613
    %1623 = vrot.lane.b32.xlu0 %v997, 96
    %v1624 = vpop.permute.xlu0 %1623
    %1625 = vrot.lane.b32.xlu0 %v1000, 96
    %v1626 = vpop.permute.xlu0 %1625
    %1627 = vrot.lane.b32.xlu0 %v1005, 96
    %v1628 = vpop.permute.xlu0 %1627
    %1629 = vrot.lane.b32.xlu0 %v1008, 96
    %v1630 = vpop.permute.xlu0 %1629
    %1639 = vrot.lane.b32.xlu0 %v1129, 32
    %v1640 = vpop.permute.xlu0 %1639
    %1641 = vrot.lane.b32.xlu0 %v1132, 32
    %v1642 = vpop.permute.xlu0 %1641
    %1643 = vrot.lane.b32.xlu0 %v1137, 32
    %v1644 = vpop.permute.xlu0 %1643
    %1645 = vrot.lane.b32.xlu0 %v1140, 32
    %v1646 = vpop.permute.xlu0 %1645
    %1655 = vrot.lane.b32.xlu0 %v1195, 64
    %v1656 = vpop.permute.xlu0 %1655
    %1657 = vrot.lane.b32.xlu0 %v1198, 64
    %v1658 = vpop.permute.xlu0 %1657
    %1659 = vrot.lane.b32.xlu0 %v1203, 64
    %v1660 = vpop.permute.xlu0 %1659
    %1661 = vrot.lane.b32.xlu0 %v1206, 64
    %v1662 = vpop.permute.xlu0 %1661
    %1671 = vrot.lane.b32.xlu0 %v1261, 96
    %v1672 = vpop.permute.xlu0 %1671
    %1673 = vrot.lane.b32.xlu0 %v1264, 96
    %v1674 = vpop.permute.xlu0 %1673
    %1675 = vrot.lane.b32.xlu0 %v1269, 96
    %v1676 = vpop.permute.xlu0 %1675
    %1677 = vrot.lane.b32.xlu0 %v1272, 96
    %v1678 = vpop.permute.xlu0 %1677
    %1687 = vrot.lane.b32.xlu0 %v1393, 32
    %v1688 = vpop.permute.xlu0 %1687
    %1689 = vrot.lane.b32.xlu0 %v1396, 32
    %v1690 = vpop.permute.xlu0 %1689
    %1691 = vrot.lane.b32.xlu0 %v1401, 32
    %v1692 = vpop.permute.xlu0 %1691
    %1693 = vrot.lane.b32.xlu0 %v1404, 32
    %v1694 = vpop.permute.xlu0 %1693
    %1703 = vrot.lane.b32.xlu0 %v1459, 64
    %v1704 = vpop.permute.xlu0 %1703
    %1705 = vrot.lane.b32.xlu0 %v1462, 64
    %v1706 = vpop.permute.xlu0 %1705
    %1707 = vrot.lane.b32.xlu0 %v1467, 64
    %v1708 = vpop.permute.xlu0 %1707
    %1709 = vrot.lane.b32.xlu0 %v1470, 64
    %v1710 = vpop.permute.xlu0 %1709
    %1719 = vrot.lane.b32.xlu0 %v1525, 96
    %v1720 = vpop.permute.xlu0 %1719
    %1721 = vrot.lane.b32.xlu0 %v1528, 96
    %v1722 = vpop.permute.xlu0 %1721
    %1723 = vrot.lane.b32.xlu0 %v1533, 96
    %v1724 = vpop.permute.xlu0 %1723
    %1725 = vrot.lane.b32.xlu0 %v1536, 96
    %v1726 = vpop.permute.xlu0 %1725
    %vm1731 = vcmask 261120
    %v1732 = vsel %vm1731, %v535, %v1544
    %v1733 = vsel %vm1731, %v538, %v1546
    %v1734 = vsel %vm1731, %v543, %v1548
    %v1735 = vsel %vm1731, %v546, %v1550
    %vm1736 = vcmask 523264
    %v1737 = vsel %vm1736, %v1732, %v1560
    %v1738 = vsel %vm1736, %v1733, %v1562
    %v1739 = vsel %vm1736, %v1734, %v1564
    %v1740 = vsel %vm1736, %v1735, %v1566
    %vm1741 = vcmask 785408
    %v1742 = vsel %vm1741, %v1737, %v1576
    %v1743 = vsel %vm1741, %v1738, %v1578
    %v1744 = vsel %vm1741, %v1739, %v1580
    %v1745 = vsel %vm1741, %v1740, %v1582
    %v1746 = vsel %vm1731, %v799, %v1592
    %v1747 = vsel %vm1731, %v802, %v1594
    %v1748 = vsel %vm1731, %v807, %v1596
    %v1749 = vsel %vm1731, %v810, %v1598
    %v1750 = vsel %vm1736, %v1746, %v1608
    %v1751 = vsel %vm1736, %v1747, %v1610
    %v1752 = vsel %vm1736, %v1748, %v1612
    %v1753 = vsel %vm1736, %v1749, %v1614
    %v1754 = vsel %vm1741, %v1750, %v1624
    %v1755 = vsel %vm1741, %v1751, %v1626
    %v1756 = vsel %vm1741, %v1752, %v1628
    %v1757 = vsel %vm1741, %v1753, %v1630
    %v1758 = vsel %vm1731, %v1063, %v1640
    %v1759 = vsel %vm1731, %v1066, %v1642
    %v1760 = vsel %vm1731, %v1071, %v1644
    %v1761 = vsel %vm1731, %v1074, %v1646
    %v1762 = vsel %vm1736, %v1758, %v1656
    %v1763 = vsel %vm1736, %v1759, %v1658
    %v1764 = vsel %vm1736, %v1760, %v1660
    %v1765 = vsel %vm1736, %v1761, %v1662
    %v1766 = vsel %vm1741, %v1762, %v1672
    %v1767 = vsel %vm1741, %v1763, %v1674
    %v1768 = vsel %vm1741, %v1764, %v1676
    %v1769 = vsel %vm1741, %v1765, %v1678
    %v1770 = vsel %vm1731, %v1327, %v1688
    %v1771 = vsel %vm1731, %v1330, %v1690
    %v1772 = vsel %vm1731, %v1335, %v1692
    %v1773 = vsel %vm1731, %v1338, %v1694
    %v1774 = vsel %vm1736, %v1770, %v1704
    %v1775 = vsel %vm1736, %v1771, %v1706
    %v1776 = vsel %vm1736, %v1772, %v1708
    %v1777 = vsel %vm1736, %v1773, %v1710
    %v1778 = vsel %vm1741, %v1774, %v1720
    %v1779 = vsel %vm1741, %v1775, %v1722
    %v1780 = vsel %vm1741, %v1776, %v1724
    %v1781 = vsel %vm1741, %v1777, %v1726
    %v1782 = vpack.c.bf16 %v1743, %v1742
    %v1783 = vpack.c.bf16 %v1755, %v1754
    %v1784 = vpack.c.bf16 %v1767, %v1766
    %v1785 = vpack.c.bf16 %v1779, %v1778
    %v1786 = vpack.c.bf16 %v1745, %v1744
    %v1787 = vpack.c.bf16 %v1757, %v1756
    %v1788 = vpack.c.bf16 %v1769, %v1768
    %v1789 = vpack.c.bf16 %v1781, %v1780
    %v1790 = vld [vmem:[%s4] sm:$0xf]
    %v1791 = vld [vmem:[%s4 + $0x4] sm:$0xf]
    %v1792 = vld [vmem:[%s4 + $0x8] sm:$0xf]
    %v1793 = vld [vmem:[%s4 + $0xc] sm:$0xf]
    %v1794 = vld [vmem:[%s4 + $0x10] sm:$0xf]
    %v1795 = vld [vmem:[%s4 + $0x14] sm:$0xf]
    %v1796 = vld [vmem:[%s4 + $0x18] sm:$0xf]
    %v1797 = vld [vmem:[%s4 + $0x1c] sm:$0xf]
    %v1798 = vld [vmem:[%s4 + $0x20] sm:$0xf]
    %v1799 = vld [vmem:[%s4 + $0x24] sm:$0xf]
    %v1800 = vld [vmem:[%s4 + $0x28] sm:$0xf]
    %v1801 = vld [vmem:[%s4 + $0x2c] sm:$0xf]
    %v1802 = vld [vmem:[%s4 + $0x30] sm:$0xf]
    %v1803 = vld [vmem:[%s4 + $0x34] sm:$0xf]
    %v1804 = vld [vmem:[%s4 + $0x38] sm:$0xf]
    %v1805 = vld [vmem:[%s4 + $0x3c] sm:$0xf]
    %v1806 = vld [vmem:[%s4 + $0x40] sm:$0xf]
    %v1807 = vld [vmem:[%s4 + $0x44] sm:$0xf]
    %v1808 = vld [vmem:[%s4 + $0x48] sm:$0xf]
    %v1809 = vld [vmem:[%s4 + $0x4c] sm:$0xf]
    %v1810 = vld [vmem:[%s4 + $0x50] sm:$0xf]
    %v1811 = vld [vmem:[%s4 + $0x54] sm:$0xf]
    %v1812 = vld [vmem:[%s4 + $0x58] sm:$0xf]
    %v1813 = vld [vmem:[%s4 + $0x5c] sm:$0xf]
    %v1814 = vld [vmem:[%s4 + $0x60] sm:$0xf]
    %v1815 = vld [vmem:[%s4 + $0x64] sm:$0xf]
    %v1816 = vld [vmem:[%s4 + $0x68] sm:$0xf]
    %v1817 = vld [vmem:[%s4 + $0x6c] sm:$0xf]
    %v1818 = vld [vmem:[%s4 + $0x70] sm:$0xf]
    %v1819 = vld [vmem:[%s4 + $0x74] sm:$0xf]
    %v1820 = vld [vmem:[%s4 + $0x78] sm:$0xf]
    %v1821 = vld [vmem:[%s4 + $0x7c] sm:$0xf]
    %v1822 = vld [vmem:[%s4 + $0x80] sm:$0xf]
    %v1823 = vld [vmem:[%s4 + $0x84] sm:$0xf]
    %v1824 = vld [vmem:[%s4 + $0x88] sm:$0xf]
    %v1825 = vld [vmem:[%s4 + $0x8c] sm:$0xf]
    %v1826 = vld [vmem:[%s4 + $0x90] sm:$0xf]
    %v1827 = vld [vmem:[%s4 + $0x94] sm:$0xf]
    %v1828 = vld [vmem:[%s4 + $0x98] sm:$0xf]
    %v1829 = vld [vmem:[%s4 + $0x9c] sm:$0xf]
    %v1830 = vld [vmem:[%s4 + $0xa0] sm:$0xf]
    %v1831 = vld [vmem:[%s4 + $0xa4] sm:$0xf]
    %v1832 = vld [vmem:[%s4 + $0xa8] sm:$0xf]
    %v1833 = vld [vmem:[%s4 + $0xac] sm:$0xf]
    %v1834 = vld [vmem:[%s4 + $0xb0] sm:$0xf]
    %v1835 = vld [vmem:[%s4 + $0xb4] sm:$0xf]
    %v1836 = vld [vmem:[%s4 + $0xb8] sm:$0xf]
    %v1837 = vld [vmem:[%s4 + $0xbc] sm:$0xf]
    %v1838 = vld [vmem:[%s4 + $0xc0] sm:$0xf]
    %v1839 = vld [vmem:[%s4 + $0xc4] sm:$0xf]
    %v1840 = vld [vmem:[%s4 + $0xc8] sm:$0xf]
    %v1841 = vld [vmem:[%s4 + $0xcc] sm:$0xf]
    %v1842 = vld [vmem:[%s4 + $0xd0] sm:$0xf]
    %v1843 = vld [vmem:[%s4 + $0xd4] sm:$0xf]
    %v1844 = vld [vmem:[%s4 + $0xd8] sm:$0xf]
    %v1845 = vld [vmem:[%s4 + $0xdc] sm:$0xf]
    %v1846 = vld [vmem:[%s4 + $0xe0] sm:$0xf]
    %v1847 = vld [vmem:[%s4 + $0xe4] sm:$0xf]
    %v1848 = vld [vmem:[%s4 + $0xe8] sm:$0xf]
    %v1849 = vld [vmem:[%s4 + $0xec] sm:$0xf]
    %v1850 = vld [vmem:[%s4 + $0xf0] sm:$0xf]
    %v1851 = vld [vmem:[%s4 + $0xf4] sm:$0xf]
    %v1852 = vld [vmem:[%s4 + $0xf8] sm:$0xf]
    %v1853 = vld [vmem:[%s4 + $0xfc] sm:$0xf]
    %v1854 = vld [vmem:[#allocation6] sm:$0x1]
    %v1856 = vlaneseq
    %v1857 = vshrl.u32 %v1856, 7
    %v1858 = vsub.s32 0, %v1857
    %v1859 = vrot.slane %v1854, %v1858
    %v1925 = vunpack.c.l.b16 %v1790
    %v1926 = vunpack.c.l.b16 %v1791
    %v1927 = vunpack.c.l.b16 %v1792
    %v1928 = vunpack.c.l.b16 %v1793
    %v1929 = vunpack.c.l.b16 %v1794
    %v1930 = vunpack.c.l.b16 %v1795
    %v1931 = vunpack.c.l.b16 %v1796
    %v1932 = vunpack.c.l.b16 %v1797
    %v1933 = vunpack.c.l.b16 %v1798
    %v1934 = vunpack.c.l.b16 %v1799
    %v1935 = vunpack.c.l.b16 %v1800
    %v1936 = vunpack.c.l.b16 %v1801
    %v1937 = vunpack.c.l.b16 %v1802
    %v1938 = vunpack.c.l.b16 %v1803
    %v1939 = vunpack.c.l.b16 %v1804
    %v1940 = vunpack.c.l.b16 %v1805
    %v1941 = vunpack.c.l.b16 %v1806
    %v1942 = vunpack.c.l.b16 %v1807
    %v1943 = vunpack.c.l.b16 %v1808
    %v1944 = vunpack.c.l.b16 %v1809
    %v1945 = vunpack.c.l.b16 %v1810
    %v1946 = vunpack.c.l.b16 %v1811
    %v1947 = vunpack.c.l.b16 %v1812
    %v1948 = vunpack.c.l.b16 %v1813
    %v1949 = vunpack.c.l.b16 %v1814
    %v1950 = vunpack.c.l.b16 %v1815
    %v1951 = vunpack.c.l.b16 %v1816
    %v1952 = vunpack.c.l.b16 %v1817
    %v1953 = vunpack.c.l.b16 %v1818
    %v1954 = vunpack.c.l.b16 %v1819
    %v1955 = vunpack.c.l.b16 %v1820
    %v1956 = vunpack.c.l.b16 %v1821
    %v1957 = vunpack.c.l.b16 %v1822
    %v1958 = vunpack.c.l.b16 %v1823
    %v1959 = vunpack.c.l.b16 %v1824
    %v1960 = vunpack.c.l.b16 %v1825
    %v1961 = vunpack.c.l.b16 %v1826
    %v1962 = vunpack.c.l.b16 %v1827
    %v1963 = vunpack.c.l.b16 %v1828
    %v1964 = vunpack.c.l.b16 %v1829
    %v1965 = vunpack.c.l.b16 %v1830
    %v1966 = vunpack.c.l.b16 %v1831
    %v1967 = vunpack.c.l.b16 %v1832
    %v1968 = vunpack.c.l.b16 %v1833
    %v1969 = vunpack.c.l.b16 %v1834
    %v1970 = vunpack.c.l.b16 %v1835
    %v1971 = vunpack.c.l.b16 %v1836
    %v1972 = vunpack.c.l.b16 %v1837
    %v1973 = vunpack.c.l.b16 %v1838
    %v1974 = vunpack.c.l.b16 %v1839
    %v1975 = vunpack.c.l.b16 %v1840
    %v1976 = vunpack.c.l.b16 %v1841
    %v1977 = vunpack.c.l.b16 %v1842
    %v1978 = vunpack.c.l.b16 %v1843
    %v1979 = vunpack.c.l.b16 %v1844
    %v1980 = vunpack.c.l.b16 %v1845
    %v1981 = vunpack.c.l.b16 %v1846
    %v1982 = vunpack.c.l.b16 %v1847
    %v1983 = vunpack.c.l.b16 %v1848
    %v1984 = vunpack.c.l.b16 %v1849
    %v1985 = vunpack.c.l.b16 %v1850
    %v1986 = vunpack.c.l.b16 %v1851
    %v1987 = vunpack.c.l.b16 %v1852
    %v1988 = vunpack.c.l.b16 %v1853
    %v1989 = vpack.c.b16 %v1926, %v1925
    %v1990 = vpack.c.b16 %v1928, %v1927
    %v1991 = vpack.c.b16 %v1930, %v1929
    %v1992 = vpack.c.b16 %v1932, %v1931
    %v1993 = vpack.c.b16 %v1934, %v1933
    %v1994 = vpack.c.b16 %v1936, %v1935
    %v1995 = vpack.c.b16 %v1938, %v1937
    %v1996 = vpack.c.b16 %v1940, %v1939
    %v1997 = vpack.c.b16 %v1942, %v1941
    %v1998 = vpack.c.b16 %v1944, %v1943
    %v1999 = vpack.c.b16 %v1946, %v1945
    %v2000 = vpack.c.b16 %v1948, %v1947
    %v2001 = vpack.c.b16 %v1950, %v1949
    %v2002 = vpack.c.b16 %v1952, %v1951
    %v2003 = vpack.c.b16 %v1954, %v1953
    %v2004 = vpack.c.b16 %v1956, %v1955
    %v2005 = vpack.c.b16 %v1958, %v1957
    %v2006 = vpack.c.b16 %v1960, %v1959
    %v2007 = vpack.c.b16 %v1962, %v1961
    %v2008 = vpack.c.b16 %v1964, %v1963
    %v2009 = vpack.c.b16 %v1966, %v1965
    %v2010 = vpack.c.b16 %v1968, %v1967
    %v2011 = vpack.c.b16 %v1970, %v1969
    %v2012 = vpack.c.b16 %v1972, %v1971
    %v2013 = vpack.c.b16 %v1974, %v1973
    %v2014 = vpack.c.b16 %v1976, %v1975
    %v2015 = vpack.c.b16 %v1978, %v1977
    %v2016 = vpack.c.b16 %v1980, %v1979
    %v2017 = vpack.c.b16 %v1982, %v1981
    %v2018 = vpack.c.b16 %v1984, %v1983
    %v2019 = vpack.c.b16 %v1986, %v1985
    %v2020 = vpack.c.b16 %v1988, %v1987
    %2053 = vmatprep.subr.bf16.mxu0 0
    %2054 = vmatpush1.bf16.msra.mxu0 %v1989
    %2055 = vmatprep.subr.bf16.mxu0 0
    %2056 = vmatpush1.bf16.msra.mxu0 %v1990
    %2057 = vmatprep.subr.bf16.mxu0 0
    %2058 = vmatpush1.bf16.msra.mxu0 %v1991
    %2059 = vmatprep.subr.bf16.mxu0 0
    %2060 = vmatpush1.bf16.msra.mxu0 %v1992
    %2061 = vmatprep.subr.bf16.mxu0 0
    %2062 = vmatpush1.bf16.msra.mxu0 %v1993
    %2063 = vmatprep.subr.bf16.mxu0 0
    %2064 = vmatpush1.bf16.msra.mxu0 %v1994
    %2065 = vmatprep.subr.bf16.mxu0 0
    %2066 = vmatpush1.bf16.msra.mxu0 %v1995
    %2067 = vmatprep.subr.bf16.mxu0 0
    %2068 = vmatpush1.bf16.msra.mxu0 %v1996
    %2069 = vmatprep.subr.bf16.mxu0 0
    %2070 = vmatpush1.bf16.msra.mxu0 %v1997
    %2071 = vmatprep.subr.bf16.mxu0 0
    %2072 = vmatpush1.bf16.msra.mxu0 %v1998
    %2073 = vmatprep.subr.bf16.mxu0 0
    %2074 = vmatpush1.bf16.msra.mxu0 %v1999
    %2075 = vmatprep.subr.bf16.mxu0 0
    %2076 = vmatpush1.bf16.msra.mxu0 %v2000
    %2077 = vmatprep.subr.bf16.mxu0 0
    %2078 = vmatpush1.bf16.msra.mxu0 %v2001
    %2079 = vmatprep.subr.bf16.mxu0 0
    %2080 = vmatpush1.bf16.msra.mxu0 %v2002
    %2081 = vmatprep.subr.bf16.mxu0 0
    %2082 = vmatpush1.bf16.msra.mxu0 %v2003
    %2083 = vmatprep.subr.bf16.mxu0 0
    %2084 = vmatpush1.bf16.msra.mxu0 %v2004
    %2085 = vmatprep.mubr.bf16.mxu0 %v1783
    %2086 = vmatmul.mubr.bf16.gmra.mrb[0].mxu0 %v1782
    %v2087 = vpop.f32.mrb[0].mxu0
    %v2088 = vadd.f32 %v1859, %v2087
    %v2089 = vpop.f32.mrb[0].mxu0
    %v2090 = vpop.f32.mrb[0].mxu0
    %v2091 = vadd.f32 %v1859, %v2090
    %v2092 = vpop.f32.mrb[0].mxu0
    %2093 = vmatprep.mubr.bf16.mxu0 %v1787
    %2094 = vmatmul.mubr.bf16.gmra.mrb[0].mxu0 %v1786
    %v2095 = vpop.f32.mrb[0].mxu0
    %v2096 = vadd.f32 %v1859, %v2095
    %v2097 = vpop.f32.mrb[0].mxu0
    %v2098 = vpop.f32.mrb[0].mxu0
    %v2099 = vadd.f32 %v1859, %v2098
    %v2100 = vpop.f32.mrb[0].mxu0
    %2101 = vdwg.mxu0
    %2102 = vmatprep.subr.bf16.mxu0 0
    %2103 = vmatpush1.bf16.msra.mxu0 %v2005
    %2104 = vmatprep.subr.bf16.mxu0 0
    %2105 = vmatpush1.bf16.msra.mxu0 %v2006
    %2106 = vmatprep.subr.bf16.mxu0 0
    %2107 = vmatpush1.bf16.msra.mxu0 %v2007
    %2108 = vmatprep.subr.bf16.mxu0 0
    %2109 = vmatpush1.bf16.msra.mxu0 %v2008
    %2110 = vmatprep.subr.bf16.mxu0 0
    %2111 = vmatpush1.bf16.msra.mxu0 %v2009
    %2112 = vmatprep.subr.bf16.mxu0 0
    %2113 = vmatpush1.bf16.msra.mxu0 %v2010
    %2114 = vmatprep.subr.bf16.mxu0 0
    %2115 = vmatpush1.bf16.msra.mxu0 %v2011
    %2116 = vmatprep.subr.bf16.mxu0 0
    %2117 = vmatpush1.bf16.msra.mxu0 %v2012
    %2118 = vmatprep.subr.bf16.mxu0 0
    %2119 = vmatpush1.bf16.msra.mxu0 %v2013
    %2120 = vmatprep.subr.bf16.mxu0 0
    %2121 = vmatpush1.bf16.msra.mxu0 %v2014
    %2122 = vmatprep.subr.bf16.mxu0 0
    %2123 = vmatpush1.bf16.msra.mxu0 %v2015
    %2124 = vmatprep.subr.bf16.mxu0 0
    %2125 = vmatpush1.bf16.msra.mxu0 %v2016
    %2126 = vmatprep.subr.bf16.mxu0 0
    %2127 = vmatpush1.bf16.msra.mxu0 %v2017
    %2128 = vmatprep.subr.bf16.mxu0 0
    %2129 = vmatpush1.bf16.msra.mxu0 %v2018
    %2130 = vmatprep.subr.bf16.mxu0 0
    %2131 = vmatpush1.bf16.msra.mxu0 %v2019
    %2132 = vmatprep.subr.bf16.mxu0 0
    %2133 = vmatpush1.bf16.msra.mxu0 %v2020
    %2134 = vmatprep.mubr.bf16.mxu0 %v1785
    %2135 = vmatmul.mubr.bf16.gmra.mrb[0].mxu0 %v1784
    %v2136 = vpop.f32.mrb[0].mxu0
    %v2137 = vadd.f32 %v2088, %v2136
    %v2138 = vpop.f32.mrb[0].mxu0
    %v2139 = vpop.f32.mrb[0].mxu0
    %v2140 = vadd.f32 %v2091, %v2139
    %v2141 = vpop.f32.mrb[0].mxu0
    %2142 = vmatprep.mubr.bf16.mxu0 %v1789
    %2143 = vmatmul.mubr.bf16.gmra.mrb[0].mxu0 %v1788
    %v2144 = vpop.f32.mrb[0].mxu0
    %v2145 = vadd.f32 %v2096, %v2144
    %v2146 = vpop.f32.mrb[0].mxu0
    %v2147 = vpop.f32.mrb[0].mxu0
    %v2148 = vadd.f32 %v2099, %v2147
    %v2149 = vpop.f32.mrb[0].mxu0
    %2150 = vdwg.mxu0
    %vm2151 = vcmp.gt.f32.partialorder %v2137, 0.0
    %vm2152 = vcmp.gt.f32.partialorder %v2140, 0.0
    %vm2153 = vcmp.gt.f32.partialorder %v2145, 0.0
    %vm2154 = vcmp.gt.f32.partialorder %v2148, 0.0
    %v2155 = vmul.f32 %v2137, 0.2
    %v2156 = vmul.f32 %v2140, 0.2
    %v2157 = vmul.f32 %v2145, 0.2
    %v2158 = vmul.f32 %v2148, 0.2
    %v2159 = vsel %vm2151, %v2137, %v2155
    %v2160 = vsel %vm2152, %v2140, %v2156
    %v2161 = vsel %vm2153, %v2145, %v2157
    %v2162 = vsel %vm2154, %v2148, %v2158
    %v2163 = vpack.c.bf16 %v2160, %v2159
    %v2164 = vpack.c.bf16 %v2162, %v2161
    %v2165 = vld [vmem:[#allocation7] sm:$0xf]
    %v2167 = vsel %vm1731, %v2165, 0
    %2169 = vmatprep.subr.bf16.mxu0 0
    %2170 = vmatpush1.bf16.msra.mxu0 %v2163
    %2171 = vmatprep.subr.bf16.mxu0 0
    %2172 = vmatpush1.bf16.msra.mxu0 %v2164
    %2173 = vmatprep.subr.bf16.mxu0 0
    %2174 = vmatpush1.bf16.msra.mxu0 0
    %2175 = vmatprep.subr.bf16.mxu0 0
    %2176 = vmatpush1.bf16.msra.mxu0 0
    %2177 = vmatprep.subr.bf16.mxu0 0
    %2178 = vmatpush1.bf16.msra.mxu0 0
    %2179 = vmatprep.subr.bf16.mxu0 0
    %2180 = vmatpush1.bf16.msra.mxu0 0
    %2181 = vmatprep.subr.bf16.mxu0 0
    %2182 = vmatpush1.bf16.msra.mxu0 0
    %2183 = vmatprep.subr.bf16.mxu0 0
    %2184 = vmatpush1.bf16.msra.mxu0 0
    %2185 = vmatprep.subr.bf16.mxu0 0
    %2186 = vmatpush1.bf16.msra.mxu0 0
    %2187 = vmatprep.subr.bf16.mxu0 0
    %2188 = vmatpush1.bf16.msra.mxu0 0
    %2189 = vmatprep.subr.bf16.mxu0 0
    %2190 = vmatpush1.bf16.msra.mxu0 0
    %2191 = vmatprep.subr.bf16.mxu0 0
    %2192 = vmatpush1.bf16.msra.mxu0 0
    %2193 = vmatprep.subr.bf16.mxu0 0
    %2194 = vmatpush1.bf16.msra.mxu0 0
    %2195 = vmatprep.subr.bf16.mxu0 0
    %2196 = vmatpush1.bf16.msra.mxu0 0
    %2197 = vmatprep.subr.bf16.mxu0 0
    %2198 = vmatpush1.bf16.msra.mxu0 0
    %2199 = vmatprep.subr.bf16.mxu0 0
    %2200 = vmatpush1.bf16.msra.mxu0 0
    %2201 = vmatprep.mubr.bf16.mxu0 0
    %2202 = vmatmul.mubr.bf16.gmra.mrb[0].mxu0 %v2167
    %v2203 = vpop.f32.mrb[0].mxu0
    %v2204 = vadd.f32 0.0, %v2203
    %v2205 = vpop.f32.mrb[0].mxu0
    %v2206 = vpop.f32.mrb[0].mxu0
    %v2207 = vpop.f32.mrb[0].mxu0
    %2208 = vdwg.mxu0
    %s2209 = scalar_lea.vmem [#allocation7], 4
    %v2210 = vld [vmem:[%s2209] sm:$0xf]
    %v2212 = vsel %vm1731, %v2210, 0
    %2214 = vmatprep.subr.bf16.mxu0 0
    %2215 = vmatpush1.bf16.msra.mxu0 %v2163
    %2216 = vmatprep.subr.bf16.mxu0 0
    %2217 = vmatpush1.bf16.msra.mxu0 %v2164
    %2218 = vmatprep.subr.bf16.mxu0 0
    %2219 = vmatpush1.bf16.msra.mxu0 0
    %2220 = vmatprep.subr.bf16.mxu0 0
    %2221 = vmatpush1.bf16.msra.mxu0 0
    %2222 = vmatprep.subr.bf16.mxu0 0
    %2223 = vmatpush1.bf16.msra.mxu0 0
    %2224 = vmatprep.subr.bf16.mxu0 0
    %2225 = vmatpush1.bf16.msra.mxu0 0
    %2226 = vmatprep.subr.bf16.mxu0 0
    %2227 = vmatpush1.bf16.msra.mxu0 0
    %2228 = vmatprep.subr.bf16.mxu0 0
    %2229 = vmatpush1.bf16.msra.mxu0 0
    %2230 = vmatprep.subr.bf16.mxu0 0
    %2231 = vmatpush1.bf16.msra.mxu0 0
    %2232 = vmatprep.subr.bf16.mxu0 0
    %2233 = vmatpush1.bf16.msra.mxu0 0
    %2234 = vmatprep.subr.bf16.mxu0 0
    %2235 = vmatpush1.bf16.msra.mxu0 0
    %2236 = vmatprep.subr.bf16.mxu0 0
    %2237 = vmatpush1.bf16.msra.mxu0 0
    %2238 = vmatprep.subr.bf16.mxu0 0
    %2239 = vmatpush1.bf16.msra.mxu0 0
    %2240 = vmatprep.subr.bf16.mxu0 0
    %2241 = vmatpush1.bf16.msra.mxu0 0
    %2242 = vmatprep.subr.bf16.mxu0 0
    %2243 = vmatpush1.bf16.msra.mxu0 0
    %2244 = vmatprep.subr.bf16.mxu0 0
    %2245 = vmatpush1.bf16.msra.mxu0 0
    %2246 = vmatprep.mubr.bf16.mxu0 0
    %2247 = vmatmul.mubr.bf16.gmra.mrb[0].mxu0 %v2212
    %v2248 = vpop.f32.mrb[0].mxu0
    %v2249 = vadd.f32 0.0, %v2248
    %v2250 = vpop.f32.mrb[0].mxu0
    %v2251 = vpop.f32.mrb[0].mxu0
    %v2252 = vpop.f32.mrb[0].mxu0
    %2253 = vdwg.mxu0
    %s2254 = scalar_lea.vmem [#allocation7], 8
    %v2255 = vld [vmem:[%s2254] sm:$0xf]
    %v2257 = vsel %vm1731, %v2255, 0
    %2259 = vmatprep.subr.bf16.mxu0 0
    %2260 = vmatpush1.bf16.msra.mxu0 %v2163
    %2261 = vmatprep.subr.bf16.mxu0 0
    %2262 = vmatpush1.bf16.msra.mxu0 %v2164
    %2263 = vmatprep.subr.bf16.mxu0 0
    %2264 = vmatpush1.bf16.msra.mxu0 0
    %2265 = vmatprep.subr.bf16.mxu0 0
    %2266 = vmatpush1.bf16.msra.mxu0 0
    %2267 = vmatprep.subr.bf16.mxu0 0
    %2268 = vmatpush1.bf16.msra.mxu0 0
    %2269 = vmatprep.subr.bf16.mxu0 0
    %2270 = vmatpush1.bf16.msra.mxu0 0
    %2271 = vmatprep.subr.bf16.mxu0 0
    %2272 = vmatpush1.bf16.msra.mxu0 0
    %2273 = vmatprep.subr.bf16.mxu0 0
    %2274 = vmatpush1.bf16.msra.mxu0 0
    %2275 = vmatprep.subr.bf16.mxu0 0
    %2276 = vmatpush1.bf16.msra.mxu0 0
    %2277 = vmatprep.subr.bf16.mxu0 0
    %2278 = vmatpush1.bf16.msra.mxu0 0
    %2279 = vmatprep.subr.bf16.mxu0 0
    %2280 = vmatpush1.bf16.msra.mxu0 0
    %2281 = vmatprep.subr.bf16.mxu0 0
    %2282 = vmatpush1.bf16.msra.mxu0 0
    %2283 = vmatprep.subr.bf16.mxu0 0
    %2284 = vmatpush1.bf16.msra.mxu0 0
    %2285 = vmatprep.subr.bf16.mxu0 0
    %2286 = vmatpush1.bf16.msra.mxu0 0
    %2287 = vmatprep.subr.bf16.mxu0 0
    %2288 = vmatpush1.bf16.msra.mxu0 0
    %2289 = vmatprep.subr.bf16.mxu0 0
    %2290 = vmatpush1.bf16.msra.mxu0 0
    %2291 = vmatprep.mubr.bf16.mxu0 0
    %2292 = vmatmul.mubr.bf16.gmra.mrb[0].mxu0 %v2257
    %v2293 = vpop.f32.mrb[0].mxu0
    %v2294 = vadd.f32 0.0, %v2293
    %v2295 = vpop.f32.mrb[0].mxu0
    %v2296 = vpop.f32.mrb[0].mxu0
    %v2297 = vpop.f32.mrb[0].mxu0
    %2298 = vdwg.mxu0
    %s2299 = scalar_lea.vmem [#allocation7], 12
    %v2300 = vld [vmem:[%s2299] sm:$0xf]
    %v2302 = vsel %vm1731, %v2300, 0
    %2304 = vmatprep.subr.bf16.mxu0 0
    %2305 = vmatpush1.bf16.msra.mxu0 %v2163
    %2306 = vmatprep.subr.bf16.mxu0 0
    %2307 = vmatpush1.bf16.msra.mxu0 %v2164
    %2308 = vmatprep.subr.bf16.mxu0 0
    %2309 = vmatpush1.bf16.msra.mxu0 0
    %2310 = vmatprep.subr.bf16.mxu0 0
    %2311 = vmatpush1.bf16.msra.mxu0 0
    %2312 = vmatprep.subr.bf16.mxu0 0
    %2313 = vmatpush1.bf16.msra.mxu0 0
    %2314 = vmatprep.subr.bf16.mxu0 0
    %2315 = vmatpush1.bf16.msra.mxu0 0
    %2316 = vmatprep.subr.bf16.mxu0 0
    %2317 = vmatpush1.bf16.msra.mxu0 0
    %2318 = vmatprep.subr.bf16.mxu0 0
    %2319 = vmatpush1.bf16.msra.mxu0 0
    %2320 = vmatprep.subr.bf16.mxu0 0
    %2321 = vmatpush1.bf16.msra.mxu0 0
    %2322 = vmatprep.subr.bf16.mxu0 0
    %2323 = vmatpush1.bf16.msra.mxu0 0
    %2324 = vmatprep.subr.bf16.mxu0 0
    %2325 = vmatpush1.bf16.msra.mxu0 0
    %2326 = vmatprep.subr.bf16.mxu0 0
    %2327 = vmatpush1.bf16.msra.mxu0 0
    %2328 = vmatprep.subr.bf16.mxu0 0
    %2329 = vmatpush1.bf16.msra.mxu0 0
    %2330 = vmatprep.subr.bf16.mxu0 0
    %2331 = vmatpush1.bf16.msra.mxu0 0
    %2332 = vmatprep.subr.bf16.mxu0 0
    %2333 = vmatpush1.bf16.msra.mxu0 0
    %2334 = vmatprep.subr.bf16.mxu0 0
    %2335 = vmatpush1.bf16.msra.mxu0 0
    %2336 = vmatprep.mubr.bf16.mxu0 0
    %2337 = vmatmul.mubr.bf16.gmra.mrb[0].mxu0 %v2302
    %v2338 = vpop.f32.mrb[0].mxu0
    %v2339 = vadd.f32 0.0, %v2338
    %v2340 = vpop.f32.mrb[0].mxu0
    %v2341 = vpop.f32.mrb[0].mxu0
    %v2342 = vpop.f32.mrb[0].mxu0
    %2343 = vdwg.mxu0
    %s2344 = scalar_lea.vmem [#allocation7], 16
    %v2345 = vld [vmem:[%s2344] sm:$0xf]
    %v2347 = vsel %vm1731, %v2345, 0
    %2349 = vmatprep.subr.bf16.mxu0 0
    %2350 = vmatpush1.bf16.msra.mxu0 %v2163
    %2351 = vmatprep.subr.bf16.mxu0 0
    %2352 = vmatpush1.bf16.msra.mxu0 %v2164
    %2353 = vmatprep.subr.bf16.mxu0 0
    %2354 = vmatpush1.bf16.msra.mxu0 0
    %2355 = vmatprep.subr.bf16.mxu0 0
    %2356 = vmatpush1.bf16.msra.mxu0 0
    %2357 = vmatprep.subr.bf16.mxu0 0
    %2358 = vmatpush1.bf16.msra.mxu0 0
    %2359 = vmatprep.subr.bf16.mxu0 0
    %2360 = vmatpush1.bf16.msra.mxu0 0
    %2361 = vmatprep.subr.bf16.mxu0 0
    %2362 = vmatpush1.bf16.msra.mxu0 0
    %2363 = vmatprep.subr.bf16.mxu0 0
    %2364 = vmatpush1.bf16.msra.mxu0 0
    %2365 = vmatprep.subr.bf16.mxu0 0
    %2366 = vmatpush1.bf16.msra.mxu0 0
    %2367 = vmatprep.subr.bf16.mxu0 0
    %2368 = vmatpush1.bf16.msra.mxu0 0
    %2369 = vmatprep.subr.bf16.mxu0 0
    %2370 = vmatpush1.bf16.msra.mxu0 0
    %2371 = vmatprep.subr.bf16.mxu0 0
    %2372 = vmatpush1.bf16.msra.mxu0 0
    %2373 = vmatprep.subr.bf16.mxu0 0
    %2374 = vmatpush1.bf16.msra.mxu0 0
    %2375 = vmatprep.subr.bf16.mxu0 0
    %2376 = vmatpush1.bf16.msra.mxu0 0
    %2377 = vmatprep.subr.bf16.mxu0 0
    %2378 = vmatpush1.bf16.msra.mxu0 0
    %2379 = vmatprep.subr.bf16.mxu0 0
    %2380 = vmatpush1.bf16.msra.mxu0 0
    %2381 = vmatprep.mubr.bf16.mxu0 0
    %2382 = vmatmul.mubr.bf16.gmra.mrb[0].mxu0 %v2347
    %v2383 = vpop.f32.mrb[0].mxu0
    %v2384 = vadd.f32 0.0, %v2383
    %v2385 = vpop.f32.mrb[0].mxu0
    %v2386 = vpop.f32.mrb[0].mxu0
    %v2387 = vpop.f32.mrb[0].mxu0
    %2388 = vdwg.mxu0
    %s2389 = scalar_lea.vmem [#allocation7], 20
    %v2390 = vld [vmem:[%s2389] sm:$0xf]
    %v2392 = vsel %vm1731, %v2390, 0
    %2394 = vmatprep.subr.bf16.mxu0 0
    %2395 = vmatpush1.bf16.msra.mxu0 %v2163
    %2396 = vmatprep.subr.bf16.mxu0 0
    %2397 = vmatpush1.bf16.msra.mxu0 %v2164
    %2398 = vmatprep.subr.bf16.mxu0 0
    %2399 = vmatpush1.bf16.msra.mxu0 0
    %2400 = vmatprep.subr.bf16.mxu0 0
    %2401 = vmatpush1.bf16.msra.mxu0 0
    %2402 = vmatprep.subr.bf16.mxu0 0
    %2403 = vmatpush1.bf16.msra.mxu0 0
    %2404 = vmatprep.subr.bf16.mxu0 0
    %2405 = vmatpush1.bf16.msra.mxu0 0
    %2406 = vmatprep.subr.bf16.mxu0 0
    %2407 = vmatpush1.bf16.msra.mxu0 0
    %2408 = vmatprep.subr.bf16.mxu0 0
    %2409 = vmatpush1.bf16.msra.mxu0 0
    %2410 = vmatprep.subr.bf16.mxu0 0
    %2411 = vmatpush1.bf16.msra.mxu0 0
    %2412 = vmatprep.subr.bf16.mxu0 0
    %2413 = vmatpush1.bf16.msra.mxu0 0
    %2414 = vmatprep.subr.bf16.mxu0 0
    %2415 = vmatpush1.bf16.msra.mxu0 0
    %2416 = vmatprep.subr.bf16.mxu0 0
    %2417 = vmatpush1.bf16.msra.mxu0 0
    %2418 = vmatprep.subr.bf16.mxu0 0
    %2419 = vmatpush1.bf16.msra.mxu0 0
    %2420 = vmatprep.subr.bf16.mxu0 0
    %2421 = vmatpush1.bf16.msra.mxu0 0
    %2422 = vmatprep.subr.bf16.mxu0 0
    %2423 = vmatpush1.bf16.msra.mxu0 0
    %2424 = vmatprep.subr.bf16.mxu0 0
    %2425 = vmatpush1.bf16.msra.mxu0 0
    %2426 = vmatprep.mubr.bf16.mxu0 0
    %2427 = vmatmul.mubr.bf16.gmra.mrb[0].mxu0 %v2392
    %v2428 = vpop.f32.mrb[0].mxu0
    %v2429 = vadd.f32 0.0, %v2428
    %v2430 = vpop.f32.mrb[0].mxu0
    %v2431 = vpop.f32.mrb[0].mxu0
    %v2432 = vpop.f32.mrb[0].mxu0
    %2433 = vdwg.mxu0
    %s2434 = scalar_lea.vmem [#allocation7], 24
    %v2435 = vld [vmem:[%s2434] sm:$0xf]
    %v2437 = vsel %vm1731, %v2435, 0
    %2439 = vmatprep.subr.bf16.mxu0 0
    %2440 = vmatpush1.bf16.msra.mxu0 %v2163
    %2441 = vmatprep.subr.bf16.mxu0 0
    %2442 = vmatpush1.bf16.msra.mxu0 %v2164
    %2443 = vmatprep.subr.bf16.mxu0 0
    %2444 = vmatpush1.bf16.msra.mxu0 0
    %2445 = vmatprep.subr.bf16.mxu0 0
    %2446 = vmatpush1.bf16.msra.mxu0 0
    %2447 = vmatprep.subr.bf16.mxu0 0
    %2448 = vmatpush1.bf16.msra.mxu0 0
    %2449 = vmatprep.subr.bf16.mxu0 0
    %2450 = vmatpush1.bf16.msra.mxu0 0
    %2451 = vmatprep.subr.bf16.mxu0 0
    %2452 = vmatpush1.bf16.msra.mxu0 0
    %2453 = vmatprep.subr.bf16.mxu0 0
    %2454 = vmatpush1.bf16.msra.mxu0 0
    %2455 = vmatprep.subr.bf16.mxu0 0
    %2456 = vmatpush1.bf16.msra.mxu0 0
    %2457 = vmatprep.subr.bf16.mxu0 0
    %2458 = vmatpush1.bf16.msra.mxu0 0
    %2459 = vmatprep.subr.bf16.mxu0 0
    %2460 = vmatpush1.bf16.msra.mxu0 0
    %2461 = vmatprep.subr.bf16.mxu0 0
    %2462 = vmatpush1.bf16.msra.mxu0 0
    %2463 = vmatprep.subr.bf16.mxu0 0
    %2464 = vmatpush1.bf16.msra.mxu0 0
    %2465 = vmatprep.subr.bf16.mxu0 0
    %2466 = vmatpush1.bf16.msra.mxu0 0
    %2467 = vmatprep.subr.bf16.mxu0 0
    %2468 = vmatpush1.bf16.msra.mxu0 0
    %2469 = vmatprep.subr.bf16.mxu0 0
    %2470 = vmatpush1.bf16.msra.mxu0 0
    %2471 = vmatprep.mubr.bf16.mxu0 0
    %2472 = vmatmul.mubr.bf16.gmra.mrb[0].mxu0 %v2437
    %v2473 = vpop.f32.mrb[0].mxu0
    %v2474 = vadd.f32 0.0, %v2473
    %v2475 = vpop.f32.mrb[0].mxu0
    %v2476 = vpop.f32.mrb[0].mxu0
    %v2477 = vpop.f32.mrb[0].mxu0
    %2478 = vdwg.mxu0
    %s2479 = scalar_lea.vmem [#allocation7], 28
    %v2480 = vld [vmem:[%s2479] sm:$0xf]
    %v2482 = vsel %vm1731, %v2480, 0
    %2484 = vmatprep.subr.bf16.mxu0 0
    %2485 = vmatpush1.bf16.msra.mxu0 %v2163
    %2486 = vmatprep.subr.bf16.mxu0 0
    %2487 = vmatpush1.bf16.msra.mxu0 %v2164
    %2488 = vmatprep.subr.bf16.mxu0 0
    %2489 = vmatpush1.bf16.msra.mxu0 0
    %2490 = vmatprep.subr.bf16.mxu0 0
    %2491 = vmatpush1.bf16.msra.mxu0 0
    %2492 = vmatprep.subr.bf16.mxu0 0
    %2493 = vmatpush1.bf16.msra.mxu0 0
    %2494 = vmatprep.subr.bf16.mxu0 0
    %2495 = vmatpush1.bf16.msra.mxu0 0
    %2496 = vmatprep.subr.bf16.mxu0 0
    %2497 = vmatpush1.bf16.msra.mxu0 0
    %2498 = vmatprep.subr.bf16.mxu0 0
    %2499 = vmatpush1.bf16.msra.mxu0 0
    %2500 = vmatprep.subr.bf16.mxu0 0
    %2501 = vmatpush1.bf16.msra.mxu0 0
    %2502 = vmatprep.subr.bf16.mxu0 0
    %2503 = vmatpush1.bf16.msra.mxu0 0
    %2504 = vmatprep.subr.bf16.mxu0 0
    %2505 = vmatpush1.bf16.msra.mxu0 0
    %2506 = vmatprep.subr.bf16.mxu0 0
    %2507 = vmatpush1.bf16.msra.mxu0 0
    %2508 = vmatprep.subr.bf16.mxu0 0
    %2509 = vmatpush1.bf16.msra.mxu0 0
    %2510 = vmatprep.subr.bf16.mxu0 0
    %2511 = vmatpush1.bf16.msra.mxu0 0
    %2512 = vmatprep.subr.bf16.mxu0 0
    %2513 = vmatpush1.bf16.msra.mxu0 0
    %2514 = vmatprep.subr.bf16.mxu0 0
    %2515 = vmatpush1.bf16.msra.mxu0 0
    %2516 = vmatprep.mubr.bf16.mxu0 0
    %2517 = vmatmul.mubr.bf16.gmra.mrb[0].mxu0 %v2482
    %v2518 = vpop.f32.mrb[0].mxu0
    %v2519 = vadd.f32 0.0, %v2518
    %v2520 = vpop.f32.mrb[0].mxu0
    %v2521 = vpop.f32.mrb[0].mxu0
    %v2522 = vpop.f32.mrb[0].mxu0
    %2523 = vdwg.mxu0
    %s2524 = scalar_lea.vmem [#allocation7], 32
    %v2525 = vld [vmem:[%s2524] sm:$0xf]
    %v2527 = vsel %vm1731, %v2525, 0
    %2529 = vmatprep.subr.bf16.mxu0 0
    %2530 = vmatpush1.bf16.msra.mxu0 %v2163
    %2531 = vmatprep.subr.bf16.mxu0 0
    %2532 = vmatpush1.bf16.msra.mxu0 %v2164
    %2533 = vmatprep.subr.bf16.mxu0 0
    %2534 = vmatpush1.bf16.msra.mxu0 0
    %2535 = vmatprep.subr.bf16.mxu0 0
    %2536 = vmatpush1.bf16.msra.mxu0 0
    %2537 = vmatprep.subr.bf16.mxu0 0
    %2538 = vmatpush1.bf16.msra.mxu0 0
    %2539 = vmatprep.subr.bf16.mxu0 0
    %2540 = vmatpush1.bf16.msra.mxu0 0
    %2541 = vmatprep.subr.bf16.mxu0 0
    %2542 = vmatpush1.bf16.msra.mxu0 0
    %2543 = vmatprep.subr.bf16.mxu0 0
    %2544 = vmatpush1.bf16.msra.mxu0 0
    %2545 = vmatprep.subr.bf16.mxu0 0
    %2546 = vmatpush1.bf16.msra.mxu0 0
    %2547 = vmatprep.subr.bf16.mxu0 0
    %2548 = vmatpush1.bf16.msra.mxu0 0
    %2549 = vmatprep.subr.bf16.mxu0 0
    %2550 = vmatpush1.bf16.msra.mxu0 0
    %2551 = vmatprep.subr.bf16.mxu0 0
    %2552 = vmatpush1.bf16.msra.mxu0 0
    %2553 = vmatprep.subr.bf16.mxu0 0
    %2554 = vmatpush1.bf16.msra.mxu0 0
    %2555 = vmatprep.subr.bf16.mxu0 0
    %2556 = vmatpush1.bf16.msra.mxu0 0
    %2557 = vmatprep.subr.bf16.mxu0 0
    %2558 = vmatpush1.bf16.msra.mxu0 0
    %2559 = vmatprep.subr.bf16.mxu0 0
    %2560 = vmatpush1.bf16.msra.mxu0 0
    %2561 = vmatprep.mubr.bf16.mxu0 0
    %2562 = vmatmul.mubr.bf16.gmra.mrb[0].mxu0 %v2527
    %v2563 = vpop.f32.mrb[0].mxu0
    %v2564 = vadd.f32 0.0, %v2563
    %v2565 = vpop.f32.mrb[0].mxu0
    %v2566 = vpop.f32.mrb[0].mxu0
    %v2567 = vpop.f32.mrb[0].mxu0
    %2568 = vdwg.mxu0
    %s2569 = scalar_lea.vmem [#allocation7], 36
    %v2570 = vld [vmem:[%s2569] sm:$0xf]
    %v2572 = vsel %vm1731, %v2570, 0
    %2574 = vmatprep.subr.bf16.mxu0 0
    %2575 = vmatpush1.bf16.msra.mxu0 %v2163
    %2576 = vmatprep.subr.bf16.mxu0 0
    %2577 = vmatpush1.bf16.msra.mxu0 %v2164
    %2578 = vmatprep.subr.bf16.mxu0 0
    %2579 = vmatpush1.bf16.msra.mxu0 0
    %2580 = vmatprep.subr.bf16.mxu0 0
    %2581 = vmatpush1.bf16.msra.mxu0 0
    %2582 = vmatprep.subr.bf16.mxu0 0
    %2583 = vmatpush1.bf16.msra.mxu0 0
    %2584 = vmatprep.subr.bf16.mxu0 0
    %2585 = vmatpush1.bf16.msra.mxu0 0
    %2586 = vmatprep.subr.bf16.mxu0 0
    %2587 = vmatpush1.bf16.msra.mxu0 0
    %2588 = vmatprep.subr.bf16.mxu0 0
    %2589 = vmatpush1.bf16.msra.mxu0 0
    %2590 = vmatprep.subr.bf16.mxu0 0
    %2591 = vmatpush1.bf16.msra.mxu0 0
    %2592 = vmatprep.subr.bf16.mxu0 0
    %2593 = vmatpush1.bf16.msra.mxu0 0
    %2594 = vmatprep.subr.bf16.mxu0 0
    %2595 = vmatpush1.bf16.msra.mxu0 0
    %2596 = vmatprep.subr.bf16.mxu0 0
    %2597 = vmatpush1.bf16.msra.mxu0 0
    %2598 = vmatprep.subr.bf16.mxu0 0
    %2599 = vmatpush1.bf16.msra.mxu0 0
    %2600 = vmatprep.subr.bf16.mxu0 0
    %2601 = vmatpush1.bf16.msra.mxu0 0
    %2602 = vmatprep.subr.bf16.mxu0 0
    %2603 = vmatpush1.bf16.msra.mxu0 0
    %2604 = vmatprep.subr.bf16.mxu0 0
    %2605 = vmatpush1.bf16.msra.mxu0 0
    %2606 = vmatprep.mubr.bf16.mxu0 0
    %2607 = vmatmul.mubr.bf16.gmra.mrb[0].mxu0 %v2572
    %v2608 = vpop.f32.mrb[0].mxu0
    %v2609 = vadd.f32 0.0, %v2608
    %v2610 = vpop.f32.mrb[0].mxu0
    %v2611 = vpop.f32.mrb[0].mxu0
    %v2612 = vpop.f32.mrb[0].mxu0
    %2613 = vdwg.mxu0
    %s2614 = scalar_lea.vmem [#allocation7], 40
    %v2615 = vld [vmem:[%s2614] sm:$0xf]
    %v2617 = vsel %vm1731, %v2615, 0
    %2619 = vmatprep.subr.bf16.mxu0 0
    %2620 = vmatpush1.bf16.msra.mxu0 %v2163
    %2621 = vmatprep.subr.bf16.mxu0 0
    %2622 = vmatpush1.bf16.msra.mxu0 %v2164
    %2623 = vmatprep.subr.bf16.mxu0 0
    %2624 = vmatpush1.bf16.msra.mxu0 0
    %2625 = vmatprep.subr.bf16.mxu0 0
    %2626 = vmatpush1.bf16.msra.mxu0 0
    %2627 = vmatprep.subr.bf16.mxu0 0
    %2628 = vmatpush1.bf16.msra.mxu0 0
    %2629 = vmatprep.subr.bf16.mxu0 0
    %2630 = vmatpush1.bf16.msra.mxu0 0
    %2631 = vmatprep.subr.bf16.mxu0 0
    %2632 = vmatpush1.bf16.msra.mxu0 0
    %2633 = vmatprep.subr.bf16.mxu0 0
    %2634 = vmatpush1.bf16.msra.mxu0 0
    %2635 = vmatprep.subr.bf16.mxu0 0
    %2636 = vmatpush1.bf16.msra.mxu0 0
    %2637 = vmatprep.subr.bf16.mxu0 0
    %2638 = vmatpush1.bf16.msra.mxu0 0
    %2639 = vmatprep.subr.bf16.mxu0 0
    %2640 = vmatpush1.bf16.msra.mxu0 0
    %2641 = vmatprep.subr.bf16.mxu0 0
    %2642 = vmatpush1.bf16.msra.mxu0 0
    %2643 = vmatprep.subr.bf16.mxu0 0
    %2644 = vmatpush1.bf16.msra.mxu0 0
    %2645 = vmatprep.subr.bf16.mxu0 0
    %2646 = vmatpush1.bf16.msra.mxu0 0
    %2647 = vmatprep.subr.bf16.mxu0 0
    %2648 = vmatpush1.bf16.msra.mxu0 0
    %2649 = vmatprep.subr.bf16.mxu0 0
    %2650 = vmatpush1.bf16.msra.mxu0 0
    %2651 = vmatprep.mubr.bf16.mxu0 0
    %2652 = vmatmul.mubr.bf16.gmra.mrb[0].mxu0 %v2617
    %v2653 = vpop.f32.mrb[0].mxu0
    %v2654 = vadd.f32 0.0, %v2653
    %v2655 = vpop.f32.mrb[0].mxu0
    %v2656 = vpop.f32.mrb[0].mxu0
    %v2657 = vpop.f32.mrb[0].mxu0
    %2658 = vdwg.mxu0
    %s2659 = scalar_lea.vmem [#allocation7], 44
    %v2660 = vld [vmem:[%s2659] sm:$0xf]
    %v2662 = vsel %vm1731, %v2660, 0
    %2664 = vmatprep.subr.bf16.mxu0 0
    %2665 = vmatpush1.bf16.msra.mxu0 %v2163
    %2666 = vmatprep.subr.bf16.mxu0 0
    %2667 = vmatpush1.bf16.msra.mxu0 %v2164
    %2668 = vmatprep.subr.bf16.mxu0 0
    %2669 = vmatpush1.bf16.msra.mxu0 0
    %2670 = vmatprep.subr.bf16.mxu0 0
    %2671 = vmatpush1.bf16.msra.mxu0 0
    %2672 = vmatprep.subr.bf16.mxu0 0
    %2673 = vmatpush1.bf16.msra.mxu0 0
    %2674 = vmatprep.subr.bf16.mxu0 0
    %2675 = vmatpush1.bf16.msra.mxu0 0
    %2676 = vmatprep.subr.bf16.mxu0 0
    %2677 = vmatpush1.bf16.msra.mxu0 0
    %2678 = vmatprep.subr.bf16.mxu0 0
    %2679 = vmatpush1.bf16.msra.mxu0 0
    %2680 = vmatprep.subr.bf16.mxu0 0
    %2681 = vmatpush1.bf16.msra.mxu0 0
    %2682 = vmatprep.subr.bf16.mxu0 0
    %2683 = vmatpush1.bf16.msra.mxu0 0
    %2684 = vmatprep.subr.bf16.mxu0 0
    %2685 = vmatpush1.bf16.msra.mxu0 0
    %2686 = vmatprep.subr.bf16.mxu0 0
    %2687 = vmatpush1.bf16.msra.mxu0 0
    %2688 = vmatprep.subr.bf16.mxu0 0
    %2689 = vmatpush1.bf16.msra.mxu0 0
    %2690 = vmatprep.subr.bf16.mxu0 0
    %2691 = vmatpush1.bf16.msra.mxu0 0
    %2692 = vmatprep.subr.bf16.mxu0 0
    %2693 = vmatpush1.bf16.msra.mxu0 0
    %2694 = vmatprep.subr.bf16.mxu0 0
    %2695 = vmatpush1.bf16.msra.mxu0 0
    %2696 = vmatprep.mubr.bf16.mxu0 0
    %2697 = vmatmul.mubr.bf16.gmra.mrb[0].mxu0 %v2662
    %v2698 = vpop.f32.mrb[0].mxu0
    %v2699 = vadd.f32 0.0, %v2698
    %v2700 = vpop.f32.mrb[0].mxu0
    %v2701 = vpop.f32.mrb[0].mxu0
    %v2702 = vpop.f32.mrb[0].mxu0
    %2703 = vdwg.mxu0
    %s2704 = scalar_lea.vmem [#allocation7], 48
    %v2705 = vld [vmem:[%s2704] sm:$0xf]
    %v2707 = vsel %vm1731, %v2705, 0
    %2709 = vmatprep.subr.bf16.mxu0 0
    %2710 = vmatpush1.bf16.msra.mxu0 %v2163
    %2711 = vmatprep.subr.bf16.mxu0 0
    %2712 = vmatpush1.bf16.msra.mxu0 %v2164
    %2713 = vmatprep.subr.bf16.mxu0 0
    %2714 = vmatpush1.bf16.msra.mxu0 0
    %2715 = vmatprep.subr.bf16.mxu0 0
    %2716 = vmatpush1.bf16.msra.mxu0 0
    %2717 = vmatprep.subr.bf16.mxu0 0
    %2718 = vmatpush1.bf16.msra.mxu0 0
    %2719 = vmatprep.subr.bf16.mxu0 0
    %2720 = vmatpush1.bf16.msra.mxu0 0
    %2721 = vmatprep.subr.bf16.mxu0 0
    %2722 = vmatpush1.bf16.msra.mxu0 0
    %2723 = vmatprep.subr.bf16.mxu0 0
    %2724 = vmatpush1.bf16.msra.mxu0 0
    %2725 = vmatprep.subr.bf16.mxu0 0
    %2726 = vmatpush1.bf16.msra.mxu0 0
    %2727 = vmatprep.subr.bf16.mxu0 0
    %2728 = vmatpush1.bf16.msra.mxu0 0
    %2729 = vmatprep.subr.bf16.mxu0 0
    %2730 = vmatpush1.bf16.msra.mxu0 0
    %2731 = vmatprep.subr.bf16.mxu0 0
    %2732 = vmatpush1.bf16.msra.mxu0 0
    %2733 = vmatprep.subr.bf16.mxu0 0
    %2734 = vmatpush1.bf16.msra.mxu0 0
    %2735 = vmatprep.subr.bf16.mxu0 0
    %2736 = vmatpush1.bf16.msra.mxu0 0
    %2737 = vmatprep.subr.bf16.mxu0 0
    %2738 = vmatpush1.bf16.msra.mxu0 0
    %2739 = vmatprep.subr.bf16.mxu0 0
    %2740 = vmatpush1.bf16.msra.mxu0 0
    %2741 = vmatprep.mubr.bf16.mxu0 0
    %2742 = vmatmul.mubr.bf16.gmra.mrb[0].mxu0 %v2707
    %v2743 = vpop.f32.mrb[0].mxu0
    %v2744 = vadd.f32 0.0, %v2743
    %v2745 = vpop.f32.mrb[0].mxu0
    %v2746 = vpop.f32.mrb[0].mxu0
    %v2747 = vpop.f32.mrb[0].mxu0
    %2748 = vdwg.mxu0
    %s2749 = scalar_lea.vmem [#allocation7], 52
    %v2750 = vld [vmem:[%s2749] sm:$0xf]
    %v2752 = vsel %vm1731, %v2750, 0
    %2754 = vmatprep.subr.bf16.mxu0 0
    %2755 = vmatpush1.bf16.msra.mxu0 %v2163
    %2756 = vmatprep.subr.bf16.mxu0 0
    %2757 = vmatpush1.bf16.msra.mxu0 %v2164
    %2758 = vmatprep.subr.bf16.mxu0 0
    %2759 = vmatpush1.bf16.msra.mxu0 0
    %2760 = vmatprep.subr.bf16.mxu0 0
    %2761 = vmatpush1.bf16.msra.mxu0 0
    %2762 = vmatprep.subr.bf16.mxu0 0
    %2763 = vmatpush1.bf16.msra.mxu0 0
    %2764 = vmatprep.subr.bf16.mxu0 0
    %2765 = vmatpush1.bf16.msra.mxu0 0
    %2766 = vmatprep.subr.bf16.mxu0 0
    %2767 = vmatpush1.bf16.msra.mxu0 0
    %2768 = vmatprep.subr.bf16.mxu0 0
    %2769 = vmatpush1.bf16.msra.mxu0 0
    %2770 = vmatprep.subr.bf16.mxu0 0
    %2771 = vmatpush1.bf16.msra.mxu0 0
    %2772 = vmatprep.subr.bf16.mxu0 0
    %2773 = vmatpush1.bf16.msra.mxu0 0
    %2774 = vmatprep.subr.bf16.mxu0 0
    %2775 = vmatpush1.bf16.msra.mxu0 0
    %2776 = vmatprep.subr.bf16.mxu0 0
    %2777 = vmatpush1.bf16.msra.mxu0 0
    %2778 = vmatprep.subr.bf16.mxu0 0
    %2779 = vmatpush1.bf16.msra.mxu0 0
    %2780 = vmatprep.subr.bf16.mxu0 0
    %2781 = vmatpush1.bf16.msra.mxu0 0
    %2782 = vmatprep.subr.bf16.mxu0 0
    %2783 = vmatpush1.bf16.msra.mxu0 0
    %2784 = vmatprep.subr.bf16.mxu0 0
    %2785 = vmatpush1.bf16.msra.mxu0 0
    %2786 = vmatprep.mubr.bf16.mxu0 0
    %2787 = vmatmul.mubr.bf16.gmra.mrb[0].mxu0 %v2752
    %v2788 = vpop.f32.mrb[0].mxu0
    %v2789 = vadd.f32 0.0, %v2788
    %v2790 = vpop.f32.mrb[0].mxu0
    %v2791 = vpop.f32.mrb[0].mxu0
    %v2792 = vpop.f32.mrb[0].mxu0
    %2793 = vdwg.mxu0
    %s2794 = scalar_lea.vmem [#allocation7], 56
    %v2795 = vld [vmem:[%s2794] sm:$0xf]
    %v2797 = vsel %vm1731, %v2795, 0
    %2799 = vmatprep.subr.bf16.mxu0 0
    %2800 = vmatpush1.bf16.msra.mxu0 %v2163
    %2801 = vmatprep.subr.bf16.mxu0 0
    %2802 = vmatpush1.bf16.msra.mxu0 %v2164
    %2803 = vmatprep.subr.bf16.mxu0 0
    %2804 = vmatpush1.bf16.msra.mxu0 0
    %2805 = vmatprep.subr.bf16.mxu0 0
    %2806 = vmatpush1.bf16.msra.mxu0 0
    %2807 = vmatprep.subr.bf16.mxu0 0
    %2808 = vmatpush1.bf16.msra.mxu0 0
    %2809 = vmatprep.subr.bf16.mxu0 0
    %2810 = vmatpush1.bf16.msra.mxu0 0
    %2811 = vmatprep.subr.bf16.mxu0 0
    %2812 = vmatpush1.bf16.msra.mxu0 0
    %2813 = vmatprep.subr.bf16.mxu0 0
    %2814 = vmatpush1.bf16.msra.mxu0 0
    %2815 = vmatprep.subr.bf16.mxu0 0
    %2816 = vmatpush1.bf16.msra.mxu0 0
    %2817 = vmatprep.subr.bf16.mxu0 0
    %2818 = vmatpush1.bf16.msra.mxu0 0
    %2819 = vmatprep.subr.bf16.mxu0 0
    %2820 = vmatpush1.bf16.msra.mxu0 0
    %2821 = vmatprep.subr.bf16.mxu0 0
    %2822 = vmatpush1.bf16.msra.mxu0 0
    %2823 = vmatprep.subr.bf16.mxu0 0
    %2824 = vmatpush1.bf16.msra.mxu0 0
    %2825 = vmatprep.subr.bf16.mxu0 0
    %2826 = vmatpush1.bf16.msra.mxu0 0
    %2827 = vmatprep.subr.bf16.mxu0 0
    %2828 = vmatpush1.bf16.msra.mxu0 0
    %2829 = vmatprep.subr.bf16.mxu0 0
    %2830 = vmatpush1.bf16.msra.mxu0 0
    %2831 = vmatprep.mubr.bf16.mxu0 0
    %2832 = vmatmul.mubr.bf16.gmra.mrb[0].mxu0 %v2797
    %v2833 = vpop.f32.mrb[0].mxu0
    %v2834 = vadd.f32 0.0, %v2833
    %v2835 = vpop.f32.mrb[0].mxu0
    %v2836 = vpop.f32.mrb[0].mxu0
    %v2837 = vpop.f32.mrb[0].mxu0
    %2838 = vdwg.mxu0
    %s2839 = scalar_lea.vmem [#allocation7], 60
    %v2840 = vld [vmem:[%s2839] sm:$0xf]
    %v2842 = vsel %vm1731, %v2840, 0
    %2844 = vmatprep.subr.bf16.mxu0 0
    %2845 = vmatpush1.bf16.msra.mxu0 %v2163
    %2846 = vmatprep.subr.bf16.mxu0 0
    %2847 = vmatpush1.bf16.msra.mxu0 %v2164
    %2848 = vmatprep.subr.bf16.mxu0 0
    %2849 = vmatpush1.bf16.msra.mxu0 0
    %2850 = vmatprep.subr.bf16.mxu0 0
    %2851 = vmatpush1.bf16.msra.mxu0 0
    %2852 = vmatprep.subr.bf16.mxu0 0
    %2853 = vmatpush1.bf16.msra.mxu0 0
    %2854 = vmatprep.subr.bf16.mxu0 0
    %2855 = vmatpush1.bf16.msra.mxu0 0
    %2856 = vmatprep.subr.bf16.mxu0 0
    %2857 = vmatpush1.bf16.msra.mxu0 0
    %2858 = vmatprep.subr.bf16.mxu0 0
    %2859 = vmatpush1.bf16.msra.mxu0 0
    %2860 = vmatprep.subr.bf16.mxu0 0
    %2861 = vmatpush1.bf16.msra.mxu0 0
    %2862 = vmatprep.subr.bf16.mxu0 0
    %2863 = vmatpush1.bf16.msra.mxu0 0
    %2864 = vmatprep.subr.bf16.mxu0 0
    %2865 = vmatpush1.bf16.msra.mxu0 0
    %2866 = vmatprep.subr.bf16.mxu0 0
    %2867 = vmatpush1.bf16.msra.mxu0 0
    %2868 = vmatprep.subr.bf16.mxu0 0
    %2869 = vmatpush1.bf16.msra.mxu0 0
    %2870 = vmatprep.subr.bf16.mxu0 0
    %2871 = vmatpush1.bf16.msra.mxu0 0
    %2872 = vmatprep.subr.bf16.mxu0 0
    %2873 = vmatpush1.bf16.msra.mxu0 0
    %2874 = vmatprep.subr.bf16.mxu0 0
    %2875 = vmatpush1.bf16.msra.mxu0 0
    %2876 = vmatprep.mubr.bf16.mxu0 0
    %2877 = vmatmul.mubr.bf16.gmra.mrb[0].mxu0 %v2842
    %v2878 = vpop.f32.mrb[0].mxu0
    %v2879 = vadd.f32 0.0, %v2878
    %v2880 = vpop.f32.mrb[0].mxu0
    %v2881 = vpop.f32.mrb[0].mxu0
    %v2882 = vpop.f32.mrb[0].mxu0
    %2883 = vdwg.mxu0
    %2885 = vrot.lane.b32.xlu0 %v2249, 64
    %v2886 = vpop.permute.xlu0 %2885
    %2889 = vrot.lane.b32.xlu0 %v2339, 64
    %v2890 = vpop.permute.xlu0 %2889
    %2893 = vrot.lane.b32.xlu0 %v2429, 64
    %v2894 = vpop.permute.xlu0 %2893
    %2897 = vrot.lane.b32.xlu0 %v2519, 64
    %v2898 = vpop.permute.xlu0 %2897
    %2901 = vrot.lane.b32.xlu0 %v2609, 64
    %v2902 = vpop.permute.xlu0 %2901
    %2905 = vrot.lane.b32.xlu0 %v2699, 64
    %v2906 = vpop.permute.xlu0 %2905
    %2909 = vrot.lane.b32.xlu0 %v2789, 64
    %v2910 = vpop.permute.xlu0 %2909
    %2913 = vrot.lane.b32.xlu0 %v2879, 64
    %v2914 = vpop.permute.xlu0 %2913
    %v2916 = vsel %vm1736, %v2204, %v2886
    %v2917 = vsel %vm1736, %v2294, %v2890
    %v2918 = vsel %vm1736, %v2384, %v2894
    %v2919 = vsel %vm1736, %v2474, %v2898
    %v2920 = vsel %vm1736, %v2564, %v2902
    %v2921 = vsel %vm1736, %v2654, %v2906
    %v2922 = vsel %vm1736, %v2744, %v2910
    %v2923 = vsel %vm1736, %v2834, %v2914
    %v2924 = vpack.c.bf16 %v2916, %v2916
    %v2925 = vpack.c.bf16 %v2917, %v2917
    %v2926 = vpack.c.bf16 %v2918, %v2918
    %v2927 = vpack.c.bf16 %v2919, %v2919
    %v2928 = vpack.c.bf16 %v2920, %v2920
    %v2929 = vpack.c.bf16 %v2921, %v2921
    %v2930 = vpack.c.bf16 %v2922, %v2922
    %v2931 = vpack.c.bf16 %v2923, %v2923
    %v2932 = vld [vmem:[%s7] sm:$0xf]
    %v2933 = vld [vmem:[%s7 + $0x4] sm:$0xf]
    %v2934 = vld [vmem:[%s7 + $0x8] sm:$0xf]
    %v2935 = vld [vmem:[%s7 + $0xc] sm:$0xf]
    %v2936 = vld [vmem:[%s7 + $0x10] sm:$0xf]
    %v2937 = vld [vmem:[%s7 + $0x14] sm:$0xf]
    %v2938 = vld [vmem:[%s7 + $0x18] sm:$0xf]
    %v2939 = vld [vmem:[%s7 + $0x1c] sm:$0xf]
    %v2940 = vld [vmem:[%s7 + $0x20] sm:$0xf]
    %v2941 = vld [vmem:[%s7 + $0x24] sm:$0xf]
    %v2942 = vld [vmem:[%s7 + $0x28] sm:$0xf]
    %v2943 = vld [vmem:[%s7 + $0x2c] sm:$0xf]
    %v2944 = vld [vmem:[%s7 + $0x30] sm:$0xf]
    %v2945 = vld [vmem:[%s7 + $0x34] sm:$0xf]
    %v2946 = vld [vmem:[%s7 + $0x38] sm:$0xf]
    %v2947 = vld [vmem:[%s7 + $0x3c] sm:$0xf]
    %v2948 = vld [vmem:[%s7 + $0x40] sm:$0xf]
    %v2949 = vld [vmem:[%s7 + $0x44] sm:$0xf]
    %v2950 = vld [vmem:[%s7 + $0x48] sm:$0xf]
    %v2951 = vld [vmem:[%s7 + $0x4c] sm:$0xf]
    %v2952 = vld [vmem:[%s7 + $0x50] sm:$0xf]
    %v2953 = vld [vmem:[%s7 + $0x54] sm:$0xf]
    %v2954 = vld [vmem:[%s7 + $0x58] sm:$0xf]
    %v2955 = vld [vmem:[%s7 + $0x5c] sm:$0xf]
    %v2956 = vld [vmem:[%s7 + $0x60] sm:$0xf]
    %v2957 = vld [vmem:[%s7 + $0x64] sm:$0xf]
    %v2958 = vld [vmem:[%s7 + $0x68] sm:$0xf]
    %v2959 = vld [vmem:[%s7 + $0x6c] sm:$0xf]
    %v2960 = vld [vmem:[%s7 + $0x70] sm:$0xf]
    %v2961 = vld [vmem:[%s7 + $0x74] sm:$0xf]
    %v2962 = vld [vmem:[%s7 + $0x78] sm:$0xf]
    %v2963 = vld [vmem:[%s7 + $0x7c] sm:$0xf]
    %v2964 = vld [vmem:[%s7 + $0x80] sm:$0xf]
    %v2965 = vld [vmem:[%s7 + $0x84] sm:$0xf]
    %v2966 = vld [vmem:[%s7 + $0x88] sm:$0xf]
    %v2967 = vld [vmem:[%s7 + $0x8c] sm:$0xf]
    %v2968 = vld [vmem:[%s7 + $0x90] sm:$0xf]
    %v2969 = vld [vmem:[%s7 + $0x94] sm:$0xf]
    %v2970 = vld [vmem:[%s7 + $0x98] sm:$0xf]
    %v2971 = vld [vmem:[%s7 + $0x9c] sm:$0xf]
    %v2972 = vld [vmem:[%s7 + $0xa0] sm:$0xf]
    %v2973 = vld [vmem:[%s7 + $0xa4] sm:$0xf]
    %v2974 = vld [vmem:[%s7 + $0xa8] sm:$0xf]
    %v2975 = vld [vmem:[%s7 + $0xac] sm:$0xf]
    %v2976 = vld [vmem:[%s7 + $0xb0] sm:$0xf]
    %v2977 = vld [vmem:[%s7 + $0xb4] sm:$0xf]
    %v2978 = vld [vmem:[%s7 + $0xb8] sm:$0xf]
    %v2979 = vld [vmem:[%s7 + $0xbc] sm:$0xf]
    %v2980 = vld [vmem:[%s7 + $0xc0] sm:$0xf]
    %v2981 = vld [vmem:[%s7 + $0xc4] sm:$0xf]
    %v2982 = vld [vmem:[%s7 + $0xc8] sm:$0xf]
    %v2983 = vld [vmem:[%s7 + $0xcc] sm:$0xf]
    %v2984 = vld [vmem:[%s7 + $0xd0] sm:$0xf]
    %v2985 = vld [vmem:[%s7 + $0xd4] sm:$0xf]
    %v2986 = vld [vmem:[%s7 + $0xd8] sm:$0xf]
    %v2987 = vld [vmem:[%s7 + $0xdc] sm:$0xf]
    %v2988 = vld [vmem:[%s7 + $0xe0] sm:$0xf]
    %v2989 = vld [vmem:[%s7 + $0xe4] sm:$0xf]
    %v2990 = vld [vmem:[%s7 + $0xe8] sm:$0xf]
    %v2991 = vld [vmem:[%s7 + $0xec] sm:$0xf]
    %v2992 = vld [vmem:[%s7 + $0xf0] sm:$0xf]
    %v2993 = vld [vmem:[%s7 + $0xf4] sm:$0xf]
    %v2994 = vld [vmem:[%s7 + $0xf8] sm:$0xf]
    %v2995 = vld [vmem:[%s7 + $0xfc] sm:$0xf]
    %v2996 = vld [vmem:[%s7 + $0x100] sm:$0xf]
    %v2997 = vld [vmem:[%s7 + $0x104] sm:$0xf]
    %v2998 = vld [vmem:[%s7 + $0x108] sm:$0xf]
    %v2999 = vld [vmem:[%s7 + $0x10c] sm:$0xf]
    %v3000 = vld [vmem:[%s7 + $0x110] sm:$0xf]
    %v3001 = vld [vmem:[%s7 + $0x114] sm:$0xf]
    %v3002 = vld [vmem:[%s7 + $0x118] sm:$0xf]
    %v3003 = vld [vmem:[%s7 + $0x11c] sm:$0xf]
    %v3004 = vld [vmem:[%s7 + $0x120] sm:$0xf]
    %v3005 = vld [vmem:[%s7 + $0x124] sm:$0xf]
    %v3006 = vld [vmem:[%s7 + $0x128] sm:$0xf]
    %v3007 = vld [vmem:[%s7 + $0x12c] sm:$0xf]
    %v3008 = vld [vmem:[%s7 + $0x130] sm:$0xf]
    %v3009 = vld [vmem:[%s7 + $0x134] sm:$0xf]
    %v3010 = vld [vmem:[%s7 + $0x138] sm:$0xf]
    %v3011 = vld [vmem:[%s7 + $0x13c] sm:$0xf]
    %v3012 = vld [vmem:[%s7 + $0x140] sm:$0xf]
    %v3013 = vld [vmem:[%s7 + $0x144] sm:$0xf]
    %v3014 = vld [vmem:[%s7 + $0x148] sm:$0xf]
    %v3015 = vld [vmem:[%s7 + $0x14c] sm:$0xf]
    %v3016 = vld [vmem:[%s7 + $0x150] sm:$0xf]
    %v3017 = vld [vmem:[%s7 + $0x154] sm:$0xf]
    %v3018 = vld [vmem:[%s7 + $0x158] sm:$0xf]
    %v3019 = vld [vmem:[%s7 + $0x15c] sm:$0xf]
    %v3020 = vld [vmem:[%s7 + $0x160] sm:$0xf]
    %v3021 = vld [vmem:[%s7 + $0x164] sm:$0xf]
    %v3022 = vld [vmem:[%s7 + $0x168] sm:$0xf]
    %v3023 = vld [vmem:[%s7 + $0x16c] sm:$0xf]
    %v3024 = vld [vmem:[%s7 + $0x170] sm:$0xf]
    %v3025 = vld [vmem:[%s7 + $0x174] sm:$0xf]
    %v3026 = vld [vmem:[%s7 + $0x178] sm:$0xf]
    %v3027 = vld [vmem:[%s7 + $0x17c] sm:$0xf]
    %v3028 = vld [vmem:[%s7 + $0x180] sm:$0xf]
    %v3029 = vld [vmem:[%s7 + $0x184] sm:$0xf]
    %v3030 = vld [vmem:[%s7 + $0x188] sm:$0xf]
    %v3031 = vld [vmem:[%s7 + $0x18c] sm:$0xf]
    %v3032 = vld [vmem:[%s7 + $0x190] sm:$0xf]
    %v3033 = vld [vmem:[%s7 + $0x194] sm:$0xf]
    %v3034 = vld [vmem:[%s7 + $0x198] sm:$0xf]
    %v3035 = vld [vmem:[%s7 + $0x19c] sm:$0xf]
    %v3036 = vld [vmem:[%s7 + $0x1a0] sm:$0xf]
    %v3037 = vld [vmem:[%s7 + $0x1a4] sm:$0xf]
    %v3038 = vld [vmem:[%s7 + $0x1a8] sm:$0xf]
    %v3039 = vld [vmem:[%s7 + $0x1ac] sm:$0xf]
    %v3040 = vld [vmem:[%s7 + $0x1b0] sm:$0xf]
    %v3041 = vld [vmem:[%s7 + $0x1b4] sm:$0xf]
    %v3042 = vld [vmem:[%s7 + $0x1b8] sm:$0xf]
    %v3043 = vld [vmem:[%s7 + $0x1bc] sm:$0xf]
    %v3044 = vld [vmem:[%s7 + $0x1c0] sm:$0xf]
    %v3045 = vld [vmem:[%s7 + $0x1c4] sm:$0xf]
    %v3046 = vld [vmem:[%s7 + $0x1c8] sm:$0xf]
    %v3047 = vld [vmem:[%s7 + $0x1cc] sm:$0xf]
    %v3048 = vld [vmem:[%s7 + $0x1d0] sm:$0xf]
    %v3049 = vld [vmem:[%s7 + $0x1d4] sm:$0xf]
    %v3050 = vld [vmem:[%s7 + $0x1d8] sm:$0xf]
    %v3051 = vld [vmem:[%s7 + $0x1dc] sm:$0xf]
    %v3052 = vld [vmem:[%s7 + $0x1e0] sm:$0xf]
    %v3053 = vld [vmem:[%s7 + $0x1e4] sm:$0xf]
    %v3054 = vld [vmem:[%s7 + $0x1e8] sm:$0xf]
    %v3055 = vld [vmem:[%s7 + $0x1ec] sm:$0xf]
    %v3056 = vld [vmem:[%s7 + $0x1f0] sm:$0xf]
    %v3057 = vld [vmem:[%s7 + $0x1f4] sm:$0xf]
    %v3058 = vld [vmem:[%s7 + $0x1f8] sm:$0xf]
    %v3059 = vld [vmem:[%s7 + $0x1fc] sm:$0xf]
    %v3060 = vld [vmem:[#allocation9] sm:$0x1]
    %v3062 = vlaneseq
    %v3063 = vshrl.u32 %v3062, 7
    %v3064 = vsub.s32 0, %v3063
    %v3065 = vrot.slane %v3060, %v3064
    %v3195 = vunpack.c.l.b16 %v2932
    %v3196 = vunpack.c.l.b16 %v2933
    %v3197 = vunpack.c.l.b16 %v2934
    %v3198 = vunpack.c.l.b16 %v2935
    %v3199 = vunpack.c.l.b16 %v2936
    %v3200 = vunpack.c.l.b16 %v2937
    %v3201 = vunpack.c.l.b16 %v2938
    %v3202 = vunpack.c.l.b16 %v2939
    %v3203 = vunpack.c.l.b16 %v2940
    %v3204 = vunpack.c.l.b16 %v2941
    %v3205 = vunpack.c.l.b16 %v2942
    %v3206 = vunpack.c.l.b16 %v2943
    %v3207 = vunpack.c.l.b16 %v2944
    %v3208 = vunpack.c.l.b16 %v2945
    %v3209 = vunpack.c.l.b16 %v2946
    %v3210 = vunpack.c.l.b16 %v2947
    %v3211 = vunpack.c.l.b16 %v2948
    %v3212 = vunpack.c.l.b16 %v2949
    %v3213 = vunpack.c.l.b16 %v2950
    %v3214 = vunpack.c.l.b16 %v2951
    %v3215 = vunpack.c.l.b16 %v2952
    %v3216 = vunpack.c.l.b16 %v2953
    %v3217 = vunpack.c.l.b16 %v2954
    %v3218 = vunpack.c.l.b16 %v2955
    %v3219 = vunpack.c.l.b16 %v2956
    %v3220 = vunpack.c.l.b16 %v2957
    %v3221 = vunpack.c.l.b16 %v2958
    %v3222 = vunpack.c.l.b16 %v2959
    %v3223 = vunpack.c.l.b16 %v2960
    %v3224 = vunpack.c.l.b16 %v2961
    %v3225 = vunpack.c.l.b16 %v2962
    %v3226 = vunpack.c.l.b16 %v2963
    %v3227 = vunpack.c.l.b16 %v2964
    %v3228 = vunpack.c.l.b16 %v2965
    %v3229 = vunpack.c.l.b16 %v2966
    %v3230 = vunpack.c.l.b16 %v2967
    %v3231 = vunpack.c.l.b16 %v2968
    %v3232 = vunpack.c.l.b16 %v2969
    %v3233 = vunpack.c.l.b16 %v2970
    %v3234 = vunpack.c.l.b16 %v2971
    %v3235 = vunpack.c.l.b16 %v2972
    %v3236 = vunpack.c.l.b16 %v2973
    %v3237 = vunpack.c.l.b16 %v2974
    %v3238 = vunpack.c.l.b16 %v2975
    %v3239 = vunpack.c.l.b16 %v2976
    %v3240 = vunpack.c.l.b16 %v2977
    %v3241 = vunpack.c.l.b16 %v2978
    %v3242 = vunpack.c.l.b16 %v2979
    %v3243 = vunpack.c.l.b16 %v2980
    %v3244 = vunpack.c.l.b16 %v2981
    %v3245 = vunpack.c.l.b16 %v2982
    %v3246 = vunpack.c.l.b16 %v2983
    %v3247 = vunpack.c.l.b16 %v2984
    %v3248 = vunpack.c.l.b16 %v2985
    %v3249 = vunpack.c.l.b16 %v2986
    %v3250 = vunpack.c.l.b16 %v2987
    %v3251 = vunpack.c.l.b16 %v2988
    %v3252 = vunpack.c.l.b16 %v2989
    %v3253 = vunpack.c.l.b16 %v2990
    %v3254 = vunpack.c.l.b16 %v2991
    %v3255 = vunpack.c.l.b16 %v2992
    %v3256 = vunpack.c.l.b16 %v2993
    %v3257 = vunpack.c.l.b16 %v2994
    %v3258 = vunpack.c.l.b16 %v2995
    %v3259 = vunpack.c.l.b16 %v2996
    %v3260 = vunpack.c.l.b16 %v2997
    %v3261 = vunpack.c.l.b16 %v2998
    %v3262 = vunpack.c.l.b16 %v2999
    %v3263 = vunpack.c.l.b16 %v3000
    %v3264 = vunpack.c.l.b16 %v3001
    %v3265 = vunpack.c.l.b16 %v3002
    %v3266 = vunpack.c.l.b16 %v3003
    %v3267 = vunpack.c.l.b16 %v3004
    %v3268 = vunpack.c.l.b16 %v3005
    %v3269 = vunpack.c.l.b16 %v3006
    %v3270 = vunpack.c.l.b16 %v3007
    %v3271 = vunpack.c.l.b16 %v3008
    %v3272 = vunpack.c.l.b16 %v3009
    %v3273 = vunpack.c.l.b16 %v3010
    %v3274 = vunpack.c.l.b16 %v3011
    %v3275 = vunpack.c.l.b16 %v3012
    %v3276 = vunpack.c.l.b16 %v3013
    %v3277 = vunpack.c.l.b16 %v3014
    %v3278 = vunpack.c.l.b16 %v3015
    %v3279 = vunpack.c.l.b16 %v3016
    %v3280 = vunpack.c.l.b16 %v3017
    %v3281 = vunpack.c.l.b16 %v3018
    %v3282 = vunpack.c.l.b16 %v3019
    %v3283 = vunpack.c.l.b16 %v3020
    %v3284 = vunpack.c.l.b16 %v3021
    %v3285 = vunpack.c.l.b16 %v3022
    %v3286 = vunpack.c.l.b16 %v3023
    %v3287 = vunpack.c.l.b16 %v3024
    %v3288 = vunpack.c.l.b16 %v3025
    %v3289 = vunpack.c.l.b16 %v3026
    %v3290 = vunpack.c.l.b16 %v3027
    %v3291 = vunpack.c.l.b16 %v3028
    %v3292 = vunpack.c.l.b16 %v3029
    %v3293 = vunpack.c.l.b16 %v3030
    %v3294 = vunpack.c.l.b16 %v3031
    %v3295 = vunpack.c.l.b16 %v3032
    %v3296 = vunpack.c.l.b16 %v3033
    %v3297 = vunpack.c.l.b16 %v3034
    %v3298 = vunpack.c.l.b16 %v3035
    %v3299 = vunpack.c.l.b16 %v3036
    %v3300 = vunpack.c.l.b16 %v3037
    %v3301 = vunpack.c.l.b16 %v3038
    %v3302 = vunpack.c.l.b16 %v3039
    %v3303 = vunpack.c.l.b16 %v3040
    %v3304 = vunpack.c.l.b16 %v3041
    %v3305 = vunpack.c.l.b16 %v3042
    %v3306 = vunpack.c.l.b16 %v3043
    %v3307 = vunpack.c.l.b16 %v3044
    %v3308 = vunpack.c.l.b16 %v3045
    %v3309 = vunpack.c.l.b16 %v3046
    %v3310 = vunpack.c.l.b16 %v3047
    %v3311 = vunpack.c.l.b16 %v3048
    %v3312 = vunpack.c.l.b16 %v3049
    %v3313 = vunpack.c.l.b16 %v3050
    %v3314 = vunpack.c.l.b16 %v3051
    %v3315 = vunpack.c.l.b16 %v3052
    %v3316 = vunpack.c.l.b16 %v3053
    %v3317 = vunpack.c.l.b16 %v3054
    %v3318 = vunpack.c.l.b16 %v3055
    %v3319 = vunpack.c.l.b16 %v3056
    %v3320 = vunpack.c.l.b16 %v3057
    %v3321 = vunpack.c.l.b16 %v3058
    %v3322 = vunpack.c.l.b16 %v3059
    %v3323 = vpack.c.b16 %v3196, %v3195
    %v3324 = vpack.c.b16 %v3198, %v3197
    %v3325 = vpack.c.b16 %v3200, %v3199
    %v3326 = vpack.c.b16 %v3202, %v3201
    %v3327 = vpack.c.b16 %v3204, %v3203
    %v3328 = vpack.c.b16 %v3206, %v3205
    %v3329 = vpack.c.b16 %v3208, %v3207
    %v3330 = vpack.c.b16 %v3210, %v3209
    %v3331 = vpack.c.b16 %v3212, %v3211
    %v3332 = vpack.c.b16 %v3214, %v3213
    %v3333 = vpack.c.b16 %v3216, %v3215
    %v3334 = vpack.c.b16 %v3218, %v3217
    %v3335 = vpack.c.b16 %v3220, %v3219
    %v3336 = vpack.c.b16 %v3222, %v3221
    %v3337 = vpack.c.b16 %v3224, %v3223
    %v3338 = vpack.c.b16 %v3226, %v3225
    %v3339 = vpack.c.b16 %v3228, %v3227
    %v3340 = vpack.c.b16 %v3230, %v3229
    %v3341 = vpack.c.b16 %v3232, %v3231
    %v3342 = vpack.c.b16 %v3234, %v3233
    %v3343 = vpack.c.b16 %v3236, %v3235
    %v3344 = vpack.c.b16 %v3238, %v3237
    %v3345 = vpack.c.b16 %v3240, %v3239
    %v3346 = vpack.c.b16 %v3242, %v3241
    %v3347 = vpack.c.b16 %v3244, %v3243
    %v3348 = vpack.c.b16 %v3246, %v3245
    %v3349 = vpack.c.b16 %v3248, %v3247
    %v3350 = vpack.c.b16 %v3250, %v3249
    %v3351 = vpack.c.b16 %v3252, %v3251
    %v3352 = vpack.c.b16 %v3254, %v3253
    %v3353 = vpack.c.b16 %v3256, %v3255
    %v3354 = vpack.c.b16 %v3258, %v3257
    %v3355 = vpack.c.b16 %v3260, %v3259
    %v3356 = vpack.c.b16 %v3262, %v3261
    %v3357 = vpack.c.b16 %v3264, %v3263
    %v3358 = vpack.c.b16 %v3266, %v3265
    %v3359 = vpack.c.b16 %v3268, %v3267
    %v3360 = vpack.c.b16 %v3270, %v3269
    %v3361 = vpack.c.b16 %v3272, %v3271
    %v3362 = vpack.c.b16 %v3274, %v3273
    %v3363 = vpack.c.b16 %v3276, %v3275
    %v3364 = vpack.c.b16 %v3278, %v3277
    %v3365 = vpack.c.b16 %v3280, %v3279
    %v3366 = vpack.c.b16 %v3282, %v3281
    %v3367 = vpack.c.b16 %v3284, %v3283
    %v3368 = vpack.c.b16 %v3286, %v3285
    %v3369 = vpack.c.b16 %v3288, %v3287
    %v3370 = vpack.c.b16 %v3290, %v3289
    %v3371 = vpack.c.b16 %v3292, %v3291
    %v3372 = vpack.c.b16 %v3294, %v3293
    %v3373 = vpack.c.b16 %v3296, %v3295
    %v3374 = vpack.c.b16 %v3298, %v3297
    %v3375 = vpack.c.b16 %v3300, %v3299
    %v3376 = vpack.c.b16 %v3302, %v3301
    %v3377 = vpack.c.b16 %v3304, %v3303
    %v3378 = vpack.c.b16 %v3306, %v3305
    %v3379 = vpack.c.b16 %v3308, %v3307
    %v3380 = vpack.c.b16 %v3310, %v3309
    %v3381 = vpack.c.b16 %v3312, %v3311
    %v3382 = vpack.c.b16 %v3314, %v3313
    %v3383 = vpack.c.b16 %v3316, %v3315
    %v3384 = vpack.c.b16 %v3318, %v3317
    %v3385 = vpack.c.b16 %v3320, %v3319
    %v3386 = vpack.c.b16 %v3322, %v3321
    %3451 = vmatprep.subr.bf16.mxu0 0
    %3452 = vmatpush1.bf16.msra.mxu0 %v3323
    %3453 = vmatprep.subr.bf16.mxu0 0
    %3454 = vmatpush1.bf16.msra.mxu0 %v3324
    %3455 = vmatprep.subr.bf16.mxu0 0
    %3456 = vmatpush1.bf16.msra.mxu0 %v3325
    %3457 = vmatprep.subr.bf16.mxu0 0
    %3458 = vmatpush1.bf16.msra.mxu0 %v3326
    %3459 = vmatprep.subr.bf16.mxu0 0
    %3460 = vmatpush1.bf16.msra.mxu0 %v3327
    %3461 = vmatprep.subr.bf16.mxu0 0
    %3462 = vmatpush1.bf16.msra.mxu0 %v3328
    %3463 = vmatprep.subr.bf16.mxu0 0
    %3464 = vmatpush1.bf16.msra.mxu0 %v3329
    %3465 = vmatprep.subr.bf16.mxu0 0
    %3466 = vmatpush1.bf16.msra.mxu0 %v3330
    %3467 = vmatprep.subr.bf16.mxu0 0
    %3468 = vmatpush1.bf16.msra.mxu0 %v3331
    %3469 = vmatprep.subr.bf16.mxu0 0
    %3470 = vmatpush1.bf16.msra.mxu0 %v3332
    %3471 = vmatprep.subr.bf16.mxu0 0
    %3472 = vmatpush1.bf16.msra.mxu0 %v3333
    %3473 = vmatprep.subr.bf16.mxu0 0
    %3474 = vmatpush1.bf16.msra.mxu0 %v3334
    %3475 = vmatprep.subr.bf16.mxu0 0
    %3476 = vmatpush1.bf16.msra.mxu0 %v3335
    %3477 = vmatprep.subr.bf16.mxu0 0
    %3478 = vmatpush1.bf16.msra.mxu0 %v3336
    %3479 = vmatprep.subr.bf16.mxu0 0
    %3480 = vmatpush1.bf16.msra.mxu0 %v3337
    %3481 = vmatprep.subr.bf16.mxu0 0
    %3482 = vmatpush1.bf16.msra.mxu0 %v3338
    %3483 = vmatprep.mubr.bf16.mxu0 %v2925
    %3484 = vmatmul.mubr.bf16.gmra.mrb[0].mxu0 %v2924
    %v3485 = vpop.f32.mrb[0].mxu0
    %v3486 = vadd.f32 %v3065, %v3485
    %v3487 = vpop.f32.mrb[0].mxu0
    %v3488 = vpop.f32.mrb[0].mxu0
    %v3489 = vpop.f32.mrb[0].mxu0
    %3490 = vdwg.mxu0
    %3491 = vmatprep.subr.bf16.mxu0 0
    %3492 = vmatpush1.bf16.msra.mxu0 %v3339
    %3493 = vmatprep.subr.bf16.mxu0 0
    %3494 = vmatpush1.bf16.msra.mxu0 %v3340
    %3495 = vmatprep.subr.bf16.mxu0 0
    %3496 = vmatpush1.bf16.msra.mxu0 %v3341
    %3497 = vmatprep.subr.bf16.mxu0 0
    %3498 = vmatpush1.bf16.msra.mxu0 %v3342
    %3499 = vmatprep.subr.bf16.mxu0 0
    %3500 = vmatpush1.bf16.msra.mxu0 %v3343
    %3501 = vmatprep.subr.bf16.mxu0 0
    %3502 = vmatpush1.bf16.msra.mxu0 %v3344
    %3503 = vmatprep.subr.bf16.mxu0 0
    %3504 = vmatpush1.bf16.msra.mxu0 %v3345
    %3505 = vmatprep.subr.bf16.mxu0 0
    %3506 = vmatpush1.bf16.msra.mxu0 %v3346
    %3507 = vmatprep.subr.bf16.mxu0 0
    %3508 = vmatpush1.bf16.msra.mxu0 %v3347
    %3509 = vmatprep.subr.bf16.mxu0 0
    %3510 = vmatpush1.bf16.msra.mxu0 %v3348
    %3511 = vmatprep.subr.bf16.mxu0 0
    %3512 = vmatpush1.bf16.msra.mxu0 %v3349
    %3513 = vmatprep.subr.bf16.mxu0 0
    %3514 = vmatpush1.bf16.msra.mxu0 %v3350
    %3515 = vmatprep.subr.bf16.mxu0 0
    %3516 = vmatpush1.bf16.msra.mxu0 %v3351
    %3517 = vmatprep.subr.bf16.mxu0 0
    %3518 = vmatpush1.bf16.msra.mxu0 %v3352
    %3519 = vmatprep.subr.bf16.mxu0 0
    %3520 = vmatpush1.bf16.msra.mxu0 %v3353
    %3521 = vmatprep.subr.bf16.mxu0 0
    %3522 = vmatpush1.bf16.msra.mxu0 %v3354
    %3523 = vmatprep.mubr.bf16.mxu0 %v2927
    %3524 = vmatmul.mubr.bf16.gmra.mrb[0].mxu0 %v2926
    %v3525 = vpop.f32.mrb[0].mxu0
    %v3526 = vadd.f32 %v3486, %v3525
    %v3527 = vpop.f32.mrb[0].mxu0
    %v3528 = vpop.f32.mrb[0].mxu0
    %v3529 = vpop.f32.mrb[0].mxu0
    %3530 = vdwg.mxu0
    %3531 = vmatprep.subr.bf16.mxu0 0
    %3532 = vmatpush1.bf16.msra.mxu0 %v3355
    %3533 = vmatprep.subr.bf16.mxu0 0
    %3534 = vmatpush1.bf16.msra.mxu0 %v3356
    %3535 = vmatprep.subr.bf16.mxu0 0
    %3536 = vmatpush1.bf16.msra.mxu0 %v3357
    %3537 = vmatprep.subr.bf16.mxu0 0
    %3538 = vmatpush1.bf16.msra.mxu0 %v3358
    %3539 = vmatprep.subr.bf16.mxu0 0
    %3540 = vmatpush1.bf16.msra.mxu0 %v3359
    %3541 = vmatprep.subr.bf16.mxu0 0
    %3542 = vmatpush1.bf16.msra.mxu0 %v3360
    %3543 = vmatprep.subr.bf16.mxu0 0
    %3544 = vmatpush1.bf16.msra.mxu0 %v3361
    %3545 = vmatprep.subr.bf16.mxu0 0
    %3546 = vmatpush1.bf16.msra.mxu0 %v3362
    %3547 = vmatprep.subr.bf16.mxu0 0
    %3548 = vmatpush1.bf16.msra.mxu0 %v3363
    %3549 = vmatprep.subr.bf16.mxu0 0
    %3550 = vmatpush1.bf16.msra.mxu0 %v3364
    %3551 = vmatprep.subr.bf16.mxu0 0
    %3552 = vmatpush1.bf16.msra.mxu0 %v3365
    %3553 = vmatprep.subr.bf16.mxu0 0
    %3554 = vmatpush1.bf16.msra.mxu0 %v3366
    %3555 = vmatprep.subr.bf16.mxu0 0
    %3556 = vmatpush1.bf16.msra.mxu0 %v3367
    %3557 = vmatprep.subr.bf16.mxu0 0
    %3558 = vmatpush1.bf16.msra.mxu0 %v3368
    %3559 = vmatprep.subr.bf16.mxu0 0
    %3560 = vmatpush1.bf16.msra.mxu0 %v3369
    %3561 = vmatprep.subr.bf16.mxu0 0
    %3562 = vmatpush1.bf16.msra.mxu0 %v3370
    %3563 = vmatprep.mubr.bf16.mxu0 %v2929
    %3564 = vmatmul.mubr.bf16.gmra.mrb[0].mxu0 %v2928
    %v3565 = vpop.f32.mrb[0].mxu0
    %v3566 = vadd.f32 %v3526, %v3565
    %v3567 = vpop.f32.mrb[0].mxu0
    %v3568 = vpop.f32.mrb[0].mxu0
    %v3569 = vpop.f32.mrb[0].mxu0
    %3570 = vdwg.mxu0
    %3571 = vmatprep.subr.bf16.mxu0 0
    %3572 = vmatpush1.bf16.msra.mxu0 %v3371
    %3573 = vmatprep.subr.bf16.mxu0 0
    %3574 = vmatpush1.bf16.msra.mxu0 %v3372
    %3575 = vmatprep.subr.bf16.mxu0 0
    %3576 = vmatpush1.bf16.msra.mxu0 %v3373
    %3577 = vmatprep.subr.bf16.mxu0 0
    %3578 = vmatpush1.bf16.msra.mxu0 %v3374
    %3579 = vmatprep.subr.bf16.mxu0 0
    %3580 = vmatpush1.bf16.msra.mxu0 %v3375
    %3581 = vmatprep.subr.bf16.mxu0 0
    %3582 = vmatpush1.bf16.msra.mxu0 %v3376
    %3583 = vmatprep.subr.bf16.mxu0 0
    %3584 = vmatpush1.bf16.msra.mxu0 %v3377
    %3585 = vmatprep.subr.bf16.mxu0 0
    %3586 = vmatpush1.bf16.msra.mxu0 %v3378
    %3587 = vmatprep.subr.bf16.mxu0 0
    %3588 = vmatpush1.bf16.msra.mxu0 %v3379
    %3589 = vmatprep.subr.bf16.mxu0 0
    %3590 = vmatpush1.bf16.msra.mxu0 %v3380
    %3591 = vmatprep.subr.bf16.mxu0 0
    %3592 = vmatpush1.bf16.msra.mxu0 %v3381
    %3593 = vmatprep.subr.bf16.mxu0 0
    %3594 = vmatpush1.bf16.msra.mxu0 %v3382
    %3595 = vmatprep.subr.bf16.mxu0 0
    %3596 = vmatpush1.bf16.msra.mxu0 %v3383
    %3597 = vmatprep.subr.bf16.mxu0 0
    %3598 = vmatpush1.bf16.msra.mxu0 %v3384
    %3599 = vmatprep.subr.bf16.mxu0 0
    %3600 = vmatpush1.bf16.msra.mxu0 %v3385
    %3601 = vmatprep.subr.bf16.mxu0 0
    %3602 = vmatpush1.bf16.msra.mxu0 %v3386
    %3603 = vmatprep.mubr.bf16.mxu0 %v2931
    %3604 = vmatmul.mubr.bf16.gmra.mrb[0].mxu0 %v2930
    %v3605 = vpop.f32.mrb[0].mxu0
    %v3606 = vadd.f32 %v3566, %v3605
    %v3607 = vpop.f32.mrb[0].mxu0
    %v3608 = vpop.f32.mrb[0].mxu0
    %v3609 = vpop.f32.mrb[0].mxu0
    %3610 = vdwg.mxu0
    %vm3611 = vcmp.gt.f32.partialorder %v3606, 0.0
    %v3612 = vmul.f32 %v3606, 0.2
    %v3613 = vsel %vm3611, %v3606, %v3612
    %v3614 = vpack.c.bf16 %v3613, %v3613
    %v3615 = vld [vmem:[%s9] sm:$0x1]
    %vm3616 = vcmask 64512
    %v3618 = vsel %vm3616, %v3615, 0
    %vm3620 = vcmask 1043456
    %v3622 = vsel %vm3620, %v3614, 0
    %3624 = vmatprep.subr.bf16.mxu0 0
    %3625 = vmatpush1.bf16.msra.mxu0 %v3622
    %3626 = vmatprep.subr.bf16.mxu0 0
    %3627 = vmatpush1.bf16.msra.mxu0 0
    %3628 = vmatprep.subr.bf16.mxu0 0
    %3629 = vmatpush1.bf16.msra.mxu0 0
    %3630 = vmatprep.subr.bf16.mxu0 0
    %3631 = vmatpush1.bf16.msra.mxu0 0
    %3632 = vmatprep.subr.bf16.mxu0 0
    %3633 = vmatpush1.bf16.msra.mxu0 0
    %3634 = vmatprep.subr.bf16.mxu0 0
    %3635 = vmatpush1.bf16.msra.mxu0 0
    %3636 = vmatprep.subr.bf16.mxu0 0
    %3637 = vmatpush1.bf16.msra.mxu0 0
    %3638 = vmatprep.subr.bf16.mxu0 0
    %3639 = vmatpush1.bf16.msra.mxu0 0
    %3640 = vmatprep.subr.bf16.mxu0 0
    %3641 = vmatpush1.bf16.msra.mxu0 0
    %3642 = vmatprep.subr.bf16.mxu0 0
    %3643 = vmatpush1.bf16.msra.mxu0 0
    %3644 = vmatprep.subr.bf16.mxu0 0
    %3645 = vmatpush1.bf16.msra.mxu0 0
    %3646 = vmatprep.subr.bf16.mxu0 0
    %3647 = vmatpush1.bf16.msra.mxu0 0
    %3648 = vmatprep.subr.bf16.mxu0 0
    %3649 = vmatpush1.bf16.msra.mxu0 0
    %3650 = vmatprep.subr.bf16.mxu0 0
    %3651 = vmatpush1.bf16.msra.mxu0 0
    %3652 = vmatprep.subr.bf16.mxu0 0
    %3653 = vmatpush1.bf16.msra.mxu0 0
    %3654 = vmatprep.subr.bf16.mxu0 0
    %3655 = vmatpush1.bf16.msra.mxu0 0
    %3656 = vmatprep.mubr.bf16.mxu0 0
    %3657 = vmatmul.mubr.bf16.gmra.mrb[0].mxu0 %v3618
    %v3658 = vpop.f32.mrb[0].mxu0
    %v3659 = vadd.f32 0.0, %v3658
    %v3660 = vpop.f32.mrb[0].mxu0
    %v3661 = vpop.f32.mrb[0].mxu0
    %v3662 = vpop.f32.mrb[0].mxu0
    %3663 = vdwg.mxu0
    %s3664 = scalar_lea.vmem %s9, 1
    %v3665 = vld [vmem:[%s3664] sm:$0x1]
    %v3667 = vsel %vm3616, %v3665, 0
    %3669 = vmatprep.subr.bf16.mxu0 0
    %3670 = vmatpush1.bf16.msra.mxu0 %v3622
    %3671 = vmatprep.subr.bf16.mxu0 0
    %3672 = vmatpush1.bf16.msra.mxu0 0
    %3673 = vmatprep.subr.bf16.mxu0 0
    %3674 = vmatpush1.bf16.msra.mxu0 0
    %3675 = vmatprep.subr.bf16.mxu0 0
    %3676 = vmatpush1.bf16.msra.mxu0 0
    %3677 = vmatprep.subr.bf16.mxu0 0
    %3678 = vmatpush1.bf16.msra.mxu0 0
    %3679 = vmatprep.subr.bf16.mxu0 0
    %3680 = vmatpush1.bf16.msra.mxu0 0
    %3681 = vmatprep.subr.bf16.mxu0 0
    %3682 = vmatpush1.bf16.msra.mxu0 0
    %3683 = vmatprep.subr.bf16.mxu0 0
    %3684 = vmatpush1.bf16.msra.mxu0 0
    %3685 = vmatprep.subr.bf16.mxu0 0
    %3686 = vmatpush1.bf16.msra.mxu0 0
    %3687 = vmatprep.subr.bf16.mxu0 0
    %3688 = vmatpush1.bf16.msra.mxu0 0
    %3689 = vmatprep.subr.bf16.mxu0 0
    %3690 = vmatpush1.bf16.msra.mxu0 0
    %3691 = vmatprep.subr.bf16.mxu0 0
    %3692 = vmatpush1.bf16.msra.mxu0 0
    %3693 = vmatprep.subr.bf16.mxu0 0
    %3694 = vmatpush1.bf16.msra.mxu0 0
    %3695 = vmatprep.subr.bf16.mxu0 0
    %3696 = vmatpush1.bf16.msra.mxu0 0
    %3697 = vmatprep.subr.bf16.mxu0 0
    %3698 = vmatpush1.bf16.msra.mxu0 0
    %3699 = vmatprep.subr.bf16.mxu0 0
    %3700 = vmatpush1.bf16.msra.mxu0 0
    %3701 = vmatprep.mubr.bf16.mxu0 0
    %3702 = vmatmul.mubr.bf16.gmra.mrb[0].mxu0 %v3667
    %v3703 = vpop.f32.mrb[0].mxu0
    %v3704 = vadd.f32 0.0, %v3703
    %v3705 = vpop.f32.mrb[0].mxu0
    %v3706 = vpop.f32.mrb[0].mxu0
    %v3707 = vpop.f32.mrb[0].mxu0
    %3708 = vdwg.mxu0
    %s3709 = scalar_lea.vmem %s9, 2
    %v3710 = vld [vmem:[%s3709] sm:$0x1]
    %v3712 = vsel %vm3616, %v3710, 0
    %3714 = vmatprep.subr.bf16.mxu0 0
    %3715 = vmatpush1.bf16.msra.mxu0 %v3622
    %3716 = vmatprep.subr.bf16.mxu0 0
    %3717 = vmatpush1.bf16.msra.mxu0 0
    %3718 = vmatprep.subr.bf16.mxu0 0
    %3719 = vmatpush1.bf16.msra.mxu0 0
    %3720 = vmatprep.subr.bf16.mxu0 0
    %3721 = vmatpush1.bf16.msra.mxu0 0
    %3722 = vmatprep.subr.bf16.mxu0 0
    %3723 = vmatpush1.bf16.msra.mxu0 0
    %3724 = vmatprep.subr.bf16.mxu0 0
    %3725 = vmatpush1.bf16.msra.mxu0 0
    %3726 = vmatprep.subr.bf16.mxu0 0
    %3727 = vmatpush1.bf16.msra.mxu0 0
    %3728 = vmatprep.subr.bf16.mxu0 0
    %3729 = vmatpush1.bf16.msra.mxu0 0
    %3730 = vmatprep.subr.bf16.mxu0 0
    %3731 = vmatpush1.bf16.msra.mxu0 0
    %3732 = vmatprep.subr.bf16.mxu0 0
    %3733 = vmatpush1.bf16.msra.mxu0 0
    %3734 = vmatprep.subr.bf16.mxu0 0
    %3735 = vmatpush1.bf16.msra.mxu0 0
    %3736 = vmatprep.subr.bf16.mxu0 0
    %3737 = vmatpush1.bf16.msra.mxu0 0
    %3738 = vmatprep.subr.bf16.mxu0 0
    %3739 = vmatpush1.bf16.msra.mxu0 0
    %3740 = vmatprep.subr.bf16.mxu0 0
    %3741 = vmatpush1.bf16.msra.mxu0 0
    %3742 = vmatprep.subr.bf16.mxu0 0
    %3743 = vmatpush1.bf16.msra.mxu0 0
    %3744 = vmatprep.subr.bf16.mxu0 0
    %3745 = vmatpush1.bf16.msra.mxu0 0
    %3746 = vmatprep.mubr.bf16.mxu0 0
    %3747 = vmatmul.mubr.bf16.gmra.mrb[0].mxu0 %v3712
    %v3748 = vpop.f32.mrb[0].mxu0
    %v3749 = vadd.f32 0.0, %v3748
    %v3750 = vpop.f32.mrb[0].mxu0
    %v3751 = vpop.f32.mrb[0].mxu0
    %v3752 = vpop.f32.mrb[0].mxu0
    %3753 = vdwg.mxu0
    %s3754 = scalar_lea.vmem %s9, 3
    %v3755 = vld [vmem:[%s3754] sm:$0x1]
    %v3757 = vsel %vm3616, %v3755, 0
    %3759 = vmatprep.subr.bf16.mxu0 0
    %3760 = vmatpush1.bf16.msra.mxu0 %v3622
    %3761 = vmatprep.subr.bf16.mxu0 0
    %3762 = vmatpush1.bf16.msra.mxu0 0
    %3763 = vmatprep.subr.bf16.mxu0 0
    %3764 = vmatpush1.bf16.msra.mxu0 0
    %3765 = vmatprep.subr.bf16.mxu0 0
    %3766 = vmatpush1.bf16.msra.mxu0 0
    %3767 = vmatprep.subr.bf16.mxu0 0
    %3768 = vmatpush1.bf16.msra.mxu0 0
    %3769 = vmatprep.subr.bf16.mxu0 0
    %3770 = vmatpush1.bf16.msra.mxu0 0
    %3771 = vmatprep.subr.bf16.mxu0 0
    %3772 = vmatpush1.bf16.msra.mxu0 0
    %3773 = vmatprep.subr.bf16.mxu0 0
    %3774 = vmatpush1.bf16.msra.mxu0 0
    %3775 = vmatprep.subr.bf16.mxu0 0
    %3776 = vmatpush1.bf16.msra.mxu0 0
    %3777 = vmatprep.subr.bf16.mxu0 0
    %3778 = vmatpush1.bf16.msra.mxu0 0
    %3779 = vmatprep.subr.bf16.mxu0 0
    %3780 = vmatpush1.bf16.msra.mxu0 0
    %3781 = vmatprep.subr.bf16.mxu0 0
    %3782 = vmatpush1.bf16.msra.mxu0 0
    %3783 = vmatprep.subr.bf16.mxu0 0
    %3784 = vmatpush1.bf16.msra.mxu0 0
    %3785 = vmatprep.subr.bf16.mxu0 0
    %3786 = vmatpush1.bf16.msra.mxu0 0
    %3787 = vmatprep.subr.bf16.mxu0 0
    %3788 = vmatpush1.bf16.msra.mxu0 0
    %3789 = vmatprep.subr.bf16.mxu0 0
    %3790 = vmatpush1.bf16.msra.mxu0 0
    %3791 = vmatprep.mubr.bf16.mxu0 0
    %3792 = vmatmul.mubr.bf16.gmra.mrb[0].mxu0 %v3757
    %v3793 = vpop.f32.mrb[0].mxu0
    %v3794 = vadd.f32 0.0, %v3793
    %v3795 = vpop.f32.mrb[0].mxu0
    %v3796 = vpop.f32.mrb[0].mxu0
    %v3797 = vpop.f32.mrb[0].mxu0
    %3798 = vdwg.mxu0
    %v3799 = vpack.c.bf16 %v3659, %v3659
    %v3800 = vpack.c.bf16 %v3704, %v3704
    %v3801 = vpack.c.bf16 %v3749, %v3749
    %v3802 = vpack.c.bf16 %v3794, %v3794
    %v3803 = vld [vmem:[%s10] sm:$0xf]
    %v3804 = vld [vmem:[%s10 + $0x4] sm:$0xf]
    %v3805 = vld [vmem:[%s10 + $0x8] sm:$0xf]
    %v3806 = vld [vmem:[%s10 + $0xc] sm:$0xf]
    %v3807 = vld [vmem:[%s10 + $0x10] sm:$0xf]
    %v3808 = vld [vmem:[%s10 + $0x14] sm:$0xf]
    %v3809 = vld [vmem:[%s10 + $0x18] sm:$0xf]
    %v3810 = vld [vmem:[%s10 + $0x1c] sm:$0xf]
    %v3811 = vld [vmem:[%s10 + $0x20] sm:$0xf]
    %v3812 = vld [vmem:[%s10 + $0x24] sm:$0xf]
    %v3813 = vld [vmem:[%s10 + $0x28] sm:$0xf]
    %v3814 = vld [vmem:[%s10 + $0x2c] sm:$0xf]
    %v3815 = vld [vmem:[%s10 + $0x30] sm:$0xf]
    %v3816 = vld [vmem:[%s10 + $0x34] sm:$0xf]
    %v3817 = vld [vmem:[%s10 + $0x38] sm:$0xf]
    %v3818 = vld [vmem:[%s10 + $0x3c] sm:$0xf]
    %v3819 = vld [vmem:[%s10 + $0x40] sm:$0xf]
    %v3820 = vld [vmem:[%s10 + $0x44] sm:$0xf]
    %v3821 = vld [vmem:[%s10 + $0x48] sm:$0xf]
    %v3822 = vld [vmem:[%s10 + $0x4c] sm:$0xf]
    %v3823 = vld [vmem:[%s10 + $0x50] sm:$0xf]
    %v3824 = vld [vmem:[%s10 + $0x54] sm:$0xf]
    %v3825 = vld [vmem:[%s10 + $0x58] sm:$0xf]
    %v3826 = vld [vmem:[%s10 + $0x5c] sm:$0xf]
    %v3827 = vld [vmem:[%s10 + $0x60] sm:$0xf]
    %v3828 = vld [vmem:[%s10 + $0x64] sm:$0xf]
    %v3829 = vld [vmem:[%s10 + $0x68] sm:$0xf]
    %v3830 = vld [vmem:[%s10 + $0x6c] sm:$0xf]
    %v3831 = vld [vmem:[%s10 + $0x70] sm:$0xf]
    %v3832 = vld [vmem:[%s10 + $0x74] sm:$0xf]
    %v3833 = vld [vmem:[%s10 + $0x78] sm:$0xf]
    %v3834 = vld [vmem:[%s10 + $0x7c] sm:$0xf]
    %v3835 = vld [vmem:[%s10 + $0x80] sm:$0xf]
    %v3836 = vld [vmem:[%s10 + $0x84] sm:$0xf]
    %v3837 = vld [vmem:[%s10 + $0x88] sm:$0xf]
    %v3838 = vld [vmem:[%s10 + $0x8c] sm:$0xf]
    %v3839 = vld [vmem:[%s10 + $0x90] sm:$0xf]
    %v3840 = vld [vmem:[%s10 + $0x94] sm:$0xf]
    %v3841 = vld [vmem:[%s10 + $0x98] sm:$0xf]
    %v3842 = vld [vmem:[%s10 + $0x9c] sm:$0xf]
    %v3843 = vld [vmem:[%s10 + $0xa0] sm:$0xf]
    %v3844 = vld [vmem:[%s10 + $0xa4] sm:$0xf]
    %v3845 = vld [vmem:[%s10 + $0xa8] sm:$0xf]
    %v3846 = vld [vmem:[%s10 + $0xac] sm:$0xf]
    %v3847 = vld [vmem:[%s10 + $0xb0] sm:$0xf]
    %v3848 = vld [vmem:[%s10 + $0xb4] sm:$0xf]
    %v3849 = vld [vmem:[%s10 + $0xb8] sm:$0xf]
    %v3850 = vld [vmem:[%s10 + $0xbc] sm:$0xf]
    %v3851 = vld [vmem:[%s10 + $0xc0] sm:$0xf]
    %v3852 = vld [vmem:[%s10 + $0xc4] sm:$0xf]
    %v3853 = vld [vmem:[%s10 + $0xc8] sm:$0xf]
    %v3854 = vld [vmem:[%s10 + $0xcc] sm:$0xf]
    %v3855 = vld [vmem:[%s10 + $0xd0] sm:$0xf]
    %v3856 = vld [vmem:[%s10 + $0xd4] sm:$0xf]
    %v3857 = vld [vmem:[%s10 + $0xd8] sm:$0xf]
    %v3858 = vld [vmem:[%s10 + $0xdc] sm:$0xf]
    %v3859 = vld [vmem:[%s10 + $0xe0] sm:$0xf]
    %v3860 = vld [vmem:[%s10 + $0xe4] sm:$0xf]
    %v3861 = vld [vmem:[%s10 + $0xe8] sm:$0xf]
    %v3862 = vld [vmem:[%s10 + $0xec] sm:$0xf]
    %v3863 = vld [vmem:[%s10 + $0xf0] sm:$0xf]
    %v3864 = vld [vmem:[%s10 + $0xf4] sm:$0xf]
    %v3865 = vld [vmem:[%s10 + $0xf8] sm:$0xf]
    %v3866 = vld [vmem:[%s10 + $0xfc] sm:$0xf]
    %v3867 = vld [vmem:[#allocation10] sm:$0x1]
    %v3869 = vlaneseq
    %v3870 = vshrl.u32 %v3869, 7
    %v3871 = vsub.s32 0, %v3870
    %v3872 = vrot.slane %v3867, %v3871
    %v3938 = vunpack.c.l.b16 %v3803
    %v3939 = vunpack.c.l.b16 %v3804
    %v3940 = vunpack.c.l.b16 %v3805
    %v3941 = vunpack.c.l.b16 %v3806
    %v3942 = vunpack.c.l.b16 %v3807
    %v3943 = vunpack.c.l.b16 %v3808
    %v3944 = vunpack.c.l.b16 %v3809
    %v3945 = vunpack.c.l.b16 %v3810
    %v3946 = vunpack.c.l.b16 %v3811
    %v3947 = vunpack.c.l.b16 %v3812
    %v3948 = vunpack.c.l.b16 %v3813
    %v3949 = vunpack.c.l.b16 %v3814
    %v3950 = vunpack.c.l.b16 %v3815
    %v3951 = vunpack.c.l.b16 %v3816
    %v3952 = vunpack.c.l.b16 %v3817
    %v3953 = vunpack.c.l.b16 %v3818
    %v3954 = vunpack.c.l.b16 %v3819
    %v3955 = vunpack.c.l.b16 %v3820
    %v3956 = vunpack.c.l.b16 %v3821
    %v3957 = vunpack.c.l.b16 %v3822
    %v3958 = vunpack.c.l.b16 %v3823
    %v3959 = vunpack.c.l.b16 %v3824
    %v3960 = vunpack.c.l.b16 %v3825
    %v3961 = vunpack.c.l.b16 %v3826
    %v3962 = vunpack.c.l.b16 %v3827
    %v3963 = vunpack.c.l.b16 %v3828
    %v3964 = vunpack.c.l.b16 %v3829
    %v3965 = vunpack.c.l.b16 %v3830
    %v3966 = vunpack.c.l.b16 %v3831
    %v3967 = vunpack.c.l.b16 %v3832
    %v3968 = vunpack.c.l.b16 %v3833
    %v3969 = vunpack.c.l.b16 %v3834
    %v3970 = vunpack.c.l.b16 %v3835
    %v3971 = vunpack.c.l.b16 %v3836
    %v3972 = vunpack.c.l.b16 %v3837
    %v3973 = vunpack.c.l.b16 %v3838
    %v3974 = vunpack.c.l.b16 %v3839
    %v3975 = vunpack.c.l.b16 %v3840
    %v3976 = vunpack.c.l.b16 %v3841
    %v3977 = vunpack.c.l.b16 %v3842
    %v3978 = vunpack.c.l.b16 %v3843
    %v3979 = vunpack.c.l.b16 %v3844
    %v3980 = vunpack.c.l.b16 %v3845
    %v3981 = vunpack.c.l.b16 %v3846
    %v3982 = vunpack.c.l.b16 %v3847
    %v3983 = vunpack.c.l.b16 %v3848
    %v3984 = vunpack.c.l.b16 %v3849
    %v3985 = vunpack.c.l.b16 %v3850
    %v3986 = vunpack.c.l.b16 %v3851
    %v3987 = vunpack.c.l.b16 %v3852
    %v3988 = vunpack.c.l.b16 %v3853
    %v3989 = vunpack.c.l.b16 %v3854
    %v3990 = vunpack.c.l.b16 %v3855
    %v3991 = vunpack.c.l.b16 %v3856
    %v3992 = vunpack.c.l.b16 %v3857
    %v3993 = vunpack.c.l.b16 %v3858
    %v3994 = vunpack.c.l.b16 %v3859
    %v3995 = vunpack.c.l.b16 %v3860
    %v3996 = vunpack.c.l.b16 %v3861
    %v3997 = vunpack.c.l.b16 %v3862
    %v3998 = vunpack.c.l.b16 %v3863
    %v3999 = vunpack.c.l.b16 %v3864
    %v4000 = vunpack.c.l.b16 %v3865
    %v4001 = vunpack.c.l.b16 %v3866
    %v4002 = vpack.c.b16 %v3939, %v3938
    %v4003 = vpack.c.b16 %v3941, %v3940
    %v4004 = vpack.c.b16 %v3943, %v3942
    %v4005 = vpack.c.b16 %v3945, %v3944
    %v4006 = vpack.c.b16 %v3947, %v3946
    %v4007 = vpack.c.b16 %v3949, %v3948
    %v4008 = vpack.c.b16 %v3951, %v3950
    %v4009 = vpack.c.b16 %v3953, %v3952
    %v4010 = vpack.c.b16 %v3955, %v3954
    %v4011 = vpack.c.b16 %v3957, %v3956
    %v4012 = vpack.c.b16 %v3959, %v3958
    %v4013 = vpack.c.b16 %v3961, %v3960
    %v4014 = vpack.c.b16 %v3963, %v3962
    %v4015 = vpack.c.b16 %v3965, %v3964
    %v4016 = vpack.c.b16 %v3967, %v3966
    %v4017 = vpack.c.b16 %v3969, %v3968
    %v4018 = vpack.c.b16 %v3971, %v3970
    %v4019 = vpack.c.b16 %v3973, %v3972
    %v4020 = vpack.c.b16 %v3975, %v3974
    %v4021 = vpack.c.b16 %v3977, %v3976
    %v4022 = vpack.c.b16 %v3979, %v3978
    %v4023 = vpack.c.b16 %v3981, %v3980
    %v4024 = vpack.c.b16 %v3983, %v3982
    %v4025 = vpack.c.b16 %v3985, %v3984
    %v4026 = vpack.c.b16 %v3987, %v3986
    %v4027 = vpack.c.b16 %v3989, %v3988
    %v4028 = vpack.c.b16 %v3991, %v3990
    %v4029 = vpack.c.b16 %v3993, %v3992
    %v4030 = vpack.c.b16 %v3995, %v3994
    %v4031 = vpack.c.b16 %v3997, %v3996
    %v4032 = vpack.c.b16 %v3999, %v3998
    %v4033 = vpack.c.b16 %v4001, %v4000
    %4066 = vmatprep.subr.bf16.mxu0 0
    %4067 = vmatpush1.bf16.msra.mxu0 %v4002
    %4068 = vmatprep.subr.bf16.mxu0 0
    %4069 = vmatpush1.bf16.msra.mxu0 %v4003
    %4070 = vmatprep.subr.bf16.mxu0 0
    %4071 = vmatpush1.bf16.msra.mxu0 %v4004
    %4072 = vmatprep.subr.bf16.mxu0 0
    %4073 = vmatpush1.bf16.msra.mxu0 %v4005
    %4074 = vmatprep.subr.bf16.mxu0 0
    %4075 = vmatpush1.bf16.msra.mxu0 %v4006
    %4076 = vmatprep.subr.bf16.mxu0 0
    %4077 = vmatpush1.bf16.msra.mxu0 %v4007
    %4078 = vmatprep.subr.bf16.mxu0 0
    %4079 = vmatpush1.bf16.msra.mxu0 %v4008
    %4080 = vmatprep.subr.bf16.mxu0 0
    %4081 = vmatpush1.bf16.msra.mxu0 %v4009
    %4082 = vmatprep.subr.bf16.mxu0 0
    %4083 = vmatpush1.bf16.msra.mxu0 %v4010
    %4084 = vmatprep.subr.bf16.mxu0 0
    %4085 = vmatpush1.bf16.msra.mxu0 %v4011
    %4086 = vmatprep.subr.bf16.mxu0 0
    %4087 = vmatpush1.bf16.msra.mxu0 %v4012
    %4088 = vmatprep.subr.bf16.mxu0 0
    %4089 = vmatpush1.bf16.msra.mxu0 %v4013
    %4090 = vmatprep.subr.bf16.mxu0 0
    %4091 = vmatpush1.bf16.msra.mxu0 %v4014
    %4092 = vmatprep.subr.bf16.mxu0 0
    %4093 = vmatpush1.bf16.msra.mxu0 %v4015
    %4094 = vmatprep.subr.bf16.mxu0 0
    %4095 = vmatpush1.bf16.msra.mxu0 %v4016
    %4096 = vmatprep.subr.bf16.mxu0 0
    %4097 = vmatpush1.bf16.msra.mxu0 %v4017
    %4098 = vmatprep.mubr.bf16.mxu0 %v3800
    %4099 = vmatmul.mubr.bf16.gmra.mrb[0].mxu0 %v3799
    %v4100 = vpop.f32.mrb[0].mxu0
    %v4101 = vadd.f32 %v3872, %v4100
    %v4102 = vpop.f32.mrb[0].mxu0
    %v4103 = vpop.f32.mrb[0].mxu0
    %v4104 = vpop.f32.mrb[0].mxu0
    %4105 = vdwg.mxu0
    %4106 = vmatprep.subr.bf16.mxu0 0
    %4107 = vmatpush1.bf16.msra.mxu0 %v4018
    %4108 = vmatprep.subr.bf16.mxu0 0
    %4109 = vmatpush1.bf16.msra.mxu0 %v4019
    %4110 = vmatprep.subr.bf16.mxu0 0
    %4111 = vmatpush1.bf16.msra.mxu0 %v4020
    %4112 = vmatprep.subr.bf16.mxu0 0
    %4113 = vmatpush1.bf16.msra.mxu0 %v4021
    %4114 = vmatprep.subr.bf16.mxu0 0
    %4115 = vmatpush1.bf16.msra.mxu0 %v4022
    %4116 = vmatprep.subr.bf16.mxu0 0
    %4117 = vmatpush1.bf16.msra.mxu0 %v4023
    %4118 = vmatprep.subr.bf16.mxu0 0
    %4119 = vmatpush1.bf16.msra.mxu0 %v4024
    %4120 = vmatprep.subr.bf16.mxu0 0
    %4121 = vmatpush1.bf16.msra.mxu0 %v4025
    %4122 = vmatprep.subr.bf16.mxu0 0
    %4123 = vmatpush1.bf16.msra.mxu0 %v4026
    %4124 = vmatprep.subr.bf16.mxu0 0
    %4125 = vmatpush1.bf16.msra.mxu0 %v4027
    %4126 = vmatprep.subr.bf16.mxu0 0
    %4127 = vmatpush1.bf16.msra.mxu0 %v4028
    %4128 = vmatprep.subr.bf16.mxu0 0
    %4129 = vmatpush1.bf16.msra.mxu0 %v4029
    %4130 = vmatprep.subr.bf16.mxu0 0
    %4131 = vmatpush1.bf16.msra.mxu0 %v4030
    %4132 = vmatprep.subr.bf16.mxu0 0
    %4133 = vmatpush1.bf16.msra.mxu0 %v4031
    %4134 = vmatprep.subr.bf16.mxu0 0
    %4135 = vmatpush1.bf16.msra.mxu0 %v4032
    %4136 = vmatprep.subr.bf16.mxu0 0
    %4137 = vmatpush1.bf16.msra.mxu0 %v4033
    %4138 = vmatprep.mubr.bf16.mxu0 %v3802
    %4139 = vmatmul.mubr.bf16.gmra.mrb[0].mxu0 %v3801
    %v4140 = vpop.f32.mrb[0].mxu0
    %v4141 = vadd.f32 %v4101, %v4140
    %v4142 = vpop.f32.mrb[0].mxu0
    %v4143 = vpop.f32.mrb[0].mxu0
    %v4144 = vpop.f32.mrb[0].mxu0
    %4145 = vdwg.mxu0
    %vm4146 = vcmask 517120
    %4147 = vst.msk [vmem:[%s26] sm:$0x3] %vm4146, %v4141
    %v4148 = vpack.c.bf16 %v4141, %v4141
    %v4149 = vld [vmem:[#allocation12] sm:$0xff]
    %v4150 = vld [vmem:[#allocation12 + $0x8] sm:$0xff]
    %v4151 = vld [vmem:[#allocation12 + $0x10] sm:$0xff]
    %v4152 = vld [vmem:[#allocation12 + $0x18] sm:$0xff]
    %v4153 = vld [vmem:[#allocation12 + $0x20] sm:$0xff]
    %v4154 = vld [vmem:[#allocation12 + $0x28] sm:$0xff]
    %v4155 = vld [vmem:[#allocation12 + $0x30] sm:$0xff]
    %v4156 = vld [vmem:[#allocation12 + $0x38] sm:$0xff]
    %v4157 = vld [vmem:[#allocation13] sm:$0xf]
    %v4159 = vlaneseq
    %v4160 = vshrl.u32 %v4159, 7
    %v4161 = vsub.s32 0, %v4160
    %v4162 = vrot.slane %v4157, %v4161
    %v4163 = vlaneseq
    %v4164 = vshrl.u32 %v4163, 7
    %v4165 = vsub.s32 1, %v4164
    %v4166 = vrot.slane %v4157, %v4165
    %v4167 = vlaneseq
    %v4168 = vshrl.u32 %v4167, 7
    %v4169 = vsub.s32 2, %v4168
    %v4170 = vrot.slane %v4157, %v4169
    %v4171 = vlaneseq
    %v4172 = vshrl.u32 %v4171, 7
    %v4173 = vsub.s32 3, %v4172
    %v4174 = vrot.slane %v4157, %v4173
    %v4187 = vunpack.c.l.b16 %v4149
    %v4188 = vunpack.c.h.b16 %v4149
    %v4189 = vunpack.c.l.b16 %v4150
    %v4190 = vunpack.c.h.b16 %v4150
    %v4191 = vunpack.c.l.b16 %v4151
    %v4192 = vunpack.c.h.b16 %v4151
    %v4193 = vunpack.c.l.b16 %v4152
    %v4194 = vunpack.c.h.b16 %v4152
    %v4195 = vunpack.c.l.b16 %v4153
    %v4196 = vunpack.c.h.b16 %v4153
    %v4197 = vunpack.c.l.b16 %v4154
    %v4198 = vunpack.c.h.b16 %v4154
    %v4199 = vunpack.c.l.b16 %v4155
    %v4200 = vunpack.c.h.b16 %v4155
    %v4201 = vunpack.c.l.b16 %v4156
    %v4202 = vunpack.c.h.b16 %v4156
    %v4203 = vpack.c.b16 %v4191, %v4187
    %v4204 = vpack.c.b16 %v4192, %v4188
    %v4205 = vpack.c.b16 %v4193, %v4189
    %v4206 = vpack.c.b16 %v4194, %v4190
    %v4207 = vpack.c.b16 %v4199, %v4195
    %v4208 = vpack.c.b16 %v4200, %v4196
    %v4209 = vpack.c.b16 %v4201, %v4197
    %v4210 = vpack.c.b16 %v4202, %v4198
    %v4220 = vsel %vm1731, %v4148, 0
    %4222 = vmatprep.subr.bf16.mxu0 %v4204
    %4223 = vmatpush1.bf16.msra.mxu0 %v4203
    %4224 = vmatprep.subr.bf16.mxu0 %v4208
    %4225 = vmatpush1.bf16.msra.mxu0 %v4207
    %4226 = vmatprep.subr.bf16.mxu0 0
    %4227 = vmatpush1.bf16.msra.mxu0 0
    %4228 = vmatprep.subr.bf16.mxu0 0
    %4229 = vmatpush1.bf16.msra.mxu0 0
    %4230 = vmatprep.subr.bf16.mxu0 0
    %4231 = vmatpush1.bf16.msra.mxu0 0
    %4232 = vmatprep.subr.bf16.mxu0 0
    %4233 = vmatpush1.bf16.msra.mxu0 0
    %4234 = vmatprep.subr.bf16.mxu0 0
    %4235 = vmatpush1.bf16.msra.mxu0 0
    %4236 = vmatprep.subr.bf16.mxu0 0
    %4237 = vmatpush1.bf16.msra.mxu0 0
    %4238 = vmatprep.subr.bf16.mxu0 0
    %4239 = vmatpush1.bf16.msra.mxu0 0
    %4240 = vmatprep.subr.bf16.mxu0 0
    %4241 = vmatpush1.bf16.msra.mxu0 0
    %4242 = vmatprep.subr.bf16.mxu0 0
    %4243 = vmatpush1.bf16.msra.mxu0 0
    %4244 = vmatprep.subr.bf16.mxu0 0
    %4245 = vmatpush1.bf16.msra.mxu0 0
    %4246 = vmatprep.subr.bf16.mxu0 0
    %4247 = vmatpush1.bf16.msra.mxu0 0
    %4248 = vmatprep.subr.bf16.mxu0 0
    %4249 = vmatpush1.bf16.msra.mxu0 0
    %4250 = vmatprep.subr.bf16.mxu0 0
    %4251 = vmatpush1.bf16.msra.mxu0 0
    %4252 = vmatprep.subr.bf16.mxu0 0
    %4253 = vmatpush1.bf16.msra.mxu0 0
    %4254 = vmatprep.mubr.bf16.mxu0 0
    %4255 = vmatmul.mubr.bf16.gmra.mrb[0].mxu0 %v4220
    %v4256 = vpop.f32.mrb[0].mxu0
    %v4257 = vadd.f32 %v4162, %v4256
    %v4258 = vpop.f32.mrb[0].mxu0
    %v4259 = vadd.f32 %v4166, %v4258
    %v4260 = vpop.f32.mrb[0].mxu0
    %v4261 = vpop.f32.mrb[0].mxu0
    %4262 = vdwg.mxu0
    %4263 = vmatprep.subr.bf16.mxu0 %v4206
    %4264 = vmatpush1.bf16.msra.mxu0 %v4205
    %4265 = vmatprep.subr.bf16.mxu0 %v4210
    %4266 = vmatpush1.bf16.msra.mxu0 %v4209
    %4267 = vmatprep.subr.bf16.mxu0 0
    %4268 = vmatpush1.bf16.msra.mxu0 0
    %4269 = vmatprep.subr.bf16.mxu0 0
    %4270 = vmatpush1.bf16.msra.mxu0 0
    %4271 = vmatprep.subr.bf16.mxu0 0
    %4272 = vmatpush1.bf16.msra.mxu0 0
    %4273 = vmatprep.subr.bf16.mxu0 0
    %4274 = vmatpush1.bf16.msra.mxu0 0
    %4275 = vmatprep.subr.bf16.mxu0 0
    %4276 = vmatpush1.bf16.msra.mxu0 0
    %4277 = vmatprep.subr.bf16.mxu0 0
    %4278 = vmatpush1.bf16.msra.mxu0 0
    %4279 = vmatprep.subr.bf16.mxu0 0
    %4280 = vmatpush1.bf16.msra.mxu0 0
    %4281 = vmatprep.subr.bf16.mxu0 0
    %4282 = vmatpush1.bf16.msra.mxu0 0
    %4283 = vmatprep.subr.bf16.mxu0 0
    %4284 = vmatpush1.bf16.msra.mxu0 0
    %4285 = vmatprep.subr.bf16.mxu0 0
    %4286 = vmatpush1.bf16.msra.mxu0 0
    %4287 = vmatprep.subr.bf16.mxu0 0
    %4288 = vmatpush1.bf16.msra.mxu0 0
    %4289 = vmatprep.subr.bf16.mxu0 0
    %4290 = vmatpush1.bf16.msra.mxu0 0
    %4291 = vmatprep.subr.bf16.mxu0 0
    %4292 = vmatpush1.bf16.msra.mxu0 0
    %4293 = vmatprep.subr.bf16.mxu0 0
    %4294 = vmatpush1.bf16.msra.mxu0 0
    %4295 = vmatprep.mubr.bf16.mxu0 0
    %4296 = vmatmul.mubr.bf16.gmra.mrb[0].mxu0 %v4220
    %v4297 = vpop.f32.mrb[0].mxu0
    %v4298 = vadd.f32 %v4170, %v4297
    %v4299 = vpop.f32.mrb[0].mxu0
    %v4300 = vadd.f32 %v4174, %v4299
    %v4301 = vpop.f32.mrb[0].mxu0
    %v4302 = vpop.f32.mrb[0].mxu0
    %4303 = vdwg.mxu0
    %v4304 = vmax.f32 %v4257, 0.0
    %v4305 = vmax.f32 %v4259, 0.0
    %v4306 = vmax.f32 %v4298, 0.0
    %v4307 = vmax.f32 %v4300, 0.0
    %v4308 = vpack.c.bf16 %v4304, %v4304
    %v4309 = vpack.c.bf16 %v4305, %v4305
    %v4310 = vpack.c.bf16 %v4306, %v4306
    %v4311 = vpack.c.bf16 %v4307, %v4307
    %v4312 = vld [vmem:[%s14] sm:$0xf]
    %s4313 = scalar_lea.vmem %s14, 4
    %v4314 = vld [vmem:[%s4313] sm:$0xf]
    %vm4315 = vcmask 15360
    %v4317 = vsel %vm4315, %v4314, 0
    %vm4319 = vcmask 1040384
    %v4321 = vsel %vm4319, %v4309, 0
    %4323 = vmatprep.subr.bf16.mxu0 0
    %4324 = vmatpush1.bf16.msra.mxu0 %v4321
    %4325 = vmatprep.subr.bf16.mxu0 0
    %4326 = vmatpush1.bf16.msra.mxu0 0
    %4327 = vmatprep.subr.bf16.mxu0 0
    %4328 = vmatpush1.bf16.msra.mxu0 0
    %4329 = vmatprep.subr.bf16.mxu0 0
    %4330 = vmatpush1.bf16.msra.mxu0 0
    %4331 = vmatprep.subr.bf16.mxu0 0
    %4332 = vmatpush1.bf16.msra.mxu0 0
    %4333 = vmatprep.subr.bf16.mxu0 0
    %4334 = vmatpush1.bf16.msra.mxu0 0
    %4335 = vmatprep.subr.bf16.mxu0 0
    %4336 = vmatpush1.bf16.msra.mxu0 0
    %4337 = vmatprep.subr.bf16.mxu0 0
    %4338 = vmatpush1.bf16.msra.mxu0 0
    %4339 = vmatprep.subr.bf16.mxu0 0
    %4340 = vmatpush1.bf16.msra.mxu0 0
    %4341 = vmatprep.subr.bf16.mxu0 0
    %4342 = vmatpush1.bf16.msra.mxu0 0
    %4343 = vmatprep.subr.bf16.mxu0 0
    %4344 = vmatpush1.bf16.msra.mxu0 0
    %4345 = vmatprep.subr.bf16.mxu0 0
    %4346 = vmatpush1.bf16.msra.mxu0 0
    %4347 = vmatprep.subr.bf16.mxu0 0
    %4348 = vmatpush1.bf16.msra.mxu0 0
    %4349 = vmatprep.subr.bf16.mxu0 0
    %4350 = vmatpush1.bf16.msra.mxu0 0
    %4351 = vmatprep.subr.bf16.mxu0 0
    %4352 = vmatpush1.bf16.msra.mxu0 0
    %4353 = vmatprep.subr.bf16.mxu0 0
    %4354 = vmatpush1.bf16.msra.mxu0 0
    %4355 = vmatprep.mubr.bf16.mxu0 0
    %4356 = vmatmul.mubr.bf16.gmra.mrb[0].mxu0 %v4317
    %v4357 = vpop.f32.mrb[0].mxu0
    %v4358 = vadd.f32 0.0, %v4357
    %v4359 = vpop.f32.mrb[0].mxu0
    %v4360 = vpop.f32.mrb[0].mxu0
    %v4361 = vpop.f32.mrb[0].mxu0
    %4362 = vdwg.mxu0
    %v4364 = vsel %vm4315, %v4312, 0
    %v4367 = vsel %vm4319, %v4308, 0
    %4369 = vmatprep.subr.bf16.mxu0 0
    %4370 = vmatpush1.bf16.msra.mxu0 %v4367
    %4371 = vmatprep.subr.bf16.mxu0 0
    %4372 = vmatpush1.bf16.msra.mxu0 0
    %4373 = vmatprep.subr.bf16.mxu0 0
    %4374 = vmatpush1.bf16.msra.mxu0 0
    %4375 = vmatprep.subr.bf16.mxu0 0
    %4376 = vmatpush1.bf16.msra.mxu0 0
    %4377 = vmatprep.subr.bf16.mxu0 0
    %4378 = vmatpush1.bf16.msra.mxu0 0
    %4379 = vmatprep.subr.bf16.mxu0 0
    %4380 = vmatpush1.bf16.msra.mxu0 0
    %4381 = vmatprep.subr.bf16.mxu0 0
    %4382 = vmatpush1.bf16.msra.mxu0 0
    %4383 = vmatprep.subr.bf16.mxu0 0
    %4384 = vmatpush1.bf16.msra.mxu0 0
    %4385 = vmatprep.subr.bf16.mxu0 0
    %4386 = vmatpush1.bf16.msra.mxu0 0
    %4387 = vmatprep.subr.bf16.mxu0 0
    %4388 = vmatpush1.bf16.msra.mxu0 0
    %4389 = vmatprep.subr.bf16.mxu0 0
    %4390 = vmatpush1.bf16.msra.mxu0 0
    %4391 = vmatprep.subr.bf16.mxu0 0
    %4392 = vmatpush1.bf16.msra.mxu0 0
    %4393 = vmatprep.subr.bf16.mxu0 0
    %4394 = vmatpush1.bf16.msra.mxu0 0
    %4395 = vmatprep.subr.bf16.mxu0 0
    %4396 = vmatpush1.bf16.msra.mxu0 0
    %4397 = vmatprep.subr.bf16.mxu0 0
    %4398 = vmatpush1.bf16.msra.mxu0 0
    %4399 = vmatprep.subr.bf16.mxu0 0
    %4400 = vmatpush1.bf16.msra.mxu0 0
    %4401 = vmatprep.mubr.bf16.mxu0 0
    %4402 = vmatmul.mubr.bf16.gmra.mrb[0].mxu0 %v4364
    %v4403 = vpop.f32.mrb[0].mxu0
    %v4404 = vadd.f32 %v4358, %v4403
    %v4405 = vpop.f32.mrb[0].mxu0
    %v4406 = vpop.f32.mrb[0].mxu0
    %v4407 = vpop.f32.mrb[0].mxu0
    %4408 = vdwg.mxu0
    %s4409 = scalar_lea.vmem %s14, 8
    %v4410 = vld [vmem:[%s4409] sm:$0xf]
    %v4412 = vsel %vm4315, %v4410, 0
    %v4415 = vsel %vm4319, %v4310, 0
    %4417 = vmatprep.subr.bf16.mxu0 0
    %4418 = vmatpush1.bf16.msra.mxu0 %v4415
    %4419 = vmatprep.subr.bf16.mxu0 0
    %4420 = vmatpush1.bf16.msra.mxu0 0
    %4421 = vmatprep.subr.bf16.mxu0 0
    %4422 = vmatpush1.bf16.msra.mxu0 0
    %4423 = vmatprep.subr.bf16.mxu0 0
    %4424 = vmatpush1.bf16.msra.mxu0 0
    %4425 = vmatprep.subr.bf16.mxu0 0
    %4426 = vmatpush1.bf16.msra.mxu0 0
    %4427 = vmatprep.subr.bf16.mxu0 0
    %4428 = vmatpush1.bf16.msra.mxu0 0
    %4429 = vmatprep.subr.bf16.mxu0 0
    %4430 = vmatpush1.bf16.msra.mxu0 0
    %4431 = vmatprep.subr.bf16.mxu0 0
    %4432 = vmatpush1.bf16.msra.mxu0 0
    %4433 = vmatprep.subr.bf16.mxu0 0
    %4434 = vmatpush1.bf16.msra.mxu0 0
    %4435 = vmatprep.subr.bf16.mxu0 0
    %4436 = vmatpush1.bf16.msra.mxu0 0
    %4437 = vmatprep.subr.bf16.mxu0 0
    %4438 = vmatpush1.bf16.msra.mxu0 0
    %4439 = vmatprep.subr.bf16.mxu0 0
    %4440 = vmatpush1.bf16.msra.mxu0 0
    %4441 = vmatprep.subr.bf16.mxu0 0
    %4442 = vmatpush1.bf16.msra.mxu0 0
    %4443 = vmatprep.subr.bf16.mxu0 0
    %4444 = vmatpush1.bf16.msra.mxu0 0
    %4445 = vmatprep.subr.bf16.mxu0 0
    %4446 = vmatpush1.bf16.msra.mxu0 0
    %4447 = vmatprep.subr.bf16.mxu0 0
    %4448 = vmatpush1.bf16.msra.mxu0 0
    %4449 = vmatprep.mubr.bf16.mxu0 0
    %4450 = vmatmul.mubr.bf16.gmra.mrb[0].mxu0 %v4412
    %v4451 = vpop.f32.mrb[0].mxu0
    %v4452 = vadd.f32 0.0, %v4451
    %v4453 = vpop.f32.mrb[0].mxu0
    %v4454 = vpop.f32.mrb[0].mxu0
    %v4455 = vpop.f32.mrb[0].mxu0
    %4456 = vdwg.mxu0
    %v4457 = vadd.f32 %v4404, %v4452
    %s4458 = scalar_lea.vmem %s14, 12
    %v4459 = vld [vmem:[%s4458] sm:$0xf]
    %v4461 = vsel %vm4315, %v4459, 0
    %v4464 = vsel %vm4319, %v4311, 0
    %4466 = vmatprep.subr.bf16.mxu0 0
    %4467 = vmatpush1.bf16.msra.mxu0 %v4464
    %4468 = vmatprep.subr.bf16.mxu0 0
    %4469 = vmatpush1.bf16.msra.mxu0 0
    %4470 = vmatprep.subr.bf16.mxu0 0
    %4471 = vmatpush1.bf16.msra.mxu0 0
    %4472 = vmatprep.subr.bf16.mxu0 0
    %4473 = vmatpush1.bf16.msra.mxu0 0
    %4474 = vmatprep.subr.bf16.mxu0 0
    %4475 = vmatpush1.bf16.msra.mxu0 0
    %4476 = vmatprep.subr.bf16.mxu0 0
    %4477 = vmatpush1.bf16.msra.mxu0 0
    %4478 = vmatprep.subr.bf16.mxu0 0
    %4479 = vmatpush1.bf16.msra.mxu0 0
    %4480 = vmatprep.subr.bf16.mxu0 0
    %4481 = vmatpush1.bf16.msra.mxu0 0
    %4482 = vmatprep.subr.bf16.mxu0 0
    %4483 = vmatpush1.bf16.msra.mxu0 0
    %4484 = vmatprep.subr.bf16.mxu0 0
    %4485 = vmatpush1.bf16.msra.mxu0 0
    %4486 = vmatprep.subr.bf16.mxu0 0
    %4487 = vmatpush1.bf16.msra.mxu0 0
    %4488 = vmatprep.subr.bf16.mxu0 0
    %4489 = vmatpush1.bf16.msra.mxu0 0
    %4490 = vmatprep.subr.bf16.mxu0 0
    %4491 = vmatpush1.bf16.msra.mxu0 0
    %4492 = vmatprep.subr.bf16.mxu0 0
    %4493 = vmatpush1.bf16.msra.mxu0 0
    %4494 = vmatprep.subr.bf16.mxu0 0
    %4495 = vmatpush1.bf16.msra.mxu0 0
    %4496 = vmatprep.subr.bf16.mxu0 0
    %4497 = vmatpush1.bf16.msra.mxu0 0
    %4498 = vmatprep.mubr.bf16.mxu0 0
    %4499 = vmatmul.mubr.bf16.gmra.mrb[0].mxu0 %v4461
    %v4500 = vpop.f32.mrb[0].mxu0
    %v4501 = vadd.f32 0.0, %v4500
    %v4502 = vpop.f32.mrb[0].mxu0
    %v4503 = vpop.f32.mrb[0].mxu0
    %v4504 = vpop.f32.mrb[0].mxu0
    %4505 = vdwg.mxu0
    %v4506 = vadd.f32 %v4457, %v4501
    %v4507 = vpack.c.bf16 %v4506, %v4506
    %v4508 = vld [vmem:[%s15] sm:$0xf]
    %v4510 = vsel %vm3616, %v4508, 0
    %v4513 = vsel %vm3620, %v4507, 0
    %4515 = vmatprep.subr.bf16.mxu0 0
    %4516 = vmatpush1.bf16.msra.mxu0 %v4513
    %4517 = vmatprep.subr.bf16.mxu0 0
    %4518 = vmatpush1.bf16.msra.mxu0 0
    %4519 = vmatprep.subr.bf16.mxu0 0
    %4520 = vmatpush1.bf16.msra.mxu0 0
    %4521 = vmatprep.subr.bf16.mxu0 0
    %4522 = vmatpush1.bf16.msra.mxu0 0
    %4523 = vmatprep.subr.bf16.mxu0 0
    %4524 = vmatpush1.bf16.msra.mxu0 0
    %4525 = vmatprep.subr.bf16.mxu0 0
    %4526 = vmatpush1.bf16.msra.mxu0 0
    %4527 = vmatprep.subr.bf16.mxu0 0
    %4528 = vmatpush1.bf16.msra.mxu0 0
    %4529 = vmatprep.subr.bf16.mxu0 0
    %4530 = vmatpush1.bf16.msra.mxu0 0
    %4531 = vmatprep.subr.bf16.mxu0 0
    %4532 = vmatpush1.bf16.msra.mxu0 0
    %4533 = vmatprep.subr.bf16.mxu0 0
    %4534 = vmatpush1.bf16.msra.mxu0 0
    %4535 = vmatprep.subr.bf16.mxu0 0
    %4536 = vmatpush1.bf16.msra.mxu0 0
    %4537 = vmatprep.subr.bf16.mxu0 0
    %4538 = vmatpush1.bf16.msra.mxu0 0
    %4539 = vmatprep.subr.bf16.mxu0 0
    %4540 = vmatpush1.bf16.msra.mxu0 0
    %4541 = vmatprep.subr.bf16.mxu0 0
    %4542 = vmatpush1.bf16.msra.mxu0 0
    %4543 = vmatprep.subr.bf16.mxu0 0
    %4544 = vmatpush1.bf16.msra.mxu0 0
    %4545 = vmatprep.subr.bf16.mxu0 0
    %4546 = vmatpush1.bf16.msra.mxu0 0
    %4547 = vmatprep.mubr.bf16.mxu0 0
    %4548 = vmatmul.mubr.bf16.gmra.mrb[0].mxu0 %v4510
    %v4549 = vpop.f32.mrb[0].mxu0
    %v4550 = vadd.f32 0.0, %v4549
    %v4551 = vpop.f32.mrb[0].mxu0
    %v4552 = vpop.f32.mrb[0].mxu0
    %v4553 = vpop.f32.mrb[0].mxu0
    %4554 = vdwg.mxu0
    %s4555 = scalar_lea.vmem %s15, 4
    %v4556 = vld [vmem:[%s4555] sm:$0xf]
    %v4558 = vsel %vm3616, %v4556, 0
    %4560 = vmatprep.subr.bf16.mxu0 0
    %4561 = vmatpush1.bf16.msra.mxu0 %v4513
    %4562 = vmatprep.subr.bf16.mxu0 0
    %4563 = vmatpush1.bf16.msra.mxu0 0
    %4564 = vmatprep.subr.bf16.mxu0 0
    %4565 = vmatpush1.bf16.msra.mxu0 0
    %4566 = vmatprep.subr.bf16.mxu0 0
    %4567 = vmatpush1.bf16.msra.mxu0 0
    %4568 = vmatprep.subr.bf16.mxu0 0
    %4569 = vmatpush1.bf16.msra.mxu0 0
    %4570 = vmatprep.subr.bf16.mxu0 0
    %4571 = vmatpush1.bf16.msra.mxu0 0
    %4572 = vmatprep.subr.bf16.mxu0 0
    %4573 = vmatpush1.bf16.msra.mxu0 0
    %4574 = vmatprep.subr.bf16.mxu0 0
    %4575 = vmatpush1.bf16.msra.mxu0 0
    %4576 = vmatprep.subr.bf16.mxu0 0
    %4577 = vmatpush1.bf16.msra.mxu0 0
    %4578 = vmatprep.subr.bf16.mxu0 0
    %4579 = vmatpush1.bf16.msra.mxu0 0
    %4580 = vmatprep.subr.bf16.mxu0 0
    %4581 = vmatpush1.bf16.msra.mxu0 0
    %4582 = vmatprep.subr.bf16.mxu0 0
    %4583 = vmatpush1.bf16.msra.mxu0 0
    %4584 = vmatprep.subr.bf16.mxu0 0
    %4585 = vmatpush1.bf16.msra.mxu0 0
    %4586 = vmatprep.subr.bf16.mxu0 0
    %4587 = vmatpush1.bf16.msra.mxu0 0
    %4588 = vmatprep.subr.bf16.mxu0 0
    %4589 = vmatpush1.bf16.msra.mxu0 0
    %4590 = vmatprep.subr.bf16.mxu0 0
    %4591 = vmatpush1.bf16.msra.mxu0 0
    %4592 = vmatprep.mubr.bf16.mxu0 0
    %4593 = vmatmul.mubr.bf16.gmra.mrb[0].mxu0 %v4558
    %v4594 = vpop.f32.mrb[0].mxu0
    %v4595 = vadd.f32 0.0, %v4594
    %v4596 = vpop.f32.mrb[0].mxu0
    %v4597 = vpop.f32.mrb[0].mxu0
    %v4598 = vpop.f32.mrb[0].mxu0
    %4599 = vdwg.mxu0
    %s4600 = scalar_lea.vmem %s15, 8
    %v4601 = vld [vmem:[%s4600] sm:$0xf]
    %v4603 = vsel %vm3616, %v4601, 0
    %4605 = vmatprep.subr.bf16.mxu0 0
    %4606 = vmatpush1.bf16.msra.mxu0 %v4513
    %4607 = vmatprep.subr.bf16.mxu0 0
    %4608 = vmatpush1.bf16.msra.mxu0 0
    %4609 = vmatprep.subr.bf16.mxu0 0
    %4610 = vmatpush1.bf16.msra.mxu0 0
    %4611 = vmatprep.subr.bf16.mxu0 0
    %4612 = vmatpush1.bf16.msra.mxu0 0
    %4613 = vmatprep.subr.bf16.mxu0 0
    %4614 = vmatpush1.bf16.msra.mxu0 0
    %4615 = vmatprep.subr.bf16.mxu0 0
    %4616 = vmatpush1.bf16.msra.mxu0 0
    %4617 = vmatprep.subr.bf16.mxu0 0
    %4618 = vmatpush1.bf16.msra.mxu0 0
    %4619 = vmatprep.subr.bf16.mxu0 0
    %4620 = vmatpush1.bf16.msra.mxu0 0
    %4621 = vmatprep.subr.bf16.mxu0 0
    %4622 = vmatpush1.bf16.msra.mxu0 0
    %4623 = vmatprep.subr.bf16.mxu0 0
    %4624 = vmatpush1.bf16.msra.mxu0 0
    %4625 = vmatprep.subr.bf16.mxu0 0
    %4626 = vmatpush1.bf16.msra.mxu0 0
    %4627 = vmatprep.subr.bf16.mxu0 0
    %4628 = vmatpush1.bf16.msra.mxu0 0
    %4629 = vmatprep.subr.bf16.mxu0 0
    %4630 = vmatpush1.bf16.msra.mxu0 0
    %4631 = vmatprep.subr.bf16.mxu0 0
    %4632 = vmatpush1.bf16.msra.mxu0 0
    %4633 = vmatprep.subr.bf16.mxu0 0
    %4634 = vmatpush1.bf16.msra.mxu0 0
    %4635 = vmatprep.subr.bf16.mxu0 0
    %4636 = vmatpush1.bf16.msra.mxu0 0
    %4637 = vmatprep.mubr.bf16.mxu0 0
    %4638 = vmatmul.mubr.bf16.gmra.mrb[0].mxu0 %v4603
    %v4639 = vpop.f32.mrb[0].mxu0
    %v4640 = vadd.f32 0.0, %v4639
    %v4641 = vpop.f32.mrb[0].mxu0
    %v4642 = vpop.f32.mrb[0].mxu0
    %v4643 = vpop.f32.mrb[0].mxu0
    %4644 = vdwg.mxu0
    %s4645 = scalar_lea.vmem %s15, 12
    %v4646 = vld [vmem:[%s4645] sm:$0xf]
    %v4648 = vsel %vm3616, %v4646, 0
    %4650 = vmatprep.subr.bf16.mxu0 0
    %4651 = vmatpush1.bf16.msra.mxu0 %v4513
    %4652 = vmatprep.subr.bf16.mxu0 0
    %4653 = vmatpush1.bf16.msra.mxu0 0
    %4654 = vmatprep.subr.bf16.mxu0 0
    %4655 = vmatpush1.bf16.msra.mxu0 0
    %4656 = vmatprep.subr.bf16.mxu0 0
    %4657 = vmatpush1.bf16.msra.mxu0 0
    %4658 = vmatprep.subr.bf16.mxu0 0
    %4659 = vmatpush1.bf16.msra.mxu0 0
    %4660 = vmatprep.subr.bf16.mxu0 0
    %4661 = vmatpush1.bf16.msra.mxu0 0
    %4662 = vmatprep.subr.bf16.mxu0 0
    %4663 = vmatpush1.bf16.msra.mxu0 0
    %4664 = vmatprep.subr.bf16.mxu0 0
    %4665 = vmatpush1.bf16.msra.mxu0 0
    %4666 = vmatprep.subr.bf16.mxu0 0
    %4667 = vmatpush1.bf16.msra.mxu0 0
    %4668 = vmatprep.subr.bf16.mxu0 0
    %4669 = vmatpush1.bf16.msra.mxu0 0
    %4670 = vmatprep.subr.bf16.mxu0 0
    %4671 = vmatpush1.bf16.msra.mxu0 0
    %4672 = vmatprep.subr.bf16.mxu0 0
    %4673 = vmatpush1.bf16.msra.mxu0 0
    %4674 = vmatprep.subr.bf16.mxu0 0
    %4675 = vmatpush1.bf16.msra.mxu0 0
    %4676 = vmatprep.subr.bf16.mxu0 0
    %4677 = vmatpush1.bf16.msra.mxu0 0
    %4678 = vmatprep.subr.bf16.mxu0 0
    %4679 = vmatpush1.bf16.msra.mxu0 0
    %4680 = vmatprep.subr.bf16.mxu0 0
    %4681 = vmatpush1.bf16.msra.mxu0 0
    %4682 = vmatprep.mubr.bf16.mxu0 0
    %4683 = vmatmul.mubr.bf16.gmra.mrb[0].mxu0 %v4648
    %v4684 = vpop.f32.mrb[0].mxu0
    %v4685 = vadd.f32 0.0, %v4684
    %v4686 = vpop.f32.mrb[0].mxu0
    %v4687 = vpop.f32.mrb[0].mxu0
    %v4688 = vpop.f32.mrb[0].mxu0
    %4689 = vdwg.mxu0
    %s4690 = scalar_lea.vmem %s15, 16
    %v4691 = vld [vmem:[%s4690] sm:$0xf]
    %v4693 = vsel %vm3616, %v4691, 0
    %4695 = vmatprep.subr.bf16.mxu0 0
    %4696 = vmatpush1.bf16.msra.mxu0 %v4513
    %4697 = vmatprep.subr.bf16.mxu0 0
    %4698 = vmatpush1.bf16.msra.mxu0 0
    %4699 = vmatprep.subr.bf16.mxu0 0
    %4700 = vmatpush1.bf16.msra.mxu0 0
    %4701 = vmatprep.subr.bf16.mxu0 0
    %4702 = vmatpush1.bf16.msra.mxu0 0
    %4703 = vmatprep.subr.bf16.mxu0 0
    %4704 = vmatpush1.bf16.msra.mxu0 0
    %4705 = vmatprep.subr.bf16.mxu0 0
    %4706 = vmatpush1.bf16.msra.mxu0 0
    %4707 = vmatprep.subr.bf16.mxu0 0
    %4708 = vmatpush1.bf16.msra.mxu0 0
    %4709 = vmatprep.subr.bf16.mxu0 0
    %4710 = vmatpush1.bf16.msra.mxu0 0
    %4711 = vmatprep.subr.bf16.mxu0 0
    %4712 = vmatpush1.bf16.msra.mxu0 0
    %4713 = vmatprep.subr.bf16.mxu0 0
    %4714 = vmatpush1.bf16.msra.mxu0 0
    %4715 = vmatprep.subr.bf16.mxu0 0
    %4716 = vmatpush1.bf16.msra.mxu0 0
    %4717 = vmatprep.subr.bf16.mxu0 0
    %4718 = vmatpush1.bf16.msra.mxu0 0
    %4719 = vmatprep.subr.bf16.mxu0 0
    %4720 = vmatpush1.bf16.msra.mxu0 0
    %4721 = vmatprep.subr.bf16.mxu0 0
    %4722 = vmatpush1.bf16.msra.mxu0 0
    %4723 = vmatprep.subr.bf16.mxu0 0
    %4724 = vmatpush1.bf16.msra.mxu0 0
    %4725 = vmatprep.subr.bf16.mxu0 0
    %4726 = vmatpush1.bf16.msra.mxu0 0
    %4727 = vmatprep.mubr.bf16.mxu0 0
    %4728 = vmatmul.mubr.bf16.gmra.mrb[0].mxu0 %v4693
    %v4729 = vpop.f32.mrb[0].mxu0
    %v4730 = vadd.f32 0.0, %v4729
    %v4731 = vpop.f32.mrb[0].mxu0
    %v4732 = vpop.f32.mrb[0].mxu0
    %v4733 = vpop.f32.mrb[0].mxu0
    %4734 = vdwg.mxu0
    %s4735 = scalar_lea.vmem %s15, 20
    %v4736 = vld [vmem:[%s4735] sm:$0xf]
    %v4738 = vsel %vm3616, %v4736, 0
    %4740 = vmatprep.subr.bf16.mxu0 0
    %4741 = vmatpush1.bf16.msra.mxu0 %v4513
    %4742 = vmatprep.subr.bf16.mxu0 0
    %4743 = vmatpush1.bf16.msra.mxu0 0
    %4744 = vmatprep.subr.bf16.mxu0 0
    %4745 = vmatpush1.bf16.msra.mxu0 0
    %4746 = vmatprep.subr.bf16.mxu0 0
    %4747 = vmatpush1.bf16.msra.mxu0 0
    %4748 = vmatprep.subr.bf16.mxu0 0
    %4749 = vmatpush1.bf16.msra.mxu0 0
    %4750 = vmatprep.subr.bf16.mxu0 0
    %4751 = vmatpush1.bf16.msra.mxu0 0
    %4752 = vmatprep.subr.bf16.mxu0 0
    %4753 = vmatpush1.bf16.msra.mxu0 0
    %4754 = vmatprep.subr.bf16.mxu0 0
    %4755 = vmatpush1.bf16.msra.mxu0 0
    %4756 = vmatprep.subr.bf16.mxu0 0
    %4757 = vmatpush1.bf16.msra.mxu0 0
    %4758 = vmatprep.subr.bf16.mxu0 0
    %4759 = vmatpush1.bf16.msra.mxu0 0
    %4760 = vmatprep.subr.bf16.mxu0 0
    %4761 = vmatpush1.bf16.msra.mxu0 0
    %4762 = vmatprep.subr.bf16.mxu0 0
    %4763 = vmatpush1.bf16.msra.mxu0 0
    %4764 = vmatprep.subr.bf16.mxu0 0
    %4765 = vmatpush1.bf16.msra.mxu0 0
    %4766 = vmatprep.subr.bf16.mxu0 0
    %4767 = vmatpush1.bf16.msra.mxu0 0
    %4768 = vmatprep.subr.bf16.mxu0 0
    %4769 = vmatpush1.bf16.msra.mxu0 0
    %4770 = vmatprep.subr.bf16.mxu0 0
    %4771 = vmatpush1.bf16.msra.mxu0 0
    %4772 = vmatprep.mubr.bf16.mxu0 0
    %4773 = vmatmul.mubr.bf16.gmra.mrb[0].mxu0 %v4738
    %v4774 = vpop.f32.mrb[0].mxu0
    %v4775 = vadd.f32 0.0, %v4774
    %v4776 = vpop.f32.mrb[0].mxu0
    %v4777 = vpop.f32.mrb[0].mxu0
    %v4778 = vpop.f32.mrb[0].mxu0
    %4779 = vdwg.mxu0
    %s4780 = scalar_lea.vmem %s15, 24
    %v4781 = vld [vmem:[%s4780] sm:$0xf]
    %v4783 = vsel %vm3616, %v4781, 0
    %4785 = vmatprep.subr.bf16.mxu0 0
    %4786 = vmatpush1.bf16.msra.mxu0 %v4513
    %4787 = vmatprep.subr.bf16.mxu0 0
    %4788 = vmatpush1.bf16.msra.mxu0 0
    %4789 = vmatprep.subr.bf16.mxu0 0
    %4790 = vmatpush1.bf16.msra.mxu0 0
    %4791 = vmatprep.subr.bf16.mxu0 0
    %4792 = vmatpush1.bf16.msra.mxu0 0
    %4793 = vmatprep.subr.bf16.mxu0 0
    %4794 = vmatpush1.bf16.msra.mxu0 0
    %4795 = vmatprep.subr.bf16.mxu0 0
    %4796 = vmatpush1.bf16.msra.mxu0 0
    %4797 = vmatprep.subr.bf16.mxu0 0
    %4798 = vmatpush1.bf16.msra.mxu0 0
    %4799 = vmatprep.subr.bf16.mxu0 0
    %4800 = vmatpush1.bf16.msra.mxu0 0
    %4801 = vmatprep.subr.bf16.mxu0 0
    %4802 = vmatpush1.bf16.msra.mxu0 0
    %4803 = vmatprep.subr.bf16.mxu0 0
    %4804 = vmatpush1.bf16.msra.mxu0 0
    %4805 = vmatprep.subr.bf16.mxu0 0
    %4806 = vmatpush1.bf16.msra.mxu0 0
    %4807 = vmatprep.subr.bf16.mxu0 0
    %4808 = vmatpush1.bf16.msra.mxu0 0
    %4809 = vmatprep.subr.bf16.mxu0 0
    %4810 = vmatpush1.bf16.msra.mxu0 0
    %4811 = vmatprep.subr.bf16.mxu0 0
    %4812 = vmatpush1.bf16.msra.mxu0 0
    %4813 = vmatprep.subr.bf16.mxu0 0
    %4814 = vmatpush1.bf16.msra.mxu0 0
    %4815 = vmatprep.subr.bf16.mxu0 0
    %4816 = vmatpush1.bf16.msra.mxu0 0
    %4817 = vmatprep.mubr.bf16.mxu0 0
    %4818 = vmatmul.mubr.bf16.gmra.mrb[0].mxu0 %v4783
    %v4819 = vpop.f32.mrb[0].mxu0
    %v4820 = vadd.f32 0.0, %v4819
    %v4821 = vpop.f32.mrb[0].mxu0
    %v4822 = vpop.f32.mrb[0].mxu0
    %v4823 = vpop.f32.mrb[0].mxu0
    %4824 = vdwg.mxu0
    %s4825 = scalar_lea.vmem %s15, 28
    %v4826 = vld [vmem:[%s4825] sm:$0xf]
    %v4828 = vsel %vm3616, %v4826, 0
    %4830 = vmatprep.subr.bf16.mxu0 0
    %4831 = vmatpush1.bf16.msra.mxu0 %v4513
    %4832 = vmatprep.subr.bf16.mxu0 0
    %4833 = vmatpush1.bf16.msra.mxu0 0
    %4834 = vmatprep.subr.bf16.mxu0 0
    %4835 = vmatpush1.bf16.msra.mxu0 0
    %4836 = vmatprep.subr.bf16.mxu0 0
    %4837 = vmatpush1.bf16.msra.mxu0 0
    %4838 = vmatprep.subr.bf16.mxu0 0
    %4839 = vmatpush1.bf16.msra.mxu0 0
    %4840 = vmatprep.subr.bf16.mxu0 0
    %4841 = vmatpush1.bf16.msra.mxu0 0
    %4842 = vmatprep.subr.bf16.mxu0 0
    %4843 = vmatpush1.bf16.msra.mxu0 0
    %4844 = vmatprep.subr.bf16.mxu0 0
    %4845 = vmatpush1.bf16.msra.mxu0 0
    %4846 = vmatprep.subr.bf16.mxu0 0
    %4847 = vmatpush1.bf16.msra.mxu0 0
    %4848 = vmatprep.subr.bf16.mxu0 0
    %4849 = vmatpush1.bf16.msra.mxu0 0
    %4850 = vmatprep.subr.bf16.mxu0 0
    %4851 = vmatpush1.bf16.msra.mxu0 0
    %4852 = vmatprep.subr.bf16.mxu0 0
    %4853 = vmatpush1.bf16.msra.mxu0 0
    %4854 = vmatprep.subr.bf16.mxu0 0
    %4855 = vmatpush1.bf16.msra.mxu0 0
    %4856 = vmatprep.subr.bf16.mxu0 0
    %4857 = vmatpush1.bf16.msra.mxu0 0
    %4858 = vmatprep.subr.bf16.mxu0 0
    %4859 = vmatpush1.bf16.msra.mxu0 0
    %4860 = vmatprep.subr.bf16.mxu0 0
    %4861 = vmatpush1.bf16.msra.mxu0 0
    %4862 = vmatprep.mubr.bf16.mxu0 0
    %4863 = vmatmul.mubr.bf16.gmra.mrb[0].mxu0 %v4828
    %v4864 = vpop.f32.mrb[0].mxu0
    %v4865 = vadd.f32 0.0, %v4864
    %v4866 = vpop.f32.mrb[0].mxu0
    %v4867 = vpop.f32.mrb[0].mxu0
    %v4868 = vpop.f32.mrb[0].mxu0
    %4869 = vdwg.mxu0
    %s4870 = scalar_lea.vmem %s15, 32
    %v4871 = vld [vmem:[%s4870] sm:$0xf]
    %v4873 = vsel %vm3616, %v4871, 0
    %4875 = vmatprep.subr.bf16.mxu0 0
    %4876 = vmatpush1.bf16.msra.mxu0 %v4513
    %4877 = vmatprep.subr.bf16.mxu0 0
    %4878 = vmatpush1.bf16.msra.mxu0 0
    %4879 = vmatprep.subr.bf16.mxu0 0
    %4880 = vmatpush1.bf16.msra.mxu0 0
    %4881 = vmatprep.subr.bf16.mxu0 0
    %4882 = vmatpush1.bf16.msra.mxu0 0
    %4883 = vmatprep.subr.bf16.mxu0 0
    %4884 = vmatpush1.bf16.msra.mxu0 0
    %4885 = vmatprep.subr.bf16.mxu0 0
    %4886 = vmatpush1.bf16.msra.mxu0 0
    %4887 = vmatprep.subr.bf16.mxu0 0
    %4888 = vmatpush1.bf16.msra.mxu0 0
    %4889 = vmatprep.subr.bf16.mxu0 0
    %4890 = vmatpush1.bf16.msra.mxu0 0
    %4891 = vmatprep.subr.bf16.mxu0 0
    %4892 = vmatpush1.bf16.msra.mxu0 0
    %4893 = vmatprep.subr.bf16.mxu0 0
    %4894 = vmatpush1.bf16.msra.mxu0 0
    %4895 = vmatprep.subr.bf16.mxu0 0
    %4896 = vmatpush1.bf16.msra.mxu0 0
    %4897 = vmatprep.subr.bf16.mxu0 0
    %4898 = vmatpush1.bf16.msra.mxu0 0
    %4899 = vmatprep.subr.bf16.mxu0 0
    %4900 = vmatpush1.bf16.msra.mxu0 0
    %4901 = vmatprep.subr.bf16.mxu0 0
    %4902 = vmatpush1.bf16.msra.mxu0 0
    %4903 = vmatprep.subr.bf16.mxu0 0
    %4904 = vmatpush1.bf16.msra.mxu0 0
    %4905 = vmatprep.subr.bf16.mxu0 0
    %4906 = vmatpush1.bf16.msra.mxu0 0
    %4907 = vmatprep.mubr.bf16.mxu0 0
    %4908 = vmatmul.mubr.bf16.gmra.mrb[0].mxu0 %v4873
    %v4909 = vpop.f32.mrb[0].mxu0
    %v4910 = vadd.f32 0.0, %v4909
    %v4911 = vpop.f32.mrb[0].mxu0
    %v4912 = vpop.f32.mrb[0].mxu0
    %v4913 = vpop.f32.mrb[0].mxu0
    %4914 = vdwg.mxu0
    %v4915 = vpack.c.bf16 %v4550, %v4550
    %v4916 = vpack.c.bf16 %v4595, %v4595
    %v4917 = vpack.c.bf16 %v4640, %v4640
    %v4918 = vpack.c.bf16 %v4685, %v4685
    %v4919 = vpack.c.bf16 %v4730, %v4730
    %v4920 = vpack.c.bf16 %v4775, %v4775
    %v4921 = vpack.c.bf16 %v4820, %v4820
    %v4922 = vpack.c.bf16 %v4865, %v4865
    %v4923 = vpack.c.bf16 %v4910, %v4910
    %v4924 = vld [vmem:[%s16] sm:$0xff]
    %v4925 = vld [vmem:[%s16 + $0x8] sm:$0xff]
    %v4926 = vld [vmem:[%s16 + $0x10] sm:$0xff]
    %v4927 = vld [vmem:[%s16 + $0x18] sm:$0xff]
    %v4928 = vld [vmem:[%s16 + $0x20] sm:$0xff]
    %v4929 = vld [vmem:[%s16 + $0x28] sm:$0xff]
    %v4930 = vld [vmem:[%s16 + $0x30] sm:$0xff]
    %v4931 = vld [vmem:[%s16 + $0x38] sm:$0xff]
    %v4932 = vld [vmem:[%s16 + $0x40] sm:$0xff]
    %v4933 = vld [vmem:[%s16 + $0x48] sm:$0xff]
    %v4934 = vld [vmem:[%s16 + $0x50] sm:$0xff]
    %v4935 = vld [vmem:[%s16 + $0x58] sm:$0xff]
    %v4936 = vld [vmem:[%s16 + $0x60] sm:$0xff]
    %v4937 = vld [vmem:[%s16 + $0x68] sm:$0xff]
    %v4938 = vld [vmem:[%s16 + $0x70] sm:$0xff]
    %v4939 = vld [vmem:[%s16 + $0x78] sm:$0xff]
    %v4940 = vld [vmem:[%s16 + $0x80] sm:$0xff]
    %v4941 = vld [vmem:[%s16 + $0x88] sm:$0xff]
    %v4942 = vld [vmem:[%s16 + $0x90] sm:$0xff]
    %v4943 = vld [vmem:[%s16 + $0x98] sm:$0xff]
    %v4944 = vld [vmem:[%s16 + $0xa0] sm:$0xff]
    %v4945 = vld [vmem:[%s16 + $0xa8] sm:$0xff]
    %v4946 = vld [vmem:[%s16 + $0xb0] sm:$0xff]
    %v4947 = vld [vmem:[%s16 + $0xb8] sm:$0xff]
    %v4948 = vld [vmem:[%s16 + $0xc0] sm:$0xff]
    %v4949 = vld [vmem:[%s16 + $0xc8] sm:$0xff]
    %v4950 = vld [vmem:[%s16 + $0xd0] sm:$0xff]
    %v4951 = vld [vmem:[%s16 + $0xd8] sm:$0xff]
    %v4952 = vld [vmem:[%s16 + $0xe0] sm:$0xff]
    %v4953 = vld [vmem:[%s16 + $0xe8] sm:$0xff]
    %v4954 = vld [vmem:[%s16 + $0xf0] sm:$0xff]
    %v4955 = vld [vmem:[%s16 + $0xf8] sm:$0xff]
    %v4956 = vld [vmem:[%s16 + $0x100] sm:$0xff]
    %v4957 = vld [vmem:[%s16 + $0x108] sm:$0xff]
    %v4958 = vld [vmem:[%s16 + $0x110] sm:$0xff]
    %v4959 = vld [vmem:[%s16 + $0x118] sm:$0xff]
    %v4960 = vld [vmem:[%s16 + $0x120] sm:$0xff]
    %v4961 = vld [vmem:[%s16 + $0x128] sm:$0xff]
    %v4962 = vld [vmem:[%s16 + $0x130] sm:$0xff]
    %v4963 = vld [vmem:[%s16 + $0x138] sm:$0xff]
    %v4964 = vld [vmem:[%s16 + $0x140] sm:$0xff]
    %v4965 = vld [vmem:[%s16 + $0x148] sm:$0xff]
    %v4966 = vld [vmem:[%s16 + $0x150] sm:$0xff]
    %v4967 = vld [vmem:[%s16 + $0x158] sm:$0xff]
    %v4968 = vld [vmem:[%s16 + $0x160] sm:$0xff]
    %v4969 = vld [vmem:[%s16 + $0x168] sm:$0xff]
    %v4970 = vld [vmem:[%s16 + $0x170] sm:$0xff]
    %v4971 = vld [vmem:[%s16 + $0x178] sm:$0xff]
    %v4972 = vld [vmem:[%s16 + $0x180] sm:$0xff]
    %v4973 = vld [vmem:[%s16 + $0x188] sm:$0xff]
    %v4974 = vld [vmem:[%s16 + $0x190] sm:$0xff]
    %v4975 = vld [vmem:[%s16 + $0x198] sm:$0xff]
    %v4976 = vld [vmem:[%s16 + $0x1a0] sm:$0xff]
    %v4977 = vld [vmem:[%s16 + $0x1a8] sm:$0xff]
    %v4978 = vld [vmem:[%s16 + $0x1b0] sm:$0xff]
    %v4979 = vld [vmem:[%s16 + $0x1b8] sm:$0xff]
    %v4980 = vld [vmem:[%s16 + $0x1c0] sm:$0xff]
    %v4981 = vld [vmem:[%s16 + $0x1c8] sm:$0xff]
    %v4982 = vld [vmem:[%s16 + $0x1d0] sm:$0xff]
    %v4983 = vld [vmem:[%s16 + $0x1d8] sm:$0xff]
    %v4984 = vld [vmem:[%s16 + $0x1e0] sm:$0xff]
    %v4985 = vld [vmem:[%s16 + $0x1e8] sm:$0xff]
    %v4986 = vld [vmem:[%s16 + $0x1f0] sm:$0xff]
    %v4987 = vld [vmem:[%s16 + $0x1f8] sm:$0xff]
    %v4988 = vld [vmem:[%s16 + $0x200] sm:$0xff]
    %v4989 = vld [vmem:[%s16 + $0x208] sm:$0xff]
    %v4990 = vld [vmem:[%s16 + $0x210] sm:$0xff]
    %v4991 = vld [vmem:[%s16 + $0x218] sm:$0xff]
    %v4992 = vld [vmem:[%s16 + $0x220] sm:$0xff]
    %v4993 = vld [vmem:[%s16 + $0x228] sm:$0xff]
    %v4994 = vld [vmem:[%s16 + $0x230] sm:$0xff]
    %v4995 = vld [vmem:[%s16 + $0x238] sm:$0xff]
    %v4996 = vld [vmem:[%s16 + $0x240] sm:$0xff]
    %v4997 = vld [vmem:[%s16 + $0x248] sm:$0xff]
    %v4998 = vld [vmem:[%s16 + $0x250] sm:$0xff]
    %v4999 = vld [vmem:[%s16 + $0x258] sm:$0xff]
    %v5000 = vld [vmem:[%s16 + $0x260] sm:$0xff]
    %v5001 = vld [vmem:[%s16 + $0x268] sm:$0xff]
    %v5002 = vld [vmem:[%s16 + $0x270] sm:$0xff]
    %v5003 = vld [vmem:[%s16 + $0x278] sm:$0xff]
    %v5004 = vld [vmem:[%s16 + $0x280] sm:$0xff]
    %v5005 = vld [vmem:[%s16 + $0x288] sm:$0xff]
    %v5006 = vld [vmem:[%s16 + $0x290] sm:$0xff]
    %v5007 = vld [vmem:[%s16 + $0x298] sm:$0xff]
    %v5008 = vld [vmem:[%s16 + $0x2a0] sm:$0xff]
    %v5009 = vld [vmem:[%s16 + $0x2a8] sm:$0xff]
    %v5010 = vld [vmem:[%s16 + $0x2b0] sm:$0xff]
    %v5011 = vld [vmem:[%s16 + $0x2b8] sm:$0xff]
    %v5012 = vld [vmem:[%s16 + $0x2c0] sm:$0xff]
    %v5013 = vld [vmem:[%s16 + $0x2c8] sm:$0xff]
    %v5014 = vld [vmem:[%s16 + $0x2d0] sm:$0xff]
    %v5015 = vld [vmem:[%s16 + $0x2d8] sm:$0xff]
    %v5016 = vld [vmem:[%s16 + $0x2e0] sm:$0xff]
    %v5017 = vld [vmem:[%s16 + $0x2e8] sm:$0xff]
    %v5018 = vld [vmem:[%s16 + $0x2f0] sm:$0xff]
    %v5019 = vld [vmem:[%s16 + $0x2f8] sm:$0xff]
    %v5020 = vld [vmem:[%s16 + $0x300] sm:$0xff]
    %v5021 = vld [vmem:[%s16 + $0x308] sm:$0xff]
    %v5022 = vld [vmem:[%s16 + $0x310] sm:$0xff]
    %v5023 = vld [vmem:[%s16 + $0x318] sm:$0xff]
    %v5024 = vld [vmem:[%s16 + $0x320] sm:$0xff]
    %v5025 = vld [vmem:[%s16 + $0x328] sm:$0xff]
    %v5026 = vld [vmem:[%s16 + $0x330] sm:$0xff]
    %v5027 = vld [vmem:[%s16 + $0x338] sm:$0xff]
    %v5028 = vld [vmem:[%s16 + $0x340] sm:$0xff]
    %v5029 = vld [vmem:[%s16 + $0x348] sm:$0xff]
    %v5030 = vld [vmem:[%s16 + $0x350] sm:$0xff]
    %v5031 = vld [vmem:[%s16 + $0x358] sm:$0xff]
    %v5032 = vld [vmem:[%s16 + $0x360] sm:$0xff]
    %v5033 = vld [vmem:[%s16 + $0x368] sm:$0xff]
    %v5034 = vld [vmem:[%s16 + $0x370] sm:$0xff]
    %v5035 = vld [vmem:[%s16 + $0x378] sm:$0xff]
    %v5036 = vld [vmem:[%s16 + $0x380] sm:$0xff]
    %v5037 = vld [vmem:[%s16 + $0x388] sm:$0xff]
    %v5038 = vld [vmem:[%s16 + $0x390] sm:$0xff]
    %v5039 = vld [vmem:[%s16 + $0x398] sm:$0xff]
    %v5040 = vld [vmem:[%s16 + $0x3a0] sm:$0xff]
    %v5041 = vld [vmem:[%s16 + $0x3a8] sm:$0xff]
    %v5042 = vld [vmem:[%s16 + $0x3b0] sm:$0xff]
    %v5043 = vld [vmem:[%s16 + $0x3b8] sm:$0xff]
    %v5044 = vld [vmem:[%s16 + $0x3c0] sm:$0xff]
    %v5045 = vld [vmem:[%s16 + $0x3c8] sm:$0xff]
    %v5046 = vld [vmem:[%s16 + $0x3d0] sm:$0xff]
    %v5047 = vld [vmem:[%s16 + $0x3d8] sm:$0xff]
    %v5048 = vld [vmem:[%s16 + $0x3e0] sm:$0xff]
    %v5049 = vld [vmem:[%s16 + $0x3e8] sm:$0xff]
    %v5050 = vld [vmem:[%s16 + $0x3f0] sm:$0xff]
    %v5051 = vld [vmem:[%s16 + $0x3f8] sm:$0xff]
    %v5052 = vld [vmem:[%s16 + $0x400] sm:$0xff]
    %v5053 = vld [vmem:[%s16 + $0x408] sm:$0xff]
    %v5054 = vld [vmem:[%s16 + $0x410] sm:$0xff]
    %v5055 = vld [vmem:[%s16 + $0x418] sm:$0xff]
    %v5056 = vld [vmem:[%s16 + $0x420] sm:$0xff]
    %v5057 = vld [vmem:[%s16 + $0x428] sm:$0xff]
    %v5058 = vld [vmem:[%s16 + $0x430] sm:$0xff]
    %v5059 = vld [vmem:[%s16 + $0x438] sm:$0xff]
    %v5060 = vld [vmem:[%s16 + $0x440] sm:$0xff]
    %v5061 = vld [vmem:[%s16 + $0x448] sm:$0xff]
    %v5062 = vld [vmem:[%s16 + $0x450] sm:$0xff]
    %v5063 = vld [vmem:[%s16 + $0x458] sm:$0xff]
    %v5064 = vld [vmem:[%s16 + $0x460] sm:$0xff]
    %v5065 = vld [vmem:[%s16 + $0x468] sm:$0xff]
    %v5066 = vld [vmem:[%s16 + $0x470] sm:$0xff]
    %v5067 = vld [vmem:[%s16 + $0x478] sm:$0xff]
    %v5068 = vld [vmem:[%s17] sm:$0x3]
    %v5070 = vlaneseq
    %v5071 = vshrl.u32 %v5070, 7
    %v5072 = vsub.s32 0, %v5071
    %v5073 = vrot.slane %v5068, %v5072
    %v5074 = vlaneseq
    %v5075 = vshrl.u32 %v5074, 7
    %v5076 = vsub.s32 1, %v5075
    %v5077 = vrot.slane %v5068, %v5076
    %v5224 = vunpack.c.l.b16 %v4924
    %v5225 = vunpack.c.h.b16 %v4924
    %v5226 = vunpack.c.l.b16 %v4925
    %v5227 = vunpack.c.h.b16 %v4925
    %v5228 = vunpack.c.l.b16 %v4926
    %v5229 = vunpack.c.h.b16 %v4926
    %v5230 = vunpack.c.l.b16 %v4927
    %v5231 = vunpack.c.h.b16 %v4927
    %v5232 = vunpack.c.l.b16 %v4928
    %v5233 = vunpack.c.h.b16 %v4928
    %v5234 = vunpack.c.l.b16 %v4929
    %v5235 = vunpack.c.h.b16 %v4929
    %v5236 = vunpack.c.l.b16 %v4930
    %v5237 = vunpack.c.h.b16 %v4930
    %v5238 = vunpack.c.l.b16 %v4931
    %v5239 = vunpack.c.h.b16 %v4931
    %v5240 = vunpack.c.l.b16 %v4932
    %v5241 = vunpack.c.h.b16 %v4932
    %v5242 = vunpack.c.l.b16 %v4933
    %v5243 = vunpack.c.h.b16 %v4933
    %v5244 = vunpack.c.l.b16 %v4934
    %v5245 = vunpack.c.h.b16 %v4934
    %v5246 = vunpack.c.l.b16 %v4935
    %v5247 = vunpack.c.h.b16 %v4935
    %v5248 = vunpack.c.l.b16 %v4936
    %v5249 = vunpack.c.h.b16 %v4936
    %v5250 = vunpack.c.l.b16 %v4937
    %v5251 = vunpack.c.h.b16 %v4937
    %v5252 = vunpack.c.l.b16 %v4938
    %v5253 = vunpack.c.h.b16 %v4938
    %v5254 = vunpack.c.l.b16 %v4939
    %v5255 = vunpack.c.h.b16 %v4939
    %v5256 = vunpack.c.l.b16 %v4940
    %v5257 = vunpack.c.h.b16 %v4940
    %v5258 = vunpack.c.l.b16 %v4941
    %v5259 = vunpack.c.h.b16 %v4941
    %v5260 = vunpack.c.l.b16 %v4942
    %v5261 = vunpack.c.h.b16 %v4942
    %v5262 = vunpack.c.l.b16 %v4943
    %v5263 = vunpack.c.h.b16 %v4943
    %v5264 = vunpack.c.l.b16 %v4944
    %v5265 = vunpack.c.h.b16 %v4944
    %v5266 = vunpack.c.l.b16 %v4945
    %v5267 = vunpack.c.h.b16 %v4945
    %v5268 = vunpack.c.l.b16 %v4946
    %v5269 = vunpack.c.h.b16 %v4946
    %v5270 = vunpack.c.l.b16 %v4947
    %v5271 = vunpack.c.h.b16 %v4947
    %v5272 = vunpack.c.l.b16 %v4948
    %v5273 = vunpack.c.h.b16 %v4948
    %v5274 = vunpack.c.l.b16 %v4949
    %v5275 = vunpack.c.h.b16 %v4949
    %v5276 = vunpack.c.l.b16 %v4950
    %v5277 = vunpack.c.h.b16 %v4950
    %v5278 = vunpack.c.l.b16 %v4951
    %v5279 = vunpack.c.h.b16 %v4951
    %v5280 = vunpack.c.l.b16 %v4952
    %v5281 = vunpack.c.h.b16 %v4952
    %v5282 = vunpack.c.l.b16 %v4953
    %v5283 = vunpack.c.h.b16 %v4953
    %v5284 = vunpack.c.l.b16 %v4954
    %v5285 = vunpack.c.h.b16 %v4954
    %v5286 = vunpack.c.l.b16 %v4955
    %v5287 = vunpack.c.h.b16 %v4955
    %v5288 = vunpack.c.l.b16 %v4956
    %v5289 = vunpack.c.h.b16 %v4956
    %v5290 = vunpack.c.l.b16 %v4957
    %v5291 = vunpack.c.h.b16 %v4957
    %v5292 = vunpack.c.l.b16 %v4958
    %v5293 = vunpack.c.h.b16 %v4958
    %v5294 = vunpack.c.l.b16 %v4959
    %v5295 = vunpack.c.h.b16 %v4959
    %v5296 = vunpack.c.l.b16 %v4960
    %v5297 = vunpack.c.h.b16 %v4960
    %v5298 = vunpack.c.l.b16 %v4961
    %v5299 = vunpack.c.h.b16 %v4961
    %v5300 = vunpack.c.l.b16 %v4962
    %v5301 = vunpack.c.h.b16 %v4962
    %v5302 = vunpack.c.l.b16 %v4963
    %v5303 = vunpack.c.h.b16 %v4963
    %v5304 = vunpack.c.l.b16 %v4964
    %v5305 = vunpack.c.h.b16 %v4964
    %v5306 = vunpack.c.l.b16 %v4965
    %v5307 = vunpack.c.h.b16 %v4965
    %v5308 = vunpack.c.l.b16 %v4966
    %v5309 = vunpack.c.h.b16 %v4966
    %v5310 = vunpack.c.l.b16 %v4967
    %v5311 = vunpack.c.h.b16 %v4967
    %v5312 = vunpack.c.l.b16 %v4968
    %v5313 = vunpack.c.h.b16 %v4968
    %v5314 = vunpack.c.l.b16 %v4969
    %v5315 = vunpack.c.h.b16 %v4969
    %v5316 = vunpack.c.l.b16 %v4970
    %v5317 = vunpack.c.h.b16 %v4970
    %v5318 = vunpack.c.l.b16 %v4971
    %v5319 = vunpack.c.h.b16 %v4971
    %v5320 = vunpack.c.l.b16 %v4972
    %v5321 = vunpack.c.h.b16 %v4972
    %v5322 = vunpack.c.l.b16 %v4973
    %v5323 = vunpack.c.h.b16 %v4973
    %v5324 = vunpack.c.l.b16 %v4974
    %v5325 = vunpack.c.h.b16 %v4974
    %v5326 = vunpack.c.l.b16 %v4975
    %v5327 = vunpack.c.h.b16 %v4975
    %v5328 = vunpack.c.l.b16 %v4976
    %v5329 = vunpack.c.h.b16 %v4976
    %v5330 = vunpack.c.l.b16 %v4977
    %v5331 = vunpack.c.h.b16 %v4977
    %v5332 = vunpack.c.l.b16 %v4978
    %v5333 = vunpack.c.h.b16 %v4978
    %v5334 = vunpack.c.l.b16 %v4979
    %v5335 = vunpack.c.h.b16 %v4979
    %v5336 = vunpack.c.l.b16 %v4980
    %v5337 = vunpack.c.h.b16 %v4980
    %v5338 = vunpack.c.l.b16 %v4981
    %v5339 = vunpack.c.h.b16 %v4981
    %v5340 = vunpack.c.l.b16 %v4982
    %v5341 = vunpack.c.h.b16 %v4982
    %v5342 = vunpack.c.l.b16 %v4983
    %v5343 = vunpack.c.h.b16 %v4983
    %v5344 = vunpack.c.l.b16 %v4984
    %v5345 = vunpack.c.h.b16 %v4984
    %v5346 = vunpack.c.l.b16 %v4985
    %v5347 = vunpack.c.h.b16 %v4985
    %v5348 = vunpack.c.l.b16 %v4986
    %v5349 = vunpack.c.h.b16 %v4986
    %v5350 = vunpack.c.l.b16 %v4987
    %v5351 = vunpack.c.h.b16 %v4987
    %v5352 = vunpack.c.l.b16 %v4988
    %v5353 = vunpack.c.h.b16 %v4988
    %v5354 = vunpack.c.l.b16 %v4989
    %v5355 = vunpack.c.h.b16 %v4989
    %v5356 = vunpack.c.l.b16 %v4990
    %v5357 = vunpack.c.h.b16 %v4990
    %v5358 = vunpack.c.l.b16 %v4991
    %v5359 = vunpack.c.h.b16 %v4991
    %v5360 = vunpack.c.l.b16 %v4992
    %v5361 = vunpack.c.h.b16 %v4992
    %v5362 = vunpack.c.l.b16 %v4993
    %v5363 = vunpack.c.h.b16 %v4993
    %v5364 = vunpack.c.l.b16 %v4994
    %v5365 = vunpack.c.h.b16 %v4994
    %v5366 = vunpack.c.l.b16 %v4995
    %v5367 = vunpack.c.h.b16 %v4995
    %v5368 = vunpack.c.l.b16 %v4996
    %v5369 = vunpack.c.h.b16 %v4996
    %v5370 = vunpack.c.l.b16 %v4997
    %v5371 = vunpack.c.h.b16 %v4997
    %v5372 = vunpack.c.l.b16 %v4998
    %v5373 = vunpack.c.h.b16 %v4998
    %v5374 = vunpack.c.l.b16 %v4999
    %v5375 = vunpack.c.h.b16 %v4999
    %v5376 = vunpack.c.l.b16 %v5000
    %v5377 = vunpack.c.h.b16 %v5000
    %v5378 = vunpack.c.l.b16 %v5001
    %v5379 = vunpack.c.h.b16 %v5001
    %v5380 = vunpack.c.l.b16 %v5002
    %v5381 = vunpack.c.h.b16 %v5002
    %v5382 = vunpack.c.l.b16 %v5003
    %v5383 = vunpack.c.h.b16 %v5003
    %v5384 = vunpack.c.l.b16 %v5004
    %v5385 = vunpack.c.h.b16 %v5004
    %v5386 = vunpack.c.l.b16 %v5005
    %v5387 = vunpack.c.h.b16 %v5005
    %v5388 = vunpack.c.l.b16 %v5006
    %v5389 = vunpack.c.h.b16 %v5006
    %v5390 = vunpack.c.l.b16 %v5007
    %v5391 = vunpack.c.h.b16 %v5007
    %v5392 = vunpack.c.l.b16 %v5008
    %v5393 = vunpack.c.h.b16 %v5008
    %v5394 = vunpack.c.l.b16 %v5009
    %v5395 = vunpack.c.h.b16 %v5009
    %v5396 = vunpack.c.l.b16 %v5010
    %v5397 = vunpack.c.h.b16 %v5010
    %v5398 = vunpack.c.l.b16 %v5011
    %v5399 = vunpack.c.h.b16 %v5011
    %v5400 = vunpack.c.l.b16 %v5012
    %v5401 = vunpack.c.h.b16 %v5012
    %v5402 = vunpack.c.l.b16 %v5013
    %v5403 = vunpack.c.h.b16 %v5013
    %v5404 = vunpack.c.l.b16 %v5014
    %v5405 = vunpack.c.h.b16 %v5014
    %v5406 = vunpack.c.l.b16 %v5015
    %v5407 = vunpack.c.h.b16 %v5015
    %v5408 = vunpack.c.l.b16 %v5016
    %v5409 = vunpack.c.h.b16 %v5016
    %v5410 = vunpack.c.l.b16 %v5017
    %v5411 = vunpack.c.h.b16 %v5017
    %v5412 = vunpack.c.l.b16 %v5018
    %v5413 = vunpack.c.h.b16 %v5018
    %v5414 = vunpack.c.l.b16 %v5019
    %v5415 = vunpack.c.h.b16 %v5019
    %v5416 = vunpack.c.l.b16 %v5020
    %v5417 = vunpack.c.h.b16 %v5020
    %v5418 = vunpack.c.l.b16 %v5021
    %v5419 = vunpack.c.h.b16 %v5021
    %v5420 = vunpack.c.l.b16 %v5022
    %v5421 = vunpack.c.h.b16 %v5022
    %v5422 = vunpack.c.l.b16 %v5023
    %v5423 = vunpack.c.h.b16 %v5023
    %v5424 = vunpack.c.l.b16 %v5024
    %v5425 = vunpack.c.h.b16 %v5024
    %v5426 = vunpack.c.l.b16 %v5025
    %v5427 = vunpack.c.h.b16 %v5025
    %v5428 = vunpack.c.l.b16 %v5026
    %v5429 = vunpack.c.h.b16 %v5026
    %v5430 = vunpack.c.l.b16 %v5027
    %v5431 = vunpack.c.h.b16 %v5027
    %v5432 = vunpack.c.l.b16 %v5028
    %v5433 = vunpack.c.h.b16 %v5028
    %v5434 = vunpack.c.l.b16 %v5029
    %v5435 = vunpack.c.h.b16 %v5029
    %v5436 = vunpack.c.l.b16 %v5030
    %v5437 = vunpack.c.h.b16 %v5030
    %v5438 = vunpack.c.l.b16 %v5031
    %v5439 = vunpack.c.h.b16 %v5031
    %v5440 = vunpack.c.l.b16 %v5032
    %v5441 = vunpack.c.h.b16 %v5032
    %v5442 = vunpack.c.l.b16 %v5033
    %v5443 = vunpack.c.h.b16 %v5033
    %v5444 = vunpack.c.l.b16 %v5034
    %v5445 = vunpack.c.h.b16 %v5034
    %v5446 = vunpack.c.l.b16 %v5035
    %v5447 = vunpack.c.h.b16 %v5035
    %v5448 = vunpack.c.l.b16 %v5036
    %v5449 = vunpack.c.h.b16 %v5036
    %v5450 = vunpack.c.l.b16 %v5037
    %v5451 = vunpack.c.h.b16 %v5037
    %v5452 = vunpack.c.l.b16 %v5038
    %v5453 = vunpack.c.h.b16 %v5038
    %v5454 = vunpack.c.l.b16 %v5039
    %v5455 = vunpack.c.h.b16 %v5039
    %v5456 = vunpack.c.l.b16 %v5040
    %v5457 = vunpack.c.h.b16 %v5040
    %v5458 = vunpack.c.l.b16 %v5041
    %v5459 = vunpack.c.h.b16 %v5041
    %v5460 = vunpack.c.l.b16 %v5042
    %v5461 = vunpack.c.h.b16 %v5042
    %v5462 = vunpack.c.l.b16 %v5043
    %v5463 = vunpack.c.h.b16 %v5043
    %v5464 = vunpack.c.l.b16 %v5044
    %v5465 = vunpack.c.h.b16 %v5044
    %v5466 = vunpack.c.l.b16 %v5045
    %v5467 = vunpack.c.h.b16 %v5045
    %v5468 = vunpack.c.l.b16 %v5046
    %v5469 = vunpack.c.h.b16 %v5046
    %v5470 = vunpack.c.l.b16 %v5047
    %v5471 = vunpack.c.h.b16 %v5047
    %v5472 = vunpack.c.l.b16 %v5048
    %v5473 = vunpack.c.h.b16 %v5048
    %v5474 = vunpack.c.l.b16 %v5049
    %v5475 = vunpack.c.h.b16 %v5049
    %v5476 = vunpack.c.l.b16 %v5050
    %v5477 = vunpack.c.h.b16 %v5050
    %v5478 = vunpack.c.l.b16 %v5051
    %v5479 = vunpack.c.h.b16 %v5051
    %v5480 = vunpack.c.l.b16 %v5052
    %v5481 = vunpack.c.h.b16 %v5052
    %v5482 = vunpack.c.l.b16 %v5053
    %v5483 = vunpack.c.h.b16 %v5053
    %v5484 = vunpack.c.l.b16 %v5054
    %v5485 = vunpack.c.h.b16 %v5054
    %v5486 = vunpack.c.l.b16 %v5055
    %v5487 = vunpack.c.h.b16 %v5055
    %v5488 = vunpack.c.l.b16 %v5056
    %v5489 = vunpack.c.h.b16 %v5056
    %v5490 = vunpack.c.l.b16 %v5057
    %v5491 = vunpack.c.h.b16 %v5057
    %v5492 = vunpack.c.l.b16 %v5058
    %v5493 = vunpack.c.h.b16 %v5058
    %v5494 = vunpack.c.l.b16 %v5059
    %v5495 = vunpack.c.h.b16 %v5059
    %v5496 = vunpack.c.l.b16 %v5060
    %v5497 = vunpack.c.h.b16 %v5060
    %v5498 = vunpack.c.l.b16 %v5061
    %v5499 = vunpack.c.h.b16 %v5061
    %v5500 = vunpack.c.l.b16 %v5062
    %v5501 = vunpack.c.h.b16 %v5062
    %v5502 = vunpack.c.l.b16 %v5063
    %v5503 = vunpack.c.h.b16 %v5063
    %v5504 = vunpack.c.l.b16 %v5064
    %v5505 = vunpack.c.h.b16 %v5064
    %v5506 = vunpack.c.l.b16 %v5065
    %v5507 = vunpack.c.h.b16 %v5065
    %v5508 = vunpack.c.l.b16 %v5066
    %v5509 = vunpack.c.h.b16 %v5066
    %v5510 = vunpack.c.l.b16 %v5067
    %v5511 = vunpack.c.h.b16 %v5067
    %v5512 = vpack.c.b16 %v5226, %v5224
    %v5513 = vpack.c.b16 %v5227, %v5225
    %v5514 = vpack.c.b16 %v5230, %v5228
    %v5515 = vpack.c.b16 %v5231, %v5229
    %v5516 = vpack.c.b16 %v5234, %v5232
    %v5517 = vpack.c.b16 %v5235, %v5233
    %v5518 = vpack.c.b16 %v5238, %v5236
    %v5519 = vpack.c.b16 %v5239, %v5237
    %v5520 = vpack.c.b16 %v5242, %v5240
    %v5521 = vpack.c.b16 %v5243, %v5241
    %v5522 = vpack.c.b16 %v5246, %v5244
    %v5523 = vpack.c.b16 %v5247, %v5245
    %v5524 = vpack.c.b16 %v5250, %v5248
    %v5525 = vpack.c.b16 %v5251, %v5249
    %v5526 = vpack.c.b16 %v5254, %v5252
    %v5527 = vpack.c.b16 %v5255, %v5253
    %v5528 = vpack.c.b16 %v5258, %v5256
    %v5529 = vpack.c.b16 %v5259, %v5257
    %v5530 = vpack.c.b16 %v5262, %v5260
    %v5531 = vpack.c.b16 %v5263, %v5261
    %v5532 = vpack.c.b16 %v5266, %v5264
    %v5533 = vpack.c.b16 %v5267, %v5265
    %v5534 = vpack.c.b16 %v5270, %v5268
    %v5535 = vpack.c.b16 %v5271, %v5269
    %v5536 = vpack.c.b16 %v5274, %v5272
    %v5537 = vpack.c.b16 %v5275, %v5273
    %v5538 = vpack.c.b16 %v5278, %v5276
    %v5539 = vpack.c.b16 %v5279, %v5277
    %v5540 = vpack.c.b16 %v5282, %v5280
    %v5541 = vpack.c.b16 %v5283, %v5281
    %v5542 = vpack.c.b16 %v5286, %v5284
    %v5543 = vpack.c.b16 %v5287, %v5285
    %v5544 = vpack.c.b16 %v5290, %v5288
    %v5545 = vpack.c.b16 %v5291, %v5289
    %v5546 = vpack.c.b16 %v5294, %v5292
    %v5547 = vpack.c.b16 %v5295, %v5293
    %v5548 = vpack.c.b16 %v5298, %v5296
    %v5549 = vpack.c.b16 %v5299, %v5297
    %v5550 = vpack.c.b16 %v5302, %v5300
    %v5551 = vpack.c.b16 %v5303, %v5301
    %v5552 = vpack.c.b16 %v5306, %v5304
    %v5553 = vpack.c.b16 %v5307, %v5305
    %v5554 = vpack.c.b16 %v5310, %v5308
    %v5555 = vpack.c.b16 %v5311, %v5309
    %v5556 = vpack.c.b16 %v5314, %v5312
    %v5557 = vpack.c.b16 %v5315, %v5313
    %v5558 = vpack.c.b16 %v5318, %v5316
    %v5559 = vpack.c.b16 %v5319, %v5317
    %v5560 = vpack.c.b16 %v5322, %v5320
    %v5561 = vpack.c.b16 %v5323, %v5321
    %v5562 = vpack.c.b16 %v5326, %v5324
    %v5563 = vpack.c.b16 %v5327, %v5325
    %v5564 = vpack.c.b16 %v5330, %v5328
    %v5565 = vpack.c.b16 %v5331, %v5329
    %v5566 = vpack.c.b16 %v5334, %v5332
    %v5567 = vpack.c.b16 %v5335, %v5333
    %v5568 = vpack.c.b16 %v5338, %v5336
    %v5569 = vpack.c.b16 %v5339, %v5337
    %v5570 = vpack.c.b16 %v5342, %v5340
    %v5571 = vpack.c.b16 %v5343, %v5341
    %v5572 = vpack.c.b16 %v5346, %v5344
    %v5573 = vpack.c.b16 %v5347, %v5345
    %v5574 = vpack.c.b16 %v5350, %v5348
    %v5575 = vpack.c.b16 %v5351, %v5349
    %v5576 = vpack.c.b16 %v5354, %v5352
    %v5577 = vpack.c.b16 %v5355, %v5353
    %v5578 = vpack.c.b16 %v5358, %v5356
    %v5579 = vpack.c.b16 %v5359, %v5357
    %v5580 = vpack.c.b16 %v5362, %v5360
    %v5581 = vpack.c.b16 %v5363, %v5361
    %v5582 = vpack.c.b16 %v5366, %v5364
    %v5583 = vpack.c.b16 %v5367, %v5365
    %v5584 = vpack.c.b16 %v5370, %v5368
    %v5585 = vpack.c.b16 %v5371, %v5369
    %v5586 = vpack.c.b16 %v5374, %v5372
    %v5587 = vpack.c.b16 %v5375, %v5373
    %v5588 = vpack.c.b16 %v5378, %v5376
    %v5589 = vpack.c.b16 %v5379, %v5377
    %v5590 = vpack.c.b16 %v5382, %v5380
    %v5591 = vpack.c.b16 %v5383, %v5381
    %v5592 = vpack.c.b16 %v5386, %v5384
    %v5593 = vpack.c.b16 %v5387, %v5385
    %v5594 = vpack.c.b16 %v5390, %v5388
    %v5595 = vpack.c.b16 %v5391, %v5389
    %v5596 = vpack.c.b16 %v5394, %v5392
    %v5597 = vpack.c.b16 %v5395, %v5393
    %v5598 = vpack.c.b16 %v5398, %v5396
    %v5599 = vpack.c.b16 %v5399, %v5397
    %v5600 = vpack.c.b16 %v5402, %v5400
    %v5601 = vpack.c.b16 %v5403, %v5401
    %v5602 = vpack.c.b16 %v5406, %v5404
    %v5603 = vpack.c.b16 %v5407, %v5405
    %v5604 = vpack.c.b16 %v5410, %v5408
    %v5605 = vpack.c.b16 %v5411, %v5409
    %v5606 = vpack.c.b16 %v5414, %v5412
    %v5607 = vpack.c.b16 %v5415, %v5413
    %v5608 = vpack.c.b16 %v5418, %v5416
    %v5609 = vpack.c.b16 %v5419, %v5417
    %v5610 = vpack.c.b16 %v5422, %v5420
    %v5611 = vpack.c.b16 %v5423, %v5421
    %v5612 = vpack.c.b16 %v5426, %v5424
    %v5613 = vpack.c.b16 %v5427, %v5425
    %v5614 = vpack.c.b16 %v5430, %v5428
    %v5615 = vpack.c.b16 %v5431, %v5429
    %v5616 = vpack.c.b16 %v5434, %v5432
    %v5617 = vpack.c.b16 %v5435, %v5433
    %v5618 = vpack.c.b16 %v5438, %v5436
    %v5619 = vpack.c.b16 %v5439, %v5437
    %v5620 = vpack.c.b16 %v5442, %v5440
    %v5621 = vpack.c.b16 %v5443, %v5441
    %v5622 = vpack.c.b16 %v5446, %v5444
    %v5623 = vpack.c.b16 %v5447, %v5445
    %v5624 = vpack.c.b16 %v5450, %v5448
    %v5625 = vpack.c.b16 %v5451, %v5449
    %v5626 = vpack.c.b16 %v5454, %v5452
    %v5627 = vpack.c.b16 %v5455, %v5453
    %v5628 = vpack.c.b16 %v5458, %v5456
    %v5629 = vpack.c.b16 %v5459, %v5457
    %v5630 = vpack.c.b16 %v5462, %v5460
    %v5631 = vpack.c.b16 %v5463, %v5461
    %v5632 = vpack.c.b16 %v5466, %v5464
    %v5633 = vpack.c.b16 %v5467, %v5465
    %v5634 = vpack.c.b16 %v5470, %v5468
    %v5635 = vpack.c.b16 %v5471, %v5469
    %v5636 = vpack.c.b16 %v5474, %v5472
    %v5637 = vpack.c.b16 %v5475, %v5473
    %v5638 = vpack.c.b16 %v5478, %v5476
    %v5639 = vpack.c.b16 %v5479, %v5477
    %v5640 = vpack.c.b16 %v5482, %v5480
    %v5641 = vpack.c.b16 %v5483, %v5481
    %v5642 = vpack.c.b16 %v5486, %v5484
    %v5643 = vpack.c.b16 %v5487, %v5485
    %v5644 = vpack.c.b16 %v5490, %v5488
    %v5645 = vpack.c.b16 %v5491, %v5489
    %v5646 = vpack.c.b16 %v5494, %v5492
    %v5647 = vpack.c.b16 %v5495, %v5493
    %v5648 = vpack.c.b16 %v5498, %v5496
    %v5649 = vpack.c.b16 %v5499, %v5497
    %v5650 = vpack.c.b16 %v5502, %v5500
    %v5651 = vpack.c.b16 %v5503, %v5501
    %v5652 = vpack.c.b16 %v5506, %v5504
    %v5653 = vpack.c.b16 %v5507, %v5505
    %v5654 = vpack.c.b16 %v5510, %v5508
    %v5655 = vpack.c.b16 %v5511, %v5509
    %5800 = vmatprep.subr.bf16.mxu0 %v5513
    %5801 = vmatpush1.bf16.msra.mxu0 %v5512
    %5802 = vmatprep.subr.bf16.mxu0 %v5515
    %5803 = vmatpush1.bf16.msra.mxu0 %v5514
    %5804 = vmatprep.subr.bf16.mxu0 %v5517
    %5805 = vmatpush1.bf16.msra.mxu0 %v5516
    %5806 = vmatprep.subr.bf16.mxu0 %v5519
    %5807 = vmatpush1.bf16.msra.mxu0 %v5518
    %5808 = vmatprep.subr.bf16.mxu0 %v5521
    %5809 = vmatpush1.bf16.msra.mxu0 %v5520
    %5810 = vmatprep.subr.bf16.mxu0 %v5523
    %5811 = vmatpush1.bf16.msra.mxu0 %v5522
    %5812 = vmatprep.subr.bf16.mxu0 %v5525
    %5813 = vmatpush1.bf16.msra.mxu0 %v5524
    %5814 = vmatprep.subr.bf16.mxu0 %v5527
    %5815 = vmatpush1.bf16.msra.mxu0 %v5526
    %5816 = vmatprep.subr.bf16.mxu0 %v5529
    %5817 = vmatpush1.bf16.msra.mxu0 %v5528
    %5818 = vmatprep.subr.bf16.mxu0 %v5531
    %5819 = vmatpush1.bf16.msra.mxu0 %v5530
    %5820 = vmatprep.subr.bf16.mxu0 %v5533
    %5821 = vmatpush1.bf16.msra.mxu0 %v5532
    %5822 = vmatprep.subr.bf16.mxu0 %v5535
    %5823 = vmatpush1.bf16.msra.mxu0 %v5534
    %5824 = vmatprep.subr.bf16.mxu0 %v5537
    %5825 = vmatpush1.bf16.msra.mxu0 %v5536
    %5826 = vmatprep.subr.bf16.mxu0 %v5539
    %5827 = vmatpush1.bf16.msra.mxu0 %v5538
    %5828 = vmatprep.subr.bf16.mxu0 %v5541
    %5829 = vmatpush1.bf16.msra.mxu0 %v5540
    %5830 = vmatprep.subr.bf16.mxu0 %v5543
    %5831 = vmatpush1.bf16.msra.mxu0 %v5542
    %5832 = vmatprep.mubr.bf16.mxu0 %v4916
    %5833 = vmatmul.mubr.bf16.gmra.mrb[0].mxu0 %v4915
    %v5834 = vpop.f32.mrb[0].mxu0
    %v5835 = vadd.f32 %v5073, %v5834
    %v5836 = vpop.f32.mrb[0].mxu0
    %v5837 = vadd.f32 %v5077, %v5836
    %v5838 = vpop.f32.mrb[0].mxu0
    %v5839 = vpop.f32.mrb[0].mxu0
    %5840 = vdwg.mxu0
    %5841 = vmatprep.subr.bf16.mxu0 %v5545
    %5842 = vmatpush1.bf16.msra.mxu0 %v5544
    %5843 = vmatprep.subr.bf16.mxu0 %v5547
    %5844 = vmatpush1.bf16.msra.mxu0 %v5546
    %5845 = vmatprep.subr.bf16.mxu0 %v5549
    %5846 = vmatpush1.bf16.msra.mxu0 %v5548
    %5847 = vmatprep.subr.bf16.mxu0 %v5551
    %5848 = vmatpush1.bf16.msra.mxu0 %v5550
    %5849 = vmatprep.subr.bf16.mxu0 %v5553
    %5850 = vmatpush1.bf16.msra.mxu0 %v5552
    %5851 = vmatprep.subr.bf16.mxu0 %v5555
    %5852 = vmatpush1.bf16.msra.mxu0 %v5554
    %5853 = vmatprep.subr.bf16.mxu0 %v5557
    %5854 = vmatpush1.bf16.msra.mxu0 %v5556
    %5855 = vmatprep.subr.bf16.mxu0 %v5559
    %5856 = vmatpush1.bf16.msra.mxu0 %v5558
    %5857 = vmatprep.subr.bf16.mxu0 %v5561
    %5858 = vmatpush1.bf16.msra.mxu0 %v5560
    %5859 = vmatprep.subr.bf16.mxu0 %v5563
    %5860 = vmatpush1.bf16.msra.mxu0 %v5562
    %5861 = vmatprep.subr.bf16.mxu0 %v5565
    %5862 = vmatpush1.bf16.msra.mxu0 %v5564
    %5863 = vmatprep.subr.bf16.mxu0 %v5567
    %5864 = vmatpush1.bf16.msra.mxu0 %v5566
    %5865 = vmatprep.subr.bf16.mxu0 %v5569
    %5866 = vmatpush1.bf16.msra.mxu0 %v5568
    %5867 = vmatprep.subr.bf16.mxu0 %v5571
    %5868 = vmatpush1.bf16.msra.mxu0 %v5570
    %5869 = vmatprep.subr.bf16.mxu0 %v5573
    %5870 = vmatpush1.bf16.msra.mxu0 %v5572
    %5871 = vmatprep.subr.bf16.mxu0 %v5575
    %5872 = vmatpush1.bf16.msra.mxu0 %v5574
    %5873 = vmatprep.mubr.bf16.mxu0 %v4918
    %5874 = vmatmul.mubr.bf16.gmra.mrb[0].mxu0 %v4917
    %v5875 = vpop.f32.mrb[0].mxu0
    %v5876 = vadd.f32 %v5835, %v5875
    %v5877 = vpop.f32.mrb[0].mxu0
    %v5878 = vadd.f32 %v5837, %v5877
    %v5879 = vpop.f32.mrb[0].mxu0
    %v5880 = vpop.f32.mrb[0].mxu0
    %5881 = vdwg.mxu0
    %5882 = vmatprep.subr.bf16.mxu0 %v5577
    %5883 = vmatpush1.bf16.msra.mxu0 %v5576
    %5884 = vmatprep.subr.bf16.mxu0 %v5579
    %5885 = vmatpush1.bf16.msra.mxu0 %v5578
    %5886 = vmatprep.subr.bf16.mxu0 %v5581
    %5887 = vmatpush1.bf16.msra.mxu0 %v5580
    %5888 = vmatprep.subr.bf16.mxu0 %v5583
    %5889 = vmatpush1.bf16.msra.mxu0 %v5582
    %5890 = vmatprep.subr.bf16.mxu0 %v5585
    %5891 = vmatpush1.bf16.msra.mxu0 %v5584
    %5892 = vmatprep.subr.bf16.mxu0 %v5587
    %5893 = vmatpush1.bf16.msra.mxu0 %v5586
    %5894 = vmatprep.subr.bf16.mxu0 %v5589
    %5895 = vmatpush1.bf16.msra.mxu0 %v5588
    %5896 = vmatprep.subr.bf16.mxu0 %v5591
    %5897 = vmatpush1.bf16.msra.mxu0 %v5590
    %5898 = vmatprep.subr.bf16.mxu0 %v5593
    %5899 = vmatpush1.bf16.msra.mxu0 %v5592
    %5900 = vmatprep.subr.bf16.mxu0 %v5595
    %5901 = vmatpush1.bf16.msra.mxu0 %v5594
    %5902 = vmatprep.subr.bf16.mxu0 %v5597
    %5903 = vmatpush1.bf16.msra.mxu0 %v5596
    %5904 = vmatprep.subr.bf16.mxu0 %v5599
    %5905 = vmatpush1.bf16.msra.mxu0 %v5598
    %5906 = vmatprep.subr.bf16.mxu0 %v5601
    %5907 = vmatpush1.bf16.msra.mxu0 %v5600
    %5908 = vmatprep.subr.bf16.mxu0 %v5603
    %5909 = vmatpush1.bf16.msra.mxu0 %v5602
    %5910 = vmatprep.subr.bf16.mxu0 %v5605
    %5911 = vmatpush1.bf16.msra.mxu0 %v5604
    %5912 = vmatprep.subr.bf16.mxu0 %v5607
    %5913 = vmatpush1.bf16.msra.mxu0 %v5606
    %5914 = vmatprep.mubr.bf16.mxu0 %v4920
    %5915 = vmatmul.mubr.bf16.gmra.mrb[0].mxu0 %v4919
    %v5916 = vpop.f32.mrb[0].mxu0
    %v5917 = vadd.f32 %v5876, %v5916
    %v5918 = vpop.f32.mrb[0].mxu0
    %v5919 = vadd.f32 %v5878, %v5918
    %v5920 = vpop.f32.mrb[0].mxu0
    %v5921 = vpop.f32.mrb[0].mxu0
    %5922 = vdwg.mxu0
    %5923 = vmatprep.subr.bf16.mxu0 %v5609
    %5924 = vmatpush1.bf16.msra.mxu0 %v5608
    %5925 = vmatprep.subr.bf16.mxu0 %v5611
    %5926 = vmatpush1.bf16.msra.mxu0 %v5610
    %5927 = vmatprep.subr.bf16.mxu0 %v5613
    %5928 = vmatpush1.bf16.msra.mxu0 %v5612
    %5929 = vmatprep.subr.bf16.mxu0 %v5615
    %5930 = vmatpush1.bf16.msra.mxu0 %v5614
    %5931 = vmatprep.subr.bf16.mxu0 %v5617
    %5932 = vmatpush1.bf16.msra.mxu0 %v5616
    %5933 = vmatprep.subr.bf16.mxu0 %v5619
    %5934 = vmatpush1.bf16.msra.mxu0 %v5618
    %5935 = vmatprep.subr.bf16.mxu0 %v5621
    %5936 = vmatpush1.bf16.msra.mxu0 %v5620
    %5937 = vmatprep.subr.bf16.mxu0 %v5623
    %5938 = vmatpush1.bf16.msra.mxu0 %v5622
    %5939 = vmatprep.subr.bf16.mxu0 %v5625
    %5940 = vmatpush1.bf16.msra.mxu0 %v5624
    %5941 = vmatprep.subr.bf16.mxu0 %v5627
    %5942 = vmatpush1.bf16.msra.mxu0 %v5626
    %5943 = vmatprep.subr.bf16.mxu0 %v5629
    %5944 = vmatpush1.bf16.msra.mxu0 %v5628
    %5945 = vmatprep.subr.bf16.mxu0 %v5631
    %5946 = vmatpush1.bf16.msra.mxu0 %v5630
    %5947 = vmatprep.subr.bf16.mxu0 %v5633
    %5948 = vmatpush1.bf16.msra.mxu0 %v5632
    %5949 = vmatprep.subr.bf16.mxu0 %v5635
    %5950 = vmatpush1.bf16.msra.mxu0 %v5634
    %5951 = vmatprep.subr.bf16.mxu0 %v5637
    %5952 = vmatpush1.bf16.msra.mxu0 %v5636
    %5953 = vmatprep.subr.bf16.mxu0 %v5639
    %5954 = vmatpush1.bf16.msra.mxu0 %v5638
    %5955 = vmatprep.mubr.bf16.mxu0 %v4922
    %5956 = vmatmul.mubr.bf16.gmra.mrb[0].mxu0 %v4921
    %v5957 = vpop.f32.mrb[0].mxu0
    %v5958 = vadd.f32 %v5917, %v5957
    %v5959 = vpop.f32.mrb[0].mxu0
    %v5960 = vadd.f32 %v5919, %v5959
    %v5961 = vpop.f32.mrb[0].mxu0
    %v5962 = vpop.f32.mrb[0].mxu0
    %5963 = vdwg.mxu0
    %5964 = vmatprep.subr.bf16.mxu0 %v5641
    %5965 = vmatpush1.bf16.msra.mxu0 %v5640
    %5966 = vmatprep.subr.bf16.mxu0 %v5643
    %5967 = vmatpush1.bf16.msra.mxu0 %v5642
    %5968 = vmatprep.subr.bf16.mxu0 %v5645
    %5969 = vmatpush1.bf16.msra.mxu0 %v5644
    %5970 = vmatprep.subr.bf16.mxu0 %v5647
    %5971 = vmatpush1.bf16.msra.mxu0 %v5646
    %5972 = vmatprep.subr.bf16.mxu0 %v5649
    %5973 = vmatpush1.bf16.msra.mxu0 %v5648
    %5974 = vmatprep.subr.bf16.mxu0 %v5651
    %5975 = vmatpush1.bf16.msra.mxu0 %v5650
    %5976 = vmatprep.subr.bf16.mxu0 %v5653
    %5977 = vmatpush1.bf16.msra.mxu0 %v5652
    %5978 = vmatprep.subr.bf16.mxu0 %v5655
    %5979 = vmatpush1.bf16.msra.mxu0 %v5654
    %5980 = vmatprep.subr.bf16.mxu0 0
    %5981 = vmatpush1.bf16.msra.mxu0 0
    %5982 = vmatprep.subr.bf16.mxu0 0
    %5983 = vmatpush1.bf16.msra.mxu0 0
    %5984 = vmatprep.subr.bf16.mxu0 0
    %5985 = vmatpush1.bf16.msra.mxu0 0
    %5986 = vmatprep.subr.bf16.mxu0 0
    %5987 = vmatpush1.bf16.msra.mxu0 0
    %5988 = vmatprep.subr.bf16.mxu0 0
    %5989 = vmatpush1.bf16.msra.mxu0 0
    %5990 = vmatprep.subr.bf16.mxu0 0
    %5991 = vmatpush1.bf16.msra.mxu0 0
    %5992 = vmatprep.subr.bf16.mxu0 0
    %5993 = vmatpush1.bf16.msra.mxu0 0
    %5994 = vmatprep.subr.bf16.mxu0 0
    %5995 = vmatpush1.bf16.msra.mxu0 0
    %5996 = vmatprep.mubr.bf16.mxu0 0
    %5997 = vmatmul.mubr.bf16.gmra.mrb[0].mxu0 %v4923
    %v5998 = vpop.f32.mrb[0].mxu0
    %v5999 = vadd.f32 %v5958, %v5998
    %v6000 = vpop.f32.mrb[0].mxu0
    %v6001 = vadd.f32 %v5960, %v6000
    %v6002 = vpop.f32.mrb[0].mxu0
    %v6003 = vpop.f32.mrb[0].mxu0
    %6004 = vdwg.mxu0
    %v6005 = vmax.f32 %v5999, 0.0
    %v6006 = vmax.f32 %v6001, 0.0
    %v6007 = vpack.c.bf16 %v6005, %v6005
    %v6008 = vpack.c.bf16 %v6006, %v6006
    %v6009 = vld [vmem:[%s18] sm:$0xf]
    %v6010 = vld [vmem:[%s18 + $0x4] sm:$0xf]
    %v6011 = vld [vmem:[%s18 + $0x8] sm:$0xf]
    %v6012 = vld [vmem:[%s18 + $0xc] sm:$0xf]
    %s6013 = scalar_lea.vmem %s18, 16
    %v6014 = vld [vmem:[%s6013] sm:$0xf]
    %v6015 = vld [vmem:[%s6013 + $0x4] sm:$0xf]
    %v6016 = vld [vmem:[%s6013 + $0x8] sm:$0xf]
    %v6017 = vld [vmem:[%s6013 + $0xc] sm:$0xf]
    %v6022 = vunpack.c.l.b16 %v6014
    %v6023 = vunpack.c.l.b16 %v6015
    %v6024 = vunpack.c.l.b16 %v6016
    %v6025 = vunpack.c.l.b16 %v6017
    %v6026 = vpack.c.b16 %v6023, %v6022
    %v6027 = vpack.c.b16 %v6025, %v6024
    %6029 = vrot.lane.b32.xlu0 %v6007, 64
    %v6030 = vpop.permute.xlu0 %6029
    %v6032 = vsel %vm3616, %v6026, 0
    %v6035 = vsel %vm3616, %v6027, 0
    %v6038 = vsel %vm3620, %v6030, 0
    %6040 = vmatprep.subr.bf16.mxu0 0
    %6041 = vmatpush1.bf16.msra.mxu0 %v6038
    %6042 = vmatprep.subr.bf16.mxu0 0
    %6043 = vmatpush1.bf16.msra.mxu0 0
    %6044 = vmatprep.subr.bf16.mxu0 0
    %6045 = vmatpush1.bf16.msra.mxu0 0
    %6046 = vmatprep.subr.bf16.mxu0 0
    %6047 = vmatpush1.bf16.msra.mxu0 0
    %6048 = vmatprep.subr.bf16.mxu0 0
    %6049 = vmatpush1.bf16.msra.mxu0 0
    %6050 = vmatprep.subr.bf16.mxu0 0
    %6051 = vmatpush1.bf16.msra.mxu0 0
    %6052 = vmatprep.subr.bf16.mxu0 0
    %6053 = vmatpush1.bf16.msra.mxu0 0
    %6054 = vmatprep.subr.bf16.mxu0 0
    %6055 = vmatpush1.bf16.msra.mxu0 0
    %6056 = vmatprep.subr.bf16.mxu0 0
    %6057 = vmatpush1.bf16.msra.mxu0 0
    %6058 = vmatprep.subr.bf16.mxu0 0
    %6059 = vmatpush1.bf16.msra.mxu0 0
    %6060 = vmatprep.subr.bf16.mxu0 0
    %6061 = vmatpush1.bf16.msra.mxu0 0
    %6062 = vmatprep.subr.bf16.mxu0 0
    %6063 = vmatpush1.bf16.msra.mxu0 0
    %6064 = vmatprep.subr.bf16.mxu0 0
    %6065 = vmatpush1.bf16.msra.mxu0 0
    %6066 = vmatprep.subr.bf16.mxu0 0
    %6067 = vmatpush1.bf16.msra.mxu0 0
    %6068 = vmatprep.subr.bf16.mxu0 0
    %6069 = vmatpush1.bf16.msra.mxu0 0
    %6070 = vmatprep.subr.bf16.mxu0 0
    %6071 = vmatpush1.bf16.msra.mxu0 0
    %6072 = vmatprep.mubr.bf16.mxu0 0
    %6073 = vmatmul.mubr.bf16.gmra.mrb[0].mxu0 %v6032
    %v6074 = vpop.f32.mrb[0].mxu0
    %v6075 = vadd.f32 0.0, %v6074
    %v6076 = vpop.f32.mrb[0].mxu0
    %v6077 = vpop.f32.mrb[0].mxu0
    %v6078 = vadd.f32 0.0, %v6077
    %v6079 = vpop.f32.mrb[0].mxu0
    %6080 = vmatprep.mubr.bf16.mxu0 0
    %6081 = vmatmul.mubr.bf16.gmra.mrb[0].mxu0 %v6035
    %v6082 = vpop.f32.mrb[0].mxu0
    %v6083 = vadd.f32 0.0, %v6082
    %v6084 = vpop.f32.mrb[0].mxu0
    %v6085 = vpop.f32.mrb[0].mxu0
    %v6086 = vadd.f32 0.0, %v6085
    %v6087 = vpop.f32.mrb[0].mxu0
    %6088 = vdwg.mxu0
    %v6093 = vunpack.c.l.b16 %v6009
    %v6094 = vunpack.c.l.b16 %v6010
    %v6095 = vunpack.c.l.b16 %v6011
    %v6096 = vunpack.c.l.b16 %v6012
    %v6097 = vpack.c.b16 %v6094, %v6093
    %v6098 = vpack.c.b16 %v6096, %v6095
    %v6100 = vsel %vm3616, %v6097, 0
    %v6103 = vsel %vm3616, %v6098, 0
    %v6106 = vsel %vm3620, %v6007, 0
    %6108 = vmatprep.subr.bf16.mxu0 0
    %6109 = vmatpush1.bf16.msra.mxu0 %v6106
    %6110 = vmatprep.subr.bf16.mxu0 0
    %6111 = vmatpush1.bf16.msra.mxu0 0
    %6112 = vmatprep.subr.bf16.mxu0 0
    %6113 = vmatpush1.bf16.msra.mxu0 0
    %6114 = vmatprep.subr.bf16.mxu0 0
    %6115 = vmatpush1.bf16.msra.mxu0 0
    %6116 = vmatprep.subr.bf16.mxu0 0
    %6117 = vmatpush1.bf16.msra.mxu0 0
    %6118 = vmatprep.subr.bf16.mxu0 0
    %6119 = vmatpush1.bf16.msra.mxu0 0
    %6120 = vmatprep.subr.bf16.mxu0 0
    %6121 = vmatpush1.bf16.msra.mxu0 0
    %6122 = vmatprep.subr.bf16.mxu0 0
    %6123 = vmatpush1.bf16.msra.mxu0 0
    %6124 = vmatprep.subr.bf16.mxu0 0
    %6125 = vmatpush1.bf16.msra.mxu0 0
    %6126 = vmatprep.subr.bf16.mxu0 0
    %6127 = vmatpush1.bf16.msra.mxu0 0
    %6128 = vmatprep.subr.bf16.mxu0 0
    %6129 = vmatpush1.bf16.msra.mxu0 0
    %6130 = vmatprep.subr.bf16.mxu0 0
    %6131 = vmatpush1.bf16.msra.mxu0 0
    %6132 = vmatprep.subr.bf16.mxu0 0
    %6133 = vmatpush1.bf16.msra.mxu0 0
    %6134 = vmatprep.subr.bf16.mxu0 0
    %6135 = vmatpush1.bf16.msra.mxu0 0
    %6136 = vmatprep.subr.bf16.mxu0 0
    %6137 = vmatpush1.bf16.msra.mxu0 0
    %6138 = vmatprep.subr.bf16.mxu0 0
    %6139 = vmatpush1.bf16.msra.mxu0 0
    %6140 = vmatprep.mubr.bf16.mxu0 0
    %6141 = vmatmul.mubr.bf16.gmra.mrb[0].mxu0 %v6100
    %v6142 = vpop.f32.mrb[0].mxu0
    %v6143 = vadd.f32 %v6075, %v6142
    %v6144 = vpop.f32.mrb[0].mxu0
    %v6145 = vpop.f32.mrb[0].mxu0
    %v6146 = vadd.f32 %v6078, %v6145
    %v6147 = vpop.f32.mrb[0].mxu0
    %6148 = vmatprep.mubr.bf16.mxu0 0
    %6149 = vmatmul.mubr.bf16.gmra.mrb[0].mxu0 %v6103
    %v6150 = vpop.f32.mrb[0].mxu0
    %v6151 = vadd.f32 %v6083, %v6150
    %v6152 = vpop.f32.mrb[0].mxu0
    %v6153 = vpop.f32.mrb[0].mxu0
    %v6154 = vadd.f32 %v6086, %v6153
    %v6155 = vpop.f32.mrb[0].mxu0
    %6156 = vdwg.mxu0
    %s6157 = scalar_lea.vmem %s18, 32
    %v6158 = vld [vmem:[%s6157] sm:$0xf]
    %v6159 = vld [vmem:[%s6157 + $0x4] sm:$0xf]
    %v6160 = vld [vmem:[%s6157 + $0x8] sm:$0xf]
    %v6161 = vld [vmem:[%s6157 + $0xc] sm:$0xf]
    %v6166 = vunpack.c.l.b16 %v6158
    %v6167 = vunpack.c.l.b16 %v6159
    %v6168 = vunpack.c.l.b16 %v6160
    %v6169 = vunpack.c.l.b16 %v6161
    %v6170 = vpack.c.b16 %v6167, %v6166
    %v6171 = vpack.c.b16 %v6169, %v6168
    %v6173 = vsel %vm3616, %v6170, 0
    %v6176 = vsel %vm3616, %v6171, 0
    %v6179 = vsel %vm3620, %v6008, 0
    %6181 = vmatprep.subr.bf16.mxu0 0
    %6182 = vmatpush1.bf16.msra.mxu0 %v6179
    %6183 = vmatprep.subr.bf16.mxu0 0
    %6184 = vmatpush1.bf16.msra.mxu0 0
    %6185 = vmatprep.subr.bf16.mxu0 0
    %6186 = vmatpush1.bf16.msra.mxu0 0
    %6187 = vmatprep.subr.bf16.mxu0 0
    %6188 = vmatpush1.bf16.msra.mxu0 0
    %6189 = vmatprep.subr.bf16.mxu0 0
    %6190 = vmatpush1.bf16.msra.mxu0 0
    %6191 = vmatprep.subr.bf16.mxu0 0
    %6192 = vmatpush1.bf16.msra.mxu0 0
    %6193 = vmatprep.subr.bf16.mxu0 0
    %6194 = vmatpush1.bf16.msra.mxu0 0
    %6195 = vmatprep.subr.bf16.mxu0 0
    %6196 = vmatpush1.bf16.msra.mxu0 0
    %6197 = vmatprep.subr.bf16.mxu0 0
    %6198 = vmatpush1.bf16.msra.mxu0 0
    %6199 = vmatprep.subr.bf16.mxu0 0
    %6200 = vmatpush1.bf16.msra.mxu0 0
    %6201 = vmatprep.subr.bf16.mxu0 0
    %6202 = vmatpush1.bf16.msra.mxu0 0
    %6203 = vmatprep.subr.bf16.mxu0 0
    %6204 = vmatpush1.bf16.msra.mxu0 0
    %6205 = vmatprep.subr.bf16.mxu0 0
    %6206 = vmatpush1.bf16.msra.mxu0 0
    %6207 = vmatprep.subr.bf16.mxu0 0
    %6208 = vmatpush1.bf16.msra.mxu0 0
    %6209 = vmatprep.subr.bf16.mxu0 0
    %6210 = vmatpush1.bf16.msra.mxu0 0
    %6211 = vmatprep.subr.bf16.mxu0 0
    %6212 = vmatpush1.bf16.msra.mxu0 0
    %6213 = vmatprep.mubr.bf16.mxu0 0
    %6214 = vmatmul.mubr.bf16.gmra.mrb[0].mxu0 %v6173
    %v6215 = vpop.f32.mrb[0].mxu0
    %v6216 = vadd.f32 0.0, %v6215
    %v6217 = vpop.f32.mrb[0].mxu0
    %v6218 = vpop.f32.mrb[0].mxu0
    %v6219 = vadd.f32 0.0, %v6218
    %v6220 = vpop.f32.mrb[0].mxu0
    %6221 = vmatprep.mubr.bf16.mxu0 0
    %6222 = vmatmul.mubr.bf16.gmra.mrb[0].mxu0 %v6176
    %v6223 = vpop.f32.mrb[0].mxu0
    %v6224 = vadd.f32 0.0, %v6223
    %v6225 = vpop.f32.mrb[0].mxu0
    %v6226 = vpop.f32.mrb[0].mxu0
    %v6227 = vadd.f32 0.0, %v6226
    %v6228 = vpop.f32.mrb[0].mxu0
    %6229 = vdwg.mxu0
    %v6230 = vadd.f32 %v6143, %v6216
    %v6231 = vadd.f32 %v6146, %v6219
    %v6232 = vadd.f32 %v6151, %v6224
    %v6233 = vadd.f32 %v6154, %v6227
    %s6234 = scalar_lea.vmem %s18, 48
    %v6235 = vld [vmem:[%s6234] sm:$0xf]
    %v6236 = vld [vmem:[%s6234 + $0x4] sm:$0xf]
    %v6237 = vld [vmem:[%s6234 + $0x8] sm:$0xf]
    %v6238 = vld [vmem:[%s6234 + $0xc] sm:$0xf]
    %v6243 = vunpack.c.l.b16 %v6235
    %v6244 = vunpack.c.l.b16 %v6236
    %v6245 = vunpack.c.l.b16 %v6237
    %v6246 = vunpack.c.l.b16 %v6238
    %v6247 = vpack.c.b16 %v6244, %v6243
    %v6248 = vpack.c.b16 %v6246, %v6245
    %6250 = vrot.lane.b32.xlu0 %v6008, 64
    %v6251 = vpop.permute.xlu0 %6250
    %v6253 = vsel %vm3616, %v6247, 0
    %v6256 = vsel %vm3616, %v6248, 0
    %v6259 = vsel %vm3620, %v6251, 0
    %6261 = vmatprep.subr.bf16.mxu0 0
    %6262 = vmatpush1.bf16.msra.mxu0 %v6259
    %6263 = vmatprep.subr.bf16.mxu0 0
    %6264 = vmatpush1.bf16.msra.mxu0 0
    %6265 = vmatprep.subr.bf16.mxu0 0
    %6266 = vmatpush1.bf16.msra.mxu0 0
    %6267 = vmatprep.subr.bf16.mxu0 0
    %6268 = vmatpush1.bf16.msra.mxu0 0
    %6269 = vmatprep.subr.bf16.mxu0 0
    %6270 = vmatpush1.bf16.msra.mxu0 0
    %6271 = vmatprep.subr.bf16.mxu0 0
    %6272 = vmatpush1.bf16.msra.mxu0 0
    %6273 = vmatprep.subr.bf16.mxu0 0
    %6274 = vmatpush1.bf16.msra.mxu0 0
    %6275 = vmatprep.subr.bf16.mxu0 0
    %6276 = vmatpush1.bf16.msra.mxu0 0
    %6277 = vmatprep.subr.bf16.mxu0 0
    %6278 = vmatpush1.bf16.msra.mxu0 0
    %6279 = vmatprep.subr.bf16.mxu0 0
    %6280 = vmatpush1.bf16.msra.mxu0 0
    %6281 = vmatprep.subr.bf16.mxu0 0
    %6282 = vmatpush1.bf16.msra.mxu0 0
    %6283 = vmatprep.subr.bf16.mxu0 0
    %6284 = vmatpush1.bf16.msra.mxu0 0
    %6285 = vmatprep.subr.bf16.mxu0 0
    %6286 = vmatpush1.bf16.msra.mxu0 0
    %6287 = vmatprep.subr.bf16.mxu0 0
    %6288 = vmatpush1.bf16.msra.mxu0 0
    %6289 = vmatprep.subr.bf16.mxu0 0
    %6290 = vmatpush1.bf16.msra.mxu0 0
    %6291 = vmatprep.subr.bf16.mxu0 0
    %6292 = vmatpush1.bf16.msra.mxu0 0
    %6293 = vmatprep.mubr.bf16.mxu0 0
    %6294 = vmatmul.mubr.bf16.gmra.mrb[0].mxu0 %v6253
    %v6295 = vpop.f32.mrb[0].mxu0
    %v6296 = vadd.f32 0.0, %v6295
    %v6297 = vpop.f32.mrb[0].mxu0
    %v6298 = vpop.f32.mrb[0].mxu0
    %v6299 = vadd.f32 0.0, %v6298
    %v6300 = vpop.f32.mrb[0].mxu0
    %6301 = vmatprep.mubr.bf16.mxu0 0
    %6302 = vmatmul.mubr.bf16.gmra.mrb[0].mxu0 %v6256
    %v6303 = vpop.f32.mrb[0].mxu0
    %v6304 = vadd.f32 0.0, %v6303
    %v6305 = vpop.f32.mrb[0].mxu0
    %v6306 = vpop.f32.mrb[0].mxu0
    %v6307 = vadd.f32 0.0, %v6306
    %v6308 = vpop.f32.mrb[0].mxu0
    %6309 = vdwg.mxu0
    %v6310 = vadd.f32 %v6230, %v6296
    %v6311 = vadd.f32 %v6231, %v6299
    %v6312 = vadd.f32 %v6232, %v6304
    %v6313 = vadd.f32 %v6233, %v6307
    %v6314 = vpack.c.bf16 %v6311, %v6310
    %v6315 = vpack.c.bf16 %v6313, %v6312
    %v6316 = vld [vmem:[#allocation15] sm:$0xf]
    %v6317 = vld [vmem:[#allocation15 + $0x4] sm:$0xf]
    %v6318 = vld [vmem:[#allocation15 + $0x8] sm:$0xf]
    %v6319 = vld [vmem:[#allocation15 + $0xc] sm:$0xf]
    %v6324 = vunpack.c.l.b16 %v6316
    %v6325 = vunpack.c.l.b16 %v6317
    %v6326 = vunpack.c.l.b16 %v6318
    %v6327 = vunpack.c.l.b16 %v6319
    %v6328 = vpack.c.b16 %v6325, %v6324
    %v6329 = vpack.c.b16 %v6327, %v6326
    %v6331 = vsel %vm1731, %v6328, 0
    %v6334 = vsel %vm1731, %v6329, 0
    %6336 = vmatprep.subr.bf16.mxu0 0
    %6337 = vmatpush1.bf16.msra.mxu0 %v6314
    %6338 = vmatprep.subr.bf16.mxu0 0
    %6339 = vmatpush1.bf16.msra.mxu0 %v6315
    %6340 = vmatprep.subr.bf16.mxu0 0
    %6341 = vmatpush1.bf16.msra.mxu0 0
    %6342 = vmatprep.subr.bf16.mxu0 0
    %6343 = vmatpush1.bf16.msra.mxu0 0
    %6344 = vmatprep.subr.bf16.mxu0 0
    %6345 = vmatpush1.bf16.msra.mxu0 0
    %6346 = vmatprep.subr.bf16.mxu0 0
    %6347 = vmatpush1.bf16.msra.mxu0 0
    %6348 = vmatprep.subr.bf16.mxu0 0
    %6349 = vmatpush1.bf16.msra.mxu0 0
    %6350 = vmatprep.subr.bf16.mxu0 0
    %6351 = vmatpush1.bf16.msra.mxu0 0
    %6352 = vmatprep.subr.bf16.mxu0 0
    %6353 = vmatpush1.bf16.msra.mxu0 0
    %6354 = vmatprep.subr.bf16.mxu0 0
    %6355 = vmatpush1.bf16.msra.mxu0 0
    %6356 = vmatprep.subr.bf16.mxu0 0
    %6357 = vmatpush1.bf16.msra.mxu0 0
    %6358 = vmatprep.subr.bf16.mxu0 0
    %6359 = vmatpush1.bf16.msra.mxu0 0
    %6360 = vmatprep.subr.bf16.mxu0 0
    %6361 = vmatpush1.bf16.msra.mxu0 0
    %6362 = vmatprep.subr.bf16.mxu0 0
    %6363 = vmatpush1.bf16.msra.mxu0 0
    %6364 = vmatprep.subr.bf16.mxu0 0
    %6365 = vmatpush1.bf16.msra.mxu0 0
    %6366 = vmatprep.subr.bf16.mxu0 0
    %6367 = vmatpush1.bf16.msra.mxu0 0
    %6368 = vmatprep.mubr.bf16.mxu0 0
    %6369 = vmatmul.mubr.bf16.gmra.mrb[0].mxu0 %v6331
    %v6370 = vpop.f32.mrb[0].mxu0
    %v6371 = vadd.f32 0.0, %v6370
    %v6372 = vpop.f32.mrb[0].mxu0
    %v6373 = vpop.f32.mrb[0].mxu0
    %v6374 = vadd.f32 0.0, %v6373
    %v6375 = vpop.f32.mrb[0].mxu0
    %6376 = vmatprep.mubr.bf16.mxu0 0
    %6377 = vmatmul.mubr.bf16.gmra.mrb[0].mxu0 %v6334
    %v6378 = vpop.f32.mrb[0].mxu0
    %v6379 = vadd.f32 0.0, %v6378
    %v6380 = vpop.f32.mrb[0].mxu0
    %v6381 = vpop.f32.mrb[0].mxu0
    %v6382 = vadd.f32 0.0, %v6381
    %v6383 = vpop.f32.mrb[0].mxu0
    %6384 = vdwg.mxu0
    %s6385 = scalar_lea.vmem [#allocation15], 16
    %v6386 = vld [vmem:[%s6385] sm:$0xf]
    %v6387 = vld [vmem:[%s6385 + $0x4] sm:$0xf]
    %v6388 = vld [vmem:[%s6385 + $0x8] sm:$0xf]
    %v6389 = vld [vmem:[%s6385 + $0xc] sm:$0xf]
    %v6394 = vunpack.c.l.b16 %v6386
    %v6395 = vunpack.c.l.b16 %v6387
    %v6396 = vunpack.c.l.b16 %v6388
    %v6397 = vunpack.c.l.b16 %v6389
    %v6398 = vpack.c.b16 %v6395, %v6394
    %v6399 = vpack.c.b16 %v6397, %v6396
    %v6401 = vsel %vm1731, %v6398, 0
    %v6404 = vsel %vm1731, %v6399, 0
    %6406 = vmatprep.subr.bf16.mxu0 0
    %6407 = vmatpush1.bf16.msra.mxu0 %v6314
    %6408 = vmatprep.subr.bf16.mxu0 0
    %6409 = vmatpush1.bf16.msra.mxu0 %v6315
    %6410 = vmatprep.subr.bf16.mxu0 0
    %6411 = vmatpush1.bf16.msra.mxu0 0
    %6412 = vmatprep.subr.bf16.mxu0 0
    %6413 = vmatpush1.bf16.msra.mxu0 0
    %6414 = vmatprep.subr.bf16.mxu0 0
    %6415 = vmatpush1.bf16.msra.mxu0 0
    %6416 = vmatprep.subr.bf16.mxu0 0
    %6417 = vmatpush1.bf16.msra.mxu0 0
    %6418 = vmatprep.subr.bf16.mxu0 0
    %6419 = vmatpush1.bf16.msra.mxu0 0
    %6420 = vmatprep.subr.bf16.mxu0 0
    %6421 = vmatpush1.bf16.msra.mxu0 0
    %6422 = vmatprep.subr.bf16.mxu0 0
    %6423 = vmatpush1.bf16.msra.mxu0 0
    %6424 = vmatprep.subr.bf16.mxu0 0
    %6425 = vmatpush1.bf16.msra.mxu0 0
    %6426 = vmatprep.subr.bf16.mxu0 0
    %6427 = vmatpush1.bf16.msra.mxu0 0
    %6428 = vmatprep.subr.bf16.mxu0 0
    %6429 = vmatpush1.bf16.msra.mxu0 0
    %6430 = vmatprep.subr.bf16.mxu0 0
    %6431 = vmatpush1.bf16.msra.mxu0 0
    %6432 = vmatprep.subr.bf16.mxu0 0
    %6433 = vmatpush1.bf16.msra.mxu0 0
    %6434 = vmatprep.subr.bf16.mxu0 0
    %6435 = vmatpush1.bf16.msra.mxu0 0
    %6436 = vmatprep.subr.bf16.mxu0 0
    %6437 = vmatpush1.bf16.msra.mxu0 0
    %6438 = vmatprep.mubr.bf16.mxu0 0
    %6439 = vmatmul.mubr.bf16.gmra.mrb[0].mxu0 %v6401
    %v6440 = vpop.f32.mrb[0].mxu0
    %v6441 = vadd.f32 0.0, %v6440
    %v6442 = vpop.f32.mrb[0].mxu0
    %v6443 = vpop.f32.mrb[0].mxu0
    %v6444 = vadd.f32 0.0, %v6443
    %v6445 = vpop.f32.mrb[0].mxu0
    %6446 = vmatprep.mubr.bf16.mxu0 0
    %6447 = vmatmul.mubr.bf16.gmra.mrb[0].mxu0 %v6404
    %v6448 = vpop.f32.mrb[0].mxu0
    %v6449 = vadd.f32 0.0, %v6448
    %v6450 = vpop.f32.mrb[0].mxu0
    %v6451 = vpop.f32.mrb[0].mxu0
    %v6452 = vadd.f32 0.0, %v6451
    %v6453 = vpop.f32.mrb[0].mxu0
    %6454 = vdwg.mxu0
    %s6455 = scalar_lea.vmem [#allocation15], 32
    %v6456 = vld [vmem:[%s6455] sm:$0xf]
    %v6457 = vld [vmem:[%s6455 + $0x4] sm:$0xf]
    %v6458 = vld [vmem:[%s6455 + $0x8] sm:$0xf]
    %v6459 = vld [vmem:[%s6455 + $0xc] sm:$0xf]
    %v6464 = vunpack.c.l.b16 %v6456
    %v6465 = vunpack.c.l.b16 %v6457
    %v6466 = vunpack.c.l.b16 %v6458
    %v6467 = vunpack.c.l.b16 %v6459
    %v6468 = vpack.c.b16 %v6465, %v6464
    %v6469 = vpack.c.b16 %v6467, %v6466
    %v6471 = vsel %vm1731, %v6468, 0
    %v6474 = vsel %vm1731, %v6469, 0
    %6476 = vmatprep.subr.bf16.mxu0 0
    %6477 = vmatpush1.bf16.msra.mxu0 %v6314
    %6478 = vmatprep.subr.bf16.mxu0 0
    %6479 = vmatpush1.bf16.msra.mxu0 %v6315
    %6480 = vmatprep.subr.bf16.mxu0 0
    %6481 = vmatpush1.bf16.msra.mxu0 0
    %6482 = vmatprep.subr.bf16.mxu0 0
    %6483 = vmatpush1.bf16.msra.mxu0 0
    %6484 = vmatprep.subr.bf16.mxu0 0
    %6485 = vmatpush1.bf16.msra.mxu0 0
    %6486 = vmatprep.subr.bf16.mxu0 0
    %6487 = vmatpush1.bf16.msra.mxu0 0
    %6488 = vmatprep.subr.bf16.mxu0 0
    %6489 = vmatpush1.bf16.msra.mxu0 0
    %6490 = vmatprep.subr.bf16.mxu0 0
    %6491 = vmatpush1.bf16.msra.mxu0 0
    %6492 = vmatprep.subr.bf16.mxu0 0
    %6493 = vmatpush1.bf16.msra.mxu0 0
    %6494 = vmatprep.subr.bf16.mxu0 0
    %6495 = vmatpush1.bf16.msra.mxu0 0
    %6496 = vmatprep.subr.bf16.mxu0 0
    %6497 = vmatpush1.bf16.msra.mxu0 0
    %6498 = vmatprep.subr.bf16.mxu0 0
    %6499 = vmatpush1.bf16.msra.mxu0 0
    %6500 = vmatprep.subr.bf16.mxu0 0
    %6501 = vmatpush1.bf16.msra.mxu0 0
    %6502 = vmatprep.subr.bf16.mxu0 0
    %6503 = vmatpush1.bf16.msra.mxu0 0
    %6504 = vmatprep.subr.bf16.mxu0 0
    %6505 = vmatpush1.bf16.msra.mxu0 0
    %6506 = vmatprep.subr.bf16.mxu0 0
    %6507 = vmatpush1.bf16.msra.mxu0 0
    %6508 = vmatprep.mubr.bf16.mxu0 0
    %6509 = vmatmul.mubr.bf16.gmra.mrb[0].mxu0 %v6471
    %v6510 = vpop.f32.mrb[0].mxu0
    %v6511 = vadd.f32 0.0, %v6510
    %v6512 = vpop.f32.mrb[0].mxu0
    %v6513 = vpop.f32.mrb[0].mxu0
    %v6514 = vadd.f32 0.0, %v6513
    %v6515 = vpop.f32.mrb[0].mxu0
    %6516 = vmatprep.mubr.bf16.mxu0 0
    %6517 = vmatmul.mubr.bf16.gmra.mrb[0].mxu0 %v6474
    %v6518 = vpop.f32.mrb[0].mxu0
    %v6519 = vadd.f32 0.0, %v6518
    %v6520 = vpop.f32.mrb[0].mxu0
    %v6521 = vpop.f32.mrb[0].mxu0
    %v6522 = vadd.f32 0.0, %v6521
    %v6523 = vpop.f32.mrb[0].mxu0
    %6524 = vdwg.mxu0
    %s6525 = scalar_lea.vmem [#allocation15], 48
    %v6526 = vld [vmem:[%s6525] sm:$0xf]
    %v6527 = vld [vmem:[%s6525 + $0x4] sm:$0xf]
    %v6528 = vld [vmem:[%s6525 + $0x8] sm:$0xf]
    %v6529 = vld [vmem:[%s6525 + $0xc] sm:$0xf]
    %v6534 = vunpack.c.l.b16 %v6526
    %v6535 = vunpack.c.l.b16 %v6527
    %v6536 = vunpack.c.l.b16 %v6528
    %v6537 = vunpack.c.l.b16 %v6529
    %v6538 = vpack.c.b16 %v6535, %v6534
    %v6539 = vpack.c.b16 %v6537, %v6536
    %v6541 = vsel %vm1731, %v6538, 0
    %v6544 = vsel %vm1731, %v6539, 0
    %6546 = vmatprep.subr.bf16.mxu0 0
    %6547 = vmatpush1.bf16.msra.mxu0 %v6314
    %6548 = vmatprep.subr.bf16.mxu0 0
    %6549 = vmatpush1.bf16.msra.mxu0 %v6315
    %6550 = vmatprep.subr.bf16.mxu0 0
    %6551 = vmatpush1.bf16.msra.mxu0 0
    %6552 = vmatprep.subr.bf16.mxu0 0
    %6553 = vmatpush1.bf16.msra.mxu0 0
    %6554 = vmatprep.subr.bf16.mxu0 0
    %6555 = vmatpush1.bf16.msra.mxu0 0
    %6556 = vmatprep.subr.bf16.mxu0 0
    %6557 = vmatpush1.bf16.msra.mxu0 0
    %6558 = vmatprep.subr.bf16.mxu0 0
    %6559 = vmatpush1.bf16.msra.mxu0 0
    %6560 = vmatprep.subr.bf16.mxu0 0
    %6561 = vmatpush1.bf16.msra.mxu0 0
    %6562 = vmatprep.subr.bf16.mxu0 0
    %6563 = vmatpush1.bf16.msra.mxu0 0
    %6564 = vmatprep.subr.bf16.mxu0 0
    %6565 = vmatpush1.bf16.msra.mxu0 0
    %6566 = vmatprep.subr.bf16.mxu0 0
    %6567 = vmatpush1.bf16.msra.mxu0 0
    %6568 = vmatprep.subr.bf16.mxu0 0
    %6569 = vmatpush1.bf16.msra.mxu0 0
    %6570 = vmatprep.subr.bf16.mxu0 0
    %6571 = vmatpush1.bf16.msra.mxu0 0
    %6572 = vmatprep.subr.bf16.mxu0 0
    %6573 = vmatpush1.bf16.msra.mxu0 0
    %6574 = vmatprep.subr.bf16.mxu0 0
    %6575 = vmatpush1.bf16.msra.mxu0 0
    %6576 = vmatprep.subr.bf16.mxu0 0
    %6577 = vmatpush1.bf16.msra.mxu0 0
    %6578 = vmatprep.mubr.bf16.mxu0 0
    %6579 = vmatmul.mubr.bf16.gmra.mrb[0].mxu0 %v6541
    %v6580 = vpop.f32.mrb[0].mxu0
    %v6581 = vadd.f32 0.0, %v6580
    %v6582 = vpop.f32.mrb[0].mxu0
    %v6583 = vpop.f32.mrb[0].mxu0
    %v6584 = vadd.f32 0.0, %v6583
    %v6585 = vpop.f32.mrb[0].mxu0
    %6586 = vmatprep.mubr.bf16.mxu0 0
    %6587 = vmatmul.mubr.bf16.gmra.mrb[0].mxu0 %v6544
    %v6588 = vpop.f32.mrb[0].mxu0
    %v6589 = vadd.f32 0.0, %v6588
    %v6590 = vpop.f32.mrb[0].mxu0
    %v6591 = vpop.f32.mrb[0].mxu0
    %v6592 = vadd.f32 0.0, %v6591
    %v6593 = vpop.f32.mrb[0].mxu0
    %6594 = vdwg.mxu0
    %s6595 = scalar_lea.vmem [#allocation15], 64
    %v6596 = vld [vmem:[%s6595] sm:$0xf]
    %v6597 = vld [vmem:[%s6595 + $0x4] sm:$0xf]
    %v6598 = vld [vmem:[%s6595 + $0x8] sm:$0xf]
    %v6599 = vld [vmem:[%s6595 + $0xc] sm:$0xf]
    %v6604 = vunpack.c.l.b16 %v6596
    %v6605 = vunpack.c.l.b16 %v6597
    %v6606 = vunpack.c.l.b16 %v6598
    %v6607 = vunpack.c.l.b16 %v6599
    %v6608 = vpack.c.b16 %v6605, %v6604
    %v6609 = vpack.c.b16 %v6607, %v6606
    %v6611 = vsel %vm1731, %v6608, 0
    %v6614 = vsel %vm1731, %v6609, 0
    %6616 = vmatprep.subr.bf16.mxu0 0
    %6617 = vmatpush1.bf16.msra.mxu0 %v6314
    %6618 = vmatprep.subr.bf16.mxu0 0
    %6619 = vmatpush1.bf16.msra.mxu0 %v6315
    %6620 = vmatprep.subr.bf16.mxu0 0
    %6621 = vmatpush1.bf16.msra.mxu0 0
    %6622 = vmatprep.subr.bf16.mxu0 0
    %6623 = vmatpush1.bf16.msra.mxu0 0
    %6624 = vmatprep.subr.bf16.mxu0 0
    %6625 = vmatpush1.bf16.msra.mxu0 0
    %6626 = vmatprep.subr.bf16.mxu0 0
    %6627 = vmatpush1.bf16.msra.mxu0 0
    %6628 = vmatprep.subr.bf16.mxu0 0
    %6629 = vmatpush1.bf16.msra.mxu0 0
    %6630 = vmatprep.subr.bf16.mxu0 0
    %6631 = vmatpush1.bf16.msra.mxu0 0
    %6632 = vmatprep.subr.bf16.mxu0 0
    %6633 = vmatpush1.bf16.msra.mxu0 0
    %6634 = vmatprep.subr.bf16.mxu0 0
    %6635 = vmatpush1.bf16.msra.mxu0 0
    %6636 = vmatprep.subr.bf16.mxu0 0
    %6637 = vmatpush1.bf16.msra.mxu0 0
    %6638 = vmatprep.subr.bf16.mxu0 0
    %6639 = vmatpush1.bf16.msra.mxu0 0
    %6640 = vmatprep.subr.bf16.mxu0 0
    %6641 = vmatpush1.bf16.msra.mxu0 0
    %6642 = vmatprep.subr.bf16.mxu0 0
    %6643 = vmatpush1.bf16.msra.mxu0 0
    %6644 = vmatprep.subr.bf16.mxu0 0
    %6645 = vmatpush1.bf16.msra.mxu0 0
    %6646 = vmatprep.subr.bf16.mxu0 0
    %6647 = vmatpush1.bf16.msra.mxu0 0
    %6648 = vmatprep.mubr.bf16.mxu0 0
    %6649 = vmatmul.mubr.bf16.gmra.mrb[0].mxu0 %v6611
    %v6650 = vpop.f32.mrb[0].mxu0
    %v6651 = vadd.f32 0.0, %v6650
    %v6652 = vpop.f32.mrb[0].mxu0
    %v6653 = vpop.f32.mrb[0].mxu0
    %v6654 = vadd.f32 0.0, %v6653
    %v6655 = vpop.f32.mrb[0].mxu0
    %6656 = vmatprep.mubr.bf16.mxu0 0
    %6657 = vmatmul.mubr.bf16.gmra.mrb[0].mxu0 %v6614
    %v6658 = vpop.f32.mrb[0].mxu0
    %v6659 = vadd.f32 0.0, %v6658
    %v6660 = vpop.f32.mrb[0].mxu0
    %v6661 = vpop.f32.mrb[0].mxu0
    %v6662 = vadd.f32 0.0, %v6661
    %v6663 = vpop.f32.mrb[0].mxu0
    %6664 = vdwg.mxu0
    %s6665 = scalar_lea.vmem [#allocation15], 80
    %v6666 = vld [vmem:[%s6665] sm:$0xf]
    %v6667 = vld [vmem:[%s6665 + $0x4] sm:$0xf]
    %v6668 = vld [vmem:[%s6665 + $0x8] sm:$0xf]
    %v6669 = vld [vmem:[%s6665 + $0xc] sm:$0xf]
    %v6674 = vunpack.c.l.b16 %v6666
    %v6675 = vunpack.c.l.b16 %v6667
    %v6676 = vunpack.c.l.b16 %v6668
    %v6677 = vunpack.c.l.b16 %v6669
    %v6678 = vpack.c.b16 %v6675, %v6674
    %v6679 = vpack.c.b16 %v6677, %v6676
    %v6681 = vsel %vm1731, %v6678, 0
    %v6684 = vsel %vm1731, %v6679, 0
    %6686 = vmatprep.subr.bf16.mxu0 0
    %6687 = vmatpush1.bf16.msra.mxu0 %v6314
    %6688 = vmatprep.subr.bf16.mxu0 0
    %6689 = vmatpush1.bf16.msra.mxu0 %v6315
    %6690 = vmatprep.subr.bf16.mxu0 0
    %6691 = vmatpush1.bf16.msra.mxu0 0
    %6692 = vmatprep.subr.bf16.mxu0 0
    %6693 = vmatpush1.bf16.msra.mxu0 0
    %6694 = vmatprep.subr.bf16.mxu0 0
    %6695 = vmatpush1.bf16.msra.mxu0 0
    %6696 = vmatprep.subr.bf16.mxu0 0
    %6697 = vmatpush1.bf16.msra.mxu0 0
    %6698 = vmatprep.subr.bf16.mxu0 0
    %6699 = vmatpush1.bf16.msra.mxu0 0
    %6700 = vmatprep.subr.bf16.mxu0 0
    %6701 = vmatpush1.bf16.msra.mxu0 0
    %6702 = vmatprep.subr.bf16.mxu0 0
    %6703 = vmatpush1.bf16.msra.mxu0 0
    %6704 = vmatprep.subr.bf16.mxu0 0
    %6705 = vmatpush1.bf16.msra.mxu0 0
    %6706 = vmatprep.subr.bf16.mxu0 0
    %6707 = vmatpush1.bf16.msra.mxu0 0
    %6708 = vmatprep.subr.bf16.mxu0 0
    %6709 = vmatpush1.bf16.msra.mxu0 0
    %6710 = vmatprep.subr.bf16.mxu0 0
    %6711 = vmatpush1.bf16.msra.mxu0 0
    %6712 = vmatprep.subr.bf16.mxu0 0
    %6713 = vmatpush1.bf16.msra.mxu0 0
    %6714 = vmatprep.subr.bf16.mxu0 0
    %6715 = vmatpush1.bf16.msra.mxu0 0
    %6716 = vmatprep.subr.bf16.mxu0 0
    %6717 = vmatpush1.bf16.msra.mxu0 0
    %6718 = vmatprep.mubr.bf16.mxu0 0
    %6719 = vmatmul.mubr.bf16.gmra.mrb[0].mxu0 %v6681
    %v6720 = vpop.f32.mrb[0].mxu0
    %v6721 = vadd.f32 0.0, %v6720
    %v6722 = vpop.f32.mrb[0].mxu0
    %v6723 = vpop.f32.mrb[0].mxu0
    %v6724 = vadd.f32 0.0, %v6723
    %v6725 = vpop.f32.mrb[0].mxu0
    %6726 = vmatprep.mubr.bf16.mxu0 0
    %6727 = vmatmul.mubr.bf16.gmra.mrb[0].mxu0 %v6684
    %v6728 = vpop.f32.mrb[0].mxu0
    %v6729 = vadd.f32 0.0, %v6728
    %v6730 = vpop.f32.mrb[0].mxu0
    %v6731 = vpop.f32.mrb[0].mxu0
    %v6732 = vadd.f32 0.0, %v6731
    %v6733 = vpop.f32.mrb[0].mxu0
    %6734 = vdwg.mxu0
    %s6735 = scalar_lea.vmem [#allocation15], 96
    %v6736 = vld [vmem:[%s6735] sm:$0xf]
    %v6737 = vld [vmem:[%s6735 + $0x4] sm:$0xf]
    %v6738 = vld [vmem:[%s6735 + $0x8] sm:$0xf]
    %v6739 = vld [vmem:[%s6735 + $0xc] sm:$0xf]
    %v6744 = vunpack.c.l.b16 %v6736
    %v6745 = vunpack.c.l.b16 %v6737
    %v6746 = vunpack.c.l.b16 %v6738
    %v6747 = vunpack.c.l.b16 %v6739
    %v6748 = vpack.c.b16 %v6745, %v6744
    %v6749 = vpack.c.b16 %v6747, %v6746
    %v6751 = vsel %vm1731, %v6748, 0
    %v6754 = vsel %vm1731, %v6749, 0
    %6756 = vmatprep.subr.bf16.mxu0 0
    %6757 = vmatpush1.bf16.msra.mxu0 %v6314
    %6758 = vmatprep.subr.bf16.mxu0 0
    %6759 = vmatpush1.bf16.msra.mxu0 %v6315
    %6760 = vmatprep.subr.bf16.mxu0 0
    %6761 = vmatpush1.bf16.msra.mxu0 0
    %6762 = vmatprep.subr.bf16.mxu0 0
    %6763 = vmatpush1.bf16.msra.mxu0 0
    %6764 = vmatprep.subr.bf16.mxu0 0
    %6765 = vmatpush1.bf16.msra.mxu0 0
    %6766 = vmatprep.subr.bf16.mxu0 0
    %6767 = vmatpush1.bf16.msra.mxu0 0
    %6768 = vmatprep.subr.bf16.mxu0 0
    %6769 = vmatpush1.bf16.msra.mxu0 0
    %6770 = vmatprep.subr.bf16.mxu0 0
    %6771 = vmatpush1.bf16.msra.mxu0 0
    %6772 = vmatprep.subr.bf16.mxu0 0
    %6773 = vmatpush1.bf16.msra.mxu0 0
    %6774 = vmatprep.subr.bf16.mxu0 0
    %6775 = vmatpush1.bf16.msra.mxu0 0
    %6776 = vmatprep.subr.bf16.mxu0 0
    %6777 = vmatpush1.bf16.msra.mxu0 0
    %6778 = vmatprep.subr.bf16.mxu0 0
    %6779 = vmatpush1.bf16.msra.mxu0 0
    %6780 = vmatprep.subr.bf16.mxu0 0
    %6781 = vmatpush1.bf16.msra.mxu0 0
    %6782 = vmatprep.subr.bf16.mxu0 0
    %6783 = vmatpush1.bf16.msra.mxu0 0
    %6784 = vmatprep.subr.bf16.mxu0 0
    %6785 = vmatpush1.bf16.msra.mxu0 0
    %6786 = vmatprep.subr.bf16.mxu0 0
    %6787 = vmatpush1.bf16.msra.mxu0 0
    %6788 = vmatprep.mubr.bf16.mxu0 0
    %6789 = vmatmul.mubr.bf16.gmra.mrb[0].mxu0 %v6751
    %v6790 = vpop.f32.mrb[0].mxu0
    %v6791 = vadd.f32 0.0, %v6790
    %v6792 = vpop.f32.mrb[0].mxu0
    %v6793 = vpop.f32.mrb[0].mxu0
    %v6794 = vadd.f32 0.0, %v6793
    %v6795 = vpop.f32.mrb[0].mxu0
    %6796 = vmatprep.mubr.bf16.mxu0 0
    %6797 = vmatmul.mubr.bf16.gmra.mrb[0].mxu0 %v6754
    %v6798 = vpop.f32.mrb[0].mxu0
    %v6799 = vadd.f32 0.0, %v6798
    %v6800 = vpop.f32.mrb[0].mxu0
    %v6801 = vpop.f32.mrb[0].mxu0
    %v6802 = vadd.f32 0.0, %v6801
    %v6803 = vpop.f32.mrb[0].mxu0
    %6804 = vdwg.mxu0
    %s6805 = scalar_lea.vmem [#allocation15], 112
    %v6806 = vld [vmem:[%s6805] sm:$0xf]
    %v6807 = vld [vmem:[%s6805 + $0x4] sm:$0xf]
    %v6808 = vld [vmem:[%s6805 + $0x8] sm:$0xf]
    %v6809 = vld [vmem:[%s6805 + $0xc] sm:$0xf]
    %v6814 = vunpack.c.l.b16 %v6806
    %v6815 = vunpack.c.l.b16 %v6807
    %v6816 = vunpack.c.l.b16 %v6808
    %v6817 = vunpack.c.l.b16 %v6809
    %v6818 = vpack.c.b16 %v6815, %v6814
    %v6819 = vpack.c.b16 %v6817, %v6816
    %v6821 = vsel %vm1731, %v6818, 0
    %v6824 = vsel %vm1731, %v6819, 0
    %6826 = vmatprep.subr.bf16.mxu0 0
    %6827 = vmatpush1.bf16.msra.mxu0 %v6314
    %6828 = vmatprep.subr.bf16.mxu0 0
    %6829 = vmatpush1.bf16.msra.mxu0 %v6315
    %6830 = vmatprep.subr.bf16.mxu0 0
    %6831 = vmatpush1.bf16.msra.mxu0 0
    %6832 = vmatprep.subr.bf16.mxu0 0
    %6833 = vmatpush1.bf16.msra.mxu0 0
    %6834 = vmatprep.subr.bf16.mxu0 0
    %6835 = vmatpush1.bf16.msra.mxu0 0
    %6836 = vmatprep.subr.bf16.mxu0 0
    %6837 = vmatpush1.bf16.msra.mxu0 0
    %6838 = vmatprep.subr.bf16.mxu0 0
    %6839 = vmatpush1.bf16.msra.mxu0 0
    %6840 = vmatprep.subr.bf16.mxu0 0
    %6841 = vmatpush1.bf16.msra.mxu0 0
    %6842 = vmatprep.subr.bf16.mxu0 0
    %6843 = vmatpush1.bf16.msra.mxu0 0
    %6844 = vmatprep.subr.bf16.mxu0 0
    %6845 = vmatpush1.bf16.msra.mxu0 0
    %6846 = vmatprep.subr.bf16.mxu0 0
    %6847 = vmatpush1.bf16.msra.mxu0 0
    %6848 = vmatprep.subr.bf16.mxu0 0
    %6849 = vmatpush1.bf16.msra.mxu0 0
    %6850 = vmatprep.subr.bf16.mxu0 0
    %6851 = vmatpush1.bf16.msra.mxu0 0
    %6852 = vmatprep.subr.bf16.mxu0 0
    %6853 = vmatpush1.bf16.msra.mxu0 0
    %6854 = vmatprep.subr.bf16.mxu0 0
    %6855 = vmatpush1.bf16.msra.mxu0 0
    %6856 = vmatprep.subr.bf16.mxu0 0
    %6857 = vmatpush1.bf16.msra.mxu0 0
    %6858 = vmatprep.mubr.bf16.mxu0 0
    %6859 = vmatmul.mubr.bf16.gmra.mrb[0].mxu0 %v6821
    %v6860 = vpop.f32.mrb[0].mxu0
    %v6861 = vadd.f32 0.0, %v6860
    %v6862 = vpop.f32.mrb[0].mxu0
    %v6863 = vpop.f32.mrb[0].mxu0
    %v6864 = vadd.f32 0.0, %v6863
    %v6865 = vpop.f32.mrb[0].mxu0
    %6866 = vmatprep.mubr.bf16.mxu0 0
    %6867 = vmatmul.mubr.bf16.gmra.mrb[0].mxu0 %v6824
    %v6868 = vpop.f32.mrb[0].mxu0
    %v6869 = vadd.f32 0.0, %v6868
    %v6870 = vpop.f32.mrb[0].mxu0
    %v6871 = vpop.f32.mrb[0].mxu0
    %v6872 = vadd.f32 0.0, %v6871
    %v6873 = vpop.f32.mrb[0].mxu0
    %6874 = vdwg.mxu0
    %s6875 = scalar_lea.vmem [#allocation15], 128
    %v6876 = vld [vmem:[%s6875] sm:$0xf]
    %v6877 = vld [vmem:[%s6875 + $0x4] sm:$0xf]
    %v6878 = vld [vmem:[%s6875 + $0x8] sm:$0xf]
    %v6879 = vld [vmem:[%s6875 + $0xc] sm:$0xf]
    %v6884 = vunpack.c.l.b16 %v6876
    %v6885 = vunpack.c.l.b16 %v6877
    %v6886 = vunpack.c.l.b16 %v6878
    %v6887 = vunpack.c.l.b16 %v6879
    %v6888 = vpack.c.b16 %v6885, %v6884
    %v6889 = vpack.c.b16 %v6887, %v6886
    %v6891 = vsel %vm1731, %v6888, 0
    %v6894 = vsel %vm1731, %v6889, 0
    %6896 = vmatprep.subr.bf16.mxu0 0
    %6897 = vmatpush1.bf16.msra.mxu0 %v6314
    %6898 = vmatprep.subr.bf16.mxu0 0
    %6899 = vmatpush1.bf16.msra.mxu0 %v6315
    %6900 = vmatprep.subr.bf16.mxu0 0
    %6901 = vmatpush1.bf16.msra.mxu0 0
    %6902 = vmatprep.subr.bf16.mxu0 0
    %6903 = vmatpush1.bf16.msra.mxu0 0
    %6904 = vmatprep.subr.bf16.mxu0 0
    %6905 = vmatpush1.bf16.msra.mxu0 0
    %6906 = vmatprep.subr.bf16.mxu0 0
    %6907 = vmatpush1.bf16.msra.mxu0 0
    %6908 = vmatprep.subr.bf16.mxu0 0
    %6909 = vmatpush1.bf16.msra.mxu0 0
    %6910 = vmatprep.subr.bf16.mxu0 0
    %6911 = vmatpush1.bf16.msra.mxu0 0
    %6912 = vmatprep.subr.bf16.mxu0 0
    %6913 = vmatpush1.bf16.msra.mxu0 0
    %6914 = vmatprep.subr.bf16.mxu0 0
    %6915 = vmatpush1.bf16.msra.mxu0 0
    %6916 = vmatprep.subr.bf16.mxu0 0
    %6917 = vmatpush1.bf16.msra.mxu0 0
    %6918 = vmatprep.subr.bf16.mxu0 0
    %6919 = vmatpush1.bf16.msra.mxu0 0
    %6920 = vmatprep.subr.bf16.mxu0 0
    %6921 = vmatpush1.bf16.msra.mxu0 0
    %6922 = vmatprep.subr.bf16.mxu0 0
    %6923 = vmatpush1.bf16.msra.mxu0 0
    %6924 = vmatprep.subr.bf16.mxu0 0
    %6925 = vmatpush1.bf16.msra.mxu0 0
    %6926 = vmatprep.subr.bf16.mxu0 0
    %6927 = vmatpush1.bf16.msra.mxu0 0
    %6928 = vmatprep.mubr.bf16.mxu0 0
    %6929 = vmatmul.mubr.bf16.gmra.mrb[0].mxu0 %v6891
    %v6930 = vpop.f32.mrb[0].mxu0
    %v6931 = vadd.f32 0.0, %v6930
    %v6932 = vpop.f32.mrb[0].mxu0
    %v6933 = vpop.f32.mrb[0].mxu0
    %v6934 = vadd.f32 0.0, %v6933
    %v6935 = vpop.f32.mrb[0].mxu0
    %6936 = vmatprep.mubr.bf16.mxu0 0
    %6937 = vmatmul.mubr.bf16.gmra.mrb[0].mxu0 %v6894
    %v6938 = vpop.f32.mrb[0].mxu0
    %v6939 = vadd.f32 0.0, %v6938
    %v6940 = vpop.f32.mrb[0].mxu0
    %v6941 = vpop.f32.mrb[0].mxu0
    %v6942 = vadd.f32 0.0, %v6941
    %v6943 = vpop.f32.mrb[0].mxu0
    %6944 = vdwg.mxu0
    %6949 = vrot.lane.b32.xlu0 %v6441, 64
    %v6950 = vpop.permute.xlu0 %6949
    %6951 = vrot.lane.b32.xlu0 %v6444, 64
    %v6952 = vpop.permute.xlu0 %6951
    %6953 = vrot.lane.b32.xlu0 %v6449, 64
    %v6954 = vpop.permute.xlu0 %6953
    %6955 = vrot.lane.b32.xlu0 %v6452, 64
    %v6956 = vpop.permute.xlu0 %6955
    %6965 = vrot.lane.b32.xlu0 %v6581, 64
    %v6966 = vpop.permute.xlu0 %6965
    %6967 = vrot.lane.b32.xlu0 %v6584, 64
    %v6968 = vpop.permute.xlu0 %6967
    %6969 = vrot.lane.b32.xlu0 %v6589, 64
    %v6970 = vpop.permute.xlu0 %6969
    %6971 = vrot.lane.b32.xlu0 %v6592, 64
    %v6972 = vpop.permute.xlu0 %6971
    %6981 = vrot.lane.b32.xlu0 %v6721, 64
    %v6982 = vpop.permute.xlu0 %6981
    %6983 = vrot.lane.b32.xlu0 %v6724, 64
    %v6984 = vpop.permute.xlu0 %6983
    %6985 = vrot.lane.b32.xlu0 %v6729, 64
    %v6986 = vpop.permute.xlu0 %6985
    %6987 = vrot.lane.b32.xlu0 %v6732, 64
    %v6988 = vpop.permute.xlu0 %6987
    %6997 = vrot.lane.b32.xlu0 %v6861, 64
    %v6998 = vpop.permute.xlu0 %6997
    %6999 = vrot.lane.b32.xlu0 %v6864, 64
    %v7000 = vpop.permute.xlu0 %6999
    %7001 = vrot.lane.b32.xlu0 %v6869, 64
    %v7002 = vpop.permute.xlu0 %7001
    %7003 = vrot.lane.b32.xlu0 %v6872, 64
    %v7004 = vpop.permute.xlu0 %7003
    %v7009 = vsel %vm1736, %v6371, %v6950
    %v7010 = vsel %vm1736, %v6374, %v6952
    %v7011 = vsel %vm1736, %v6379, %v6954
    %v7012 = vsel %vm1736, %v6382, %v6956
    %v7013 = vsel %vm1736, %v6511, %v6966
    %v7014 = vsel %vm1736, %v6514, %v6968
    %v7015 = vsel %vm1736, %v6519, %v6970
    %v7016 = vsel %vm1736, %v6522, %v6972
    %v7017 = vsel %vm1736, %v6651, %v6982
    %v7018 = vsel %vm1736, %v6654, %v6984
    %v7019 = vsel %vm1736, %v6659, %v6986
    %v7020 = vsel %vm1736, %v6662, %v6988
    %v7021 = vsel %vm1736, %v6791, %v6998
    %v7022 = vsel %vm1736, %v6794, %v7000
    %v7023 = vsel %vm1736, %v6799, %v7002
    %v7024 = vsel %vm1736, %v6802, %v7004
    %v7025 = vpack.c.bf16 %v7010, %v7009
    %v7026 = vpack.c.bf16 %v7014, %v7013
    %v7027 = vpack.c.bf16 %v7018, %v7017
    %v7028 = vpack.c.bf16 %v7022, %v7021
    %v7029 = vpack.c.bf16 %v6934, %v6931
    %v7030 = vpack.c.bf16 %v7012, %v7011
    %v7031 = vpack.c.bf16 %v7016, %v7015
    %v7032 = vpack.c.bf16 %v7020, %v7019
    %v7033 = vpack.c.bf16 %v7024, %v7023
    %v7034 = vpack.c.bf16 %v6942, %v6939
    %v7035 = vld [vmem:[#allocation16] sm:$0xf]
    %v7036 = vld [vmem:[#allocation16 + $0x4] sm:$0xf]
    %v7037 = vld [vmem:[#allocation16 + $0x8] sm:$0xf]
    %v7038 = vld [vmem:[#allocation16 + $0xc] sm:$0xf]
    %v7039 = vld [vmem:[#allocation16 + $0x10] sm:$0xf]
    %v7040 = vld [vmem:[#allocation16 + $0x14] sm:$0xf]
    %v7041 = vld [vmem:[#allocation16 + $0x18] sm:$0xf]
    %v7042 = vld [vmem:[#allocation16 + $0x1c] sm:$0xf]
    %v7043 = vld [vmem:[#allocation16 + $0x20] sm:$0xf]
    %v7044 = vld [vmem:[#allocation16 + $0x24] sm:$0xf]
    %v7045 = vld [vmem:[#allocation16 + $0x28] sm:$0xf]
    %v7046 = vld [vmem:[#allocation16 + $0x2c] sm:$0xf]
    %v7047 = vld [vmem:[#allocation16 + $0x30] sm:$0xf]
    %v7048 = vld [vmem:[#allocation16 + $0x34] sm:$0xf]
    %v7049 = vld [vmem:[#allocation16 + $0x38] sm:$0xf]
    %v7050 = vld [vmem:[#allocation16 + $0x3c] sm:$0xf]
    %v7051 = vld [vmem:[#allocation16 + $0x40] sm:$0xf]
    %v7052 = vld [vmem:[#allocation16 + $0x44] sm:$0xf]
    %v7053 = vld [vmem:[#allocation16 + $0x48] sm:$0xf]
    %v7054 = vld [vmem:[#allocation16 + $0x4c] sm:$0xf]
    %v7055 = vld [vmem:[#allocation16 + $0x50] sm:$0xf]
    %v7056 = vld [vmem:[#allocation16 + $0x54] sm:$0xf]
    %v7057 = vld [vmem:[#allocation16 + $0x58] sm:$0xf]
    %v7058 = vld [vmem:[#allocation16 + $0x5c] sm:$0xf]
    %v7059 = vld [vmem:[#allocation16 + $0x60] sm:$0xf]
    %v7060 = vld [vmem:[#allocation16 + $0x64] sm:$0xf]
    %v7061 = vld [vmem:[#allocation16 + $0x68] sm:$0xf]
    %v7062 = vld [vmem:[#allocation16 + $0x6c] sm:$0xf]
    %v7063 = vld [vmem:[#allocation16 + $0x70] sm:$0xf]
    %v7064 = vld [vmem:[#allocation16 + $0x74] sm:$0xf]
    %v7065 = vld [vmem:[#allocation16 + $0x78] sm:$0xf]
    %v7066 = vld [vmem:[#allocation16 + $0x7c] sm:$0xf]
    %v7067 = vld [vmem:[#allocation16 + $0x80] sm:$0xf]
    %v7068 = vld [vmem:[#allocation16 + $0x84] sm:$0xf]
    %v7069 = vld [vmem:[#allocation16 + $0x88] sm:$0xf]
    %v7070 = vld [vmem:[#allocation16 + $0x8c] sm:$0xf]
    %v7071 = vld [vmem:[#allocation16 + $0x90] sm:$0xf]
    %v7072 = vld [vmem:[#allocation16 + $0x94] sm:$0xf]
    %v7073 = vld [vmem:[#allocation16 + $0x98] sm:$0xf]
    %v7074 = vld [vmem:[#allocation16 + $0x9c] sm:$0xf]
    %v7075 = vld [vmem:[#allocation16 + $0xa0] sm:$0xf]
    %v7076 = vld [vmem:[#allocation16 + $0xa4] sm:$0xf]
    %v7077 = vld [vmem:[#allocation16 + $0xa8] sm:$0xf]
    %v7078 = vld [vmem:[#allocation16 + $0xac] sm:$0xf]
    %v7079 = vld [vmem:[#allocation16 + $0xb0] sm:$0xf]
    %v7080 = vld [vmem:[#allocation16 + $0xb4] sm:$0xf]
    %v7081 = vld [vmem:[#allocation16 + $0xb8] sm:$0xf]
    %v7082 = vld [vmem:[#allocation16 + $0xbc] sm:$0xf]
    %v7083 = vld [vmem:[#allocation16 + $0xc0] sm:$0xf]
    %v7084 = vld [vmem:[#allocation16 + $0xc4] sm:$0xf]
    %v7085 = vld [vmem:[#allocation16 + $0xc8] sm:$0xf]
    %v7086 = vld [vmem:[#allocation16 + $0xcc] sm:$0xf]
    %v7087 = vld [vmem:[#allocation16 + $0xd0] sm:$0xf]
    %v7088 = vld [vmem:[#allocation16 + $0xd4] sm:$0xf]
    %v7089 = vld [vmem:[#allocation16 + $0xd8] sm:$0xf]
    %v7090 = vld [vmem:[#allocation16 + $0xdc] sm:$0xf]
    %v7091 = vld [vmem:[#allocation16 + $0xe0] sm:$0xf]
    %v7092 = vld [vmem:[#allocation16 + $0xe4] sm:$0xf]
    %v7093 = vld [vmem:[#allocation16 + $0xe8] sm:$0xf]
    %v7094 = vld [vmem:[#allocation16 + $0xec] sm:$0xf]
    %v7095 = vld [vmem:[#allocation16 + $0xf0] sm:$0xf]
    %v7096 = vld [vmem:[#allocation16 + $0xf4] sm:$0xf]
    %v7097 = vld [vmem:[#allocation16 + $0xf8] sm:$0xf]
    %v7098 = vld [vmem:[#allocation16 + $0xfc] sm:$0xf]
    %v7099 = vld [vmem:[#allocation16 + $0x100] sm:$0xf]
    %v7100 = vld [vmem:[#allocation16 + $0x104] sm:$0xf]
    %v7101 = vld [vmem:[#allocation16 + $0x108] sm:$0xf]
    %v7102 = vld [vmem:[#allocation16 + $0x10c] sm:$0xf]
    %v7103 = vld [vmem:[#allocation16 + $0x110] sm:$0xf]
    %v7104 = vld [vmem:[#allocation16 + $0x114] sm:$0xf]
    %v7105 = vld [vmem:[#allocation16 + $0x118] sm:$0xf]
    %v7106 = vld [vmem:[#allocation16 + $0x11c] sm:$0xf]
    %v7107 = vld [vmem:[#allocation18] sm:$0x1]
    %v7109 = vlaneseq
    %v7110 = vshrl.u32 %v7109, 7
    %v7111 = vsub.s32 0, %v7110
    %v7112 = vrot.slane %v7107, %v7111
    %v7186 = vunpack.c.l.b16 %v7035
    %v7187 = vunpack.c.l.b16 %v7036
    %v7188 = vunpack.c.l.b16 %v7037
    %v7189 = vunpack.c.l.b16 %v7038
    %v7190 = vunpack.c.l.b16 %v7039
    %v7191 = vunpack.c.l.b16 %v7040
    %v7192 = vunpack.c.l.b16 %v7041
    %v7193 = vunpack.c.l.b16 %v7042
    %v7194 = vunpack.c.l.b16 %v7043
    %v7195 = vunpack.c.l.b16 %v7044
    %v7196 = vunpack.c.l.b16 %v7045
    %v7197 = vunpack.c.l.b16 %v7046
    %v7198 = vunpack.c.l.b16 %v7047
    %v7199 = vunpack.c.l.b16 %v7048
    %v7200 = vunpack.c.l.b16 %v7049
    %v7201 = vunpack.c.l.b16 %v7050
    %v7202 = vunpack.c.l.b16 %v7051
    %v7203 = vunpack.c.l.b16 %v7052
    %v7204 = vunpack.c.l.b16 %v7053
    %v7205 = vunpack.c.l.b16 %v7054
    %v7206 = vunpack.c.l.b16 %v7055
    %v7207 = vunpack.c.l.b16 %v7056
    %v7208 = vunpack.c.l.b16 %v7057
    %v7209 = vunpack.c.l.b16 %v7058
    %v7210 = vunpack.c.l.b16 %v7059
    %v7211 = vunpack.c.l.b16 %v7060
    %v7212 = vunpack.c.l.b16 %v7061
    %v7213 = vunpack.c.l.b16 %v7062
    %v7214 = vunpack.c.l.b16 %v7063
    %v7215 = vunpack.c.l.b16 %v7064
    %v7216 = vunpack.c.l.b16 %v7065
    %v7217 = vunpack.c.l.b16 %v7066
    %v7218 = vunpack.c.l.b16 %v7067
    %v7219 = vunpack.c.l.b16 %v7068
    %v7220 = vunpack.c.l.b16 %v7069
    %v7221 = vunpack.c.l.b16 %v7070
    %v7222 = vunpack.c.l.b16 %v7071
    %v7223 = vunpack.c.l.b16 %v7072
    %v7224 = vunpack.c.l.b16 %v7073
    %v7225 = vunpack.c.l.b16 %v7074
    %v7226 = vunpack.c.l.b16 %v7075
    %v7227 = vunpack.c.l.b16 %v7076
    %v7228 = vunpack.c.l.b16 %v7077
    %v7229 = vunpack.c.l.b16 %v7078
    %v7230 = vunpack.c.l.b16 %v7079
    %v7231 = vunpack.c.l.b16 %v7080
    %v7232 = vunpack.c.l.b16 %v7081
    %v7233 = vunpack.c.l.b16 %v7082
    %v7234 = vunpack.c.l.b16 %v7083
    %v7235 = vunpack.c.l.b16 %v7084
    %v7236 = vunpack.c.l.b16 %v7085
    %v7237 = vunpack.c.l.b16 %v7086
    %v7238 = vunpack.c.l.b16 %v7087
    %v7239 = vunpack.c.l.b16 %v7088
    %v7240 = vunpack.c.l.b16 %v7089
    %v7241 = vunpack.c.l.b16 %v7090
    %v7242 = vunpack.c.l.b16 %v7091
    %v7243 = vunpack.c.l.b16 %v7092
    %v7244 = vunpack.c.l.b16 %v7093
    %v7245 = vunpack.c.l.b16 %v7094
    %v7246 = vunpack.c.l.b16 %v7095
    %v7247 = vunpack.c.l.b16 %v7096
    %v7248 = vunpack.c.l.b16 %v7097
    %v7249 = vunpack.c.l.b16 %v7098
    %v7250 = vunpack.c.l.b16 %v7099
    %v7251 = vunpack.c.l.b16 %v7100
    %v7252 = vunpack.c.l.b16 %v7101
    %v7253 = vunpack.c.l.b16 %v7102
    %v7254 = vunpack.c.l.b16 %v7103
    %v7255 = vunpack.c.l.b16 %v7104
    %v7256 = vunpack.c.l.b16 %v7105
    %v7257 = vunpack.c.l.b16 %v7106
    %v7258 = vpack.c.b16 %v7187, %v7186
    %v7259 = vpack.c.b16 %v7189, %v7188
    %v7260 = vpack.c.b16 %v7191, %v7190
    %v7261 = vpack.c.b16 %v7193, %v7192
    %v7262 = vpack.c.b16 %v7195, %v7194
    %v7263 = vpack.c.b16 %v7197, %v7196
    %v7264 = vpack.c.b16 %v7199, %v7198
    %v7265 = vpack.c.b16 %v7201, %v7200
    %v7266 = vpack.c.b16 %v7203, %v7202
    %v7267 = vpack.c.b16 %v7205, %v7204
    %v7268 = vpack.c.b16 %v7207, %v7206
    %v7269 = vpack.c.b16 %v7209, %v7208
    %v7270 = vpack.c.b16 %v7211, %v7210
    %v7271 = vpack.c.b16 %v7213, %v7212
    %v7272 = vpack.c.b16 %v7215, %v7214
    %v7273 = vpack.c.b16 %v7217, %v7216
    %v7274 = vpack.c.b16 %v7219, %v7218
    %v7275 = vpack.c.b16 %v7221, %v7220
    %v7276 = vpack.c.b16 %v7223, %v7222
    %v7277 = vpack.c.b16 %v7225, %v7224
    %v7278 = vpack.c.b16 %v7227, %v7226
    %v7279 = vpack.c.b16 %v7229, %v7228
    %v7280 = vpack.c.b16 %v7231, %v7230
    %v7281 = vpack.c.b16 %v7233, %v7232
    %v7282 = vpack.c.b16 %v7235, %v7234
    %v7283 = vpack.c.b16 %v7237, %v7236
    %v7284 = vpack.c.b16 %v7239, %v7238
    %v7285 = vpack.c.b16 %v7241, %v7240
    %v7286 = vpack.c.b16 %v7243, %v7242
    %v7287 = vpack.c.b16 %v7245, %v7244
    %v7288 = vpack.c.b16 %v7247, %v7246
    %v7289 = vpack.c.b16 %v7249, %v7248
    %v7290 = vpack.c.b16 %v7251, %v7250
    %v7291 = vpack.c.b16 %v7253, %v7252
    %v7292 = vpack.c.b16 %v7255, %v7254
    %v7293 = vpack.c.b16 %v7257, %v7256
    %v7331 = vsel %vm1736, %v7029, 0
    %v7334 = vsel %vm1736, %v7034, 0
    %7336 = vmatprep.subr.bf16.mxu0 0
    %7337 = vmatpush1.bf16.msra.mxu0 %v7258
    %7338 = vmatprep.subr.bf16.mxu0 0
    %7339 = vmatpush1.bf16.msra.mxu0 %v7259
    %7340 = vmatprep.subr.bf16.mxu0 0
    %7341 = vmatpush1.bf16.msra.mxu0 %v7260
    %7342 = vmatprep.subr.bf16.mxu0 0
    %7343 = vmatpush1.bf16.msra.mxu0 %v7261
    %7344 = vmatprep.subr.bf16.mxu0 0
    %7345 = vmatpush1.bf16.msra.mxu0 %v7262
    %7346 = vmatprep.subr.bf16.mxu0 0
    %7347 = vmatpush1.bf16.msra.mxu0 %v7263
    %7348 = vmatprep.subr.bf16.mxu0 0
    %7349 = vmatpush1.bf16.msra.mxu0 %v7264
    %7350 = vmatprep.subr.bf16.mxu0 0
    %7351 = vmatpush1.bf16.msra.mxu0 %v7265
    %7352 = vmatprep.subr.bf16.mxu0 0
    %7353 = vmatpush1.bf16.msra.mxu0 %v7266
    %7354 = vmatprep.subr.bf16.mxu0 0
    %7355 = vmatpush1.bf16.msra.mxu0 %v7267
    %7356 = vmatprep.subr.bf16.mxu0 0
    %7357 = vmatpush1.bf16.msra.mxu0 %v7268
    %7358 = vmatprep.subr.bf16.mxu0 0
    %7359 = vmatpush1.bf16.msra.mxu0 %v7269
    %7360 = vmatprep.subr.bf16.mxu0 0
    %7361 = vmatpush1.bf16.msra.mxu0 %v7270
    %7362 = vmatprep.subr.bf16.mxu0 0
    %7363 = vmatpush1.bf16.msra.mxu0 %v7271
    %7364 = vmatprep.subr.bf16.mxu0 0
    %7365 = vmatpush1.bf16.msra.mxu0 %v7272
    %7366 = vmatprep.subr.bf16.mxu0 0
    %7367 = vmatpush1.bf16.msra.mxu0 %v7273
    %7368 = vmatprep.mubr.bf16.mxu0 %v7026
    %7369 = vmatmul.mubr.bf16.gmra.mrb[0].mxu0 %v7025
    %v7370 = vpop.f32.mrb[0].mxu0
    %v7371 = vadd.f32 %v7112, %v7370
    %v7372 = vpop.f32.mrb[0].mxu0
    %v7373 = vpop.f32.mrb[0].mxu0
    %v7374 = vadd.f32 %v7112, %v7373
    %v7375 = vpop.f32.mrb[0].mxu0
    %7376 = vmatprep.mubr.bf16.mxu0 %v7031
    %7377 = vmatmul.mubr.bf16.gmra.mrb[0].mxu0 %v7030
    %v7378 = vpop.f32.mrb[0].mxu0
    %v7379 = vadd.f32 %v7112, %v7378
    %v7380 = vpop.f32.mrb[0].mxu0
    %v7381 = vpop.f32.mrb[0].mxu0
    %v7382 = vadd.f32 %v7112, %v7381
    %v7383 = vpop.f32.mrb[0].mxu0
    %7384 = vdwg.mxu0
    %7385 = vmatprep.subr.bf16.mxu0 0
    %7386 = vmatpush1.bf16.msra.mxu0 %v7274
    %7387 = vmatprep.subr.bf16.mxu0 0
    %7388 = vmatpush1.bf16.msra.mxu0 %v7275
    %7389 = vmatprep.subr.bf16.mxu0 0
    %7390 = vmatpush1.bf16.msra.mxu0 %v7276
    %7391 = vmatprep.subr.bf16.mxu0 0
    %7392 = vmatpush1.bf16.msra.mxu0 %v7277
    %7393 = vmatprep.subr.bf16.mxu0 0
    %7394 = vmatpush1.bf16.msra.mxu0 %v7278
    %7395 = vmatprep.subr.bf16.mxu0 0
    %7396 = vmatpush1.bf16.msra.mxu0 %v7279
    %7397 = vmatprep.subr.bf16.mxu0 0
    %7398 = vmatpush1.bf16.msra.mxu0 %v7280
    %7399 = vmatprep.subr.bf16.mxu0 0
    %7400 = vmatpush1.bf16.msra.mxu0 %v7281
    %7401 = vmatprep.subr.bf16.mxu0 0
    %7402 = vmatpush1.bf16.msra.mxu0 %v7282
    %7403 = vmatprep.subr.bf16.mxu0 0
    %7404 = vmatpush1.bf16.msra.mxu0 %v7283
    %7405 = vmatprep.subr.bf16.mxu0 0
    %7406 = vmatpush1.bf16.msra.mxu0 %v7284
    %7407 = vmatprep.subr.bf16.mxu0 0
    %7408 = vmatpush1.bf16.msra.mxu0 %v7285
    %7409 = vmatprep.subr.bf16.mxu0 0
    %7410 = vmatpush1.bf16.msra.mxu0 %v7286
    %7411 = vmatprep.subr.bf16.mxu0 0
    %7412 = vmatpush1.bf16.msra.mxu0 %v7287
    %7413 = vmatprep.subr.bf16.mxu0 0
    %7414 = vmatpush1.bf16.msra.mxu0 %v7288
    %7415 = vmatprep.subr.bf16.mxu0 0
    %7416 = vmatpush1.bf16.msra.mxu0 %v7289
    %7417 = vmatprep.mubr.bf16.mxu0 %v7028
    %7418 = vmatmul.mubr.bf16.gmra.mrb[0].mxu0 %v7027
    %v7419 = vpop.f32.mrb[0].mxu0
    %v7420 = vadd.f32 %v7371, %v7419
    %v7421 = vpop.f32.mrb[0].mxu0
    %v7422 = vpop.f32.mrb[0].mxu0
    %v7423 = vadd.f32 %v7374, %v7422
    %v7424 = vpop.f32.mrb[0].mxu0
    %7425 = vmatprep.mubr.bf16.mxu0 %v7033
    %7426 = vmatmul.mubr.bf16.gmra.mrb[0].mxu0 %v7032
    %v7427 = vpop.f32.mrb[0].mxu0
    %v7428 = vadd.f32 %v7379, %v7427
    %v7429 = vpop.f32.mrb[0].mxu0
    %v7430 = vpop.f32.mrb[0].mxu0
    %v7431 = vadd.f32 %v7382, %v7430
    %v7432 = vpop.f32.mrb[0].mxu0
    %7433 = vdwg.mxu0
    %7434 = vmatprep.subr.bf16.mxu0 0
    %7435 = vmatpush1.bf16.msra.mxu0 %v7290
    %7436 = vmatprep.subr.bf16.mxu0 0
    %7437 = vmatpush1.bf16.msra.mxu0 %v7291
    %7438 = vmatprep.subr.bf16.mxu0 0
    %7439 = vmatpush1.bf16.msra.mxu0 %v7292
    %7440 = vmatprep.subr.bf16.mxu0 0
    %7441 = vmatpush1.bf16.msra.mxu0 %v7293
    %7442 = vmatprep.subr.bf16.mxu0 0
    %7443 = vmatpush1.bf16.msra.mxu0 0
    %7444 = vmatprep.subr.bf16.mxu0 0
    %7445 = vmatpush1.bf16.msra.mxu0 0
    %7446 = vmatprep.subr.bf16.mxu0 0
    %7447 = vmatpush1.bf16.msra.mxu0 0
    %7448 = vmatprep.subr.bf16.mxu0 0
    %7449 = vmatpush1.bf16.msra.mxu0 0
    %7450 = vmatprep.subr.bf16.mxu0 0
    %7451 = vmatpush1.bf16.msra.mxu0 0
    %7452 = vmatprep.subr.bf16.mxu0 0
    %7453 = vmatpush1.bf16.msra.mxu0 0
    %7454 = vmatprep.subr.bf16.mxu0 0
    %7455 = vmatpush1.bf16.msra.mxu0 0
    %7456 = vmatprep.subr.bf16.mxu0 0
    %7457 = vmatpush1.bf16.msra.mxu0 0
    %7458 = vmatprep.subr.bf16.mxu0 0
    %7459 = vmatpush1.bf16.msra.mxu0 0
    %7460 = vmatprep.subr.bf16.mxu0 0
    %7461 = vmatpush1.bf16.msra.mxu0 0
    %7462 = vmatprep.subr.bf16.mxu0 0
    %7463 = vmatpush1.bf16.msra.mxu0 0
    %7464 = vmatprep.subr.bf16.mxu0 0
    %7465 = vmatpush1.bf16.msra.mxu0 0
    %7466 = vmatprep.mubr.bf16.mxu0 0
    %7467 = vmatmul.mubr.bf16.gmra.mrb[0].mxu0 %v7331
    %v7468 = vpop.f32.mrb[0].mxu0
    %v7469 = vadd.f32 %v7420, %v7468
    %v7470 = vpop.f32.mrb[0].mxu0
    %v7471 = vpop.f32.mrb[0].mxu0
    %v7472 = vadd.f32 %v7423, %v7471
    %v7473 = vpop.f32.mrb[0].mxu0
    %7474 = vmatprep.mubr.bf16.mxu0 0
    %7475 = vmatmul.mubr.bf16.gmra.mrb[0].mxu0 %v7334
    %v7476 = vpop.f32.mrb[0].mxu0
    %v7477 = vadd.f32 %v7428, %v7476
    %v7478 = vpop.f32.mrb[0].mxu0
    %v7479 = vpop.f32.mrb[0].mxu0
    %v7480 = vadd.f32 %v7431, %v7479
    %v7481 = vpop.f32.mrb[0].mxu0
    %7482 = vdwg.mxu0
    %v7483 = vmax.f32 %v7469, 0.0
    %v7484 = vmax.f32 %v7472, 0.0
    %v7485 = vmax.f32 %v7477, 0.0
    %v7486 = vmax.f32 %v7480, 0.0
    %v7487 = vpack.c.bf16 %v7484, %v7483
    %v7488 = vpack.c.bf16 %v7486, %v7485
    %v7489 = vld [vmem:[%s22] sm:$0xf]
    %v7490 = vld [vmem:[%s22 + $0x4] sm:$0xf]
    %v7491 = vld [vmem:[%s22 + $0x8] sm:$0xf]
    %v7492 = vld [vmem:[%s22 + $0xc] sm:$0xf]
    %v7493 = vld [vmem:[%s22 + $0x10] sm:$0xf]
    %v7494 = vld [vmem:[%s22 + $0x14] sm:$0xf]
    %v7495 = vld [vmem:[%s22 + $0x18] sm:$0xf]
    %v7496 = vld [vmem:[%s22 + $0x1c] sm:$0xf]
    %v7497 = vld [vmem:[%s22 + $0x20] sm:$0xf]
    %v7498 = vld [vmem:[%s22 + $0x24] sm:$0xf]
    %v7499 = vld [vmem:[%s22 + $0x28] sm:$0xf]
    %v7500 = vld [vmem:[%s22 + $0x2c] sm:$0xf]
    %v7501 = vld [vmem:[%s22 + $0x30] sm:$0xf]
    %v7502 = vld [vmem:[%s22 + $0x34] sm:$0xf]
    %v7503 = vld [vmem:[%s22 + $0x38] sm:$0xf]
    %v7504 = vld [vmem:[%s22 + $0x3c] sm:$0xf]
    %s7505 = scalar_lea.vmem %s22, 64
    %v7506 = vld [vmem:[%s7505] sm:$0xf]
    %v7507 = vld [vmem:[%s7505 + $0x4] sm:$0xf]
    %v7508 = vld [vmem:[%s7505 + $0x8] sm:$0xf]
    %v7509 = vld [vmem:[%s7505 + $0xc] sm:$0xf]
    %v7510 = vld [vmem:[%s7505 + $0x10] sm:$0xf]
    %v7511 = vld [vmem:[%s7505 + $0x14] sm:$0xf]
    %v7512 = vld [vmem:[%s7505 + $0x18] sm:$0xf]
    %v7513 = vld [vmem:[%s7505 + $0x1c] sm:$0xf]
    %v7514 = vld [vmem:[%s7505 + $0x20] sm:$0xf]
    %v7515 = vld [vmem:[%s7505 + $0x24] sm:$0xf]
    %v7516 = vld [vmem:[%s7505 + $0x28] sm:$0xf]
    %v7517 = vld [vmem:[%s7505 + $0x2c] sm:$0xf]
    %v7518 = vld [vmem:[%s7505 + $0x30] sm:$0xf]
    %v7519 = vld [vmem:[%s7505 + $0x34] sm:$0xf]
    %v7520 = vld [vmem:[%s7505 + $0x38] sm:$0xf]
    %v7521 = vld [vmem:[%s7505 + $0x3c] sm:$0xf]
    %v7538 = vunpack.c.l.b16 %v7506
    %v7539 = vunpack.c.l.b16 %v7507
    %v7540 = vunpack.c.l.b16 %v7508
    %v7541 = vunpack.c.l.b16 %v7509
    %v7542 = vunpack.c.l.b16 %v7510
    %v7543 = vunpack.c.l.b16 %v7511
    %v7544 = vunpack.c.l.b16 %v7512
    %v7545 = vunpack.c.l.b16 %v7513
    %v7546 = vunpack.c.l.b16 %v7514
    %v7547 = vunpack.c.l.b16 %v7515
    %v7548 = vunpack.c.l.b16 %v7516
    %v7549 = vunpack.c.l.b16 %v7517
    %v7550 = vunpack.c.l.b16 %v7518
    %v7551 = vunpack.c.l.b16 %v7519
    %v7552 = vunpack.c.l.b16 %v7520
    %v7553 = vunpack.c.l.b16 %v7521
    %v7554 = vpack.c.b16 %v7539, %v7538
    %v7555 = vpack.c.b16 %v7541, %v7540
    %v7556 = vpack.c.b16 %v7543, %v7542
    %v7557 = vpack.c.b16 %v7545, %v7544
    %v7558 = vpack.c.b16 %v7547, %v7546
    %v7559 = vpack.c.b16 %v7549, %v7548
    %v7560 = vpack.c.b16 %v7551, %v7550
    %v7561 = vpack.c.b16 %v7553, %v7552
    %7564 = vrot.lane.b32.xlu0 %v7487, 96
    %v7565 = vpop.permute.xlu0 %7564
    %7566 = vrot.lane.b32.xlu0 %v7488, 96
    %v7567 = vpop.permute.xlu0 %7566
    %v7571 = vsel %vm1731, %v7554, 0
    %v7574 = vsel %vm1731, %v7555, 0
    %v7577 = vsel %vm1731, %v7556, 0
    %v7580 = vsel %vm1731, %v7557, 0
    %v7583 = vsel %vm1731, %v7558, 0
    %v7586 = vsel %vm1731, %v7559, 0
    %v7589 = vsel %vm1731, %v7560, 0
    %v7592 = vsel %vm1731, %v7561, 0
    %7594 = vmatprep.subr.bf16.mxu0 0
    %7595 = vmatpush1.bf16.msra.mxu0 %v7565
    %7596 = vmatprep.subr.bf16.mxu0 0
    %7597 = vmatpush1.bf16.msra.mxu0 %v7567
    %7598 = vmatprep.subr.bf16.mxu0 0
    %7599 = vmatpush1.bf16.msra.mxu0 0
    %7600 = vmatprep.subr.bf16.mxu0 0
    %7601 = vmatpush1.bf16.msra.mxu0 0
    %7602 = vmatprep.subr.bf16.mxu0 0
    %7603 = vmatpush1.bf16.msra.mxu0 0
    %7604 = vmatprep.subr.bf16.mxu0 0
    %7605 = vmatpush1.bf16.msra.mxu0 0
    %7606 = vmatprep.subr.bf16.mxu0 0
    %7607 = vmatpush1.bf16.msra.mxu0 0
    %7608 = vmatprep.subr.bf16.mxu0 0
    %7609 = vmatpush1.bf16.msra.mxu0 0
    %7610 = vmatprep.subr.bf16.mxu0 0
    %7611 = vmatpush1.bf16.msra.mxu0 0
    %7612 = vmatprep.subr.bf16.mxu0 0
    %7613 = vmatpush1.bf16.msra.mxu0 0
    %7614 = vmatprep.subr.bf16.mxu0 0
    %7615 = vmatpush1.bf16.msra.mxu0 0
    %7616 = vmatprep.subr.bf16.mxu0 0
    %7617 = vmatpush1.bf16.msra.mxu0 0
    %7618 = vmatprep.subr.bf16.mxu0 0
    %7619 = vmatpush1.bf16.msra.mxu0 0
    %7620 = vmatprep.subr.bf16.mxu0 0
    %7621 = vmatpush1.bf16.msra.mxu0 0
    %7622 = vmatprep.subr.bf16.mxu0 0
    %7623 = vmatpush1.bf16.msra.mxu0 0
    %7624 = vmatprep.subr.bf16.mxu0 0
    %7625 = vmatpush1.bf16.msra.mxu0 0
    %7626 = vmatprep.mubr.bf16.mxu0 0
    %7627 = vmatmul.mubr.bf16.gmra.mrb[0].mxu0 %v7571
    %v7628 = vpop.f32.mrb[0].mxu0
    %v7629 = vadd.f32 0.0, %v7628
    %v7630 = vpop.f32.mrb[0].mxu0
    %v7631 = vpop.f32.mrb[0].mxu0
    %v7632 = vadd.f32 0.0, %v7631
    %v7633 = vpop.f32.mrb[0].mxu0
    %7634 = vmatprep.mubr.bf16.mxu0 0
    %7635 = vmatmul.mubr.bf16.gmra.mrb[0].mxu0 %v7574
    %v7636 = vpop.f32.mrb[0].mxu0
    %v7637 = vadd.f32 0.0, %v7636
    %v7638 = vpop.f32.mrb[0].mxu0
    %v7639 = vpop.f32.mrb[0].mxu0
    %v7640 = vadd.f32 0.0, %v7639
    %v7641 = vpop.f32.mrb[0].mxu0
    %7642 = vmatprep.mubr.bf16.mxu0 0
    %7643 = vmatmul.mubr.bf16.gmra.mrb[0].mxu0 %v7577
    %v7644 = vpop.f32.mrb[0].mxu0
    %v7645 = vadd.f32 0.0, %v7644
    %v7646 = vpop.f32.mrb[0].mxu0
    %v7647 = vpop.f32.mrb[0].mxu0
    %v7648 = vadd.f32 0.0, %v7647
    %v7649 = vpop.f32.mrb[0].mxu0
    %7650 = vmatprep.mubr.bf16.mxu0 0
    %7651 = vmatmul.mubr.bf16.gmra.mrb[0].mxu0 %v7580
    %v7652 = vpop.f32.mrb[0].mxu0
    %v7653 = vadd.f32 0.0, %v7652
    %v7654 = vpop.f32.mrb[0].mxu0
    %v7655 = vpop.f32.mrb[0].mxu0
    %v7656 = vadd.f32 0.0, %v7655
    %v7657 = vpop.f32.mrb[0].mxu0
    %7658 = vmatprep.mubr.bf16.mxu0 0
    %7659 = vmatmul.mubr.bf16.gmra.mrb[0].mxu0 %v7583
    %v7660 = vpop.f32.mrb[0].mxu0
    %v7661 = vadd.f32 0.0, %v7660
    %v7662 = vpop.f32.mrb[0].mxu0
    %v7663 = vpop.f32.mrb[0].mxu0
    %v7664 = vadd.f32 0.0, %v7663
    %v7665 = vpop.f32.mrb[0].mxu0
    %7666 = vmatprep.mubr.bf16.mxu0 0
    %7667 = vmatmul.mubr.bf16.gmra.mrb[0].mxu0 %v7586
    %v7668 = vpop.f32.mrb[0].mxu0
    %v7669 = vadd.f32 0.0, %v7668
    %v7670 = vpop.f32.mrb[0].mxu0
    %v7671 = vpop.f32.mrb[0].mxu0
    %v7672 = vadd.f32 0.0, %v7671
    %v7673 = vpop.f32.mrb[0].mxu0
    %7674 = vmatprep.mubr.bf16.mxu0 0
    %7675 = vmatmul.mubr.bf16.gmra.mrb[0].mxu0 %v7589
    %v7676 = vpop.f32.mrb[0].mxu0
    %v7677 = vadd.f32 0.0, %v7676
    %v7678 = vpop.f32.mrb[0].mxu0
    %v7679 = vpop.f32.mrb[0].mxu0
    %v7680 = vadd.f32 0.0, %v7679
    %v7681 = vpop.f32.mrb[0].mxu0
    %7682 = vmatprep.mubr.bf16.mxu0 0
    %7683 = vmatmul.mubr.bf16.gmra.mrb[0].mxu0 %v7592
    %v7684 = vpop.f32.mrb[0].mxu0
    %v7685 = vadd.f32 0.0, %v7684
    %v7686 = vpop.f32.mrb[0].mxu0
    %v7687 = vpop.f32.mrb[0].mxu0
    %v7688 = vadd.f32 0.0, %v7687
    %v7689 = vpop.f32.mrb[0].mxu0
    %7690 = vdwg.mxu0
    %v7707 = vunpack.c.l.b16 %v7489
    %v7708 = vunpack.c.l.b16 %v7490
    %v7709 = vunpack.c.l.b16 %v7491
    %v7710 = vunpack.c.l.b16 %v7492
    %v7711 = vunpack.c.l.b16 %v7493
    %v7712 = vunpack.c.l.b16 %v7494
    %v7713 = vunpack.c.l.b16 %v7495
    %v7714 = vunpack.c.l.b16 %v7496
    %v7715 = vunpack.c.l.b16 %v7497
    %v7716 = vunpack.c.l.b16 %v7498
    %v7717 = vunpack.c.l.b16 %v7499
    %v7718 = vunpack.c.l.b16 %v7500
    %v7719 = vunpack.c.l.b16 %v7501
    %v7720 = vunpack.c.l.b16 %v7502
    %v7721 = vunpack.c.l.b16 %v7503
    %v7722 = vunpack.c.l.b16 %v7504
    %v7723 = vpack.c.b16 %v7708, %v7707
    %v7724 = vpack.c.b16 %v7710, %v7709
    %v7725 = vpack.c.b16 %v7712, %v7711
    %v7726 = vpack.c.b16 %v7714, %v7713
    %v7727 = vpack.c.b16 %v7716, %v7715
    %v7728 = vpack.c.b16 %v7718, %v7717
    %v7729 = vpack.c.b16 %v7720, %v7719
    %v7730 = vpack.c.b16 %v7722, %v7721
    %v7732 = vsel %vm1731, %v7723, 0
    %v7735 = vsel %vm1731, %v7724, 0
    %v7738 = vsel %vm1731, %v7725, 0
    %v7741 = vsel %vm1731, %v7726, 0
    %v7744 = vsel %vm1731, %v7727, 0
    %v7747 = vsel %vm1731, %v7728, 0
    %v7750 = vsel %vm1731, %v7729, 0
    %v7753 = vsel %vm1731, %v7730, 0
    %7755 = vmatprep.subr.bf16.mxu0 0
    %7756 = vmatpush1.bf16.msra.mxu0 %v7487
    %7757 = vmatprep.subr.bf16.mxu0 0
    %7758 = vmatpush1.bf16.msra.mxu0 %v7488
    %7759 = vmatprep.subr.bf16.mxu0 0
    %7760 = vmatpush1.bf16.msra.mxu0 0
    %7761 = vmatprep.subr.bf16.mxu0 0
    %7762 = vmatpush1.bf16.msra.mxu0 0
    %7763 = vmatprep.subr.bf16.mxu0 0
    %7764 = vmatpush1.bf16.msra.mxu0 0
    %7765 = vmatprep.subr.bf16.mxu0 0
    %7766 = vmatpush1.bf16.msra.mxu0 0
    %7767 = vmatprep.subr.bf16.mxu0 0
    %7768 = vmatpush1.bf16.msra.mxu0 0
    %7769 = vmatprep.subr.bf16.mxu0 0
    %7770 = vmatpush1.bf16.msra.mxu0 0
    %7771 = vmatprep.subr.bf16.mxu0 0
    %7772 = vmatpush1.bf16.msra.mxu0 0
    %7773 = vmatprep.subr.bf16.mxu0 0
    %7774 = vmatpush1.bf16.msra.mxu0 0
    %7775 = vmatprep.subr.bf16.mxu0 0
    %7776 = vmatpush1.bf16.msra.mxu0 0
    %7777 = vmatprep.subr.bf16.mxu0 0
    %7778 = vmatpush1.bf16.msra.mxu0 0
    %7779 = vmatprep.subr.bf16.mxu0 0
    %7780 = vmatpush1.bf16.msra.mxu0 0
    %7781 = vmatprep.subr.bf16.mxu0 0
    %7782 = vmatpush1.bf16.msra.mxu0 0
    %7783 = vmatprep.subr.bf16.mxu0 0
    %7784 = vmatpush1.bf16.msra.mxu0 0
    %7785 = vmatprep.subr.bf16.mxu0 0
    %7786 = vmatpush1.bf16.msra.mxu0 0
    %7787 = vmatprep.mubr.bf16.mxu0 0
    %7788 = vmatmul.mubr.bf16.gmra.mrb[0].mxu0 %v7732
    %v7789 = vpop.f32.mrb[0].mxu0
    %v7790 = vadd.f32 %v7629, %v7789
    %v7791 = vpop.f32.mrb[0].mxu0
    %v7792 = vpop.f32.mrb[0].mxu0
    %v7793 = vadd.f32 %v7632, %v7792
    %v7794 = vpop.f32.mrb[0].mxu0
    %7795 = vmatprep.mubr.bf16.mxu0 0
    %7796 = vmatmul.mubr.bf16.gmra.mrb[0].mxu0 %v7735
    %v7797 = vpop.f32.mrb[0].mxu0
    %v7798 = vadd.f32 %v7637, %v7797
    %v7799 = vpop.f32.mrb[0].mxu0
    %v7800 = vpop.f32.mrb[0].mxu0
    %v7801 = vadd.f32 %v7640, %v7800
    %v7802 = vpop.f32.mrb[0].mxu0
    %7803 = vmatprep.mubr.bf16.mxu0 0
    %7804 = vmatmul.mubr.bf16.gmra.mrb[0].mxu0 %v7738
    %v7805 = vpop.f32.mrb[0].mxu0
    %v7806 = vadd.f32 %v7645, %v7805
    %v7807 = vpop.f32.mrb[0].mxu0
    %v7808 = vpop.f32.mrb[0].mxu0
    %v7809 = vadd.f32 %v7648, %v7808
    %v7810 = vpop.f32.mrb[0].mxu0
    %7811 = vmatprep.mubr.bf16.mxu0 0
    %7812 = vmatmul.mubr.bf16.gmra.mrb[0].mxu0 %v7741
    %v7813 = vpop.f32.mrb[0].mxu0
    %v7814 = vadd.f32 %v7653, %v7813
    %v7815 = vpop.f32.mrb[0].mxu0
    %v7816 = vpop.f32.mrb[0].mxu0
    %v7817 = vadd.f32 %v7656, %v7816
    %v7818 = vpop.f32.mrb[0].mxu0
    %7819 = vmatprep.mubr.bf16.mxu0 0
    %7820 = vmatmul.mubr.bf16.gmra.mrb[0].mxu0 %v7744
    %v7821 = vpop.f32.mrb[0].mxu0
    %v7822 = vadd.f32 %v7661, %v7821
    %v7823 = vpop.f32.mrb[0].mxu0
    %v7824 = vpop.f32.mrb[0].mxu0
    %v7825 = vadd.f32 %v7664, %v7824
    %v7826 = vpop.f32.mrb[0].mxu0
    %7827 = vmatprep.mubr.bf16.mxu0 0
    %7828 = vmatmul.mubr.bf16.gmra.mrb[0].mxu0 %v7747
    %v7829 = vpop.f32.mrb[0].mxu0
    %v7830 = vadd.f32 %v7669, %v7829
    %v7831 = vpop.f32.mrb[0].mxu0
    %v7832 = vpop.f32.mrb[0].mxu0
    %v7833 = vadd.f32 %v7672, %v7832
    %v7834 = vpop.f32.mrb[0].mxu0
    %7835 = vmatprep.mubr.bf16.mxu0 0
    %7836 = vmatmul.mubr.bf16.gmra.mrb[0].mxu0 %v7750
    %v7837 = vpop.f32.mrb[0].mxu0
    %v7838 = vadd.f32 %v7677, %v7837
    %v7839 = vpop.f32.mrb[0].mxu0
    %v7840 = vpop.f32.mrb[0].mxu0
    %v7841 = vadd.f32 %v7680, %v7840
    %v7842 = vpop.f32.mrb[0].mxu0
    %7843 = vmatprep.mubr.bf16.mxu0 0
    %7844 = vmatmul.mubr.bf16.gmra.mrb[0].mxu0 %v7753
    %v7845 = vpop.f32.mrb[0].mxu0
    %v7846 = vadd.f32 %v7685, %v7845
    %v7847 = vpop.f32.mrb[0].mxu0
    %v7848 = vpop.f32.mrb[0].mxu0
    %v7849 = vadd.f32 %v7688, %v7848
    %v7850 = vpop.f32.mrb[0].mxu0
    %7851 = vdwg.mxu0
    %s7852 = scalar_lea.vmem %s22, 128
    %v7853 = vld [vmem:[%s7852] sm:$0xf]
    %v7854 = vld [vmem:[%s7852 + $0x4] sm:$0xf]
    %v7855 = vld [vmem:[%s7852 + $0x8] sm:$0xf]
    %v7856 = vld [vmem:[%s7852 + $0xc] sm:$0xf]
    %v7857 = vld [vmem:[%s7852 + $0x10] sm:$0xf]
    %v7858 = vld [vmem:[%s7852 + $0x14] sm:$0xf]
    %v7859 = vld [vmem:[%s7852 + $0x18] sm:$0xf]
    %v7860 = vld [vmem:[%s7852 + $0x1c] sm:$0xf]
    %v7861 = vld [vmem:[%s7852 + $0x20] sm:$0xf]
    %v7862 = vld [vmem:[%s7852 + $0x24] sm:$0xf]
    %v7863 = vld [vmem:[%s7852 + $0x28] sm:$0xf]
    %v7864 = vld [vmem:[%s7852 + $0x2c] sm:$0xf]
    %v7865 = vld [vmem:[%s7852 + $0x30] sm:$0xf]
    %v7866 = vld [vmem:[%s7852 + $0x34] sm:$0xf]
    %v7867 = vld [vmem:[%s7852 + $0x38] sm:$0xf]
    %v7868 = vld [vmem:[%s7852 + $0x3c] sm:$0xf]
    %v7885 = vunpack.c.l.b16 %v7853
    %v7886 = vunpack.c.l.b16 %v7854
    %v7887 = vunpack.c.l.b16 %v7855
    %v7888 = vunpack.c.l.b16 %v7856
    %v7889 = vunpack.c.l.b16 %v7857
    %v7890 = vunpack.c.l.b16 %v7858
    %v7891 = vunpack.c.l.b16 %v7859
    %v7892 = vunpack.c.l.b16 %v7860
    %v7893 = vunpack.c.l.b16 %v7861
    %v7894 = vunpack.c.l.b16 %v7862
    %v7895 = vunpack.c.l.b16 %v7863
    %v7896 = vunpack.c.l.b16 %v7864
    %v7897 = vunpack.c.l.b16 %v7865
    %v7898 = vunpack.c.l.b16 %v7866
    %v7899 = vunpack.c.l.b16 %v7867
    %v7900 = vunpack.c.l.b16 %v7868
    %v7901 = vpack.c.b16 %v7886, %v7885
    %v7902 = vpack.c.b16 %v7888, %v7887
    %v7903 = vpack.c.b16 %v7890, %v7889
    %v7904 = vpack.c.b16 %v7892, %v7891
    %v7905 = vpack.c.b16 %v7894, %v7893
    %v7906 = vpack.c.b16 %v7896, %v7895
    %v7907 = vpack.c.b16 %v7898, %v7897
    %v7908 = vpack.c.b16 %v7900, %v7899
    %7909 = vrot.lane.b32.xlu0 %v7487, 64
    %v7910 = vpop.permute.xlu0 %7909
    %7911 = vrot.lane.b32.xlu0 %v7488, 64
    %v7912 = vpop.permute.xlu0 %7911
    %v7916 = vsel %vm1731, %v7901, 0
    %v7919 = vsel %vm1731, %v7902, 0
    %v7922 = vsel %vm1731, %v7903, 0
    %v7925 = vsel %vm1731, %v7904, 0
    %v7928 = vsel %vm1731, %v7905, 0
    %v7931 = vsel %vm1731, %v7906, 0
    %v7934 = vsel %vm1731, %v7907, 0
    %v7937 = vsel %vm1731, %v7908, 0
    %7939 = vmatprep.subr.bf16.mxu0 0
    %7940 = vmatpush1.bf16.msra.mxu0 %v7910
    %7941 = vmatprep.subr.bf16.mxu0 0
    %7942 = vmatpush1.bf16.msra.mxu0 %v7912
    %7943 = vmatprep.subr.bf16.mxu0 0
    %7944 = vmatpush1.bf16.msra.mxu0 0
    %7945 = vmatprep.subr.bf16.mxu0 0
    %7946 = vmatpush1.bf16.msra.mxu0 0
    %7947 = vmatprep.subr.bf16.mxu0 0
    %7948 = vmatpush1.bf16.msra.mxu0 0
    %7949 = vmatprep.subr.bf16.mxu0 0
    %7950 = vmatpush1.bf16.msra.mxu0 0
    %7951 = vmatprep.subr.bf16.mxu0 0
    %7952 = vmatpush1.bf16.msra.mxu0 0
    %7953 = vmatprep.subr.bf16.mxu0 0
    %7954 = vmatpush1.bf16.msra.mxu0 0
    %7955 = vmatprep.subr.bf16.mxu0 0
    %7956 = vmatpush1.bf16.msra.mxu0 0
    %7957 = vmatprep.subr.bf16.mxu0 0
    %7958 = vmatpush1.bf16.msra.mxu0 0
    %7959 = vmatprep.subr.bf16.mxu0 0
    %7960 = vmatpush1.bf16.msra.mxu0 0
    %7961 = vmatprep.subr.bf16.mxu0 0
    %7962 = vmatpush1.bf16.msra.mxu0 0
    %7963 = vmatprep.subr.bf16.mxu0 0
    %7964 = vmatpush1.bf16.msra.mxu0 0
    %7965 = vmatprep.subr.bf16.mxu0 0
    %7966 = vmatpush1.bf16.msra.mxu0 0
    %7967 = vmatprep.subr.bf16.mxu0 0
    %7968 = vmatpush1.bf16.msra.mxu0 0
    %7969 = vmatprep.subr.bf16.mxu0 0
    %7970 = vmatpush1.bf16.msra.mxu0 0
    %7971 = vmatprep.mubr.bf16.mxu0 0
    %7972 = vmatmul.mubr.bf16.gmra.mrb[0].mxu0 %v7916
    %v7973 = vpop.f32.mrb[0].mxu0
    %v7974 = vadd.f32 0.0, %v7973
    %v7975 = vpop.f32.mrb[0].mxu0
    %v7976 = vpop.f32.mrb[0].mxu0
    %v7977 = vadd.f32 0.0, %v7976
    %v7978 = vpop.f32.mrb[0].mxu0
    %7979 = vmatprep.mubr.bf16.mxu0 0
    %7980 = vmatmul.mubr.bf16.gmra.mrb[0].mxu0 %v7919
    %v7981 = vpop.f32.mrb[0].mxu0
    %v7982 = vadd.f32 0.0, %v7981
    %v7983 = vpop.f32.mrb[0].mxu0
    %v7984 = vpop.f32.mrb[0].mxu0
    %v7985 = vadd.f32 0.0, %v7984
    %v7986 = vpop.f32.mrb[0].mxu0
    %7987 = vmatprep.mubr.bf16.mxu0 0
    %7988 = vmatmul.mubr.bf16.gmra.mrb[0].mxu0 %v7922
    %v7989 = vpop.f32.mrb[0].mxu0
    %v7990 = vadd.f32 0.0, %v7989
    %v7991 = vpop.f32.mrb[0].mxu0
    %v7992 = vpop.f32.mrb[0].mxu0
    %v7993 = vadd.f32 0.0, %v7992
    %v7994 = vpop.f32.mrb[0].mxu0
    %7995 = vmatprep.mubr.bf16.mxu0 0
    %7996 = vmatmul.mubr.bf16.gmra.mrb[0].mxu0 %v7925
    %v7997 = vpop.f32.mrb[0].mxu0
    %v7998 = vadd.f32 0.0, %v7997
    %v7999 = vpop.f32.mrb[0].mxu0
    %v8000 = vpop.f32.mrb[0].mxu0
    %v8001 = vadd.f32 0.0, %v8000
    %v8002 = vpop.f32.mrb[0].mxu0
    %8003 = vmatprep.mubr.bf16.mxu0 0
    %8004 = vmatmul.mubr.bf16.gmra.mrb[0].mxu0 %v7928
    %v8005 = vpop.f32.mrb[0].mxu0
    %v8006 = vadd.f32 0.0, %v8005
    %v8007 = vpop.f32.mrb[0].mxu0
    %v8008 = vpop.f32.mrb[0].mxu0
    %v8009 = vadd.f32 0.0, %v8008
    %v8010 = vpop.f32.mrb[0].mxu0
    %8011 = vmatprep.mubr.bf16.mxu0 0
    %8012 = vmatmul.mubr.bf16.gmra.mrb[0].mxu0 %v7931
    %v8013 = vpop.f32.mrb[0].mxu0
    %v8014 = vadd.f32 0.0, %v8013
    %v8015 = vpop.f32.mrb[0].mxu0
    %v8016 = vpop.f32.mrb[0].mxu0
    %v8017 = vadd.f32 0.0, %v8016
    %v8018 = vpop.f32.mrb[0].mxu0
    %8019 = vmatprep.mubr.bf16.mxu0 0
    %8020 = vmatmul.mubr.bf16.gmra.mrb[0].mxu0 %v7934
    %v8021 = vpop.f32.mrb[0].mxu0
    %v8022 = vadd.f32 0.0, %v8021
    %v8023 = vpop.f32.mrb[0].mxu0
    %v8024 = vpop.f32.mrb[0].mxu0
    %v8025 = vadd.f32 0.0, %v8024
    %v8026 = vpop.f32.mrb[0].mxu0
    %8027 = vmatprep.mubr.bf16.mxu0 0
    %8028 = vmatmul.mubr.bf16.gmra.mrb[0].mxu0 %v7937
    %v8029 = vpop.f32.mrb[0].mxu0
    %v8030 = vadd.f32 0.0, %v8029
    %v8031 = vpop.f32.mrb[0].mxu0
    %v8032 = vpop.f32.mrb[0].mxu0
    %v8033 = vadd.f32 0.0, %v8032
    %v8034 = vpop.f32.mrb[0].mxu0
    %8035 = vdwg.mxu0
    %v8036 = vadd.f32 %v7790, %v7974
    %v8037 = vadd.f32 %v7793, %v7977
    %v8038 = vadd.f32 %v7798, %v7982
    %v8039 = vadd.f32 %v7801, %v7985
    %v8040 = vadd.f32 %v7806, %v7990
    %v8041 = vadd.f32 %v7809, %v7993
    %v8042 = vadd.f32 %v7814, %v7998
    %v8043 = vadd.f32 %v7817, %v8001
    %v8044 = vadd.f32 %v7822, %v8006
    %v8045 = vadd.f32 %v7825, %v8009
    %v8046 = vadd.f32 %v7830, %v8014
    %v8047 = vadd.f32 %v7833, %v8017
    %v8048 = vadd.f32 %v7838, %v8022
    %v8049 = vadd.f32 %v7841, %v8025
    %v8050 = vadd.f32 %v7846, %v8030
    %v8051 = vadd.f32 %v7849, %v8033
    %s8052 = scalar_lea.vmem %s22, 192
    %v8053 = vld [vmem:[%s8052] sm:$0xf]
    %v8054 = vld [vmem:[%s8052 + $0x4] sm:$0xf]
    %v8055 = vld [vmem:[%s8052 + $0x8] sm:$0xf]
    %v8056 = vld [vmem:[%s8052 + $0xc] sm:$0xf]
    %v8057 = vld [vmem:[%s8052 + $0x10] sm:$0xf]
    %v8058 = vld [vmem:[%s8052 + $0x14] sm:$0xf]
    %v8059 = vld [vmem:[%s8052 + $0x18] sm:$0xf]
    %v8060 = vld [vmem:[%s8052 + $0x1c] sm:$0xf]
    %v8061 = vld [vmem:[%s8052 + $0x20] sm:$0xf]
    %v8062 = vld [vmem:[%s8052 + $0x24] sm:$0xf]
    %v8063 = vld [vmem:[%s8052 + $0x28] sm:$0xf]
    %v8064 = vld [vmem:[%s8052 + $0x2c] sm:$0xf]
    %v8065 = vld [vmem:[%s8052 + $0x30] sm:$0xf]
    %v8066 = vld [vmem:[%s8052 + $0x34] sm:$0xf]
    %v8067 = vld [vmem:[%s8052 + $0x38] sm:$0xf]
    %v8068 = vld [vmem:[%s8052 + $0x3c] sm:$0xf]
    %v8085 = vunpack.c.l.b16 %v8053
    %v8086 = vunpack.c.l.b16 %v8054
    %v8087 = vunpack.c.l.b16 %v8055
    %v8088 = vunpack.c.l.b16 %v8056
    %v8089 = vunpack.c.l.b16 %v8057
    %v8090 = vunpack.c.l.b16 %v8058
    %v8091 = vunpack.c.l.b16 %v8059
    %v8092 = vunpack.c.l.b16 %v8060
    %v8093 = vunpack.c.l.b16 %v8061
    %v8094 = vunpack.c.l.b16 %v8062
    %v8095 = vunpack.c.l.b16 %v8063
    %v8096 = vunpack.c.l.b16 %v8064
    %v8097 = vunpack.c.l.b16 %v8065
    %v8098 = vunpack.c.l.b16 %v8066
    %v8099 = vunpack.c.l.b16 %v8067
    %v8100 = vunpack.c.l.b16 %v8068
    %v8101 = vpack.c.b16 %v8086, %v8085
    %v8102 = vpack.c.b16 %v8088, %v8087
    %v8103 = vpack.c.b16 %v8090, %v8089
    %v8104 = vpack.c.b16 %v8092, %v8091
    %v8105 = vpack.c.b16 %v8094, %v8093
    %v8106 = vpack.c.b16 %v8096, %v8095
    %v8107 = vpack.c.b16 %v8098, %v8097
    %v8108 = vpack.c.b16 %v8100, %v8099
    %8109 = vrot.lane.b32.xlu0 %v7487, 32
    %v8110 = vpop.permute.xlu0 %8109
    %8111 = vrot.lane.b32.xlu0 %v7488, 32
    %v8112 = vpop.permute.xlu0 %8111
    %v8116 = vsel %vm1731, %v8101, 0
    %v8119 = vsel %vm1731, %v8102, 0
    %v8122 = vsel %vm1731, %v8103, 0
    %v8125 = vsel %vm1731, %v8104, 0
    %v8128 = vsel %vm1731, %v8105, 0
    %v8131 = vsel %vm1731, %v8106, 0
    %v8134 = vsel %vm1731, %v8107, 0
    %v8137 = vsel %vm1731, %v8108, 0
    %8139 = vmatprep.subr.bf16.mxu0 0
    %8140 = vmatpush1.bf16.msra.mxu0 %v8110
    %8141 = vmatprep.subr.bf16.mxu0 0
    %8142 = vmatpush1.bf16.msra.mxu0 %v8112
    %8143 = vmatprep.subr.bf16.mxu0 0
    %8144 = vmatpush1.bf16.msra.mxu0 0
    %8145 = vmatprep.subr.bf16.mxu0 0
    %8146 = vmatpush1.bf16.msra.mxu0 0
    %8147 = vmatprep.subr.bf16.mxu0 0
    %8148 = vmatpush1.bf16.msra.mxu0 0
    %8149 = vmatprep.subr.bf16.mxu0 0
    %8150 = vmatpush1.bf16.msra.mxu0 0
    %8151 = vmatprep.subr.bf16.mxu0 0
    %8152 = vmatpush1.bf16.msra.mxu0 0
    %8153 = vmatprep.subr.bf16.mxu0 0
    %8154 = vmatpush1.bf16.msra.mxu0 0
    %8155 = vmatprep.subr.bf16.mxu0 0
    %8156 = vmatpush1.bf16.msra.mxu0 0
    %8157 = vmatprep.subr.bf16.mxu0 0
    %8158 = vmatpush1.bf16.msra.mxu0 0
    %8159 = vmatprep.subr.bf16.mxu0 0
    %8160 = vmatpush1.bf16.msra.mxu0 0
    %8161 = vmatprep.subr.bf16.mxu0 0
    %8162 = vmatpush1.bf16.msra.mxu0 0
    %8163 = vmatprep.subr.bf16.mxu0 0
    %8164 = vmatpush1.bf16.msra.mxu0 0
    %8165 = vmatprep.subr.bf16.mxu0 0
    %8166 = vmatpush1.bf16.msra.mxu0 0
    %8167 = vmatprep.subr.bf16.mxu0 0
    %8168 = vmatpush1.bf16.msra.mxu0 0
    %8169 = vmatprep.subr.bf16.mxu0 0
    %8170 = vmatpush1.bf16.msra.mxu0 0
    %8171 = vmatprep.mubr.bf16.mxu0 0
    %8172 = vmatmul.mubr.bf16.gmra.mrb[0].mxu0 %v8116
    %v8173 = vpop.f32.mrb[0].mxu0
    %v8174 = vadd.f32 0.0, %v8173
    %v8175 = vpop.f32.mrb[0].mxu0
    %v8176 = vpop.f32.mrb[0].mxu0
    %v8177 = vadd.f32 0.0, %v8176
    %v8178 = vpop.f32.mrb[0].mxu0
    %8179 = vmatprep.mubr.bf16.mxu0 0
    %8180 = vmatmul.mubr.bf16.gmra.mrb[0].mxu0 %v8119
    %v8181 = vpop.f32.mrb[0].mxu0
    %v8182 = vadd.f32 0.0, %v8181
    %v8183 = vpop.f32.mrb[0].mxu0
    %v8184 = vpop.f32.mrb[0].mxu0
    %v8185 = vadd.f32 0.0, %v8184
    %v8186 = vpop.f32.mrb[0].mxu0
    %8187 = vmatprep.mubr.bf16.mxu0 0
    %8188 = vmatmul.mubr.bf16.gmra.mrb[0].mxu0 %v8122
    %v8189 = vpop.f32.mrb[0].mxu0
    %v8190 = vadd.f32 0.0, %v8189
    %v8191 = vpop.f32.mrb[0].mxu0
    %v8192 = vpop.f32.mrb[0].mxu0
    %v8193 = vadd.f32 0.0, %v8192
    %v8194 = vpop.f32.mrb[0].mxu0
    %8195 = vmatprep.mubr.bf16.mxu0 0
    %8196 = vmatmul.mubr.bf16.gmra.mrb[0].mxu0 %v8125
    %v8197 = vpop.f32.mrb[0].mxu0
    %v8198 = vadd.f32 0.0, %v8197
    %v8199 = vpop.f32.mrb[0].mxu0
    %v8200 = vpop.f32.mrb[0].mxu0
    %v8201 = vadd.f32 0.0, %v8200
    %v8202 = vpop.f32.mrb[0].mxu0
    %8203 = vmatprep.mubr.bf16.mxu0 0
    %8204 = vmatmul.mubr.bf16.gmra.mrb[0].mxu0 %v8128
    %v8205 = vpop.f32.mrb[0].mxu0
    %v8206 = vadd.f32 0.0, %v8205
    %v8207 = vpop.f32.mrb[0].mxu0
    %v8208 = vpop.f32.mrb[0].mxu0
    %v8209 = vadd.f32 0.0, %v8208
    %v8210 = vpop.f32.mrb[0].mxu0
    %8211 = vmatprep.mubr.bf16.mxu0 0
    %8212 = vmatmul.mubr.bf16.gmra.mrb[0].mxu0 %v8131
    %v8213 = vpop.f32.mrb[0].mxu0
    %v8214 = vadd.f32 0.0, %v8213
    %v8215 = vpop.f32.mrb[0].mxu0
    %v8216 = vpop.f32.mrb[0].mxu0
    %v8217 = vadd.f32 0.0, %v8216
    %v8218 = vpop.f32.mrb[0].mxu0
    %8219 = vmatprep.mubr.bf16.mxu0 0
    %8220 = vmatmul.mubr.bf16.gmra.mrb[0].mxu0 %v8134
    %v8221 = vpop.f32.mrb[0].mxu0
    %v8222 = vadd.f32 0.0, %v8221
    %v8223 = vpop.f32.mrb[0].mxu0
    %v8224 = vpop.f32.mrb[0].mxu0
    %v8225 = vadd.f32 0.0, %v8224
    %v8226 = vpop.f32.mrb[0].mxu0
    %8227 = vmatprep.mubr.bf16.mxu0 0
    %8228 = vmatmul.mubr.bf16.gmra.mrb[0].mxu0 %v8137
    %v8229 = vpop.f32.mrb[0].mxu0
    %v8230 = vadd.f32 0.0, %v8229
    %v8231 = vpop.f32.mrb[0].mxu0
    %v8232 = vpop.f32.mrb[0].mxu0
    %v8233 = vadd.f32 0.0, %v8232
    %v8234 = vpop.f32.mrb[0].mxu0
    %8235 = vdwg.mxu0
    %v8236 = vadd.f32 %v8036, %v8174
    %v8237 = vadd.f32 %v8037, %v8177
    %v8238 = vadd.f32 %v8038, %v8182
    %v8239 = vadd.f32 %v8039, %v8185
    %v8240 = vadd.f32 %v8040, %v8190
    %v8241 = vadd.f32 %v8041, %v8193
    %v8242 = vadd.f32 %v8042, %v8198
    %v8243 = vadd.f32 %v8043, %v8201
    %v8244 = vadd.f32 %v8044, %v8206
    %v8245 = vadd.f32 %v8045, %v8209
    %v8246 = vadd.f32 %v8046, %v8214
    %v8247 = vadd.f32 %v8047, %v8217
    %v8248 = vadd.f32 %v8048, %v8222
    %v8249 = vadd.f32 %v8049, %v8225
    %v8250 = vadd.f32 %v8050, %v8230
    %v8251 = vadd.f32 %v8051, %v8233
    %v8252 = vpack.c.bf16 %v8237, %v8236
    %v8253 = vpack.c.bf16 %v8239, %v8238
    %v8254 = vpack.c.bf16 %v8241, %v8240
    %v8255 = vpack.c.bf16 %v8243, %v8242
    %v8256 = vpack.c.bf16 %v8245, %v8244
    %v8257 = vpack.c.bf16 %v8247, %v8246
    %v8258 = vpack.c.bf16 %v8249, %v8248
    %v8259 = vpack.c.bf16 %v8251, %v8250
    %v8260 = vld [vmem:[%s23] sm:$0xf]
    %v8261 = vld [vmem:[%s23 + $0x4] sm:$0xf]
    %v8262 = vld [vmem:[%s23 + $0x8] sm:$0xf]
    %v8263 = vld [vmem:[%s23 + $0xc] sm:$0xf]
    %v8264 = vld [vmem:[%s23 + $0x10] sm:$0xf]
    %v8265 = vld [vmem:[%s23 + $0x14] sm:$0xf]
    %v8266 = vld [vmem:[%s23 + $0x18] sm:$0xf]
    %v8267 = vld [vmem:[%s23 + $0x1c] sm:$0xf]
    %v8268 = vld [vmem:[%s23 + $0x20] sm:$0xf]
    %v8269 = vld [vmem:[%s23 + $0x24] sm:$0xf]
    %v8270 = vld [vmem:[%s23 + $0x28] sm:$0xf]
    %v8271 = vld [vmem:[%s23 + $0x2c] sm:$0xf]
    %v8272 = vld [vmem:[%s23 + $0x30] sm:$0xf]
    %v8273 = vld [vmem:[%s23 + $0x34] sm:$0xf]
    %v8274 = vld [vmem:[%s23 + $0x38] sm:$0xf]
    %v8275 = vld [vmem:[%s23 + $0x3c] sm:$0xf]
    %v8292 = vunpack.c.l.b16 %v8260
    %v8293 = vunpack.c.l.b16 %v8261
    %v8294 = vunpack.c.l.b16 %v8262
    %v8295 = vunpack.c.l.b16 %v8263
    %v8296 = vunpack.c.l.b16 %v8264
    %v8297 = vunpack.c.l.b16 %v8265
    %v8298 = vunpack.c.l.b16 %v8266
    %v8299 = vunpack.c.l.b16 %v8267
    %v8300 = vunpack.c.l.b16 %v8268
    %v8301 = vunpack.c.l.b16 %v8269
    %v8302 = vunpack.c.l.b16 %v8270
    %v8303 = vunpack.c.l.b16 %v8271
    %v8304 = vunpack.c.l.b16 %v8272
    %v8305 = vunpack.c.l.b16 %v8273
    %v8306 = vunpack.c.l.b16 %v8274
    %v8307 = vunpack.c.l.b16 %v8275
    %v8308 = vpack.c.b16 %v8293, %v8292
    %v8309 = vpack.c.b16 %v8295, %v8294
    %v8310 = vpack.c.b16 %v8297, %v8296
    %v8311 = vpack.c.b16 %v8299, %v8298
    %v8312 = vpack.c.b16 %v8301, %v8300
    %v8313 = vpack.c.b16 %v8303, %v8302
    %v8314 = vpack.c.b16 %v8305, %v8304
    %v8315 = vpack.c.b16 %v8307, %v8306
    %8324 = vmatprep.subr.bf16.mxu0 0
    %8325 = vmatpush1.bf16.msra.mxu0 %v8252
    %8326 = vmatprep.subr.bf16.mxu0 0
    %8327 = vmatpush1.bf16.msra.mxu0 %v8253
    %8328 = vmatprep.subr.bf16.mxu0 0
    %8329 = vmatpush1.bf16.msra.mxu0 %v8254
    %8330 = vmatprep.subr.bf16.mxu0 0
    %8331 = vmatpush1.bf16.msra.mxu0 %v8255
    %8332 = vmatprep.subr.bf16.mxu0 0
    %8333 = vmatpush1.bf16.msra.mxu0 %v8256
    %8334 = vmatprep.subr.bf16.mxu0 0
    %8335 = vmatpush1.bf16.msra.mxu0 %v8257
    %8336 = vmatprep.subr.bf16.mxu0 0
    %8337 = vmatpush1.bf16.msra.mxu0 %v8258
    %8338 = vmatprep.subr.bf16.mxu0 0
    %8339 = vmatpush1.bf16.msra.mxu0 %v8259
    %8340 = vmatprep.subr.bf16.mxu0 0
    %8341 = vmatpush1.bf16.msra.mxu0 0
    %8342 = vmatprep.subr.bf16.mxu0 0
    %8343 = vmatpush1.bf16.msra.mxu0 0
    %8344 = vmatprep.subr.bf16.mxu0 0
    %8345 = vmatpush1.bf16.msra.mxu0 0
    %8346 = vmatprep.subr.bf16.mxu0 0
    %8347 = vmatpush1.bf16.msra.mxu0 0
    %8348 = vmatprep.subr.bf16.mxu0 0
    %8349 = vmatpush1.bf16.msra.mxu0 0
    %8350 = vmatprep.subr.bf16.mxu0 0
    %8351 = vmatpush1.bf16.msra.mxu0 0
    %8352 = vmatprep.subr.bf16.mxu0 0
    %8353 = vmatpush1.bf16.msra.mxu0 0
    %8354 = vmatprep.subr.bf16.mxu0 0
    %8355 = vmatpush1.bf16.msra.mxu0 0
    %8356 = vmatprep.mubr.bf16.mxu0 0
    %8357 = vmatmul.mubr.bf16.gmra.mrb[0].mxu0 %v8308
    %v8358 = vpop.f32.mrb[0].mxu0
    %v8359 = vadd.f32 0.0, %v8358
    %v8360 = vpop.f32.mrb[0].mxu0
    %v8361 = vpop.f32.mrb[0].mxu0
    %v8362 = vadd.f32 0.0, %v8361
    %v8363 = vpop.f32.mrb[0].mxu0
    %8364 = vmatprep.mubr.bf16.mxu0 0
    %8365 = vmatmul.mubr.bf16.gmra.mrb[0].mxu0 %v8309
    %v8366 = vpop.f32.mrb[0].mxu0
    %v8367 = vadd.f32 0.0, %v8366
    %v8368 = vpop.f32.mrb[0].mxu0
    %v8369 = vpop.f32.mrb[0].mxu0
    %v8370 = vadd.f32 0.0, %v8369
    %v8371 = vpop.f32.mrb[0].mxu0
    %8372 = vmatprep.mubr.bf16.mxu0 0
    %8373 = vmatmul.mubr.bf16.gmra.mrb[0].mxu0 %v8310
    %v8374 = vpop.f32.mrb[0].mxu0
    %v8375 = vadd.f32 0.0, %v8374
    %v8376 = vpop.f32.mrb[0].mxu0
    %v8377 = vpop.f32.mrb[0].mxu0
    %v8378 = vadd.f32 0.0, %v8377
    %v8379 = vpop.f32.mrb[0].mxu0
    %8380 = vmatprep.mubr.bf16.mxu0 0
    %8381 = vmatmul.mubr.bf16.gmra.mrb[0].mxu0 %v8311
    %v8382 = vpop.f32.mrb[0].mxu0
    %v8383 = vadd.f32 0.0, %v8382
    %v8384 = vpop.f32.mrb[0].mxu0
    %v8385 = vpop.f32.mrb[0].mxu0
    %v8386 = vadd.f32 0.0, %v8385
    %v8387 = vpop.f32.mrb[0].mxu0
    %8388 = vmatprep.mubr.bf16.mxu0 0
    %8389 = vmatmul.mubr.bf16.gmra.mrb[0].mxu0 %v8312
    %v8390 = vpop.f32.mrb[0].mxu0
    %v8391 = vadd.f32 0.0, %v8390
    %v8392 = vpop.f32.mrb[0].mxu0
    %v8393 = vpop.f32.mrb[0].mxu0
    %v8394 = vadd.f32 0.0, %v8393
    %v8395 = vpop.f32.mrb[0].mxu0
    %8396 = vmatprep.mubr.bf16.mxu0 0
    %8397 = vmatmul.mubr.bf16.gmra.mrb[0].mxu0 %v8313
    %v8398 = vpop.f32.mrb[0].mxu0
    %v8399 = vadd.f32 0.0, %v8398
    %v8400 = vpop.f32.mrb[0].mxu0
    %v8401 = vpop.f32.mrb[0].mxu0
    %v8402 = vadd.f32 0.0, %v8401
    %v8403 = vpop.f32.mrb[0].mxu0
    %8404 = vmatprep.mubr.bf16.mxu0 0
    %8405 = vmatmul.mubr.bf16.gmra.mrb[0].mxu0 %v8314
    %v8406 = vpop.f32.mrb[0].mxu0
    %v8407 = vadd.f32 0.0, %v8406
    %v8408 = vpop.f32.mrb[0].mxu0
    %v8409 = vpop.f32.mrb[0].mxu0
    %v8410 = vadd.f32 0.0, %v8409
    %v8411 = vpop.f32.mrb[0].mxu0
    %8412 = vmatprep.mubr.bf16.mxu0 0
    %8413 = vmatmul.mubr.bf16.gmra.mrb[0].mxu0 %v8315
    %v8414 = vpop.f32.mrb[0].mxu0
    %v8415 = vadd.f32 0.0, %v8414
    %v8416 = vpop.f32.mrb[0].mxu0
    %v8417 = vpop.f32.mrb[0].mxu0
    %v8418 = vadd.f32 0.0, %v8417
    %v8419 = vpop.f32.mrb[0].mxu0
    %8420 = vdwg.mxu0
    %s8421 = scalar_lea.vmem %s23, 64
    %v8422 = vld [vmem:[%s8421] sm:$0xf]
    %v8423 = vld [vmem:[%s8421 + $0x4] sm:$0xf]
    %v8424 = vld [vmem:[%s8421 + $0x8] sm:$0xf]
    %v8425 = vld [vmem:[%s8421 + $0xc] sm:$0xf]
    %v8426 = vld [vmem:[%s8421 + $0x10] sm:$0xf]
    %v8427 = vld [vmem:[%s8421 + $0x14] sm:$0xf]
    %v8428 = vld [vmem:[%s8421 + $0x18] sm:$0xf]
    %v8429 = vld [vmem:[%s8421 + $0x1c] sm:$0xf]
    %v8430 = vld [vmem:[%s8421 + $0x20] sm:$0xf]
    %v8431 = vld [vmem:[%s8421 + $0x24] sm:$0xf]
    %v8432 = vld [vmem:[%s8421 + $0x28] sm:$0xf]
    %v8433 = vld [vmem:[%s8421 + $0x2c] sm:$0xf]
    %v8434 = vld [vmem:[%s8421 + $0x30] sm:$0xf]
    %v8435 = vld [vmem:[%s8421 + $0x34] sm:$0xf]
    %v8436 = vld [vmem:[%s8421 + $0x38] sm:$0xf]
    %v8437 = vld [vmem:[%s8421 + $0x3c] sm:$0xf]
    %v8454 = vunpack.c.l.b16 %v8422
    %v8455 = vunpack.c.l.b16 %v8423
    %v8456 = vunpack.c.l.b16 %v8424
    %v8457 = vunpack.c.l.b16 %v8425
    %v8458 = vunpack.c.l.b16 %v8426
    %v8459 = vunpack.c.l.b16 %v8427
    %v8460 = vunpack.c.l.b16 %v8428
    %v8461 = vunpack.c.l.b16 %v8429
    %v8462 = vunpack.c.l.b16 %v8430
    %v8463 = vunpack.c.l.b16 %v8431
    %v8464 = vunpack.c.l.b16 %v8432
    %v8465 = vunpack.c.l.b16 %v8433
    %v8466 = vunpack.c.l.b16 %v8434
    %v8467 = vunpack.c.l.b16 %v8435
    %v8468 = vunpack.c.l.b16 %v8436
    %v8469 = vunpack.c.l.b16 %v8437
    %v8470 = vpack.c.b16 %v8455, %v8454
    %v8471 = vpack.c.b16 %v8457, %v8456
    %v8472 = vpack.c.b16 %v8459, %v8458
    %v8473 = vpack.c.b16 %v8461, %v8460
    %v8474 = vpack.c.b16 %v8463, %v8462
    %v8475 = vpack.c.b16 %v8465, %v8464
    %v8476 = vpack.c.b16 %v8467, %v8466
    %v8477 = vpack.c.b16 %v8469, %v8468
    %8486 = vmatprep.subr.bf16.mxu0 0
    %8487 = vmatpush1.bf16.msra.mxu0 %v8252
    %8488 = vmatprep.subr.bf16.mxu0 0
    %8489 = vmatpush1.bf16.msra.mxu0 %v8253
    %8490 = vmatprep.subr.bf16.mxu0 0
    %8491 = vmatpush1.bf16.msra.mxu0 %v8254
    %8492 = vmatprep.subr.bf16.mxu0 0
    %8493 = vmatpush1.bf16.msra.mxu0 %v8255
    %8494 = vmatprep.subr.bf16.mxu0 0
    %8495 = vmatpush1.bf16.msra.mxu0 %v8256
    %8496 = vmatprep.subr.bf16.mxu0 0
    %8497 = vmatpush1.bf16.msra.mxu0 %v8257
    %8498 = vmatprep.subr.bf16.mxu0 0
    %8499 = vmatpush1.bf16.msra.mxu0 %v8258
    %8500 = vmatprep.subr.bf16.mxu0 0
    %8501 = vmatpush1.bf16.msra.mxu0 %v8259
    %8502 = vmatprep.subr.bf16.mxu0 0
    %8503 = vmatpush1.bf16.msra.mxu0 0
    %8504 = vmatprep.subr.bf16.mxu0 0
    %8505 = vmatpush1.bf16.msra.mxu0 0
    %8506 = vmatprep.subr.bf16.mxu0 0
    %8507 = vmatpush1.bf16.msra.mxu0 0
    %8508 = vmatprep.subr.bf16.mxu0 0
    %8509 = vmatpush1.bf16.msra.mxu0 0
    %8510 = vmatprep.subr.bf16.mxu0 0
    %8511 = vmatpush1.bf16.msra.mxu0 0
    %8512 = vmatprep.subr.bf16.mxu0 0
    %8513 = vmatpush1.bf16.msra.mxu0 0
    %8514 = vmatprep.subr.bf16.mxu0 0
    %8515 = vmatpush1.bf16.msra.mxu0 0
    %8516 = vmatprep.subr.bf16.mxu0 0
    %8517 = vmatpush1.bf16.msra.mxu0 0
    %8518 = vmatprep.mubr.bf16.mxu0 0
    %8519 = vmatmul.mubr.bf16.gmra.mrb[0].mxu0 %v8470
    %v8520 = vpop.f32.mrb[0].mxu0
    %v8521 = vadd.f32 0.0, %v8520
    %v8522 = vpop.f32.mrb[0].mxu0
    %v8523 = vpop.f32.mrb[0].mxu0
    %v8524 = vadd.f32 0.0, %v8523
    %v8525 = vpop.f32.mrb[0].mxu0
    %8526 = vmatprep.mubr.bf16.mxu0 0
    %8527 = vmatmul.mubr.bf16.gmra.mrb[0].mxu0 %v8471
    %v8528 = vpop.f32.mrb[0].mxu0
    %v8529 = vadd.f32 0.0, %v8528
    %v8530 = vpop.f32.mrb[0].mxu0
    %v8531 = vpop.f32.mrb[0].mxu0
    %v8532 = vadd.f32 0.0, %v8531
    %v8533 = vpop.f32.mrb[0].mxu0
    %8534 = vmatprep.mubr.bf16.mxu0 0
    %8535 = vmatmul.mubr.bf16.gmra.mrb[0].mxu0 %v8472
    %v8536 = vpop.f32.mrb[0].mxu0
    %v8537 = vadd.f32 0.0, %v8536
    %v8538 = vpop.f32.mrb[0].mxu0
    %v8539 = vpop.f32.mrb[0].mxu0
    %v8540 = vadd.f32 0.0, %v8539
    %v8541 = vpop.f32.mrb[0].mxu0
    %8542 = vmatprep.mubr.bf16.mxu0 0
    %8543 = vmatmul.mubr.bf16.gmra.mrb[0].mxu0 %v8473
    %v8544 = vpop.f32.mrb[0].mxu0
    %v8545 = vadd.f32 0.0, %v8544
    %v8546 = vpop.f32.mrb[0].mxu0
    %v8547 = vpop.f32.mrb[0].mxu0
    %v8548 = vadd.f32 0.0, %v8547
    %v8549 = vpop.f32.mrb[0].mxu0
    %8550 = vmatprep.mubr.bf16.mxu0 0
    %8551 = vmatmul.mubr.bf16.gmra.mrb[0].mxu0 %v8474
    %v8552 = vpop.f32.mrb[0].mxu0
    %v8553 = vadd.f32 0.0, %v8552
    %v8554 = vpop.f32.mrb[0].mxu0
    %v8555 = vpop.f32.mrb[0].mxu0
    %v8556 = vadd.f32 0.0, %v8555
    %v8557 = vpop.f32.mrb[0].mxu0
    %8558 = vmatprep.mubr.bf16.mxu0 0
    %8559 = vmatmul.mubr.bf16.gmra.mrb[0].mxu0 %v8475
    %v8560 = vpop.f32.mrb[0].mxu0
    %v8561 = vadd.f32 0.0, %v8560
    %v8562 = vpop.f32.mrb[0].mxu0
    %v8563 = vpop.f32.mrb[0].mxu0
    %v8564 = vadd.f32 0.0, %v8563
    %v8565 = vpop.f32.mrb[0].mxu0
    %8566 = vmatprep.mubr.bf16.mxu0 0
    %8567 = vmatmul.mubr.bf16.gmra.mrb[0].mxu0 %v8476
    %v8568 = vpop.f32.mrb[0].mxu0
    %v8569 = vadd.f32 0.0, %v8568
    %v8570 = vpop.f32.mrb[0].mxu0
    %v8571 = vpop.f32.mrb[0].mxu0
    %v8572 = vadd.f32 0.0, %v8571
    %v8573 = vpop.f32.mrb[0].mxu0
    %8574 = vmatprep.mubr.bf16.mxu0 0
    %8575 = vmatmul.mubr.bf16.gmra.mrb[0].mxu0 %v8477
    %v8576 = vpop.f32.mrb[0].mxu0
    %v8577 = vadd.f32 0.0, %v8576
    %v8578 = vpop.f32.mrb[0].mxu0
    %v8579 = vpop.f32.mrb[0].mxu0
    %v8580 = vadd.f32 0.0, %v8579
    %v8581 = vpop.f32.mrb[0].mxu0
    %8582 = vdwg.mxu0
    %s8583 = scalar_lea.vmem %s23, 128
    %v8584 = vld [vmem:[%s8583] sm:$0xf]
    %v8585 = vld [vmem:[%s8583 + $0x4] sm:$0xf]
    %v8586 = vld [vmem:[%s8583 + $0x8] sm:$0xf]
    %v8587 = vld [vmem:[%s8583 + $0xc] sm:$0xf]
    %v8588 = vld [vmem:[%s8583 + $0x10] sm:$0xf]
    %v8589 = vld [vmem:[%s8583 + $0x14] sm:$0xf]
    %v8590 = vld [vmem:[%s8583 + $0x18] sm:$0xf]
    %v8591 = vld [vmem:[%s8583 + $0x1c] sm:$0xf]
    %v8592 = vld [vmem:[%s8583 + $0x20] sm:$0xf]
    %v8593 = vld [vmem:[%s8583 + $0x24] sm:$0xf]
    %v8594 = vld [vmem:[%s8583 + $0x28] sm:$0xf]
    %v8595 = vld [vmem:[%s8583 + $0x2c] sm:$0xf]
    %v8596 = vld [vmem:[%s8583 + $0x30] sm:$0xf]
    %v8597 = vld [vmem:[%s8583 + $0x34] sm:$0xf]
    %v8598 = vld [vmem:[%s8583 + $0x38] sm:$0xf]
    %v8599 = vld [vmem:[%s8583 + $0x3c] sm:$0xf]
    %v8616 = vunpack.c.l.b16 %v8584
    %v8617 = vunpack.c.l.b16 %v8585
    %v8618 = vunpack.c.l.b16 %v8586
    %v8619 = vunpack.c.l.b16 %v8587
    %v8620 = vunpack.c.l.b16 %v8588
    %v8621 = vunpack.c.l.b16 %v8589
    %v8622 = vunpack.c.l.b16 %v8590
    %v8623 = vunpack.c.l.b16 %v8591
    %v8624 = vunpack.c.l.b16 %v8592
    %v8625 = vunpack.c.l.b16 %v8593
    %v8626 = vunpack.c.l.b16 %v8594
    %v8627 = vunpack.c.l.b16 %v8595
    %v8628 = vunpack.c.l.b16 %v8596
    %v8629 = vunpack.c.l.b16 %v8597
    %v8630 = vunpack.c.l.b16 %v8598
    %v8631 = vunpack.c.l.b16 %v8599
    %v8632 = vpack.c.b16 %v8617, %v8616
    %v8633 = vpack.c.b16 %v8619, %v8618
    %v8634 = vpack.c.b16 %v8621, %v8620
    %v8635 = vpack.c.b16 %v8623, %v8622
    %v8636 = vpack.c.b16 %v8625, %v8624
    %v8637 = vpack.c.b16 %v8627, %v8626
    %v8638 = vpack.c.b16 %v8629, %v8628
    %v8639 = vpack.c.b16 %v8631, %v8630
    %8648 = vmatprep.subr.bf16.mxu0 0
    %8649 = vmatpush1.bf16.msra.mxu0 %v8252
    %8650 = vmatprep.subr.bf16.mxu0 0
    %8651 = vmatpush1.bf16.msra.mxu0 %v8253
    %8652 = vmatprep.subr.bf16.mxu0 0
    %8653 = vmatpush1.bf16.msra.mxu0 %v8254
    %8654 = vmatprep.subr.bf16.mxu0 0
    %8655 = vmatpush1.bf16.msra.mxu0 %v8255
    %8656 = vmatprep.subr.bf16.mxu0 0
    %8657 = vmatpush1.bf16.msra.mxu0 %v8256
    %8658 = vmatprep.subr.bf16.mxu0 0
    %8659 = vmatpush1.bf16.msra.mxu0 %v8257
    %8660 = vmatprep.subr.bf16.mxu0 0
    %8661 = vmatpush1.bf16.msra.mxu0 %v8258
    %8662 = vmatprep.subr.bf16.mxu0 0
    %8663 = vmatpush1.bf16.msra.mxu0 %v8259
    %8664 = vmatprep.subr.bf16.mxu0 0
    %8665 = vmatpush1.bf16.msra.mxu0 0
    %8666 = vmatprep.subr.bf16.mxu0 0
    %8667 = vmatpush1.bf16.msra.mxu0 0
    %8668 = vmatprep.subr.bf16.mxu0 0
    %8669 = vmatpush1.bf16.msra.mxu0 0
    %8670 = vmatprep.subr.bf16.mxu0 0
    %8671 = vmatpush1.bf16.msra.mxu0 0
    %8672 = vmatprep.subr.bf16.mxu0 0
    %8673 = vmatpush1.bf16.msra.mxu0 0
    %8674 = vmatprep.subr.bf16.mxu0 0
    %8675 = vmatpush1.bf16.msra.mxu0 0
    %8676 = vmatprep.subr.bf16.mxu0 0
    %8677 = vmatpush1.bf16.msra.mxu0 0
    %8678 = vmatprep.subr.bf16.mxu0 0
    %8679 = vmatpush1.bf16.msra.mxu0 0
    %8680 = vmatprep.mubr.bf16.mxu0 0
    %8681 = vmatmul.mubr.bf16.gmra.mrb[0].mxu0 %v8632
    %v8682 = vpop.f32.mrb[0].mxu0
    %v8683 = vadd.f32 0.0, %v8682
    %v8684 = vpop.f32.mrb[0].mxu0
    %v8685 = vpop.f32.mrb[0].mxu0
    %v8686 = vadd.f32 0.0, %v8685
    %v8687 = vpop.f32.mrb[0].mxu0
    %8688 = vmatprep.mubr.bf16.mxu0 0
    %8689 = vmatmul.mubr.bf16.gmra.mrb[0].mxu0 %v8633
    %v8690 = vpop.f32.mrb[0].mxu0
    %v8691 = vadd.f32 0.0, %v8690
    %v8692 = vpop.f32.mrb[0].mxu0
    %v8693 = vpop.f32.mrb[0].mxu0
    %v8694 = vadd.f32 0.0, %v8693
    %v8695 = vpop.f32.mrb[0].mxu0
    %8696 = vmatprep.mubr.bf16.mxu0 0
    %8697 = vmatmul.mubr.bf16.gmra.mrb[0].mxu0 %v8634
    %v8698 = vpop.f32.mrb[0].mxu0
    %v8699 = vadd.f32 0.0, %v8698
    %v8700 = vpop.f32.mrb[0].mxu0
    %v8701 = vpop.f32.mrb[0].mxu0
    %v8702 = vadd.f32 0.0, %v8701
    %v8703 = vpop.f32.mrb[0].mxu0
    %8704 = vmatprep.mubr.bf16.mxu0 0
    %8705 = vmatmul.mubr.bf16.gmra.mrb[0].mxu0 %v8635
    %v8706 = vpop.f32.mrb[0].mxu0
    %v8707 = vadd.f32 0.0, %v8706
    %v8708 = vpop.f32.mrb[0].mxu0
    %v8709 = vpop.f32.mrb[0].mxu0
    %v8710 = vadd.f32 0.0, %v8709
    %v8711 = vpop.f32.mrb[0].mxu0
    %8712 = vmatprep.mubr.bf16.mxu0 0
    %8713 = vmatmul.mubr.bf16.gmra.mrb[0].mxu0 %v8636
    %v8714 = vpop.f32.mrb[0].mxu0
    %v8715 = vadd.f32 0.0, %v8714
    %v8716 = vpop.f32.mrb[0].mxu0
    %v8717 = vpop.f32.mrb[0].mxu0
    %v8718 = vadd.f32 0.0, %v8717
    %v8719 = vpop.f32.mrb[0].mxu0
    %8720 = vmatprep.mubr.bf16.mxu0 0
    %8721 = vmatmul.mubr.bf16.gmra.mrb[0].mxu0 %v8637
    %v8722 = vpop.f32.mrb[0].mxu0
    %v8723 = vadd.f32 0.0, %v8722
    %v8724 = vpop.f32.mrb[0].mxu0
    %v8725 = vpop.f32.mrb[0].mxu0
    %v8726 = vadd.f32 0.0, %v8725
    %v8727 = vpop.f32.mrb[0].mxu0
    %8728 = vmatprep.mubr.bf16.mxu0 0
    %8729 = vmatmul.mubr.bf16.gmra.mrb[0].mxu0 %v8638
    %v8730 = vpop.f32.mrb[0].mxu0
    %v8731 = vadd.f32 0.0, %v8730
    %v8732 = vpop.f32.mrb[0].mxu0
    %v8733 = vpop.f32.mrb[0].mxu0
    %v8734 = vadd.f32 0.0, %v8733
    %v8735 = vpop.f32.mrb[0].mxu0
    %8736 = vmatprep.mubr.bf16.mxu0 0
    %8737 = vmatmul.mubr.bf16.gmra.mrb[0].mxu0 %v8639
    %v8738 = vpop.f32.mrb[0].mxu0
    %v8739 = vadd.f32 0.0, %v8738
    %v8740 = vpop.f32.mrb[0].mxu0
    %v8741 = vpop.f32.mrb[0].mxu0
    %v8742 = vadd.f32 0.0, %v8741
    %v8743 = vpop.f32.mrb[0].mxu0
    %8744 = vdwg.mxu0
    %s8745 = scalar_lea.vmem %s23, 192
    %v8746 = vld [vmem:[%s8745] sm:$0xf]
    %v8747 = vld [vmem:[%s8745 + $0x4] sm:$0xf]
    %v8748 = vld [vmem:[%s8745 + $0x8] sm:$0xf]
    %v8749 = vld [vmem:[%s8745 + $0xc] sm:$0xf]
    %v8750 = vld [vmem:[%s8745 + $0x10] sm:$0xf]
    %v8751 = vld [vmem:[%s8745 + $0x14] sm:$0xf]
    %v8752 = vld [vmem:[%s8745 + $0x18] sm:$0xf]
    %v8753 = vld [vmem:[%s8745 + $0x1c] sm:$0xf]
    %v8754 = vld [vmem:[%s8745 + $0x20] sm:$0xf]
    %v8755 = vld [vmem:[%s8745 + $0x24] sm:$0xf]
    %v8756 = vld [vmem:[%s8745 + $0x28] sm:$0xf]
    %v8757 = vld [vmem:[%s8745 + $0x2c] sm:$0xf]
    %v8758 = vld [vmem:[%s8745 + $0x30] sm:$0xf]
    %v8759 = vld [vmem:[%s8745 + $0x34] sm:$0xf]
    %v8760 = vld [vmem:[%s8745 + $0x38] sm:$0xf]
    %v8761 = vld [vmem:[%s8745 + $0x3c] sm:$0xf]
    %v8778 = vunpack.c.l.b16 %v8746
    %v8779 = vunpack.c.l.b16 %v8747
    %v8780 = vunpack.c.l.b16 %v8748
    %v8781 = vunpack.c.l.b16 %v8749
    %v8782 = vunpack.c.l.b16 %v8750
    %v8783 = vunpack.c.l.b16 %v8751
    %v8784 = vunpack.c.l.b16 %v8752
    %v8785 = vunpack.c.l.b16 %v8753
    %v8786 = vunpack.c.l.b16 %v8754
    %v8787 = vunpack.c.l.b16 %v8755
    %v8788 = vunpack.c.l.b16 %v8756
    %v8789 = vunpack.c.l.b16 %v8757
    %v8790 = vunpack.c.l.b16 %v8758
    %v8791 = vunpack.c.l.b16 %v8759
    %v8792 = vunpack.c.l.b16 %v8760
    %v8793 = vunpack.c.l.b16 %v8761
    %v8794 = vpack.c.b16 %v8779, %v8778
    %v8795 = vpack.c.b16 %v8781, %v8780
    %v8796 = vpack.c.b16 %v8783, %v8782
    %v8797 = vpack.c.b16 %v8785, %v8784
    %v8798 = vpack.c.b16 %v8787, %v8786
    %v8799 = vpack.c.b16 %v8789, %v8788
    %v8800 = vpack.c.b16 %v8791, %v8790
    %v8801 = vpack.c.b16 %v8793, %v8792
    %8810 = vmatprep.subr.bf16.mxu0 0
    %8811 = vmatpush1.bf16.msra.mxu0 %v8252
    %8812 = vmatprep.subr.bf16.mxu0 0
    %8813 = vmatpush1.bf16.msra.mxu0 %v8253
    %8814 = vmatprep.subr.bf16.mxu0 0
    %8815 = vmatpush1.bf16.msra.mxu0 %v8254
    %8816 = vmatprep.subr.bf16.mxu0 0
    %8817 = vmatpush1.bf16.msra.mxu0 %v8255
    %8818 = vmatprep.subr.bf16.mxu0 0
    %8819 = vmatpush1.bf16.msra.mxu0 %v8256
    %8820 = vmatprep.subr.bf16.mxu0 0
    %8821 = vmatpush1.bf16.msra.mxu0 %v8257
    %8822 = vmatprep.subr.bf16.mxu0 0
    %8823 = vmatpush1.bf16.msra.mxu0 %v8258
    %8824 = vmatprep.subr.bf16.mxu0 0
    %8825 = vmatpush1.bf16.msra.mxu0 %v8259
    %8826 = vmatprep.subr.bf16.mxu0 0
    %8827 = vmatpush1.bf16.msra.mxu0 0
    %8828 = vmatprep.subr.bf16.mxu0 0
    %8829 = vmatpush1.bf16.msra.mxu0 0
    %8830 = vmatprep.subr.bf16.mxu0 0
    %8831 = vmatpush1.bf16.msra.mxu0 0
    %8832 = vmatprep.subr.bf16.mxu0 0
    %8833 = vmatpush1.bf16.msra.mxu0 0
    %8834 = vmatprep.subr.bf16.mxu0 0
    %8835 = vmatpush1.bf16.msra.mxu0 0
    %8836 = vmatprep.subr.bf16.mxu0 0
    %8837 = vmatpush1.bf16.msra.mxu0 0
    %8838 = vmatprep.subr.bf16.mxu0 0
    %8839 = vmatpush1.bf16.msra.mxu0 0
    %8840 = vmatprep.subr.bf16.mxu0 0
    %8841 = vmatpush1.bf16.msra.mxu0 0
    %8842 = vmatprep.mubr.bf16.mxu0 0
    %8843 = vmatmul.mubr.bf16.gmra.mrb[0].mxu0 %v8794
    %v8844 = vpop.f32.mrb[0].mxu0
    %v8845 = vadd.f32 0.0, %v8844
    %v8846 = vpop.f32.mrb[0].mxu0
    %v8847 = vpop.f32.mrb[0].mxu0
    %v8848 = vadd.f32 0.0, %v8847
    %v8849 = vpop.f32.mrb[0].mxu0
    %8850 = vmatprep.mubr.bf16.mxu0 0
    %8851 = vmatmul.mubr.bf16.gmra.mrb[0].mxu0 %v8795
    %v8852 = vpop.f32.mrb[0].mxu0
    %v8853 = vadd.f32 0.0, %v8852
    %v8854 = vpop.f32.mrb[0].mxu0
    %v8855 = vpop.f32.mrb[0].mxu0
    %v8856 = vadd.f32 0.0, %v8855
    %v8857 = vpop.f32.mrb[0].mxu0
    %8858 = vmatprep.mubr.bf16.mxu0 0
    %8859 = vmatmul.mubr.bf16.gmra.mrb[0].mxu0 %v8796
    %v8860 = vpop.f32.mrb[0].mxu0
    %v8861 = vadd.f32 0.0, %v8860
    %v8862 = vpop.f32.mrb[0].mxu0
    %v8863 = vpop.f32.mrb[0].mxu0
    %v8864 = vadd.f32 0.0, %v8863
    %v8865 = vpop.f32.mrb[0].mxu0
    %8866 = vmatprep.mubr.bf16.mxu0 0
    %8867 = vmatmul.mubr.bf16.gmra.mrb[0].mxu0 %v8797
    %v8868 = vpop.f32.mrb[0].mxu0
    %v8869 = vadd.f32 0.0, %v8868
    %v8870 = vpop.f32.mrb[0].mxu0
    %v8871 = vpop.f32.mrb[0].mxu0
    %v8872 = vadd.f32 0.0, %v8871
    %v8873 = vpop.f32.mrb[0].mxu0
    %8874 = vmatprep.mubr.bf16.mxu0 0
    %8875 = vmatmul.mubr.bf16.gmra.mrb[0].mxu0 %v8798
    %v8876 = vpop.f32.mrb[0].mxu0
    %v8877 = vadd.f32 0.0, %v8876
    %v8878 = vpop.f32.mrb[0].mxu0
    %v8879 = vpop.f32.mrb[0].mxu0
    %v8880 = vadd.f32 0.0, %v8879
    %v8881 = vpop.f32.mrb[0].mxu0
    %8882 = vmatprep.mubr.bf16.mxu0 0
    %8883 = vmatmul.mubr.bf16.gmra.mrb[0].mxu0 %v8799
    %v8884 = vpop.f32.mrb[0].mxu0
    %v8885 = vadd.f32 0.0, %v8884
    %v8886 = vpop.f32.mrb[0].mxu0
    %v8887 = vpop.f32.mrb[0].mxu0
    %v8888 = vadd.f32 0.0, %v8887
    %v8889 = vpop.f32.mrb[0].mxu0
    %8890 = vmatprep.mubr.bf16.mxu0 0
    %8891 = vmatmul.mubr.bf16.gmra.mrb[0].mxu0 %v8800
    %v8892 = vpop.f32.mrb[0].mxu0
    %v8893 = vadd.f32 0.0, %v8892
    %v8894 = vpop.f32.mrb[0].mxu0
    %v8895 = vpop.f32.mrb[0].mxu0
    %v8896 = vadd.f32 0.0, %v8895
    %v8897 = vpop.f32.mrb[0].mxu0
    %8898 = vmatprep.mubr.bf16.mxu0 0
    %8899 = vmatmul.mubr.bf16.gmra.mrb[0].mxu0 %v8801
    %v8900 = vpop.f32.mrb[0].mxu0
    %v8901 = vadd.f32 0.0, %v8900
    %v8902 = vpop.f32.mrb[0].mxu0
    %v8903 = vpop.f32.mrb[0].mxu0
    %v8904 = vadd.f32 0.0, %v8903
    %v8905 = vpop.f32.mrb[0].mxu0
    %8906 = vdwg.mxu0
    %s8907 = scalar_lea.vmem %s23, 256
    %v8908 = vld [vmem:[%s8907] sm:$0xf]
    %v8909 = vld [vmem:[%s8907 + $0x4] sm:$0xf]
    %v8910 = vld [vmem:[%s8907 + $0x8] sm:$0xf]
    %v8911 = vld [vmem:[%s8907 + $0xc] sm:$0xf]
    %v8912 = vld [vmem:[%s8907 + $0x10] sm:$0xf]
    %v8913 = vld [vmem:[%s8907 + $0x14] sm:$0xf]
    %v8914 = vld [vmem:[%s8907 + $0x18] sm:$0xf]
    %v8915 = vld [vmem:[%s8907 + $0x1c] sm:$0xf]
    %v8916 = vld [vmem:[%s8907 + $0x20] sm:$0xf]
    %v8917 = vld [vmem:[%s8907 + $0x24] sm:$0xf]
    %v8918 = vld [vmem:[%s8907 + $0x28] sm:$0xf]
    %v8919 = vld [vmem:[%s8907 + $0x2c] sm:$0xf]
    %v8920 = vld [vmem:[%s8907 + $0x30] sm:$0xf]
    %v8921 = vld [vmem:[%s8907 + $0x34] sm:$0xf]
    %v8922 = vld [vmem:[%s8907 + $0x38] sm:$0xf]
    %v8923 = vld [vmem:[%s8907 + $0x3c] sm:$0xf]
    %v8940 = vunpack.c.l.b16 %v8908
    %v8941 = vunpack.c.l.b16 %v8909
    %v8942 = vunpack.c.l.b16 %v8910
    %v8943 = vunpack.c.l.b16 %v8911
    %v8944 = vunpack.c.l.b16 %v8912
    %v8945 = vunpack.c.l.b16 %v8913
    %v8946 = vunpack.c.l.b16 %v8914
    %v8947 = vunpack.c.l.b16 %v8915
    %v8948 = vunpack.c.l.b16 %v8916
    %v8949 = vunpack.c.l.b16 %v8917
    %v8950 = vunpack.c.l.b16 %v8918
    %v8951 = vunpack.c.l.b16 %v8919
    %v8952 = vunpack.c.l.b16 %v8920
    %v8953 = vunpack.c.l.b16 %v8921
    %v8954 = vunpack.c.l.b16 %v8922
    %v8955 = vunpack.c.l.b16 %v8923
    %v8956 = vpack.c.b16 %v8941, %v8940
    %v8957 = vpack.c.b16 %v8943, %v8942
    %v8958 = vpack.c.b16 %v8945, %v8944
    %v8959 = vpack.c.b16 %v8947, %v8946
    %v8960 = vpack.c.b16 %v8949, %v8948
    %v8961 = vpack.c.b16 %v8951, %v8950
    %v8962 = vpack.c.b16 %v8953, %v8952
    %v8963 = vpack.c.b16 %v8955, %v8954
    %8972 = vmatprep.subr.bf16.mxu0 0
    %8973 = vmatpush1.bf16.msra.mxu0 %v8252
    %8974 = vmatprep.subr.bf16.mxu0 0
    %8975 = vmatpush1.bf16.msra.mxu0 %v8253
    %8976 = vmatprep.subr.bf16.mxu0 0
    %8977 = vmatpush1.bf16.msra.mxu0 %v8254
    %8978 = vmatprep.subr.bf16.mxu0 0
    %8979 = vmatpush1.bf16.msra.mxu0 %v8255
    %8980 = vmatprep.subr.bf16.mxu0 0
    %8981 = vmatpush1.bf16.msra.mxu0 %v8256
    %8982 = vmatprep.subr.bf16.mxu0 0
    %8983 = vmatpush1.bf16.msra.mxu0 %v8257
    %8984 = vmatprep.subr.bf16.mxu0 0
    %8985 = vmatpush1.bf16.msra.mxu0 %v8258
    %8986 = vmatprep.subr.bf16.mxu0 0
    %8987 = vmatpush1.bf16.msra.mxu0 %v8259
    %8988 = vmatprep.subr.bf16.mxu0 0
    %8989 = vmatpush1.bf16.msra.mxu0 0
    %8990 = vmatprep.subr.bf16.mxu0 0
    %8991 = vmatpush1.bf16.msra.mxu0 0
    %8992 = vmatprep.subr.bf16.mxu0 0
    %8993 = vmatpush1.bf16.msra.mxu0 0
    %8994 = vmatprep.subr.bf16.mxu0 0
    %8995 = vmatpush1.bf16.msra.mxu0 0
    %8996 = vmatprep.subr.bf16.mxu0 0
    %8997 = vmatpush1.bf16.msra.mxu0 0
    %8998 = vmatprep.subr.bf16.mxu0 0
    %8999 = vmatpush1.bf16.msra.mxu0 0
    %9000 = vmatprep.subr.bf16.mxu0 0
    %9001 = vmatpush1.bf16.msra.mxu0 0
    %9002 = vmatprep.subr.bf16.mxu0 0
    %9003 = vmatpush1.bf16.msra.mxu0 0
    %9004 = vmatprep.mubr.bf16.mxu0 0
    %9005 = vmatmul.mubr.bf16.gmra.mrb[0].mxu0 %v8956
    %v9006 = vpop.f32.mrb[0].mxu0
    %v9007 = vadd.f32 0.0, %v9006
    %v9008 = vpop.f32.mrb[0].mxu0
    %v9009 = vpop.f32.mrb[0].mxu0
    %v9010 = vadd.f32 0.0, %v9009
    %v9011 = vpop.f32.mrb[0].mxu0
    %9012 = vmatprep.mubr.bf16.mxu0 0
    %9013 = vmatmul.mubr.bf16.gmra.mrb[0].mxu0 %v8957
    %v9014 = vpop.f32.mrb[0].mxu0
    %v9015 = vadd.f32 0.0, %v9014
    %v9016 = vpop.f32.mrb[0].mxu0
    %v9017 = vpop.f32.mrb[0].mxu0
    %v9018 = vadd.f32 0.0, %v9017
    %v9019 = vpop.f32.mrb[0].mxu0
    %9020 = vmatprep.mubr.bf16.mxu0 0
    %9021 = vmatmul.mubr.bf16.gmra.mrb[0].mxu0 %v8958
    %v9022 = vpop.f32.mrb[0].mxu0
    %v9023 = vadd.f32 0.0, %v9022
    %v9024 = vpop.f32.mrb[0].mxu0
    %v9025 = vpop.f32.mrb[0].mxu0
    %v9026 = vadd.f32 0.0, %v9025
    %v9027 = vpop.f32.mrb[0].mxu0
    %9028 = vmatprep.mubr.bf16.mxu0 0
    %9029 = vmatmul.mubr.bf16.gmra.mrb[0].mxu0 %v8959
    %v9030 = vpop.f32.mrb[0].mxu0
    %v9031 = vadd.f32 0.0, %v9030
    %v9032 = vpop.f32.mrb[0].mxu0
    %v9033 = vpop.f32.mrb[0].mxu0
    %v9034 = vadd.f32 0.0, %v9033
    %v9035 = vpop.f32.mrb[0].mxu0
    %9036 = vmatprep.mubr.bf16.mxu0 0
    %9037 = vmatmul.mubr.bf16.gmra.mrb[0].mxu0 %v8960
    %v9038 = vpop.f32.mrb[0].mxu0
    %v9039 = vadd.f32 0.0, %v9038
    %v9040 = vpop.f32.mrb[0].mxu0
    %v9041 = vpop.f32.mrb[0].mxu0
    %v9042 = vadd.f32 0.0, %v9041
    %v9043 = vpop.f32.mrb[0].mxu0
    %9044 = vmatprep.mubr.bf16.mxu0 0
    %9045 = vmatmul.mubr.bf16.gmra.mrb[0].mxu0 %v8961
    %v9046 = vpop.f32.mrb[0].mxu0
    %v9047 = vadd.f32 0.0, %v9046
    %v9048 = vpop.f32.mrb[0].mxu0
    %v9049 = vpop.f32.mrb[0].mxu0
    %v9050 = vadd.f32 0.0, %v9049
    %v9051 = vpop.f32.mrb[0].mxu0
    %9052 = vmatprep.mubr.bf16.mxu0 0
    %9053 = vmatmul.mubr.bf16.gmra.mrb[0].mxu0 %v8962
    %v9054 = vpop.f32.mrb[0].mxu0
    %v9055 = vadd.f32 0.0, %v9054
    %v9056 = vpop.f32.mrb[0].mxu0
    %v9057 = vpop.f32.mrb[0].mxu0
    %v9058 = vadd.f32 0.0, %v9057
    %v9059 = vpop.f32.mrb[0].mxu0
    %9060 = vmatprep.mubr.bf16.mxu0 0
    %9061 = vmatmul.mubr.bf16.gmra.mrb[0].mxu0 %v8963
    %v9062 = vpop.f32.mrb[0].mxu0
    %v9063 = vadd.f32 0.0, %v9062
    %v9064 = vpop.f32.mrb[0].mxu0
    %v9065 = vpop.f32.mrb[0].mxu0
    %v9066 = vadd.f32 0.0, %v9065
    %v9067 = vpop.f32.mrb[0].mxu0
    %9068 = vdwg.mxu0
    %s9069 = scalar_lea.vmem %s23, 320
    %v9070 = vld [vmem:[%s9069] sm:$0xf]
    %v9071 = vld [vmem:[%s9069 + $0x4] sm:$0xf]
    %v9072 = vld [vmem:[%s9069 + $0x8] sm:$0xf]
    %v9073 = vld [vmem:[%s9069 + $0xc] sm:$0xf]
    %v9074 = vld [vmem:[%s9069 + $0x10] sm:$0xf]
    %v9075 = vld [vmem:[%s9069 + $0x14] sm:$0xf]
    %v9076 = vld [vmem:[%s9069 + $0x18] sm:$0xf]
    %v9077 = vld [vmem:[%s9069 + $0x1c] sm:$0xf]
    %v9078 = vld [vmem:[%s9069 + $0x20] sm:$0xf]
    %v9079 = vld [vmem:[%s9069 + $0x24] sm:$0xf]
    %v9080 = vld [vmem:[%s9069 + $0x28] sm:$0xf]
    %v9081 = vld [vmem:[%s9069 + $0x2c] sm:$0xf]
    %v9082 = vld [vmem:[%s9069 + $0x30] sm:$0xf]
    %v9083 = vld [vmem:[%s9069 + $0x34] sm:$0xf]
    %v9084 = vld [vmem:[%s9069 + $0x38] sm:$0xf]
    %v9085 = vld [vmem:[%s9069 + $0x3c] sm:$0xf]
    %v9102 = vunpack.c.l.b16 %v9070
    %v9103 = vunpack.c.l.b16 %v9071
    %v9104 = vunpack.c.l.b16 %v9072
    %v9105 = vunpack.c.l.b16 %v9073
    %v9106 = vunpack.c.l.b16 %v9074
    %v9107 = vunpack.c.l.b16 %v9075
    %v9108 = vunpack.c.l.b16 %v9076
    %v9109 = vunpack.c.l.b16 %v9077
    %v9110 = vunpack.c.l.b16 %v9078
    %v9111 = vunpack.c.l.b16 %v9079
    %v9112 = vunpack.c.l.b16 %v9080
    %v9113 = vunpack.c.l.b16 %v9081
    %v9114 = vunpack.c.l.b16 %v9082
    %v9115 = vunpack.c.l.b16 %v9083
    %v9116 = vunpack.c.l.b16 %v9084
    %v9117 = vunpack.c.l.b16 %v9085
    %v9118 = vpack.c.b16 %v9103, %v9102
    %v9119 = vpack.c.b16 %v9105, %v9104
    %v9120 = vpack.c.b16 %v9107, %v9106
    %v9121 = vpack.c.b16 %v9109, %v9108
    %v9122 = vpack.c.b16 %v9111, %v9110
    %v9123 = vpack.c.b16 %v9113, %v9112
    %v9124 = vpack.c.b16 %v9115, %v9114
    %v9125 = vpack.c.b16 %v9117, %v9116
    %9134 = vmatprep.subr.bf16.mxu0 0
    %9135 = vmatpush1.bf16.msra.mxu0 %v8252
    %9136 = vmatprep.subr.bf16.mxu0 0
    %9137 = vmatpush1.bf16.msra.mxu0 %v8253
    %9138 = vmatprep.subr.bf16.mxu0 0
    %9139 = vmatpush1.bf16.msra.mxu0 %v8254
    %9140 = vmatprep.subr.bf16.mxu0 0
    %9141 = vmatpush1.bf16.msra.mxu0 %v8255
    %9142 = vmatprep.subr.bf16.mxu0 0
    %9143 = vmatpush1.bf16.msra.mxu0 %v8256
    %9144 = vmatprep.subr.bf16.mxu0 0
    %9145 = vmatpush1.bf16.msra.mxu0 %v8257
    %9146 = vmatprep.subr.bf16.mxu0 0
    %9147 = vmatpush1.bf16.msra.mxu0 %v8258
    %9148 = vmatprep.subr.bf16.mxu0 0
    %9149 = vmatpush1.bf16.msra.mxu0 %v8259
    %9150 = vmatprep.subr.bf16.mxu0 0
    %9151 = vmatpush1.bf16.msra.mxu0 0
    %9152 = vmatprep.subr.bf16.mxu0 0
    %9153 = vmatpush1.bf16.msra.mxu0 0
    %9154 = vmatprep.subr.bf16.mxu0 0
    %9155 = vmatpush1.bf16.msra.mxu0 0
    %9156 = vmatprep.subr.bf16.mxu0 0
    %9157 = vmatpush1.bf16.msra.mxu0 0
    %9158 = vmatprep.subr.bf16.mxu0 0
    %9159 = vmatpush1.bf16.msra.mxu0 0
    %9160 = vmatprep.subr.bf16.mxu0 0
    %9161 = vmatpush1.bf16.msra.mxu0 0
    %9162 = vmatprep.subr.bf16.mxu0 0
    %9163 = vmatpush1.bf16.msra.mxu0 0
    %9164 = vmatprep.subr.bf16.mxu0 0
    %9165 = vmatpush1.bf16.msra.mxu0 0
    %9166 = vmatprep.mubr.bf16.mxu0 0
    %9167 = vmatmul.mubr.bf16.gmra.mrb[0].mxu0 %v9118
    %v9168 = vpop.f32.mrb[0].mxu0
    %v9169 = vadd.f32 0.0, %v9168
    %v9170 = vpop.f32.mrb[0].mxu0
    %v9171 = vpop.f32.mrb[0].mxu0
    %v9172 = vadd.f32 0.0, %v9171
    %v9173 = vpop.f32.mrb[0].mxu0
    %9174 = vmatprep.mubr.bf16.mxu0 0
    %9175 = vmatmul.mubr.bf16.gmra.mrb[0].mxu0 %v9119
    %v9176 = vpop.f32.mrb[0].mxu0
    %v9177 = vadd.f32 0.0, %v9176
    %v9178 = vpop.f32.mrb[0].mxu0
    %v9179 = vpop.f32.mrb[0].mxu0
    %v9180 = vadd.f32 0.0, %v9179
    %v9181 = vpop.f32.mrb[0].mxu0
    %9182 = vmatprep.mubr.bf16.mxu0 0
    %9183 = vmatmul.mubr.bf16.gmra.mrb[0].mxu0 %v9120
    %v9184 = vpop.f32.mrb[0].mxu0
    %v9185 = vadd.f32 0.0, %v9184
    %v9186 = vpop.f32.mrb[0].mxu0
    %v9187 = vpop.f32.mrb[0].mxu0
    %v9188 = vadd.f32 0.0, %v9187
    %v9189 = vpop.f32.mrb[0].mxu0
    %9190 = vmatprep.mubr.bf16.mxu0 0
    %9191 = vmatmul.mubr.bf16.gmra.mrb[0].mxu0 %v9121
    %v9192 = vpop.f32.mrb[0].mxu0
    %v9193 = vadd.f32 0.0, %v9192
    %v9194 = vpop.f32.mrb[0].mxu0
    %v9195 = vpop.f32.mrb[0].mxu0
    %v9196 = vadd.f32 0.0, %v9195
    %v9197 = vpop.f32.mrb[0].mxu0
    %9198 = vmatprep.mubr.bf16.mxu0 0
    %9199 = vmatmul.mubr.bf16.gmra.mrb[0].mxu0 %v9122
    %v9200 = vpop.f32.mrb[0].mxu0
    %v9201 = vadd.f32 0.0, %v9200
    %v9202 = vpop.f32.mrb[0].mxu0
    %v9203 = vpop.f32.mrb[0].mxu0
    %v9204 = vadd.f32 0.0, %v9203
    %v9205 = vpop.f32.mrb[0].mxu0
    %9206 = vmatprep.mubr.bf16.mxu0 0
    %9207 = vmatmul.mubr.bf16.gmra.mrb[0].mxu0 %v9123
    %v9208 = vpop.f32.mrb[0].mxu0
    %v9209 = vadd.f32 0.0, %v9208
    %v9210 = vpop.f32.mrb[0].mxu0
    %v9211 = vpop.f32.mrb[0].mxu0
    %v9212 = vadd.f32 0.0, %v9211
    %v9213 = vpop.f32.mrb[0].mxu0
    %9214 = vmatprep.mubr.bf16.mxu0 0
    %9215 = vmatmul.mubr.bf16.gmra.mrb[0].mxu0 %v9124
    %v9216 = vpop.f32.mrb[0].mxu0
    %v9217 = vadd.f32 0.0, %v9216
    %v9218 = vpop.f32.mrb[0].mxu0
    %v9219 = vpop.f32.mrb[0].mxu0
    %v9220 = vadd.f32 0.0, %v9219
    %v9221 = vpop.f32.mrb[0].mxu0
    %9222 = vmatprep.mubr.bf16.mxu0 0
    %9223 = vmatmul.mubr.bf16.gmra.mrb[0].mxu0 %v9125
    %v9224 = vpop.f32.mrb[0].mxu0
    %v9225 = vadd.f32 0.0, %v9224
    %v9226 = vpop.f32.mrb[0].mxu0
    %v9227 = vpop.f32.mrb[0].mxu0
    %v9228 = vadd.f32 0.0, %v9227
    %v9229 = vpop.f32.mrb[0].mxu0
    %9230 = vdwg.mxu0
    %s9231 = scalar_lea.vmem %s23, 384
    %v9232 = vld [vmem:[%s9231] sm:$0xf]
    %v9233 = vld [vmem:[%s9231 + $0x4] sm:$0xf]
    %v9234 = vld [vmem:[%s9231 + $0x8] sm:$0xf]
    %v9235 = vld [vmem:[%s9231 + $0xc] sm:$0xf]
    %v9236 = vld [vmem:[%s9231 + $0x10] sm:$0xf]
    %v9237 = vld [vmem:[%s9231 + $0x14] sm:$0xf]
    %v9238 = vld [vmem:[%s9231 + $0x18] sm:$0xf]
    %v9239 = vld [vmem:[%s9231 + $0x1c] sm:$0xf]
    %v9240 = vld [vmem:[%s9231 + $0x20] sm:$0xf]
    %v9241 = vld [vmem:[%s9231 + $0x24] sm:$0xf]
    %v9242 = vld [vmem:[%s9231 + $0x28] sm:$0xf]
    %v9243 = vld [vmem:[%s9231 + $0x2c] sm:$0xf]
    %v9244 = vld [vmem:[%s9231 + $0x30] sm:$0xf]
    %v9245 = vld [vmem:[%s9231 + $0x34] sm:$0xf]
    %v9246 = vld [vmem:[%s9231 + $0x38] sm:$0xf]
    %v9247 = vld [vmem:[%s9231 + $0x3c] sm:$0xf]
    %v9264 = vunpack.c.l.b16 %v9232
    %v9265 = vunpack.c.l.b16 %v9233
    %v9266 = vunpack.c.l.b16 %v9234
    %v9267 = vunpack.c.l.b16 %v9235
    %v9268 = vunpack.c.l.b16 %v9236
    %v9269 = vunpack.c.l.b16 %v9237
    %v9270 = vunpack.c.l.b16 %v9238
    %v9271 = vunpack.c.l.b16 %v9239
    %v9272 = vunpack.c.l.b16 %v9240
    %v9273 = vunpack.c.l.b16 %v9241
    %v9274 = vunpack.c.l.b16 %v9242
    %v9275 = vunpack.c.l.b16 %v9243
    %v9276 = vunpack.c.l.b16 %v9244
    %v9277 = vunpack.c.l.b16 %v9245
    %v9278 = vunpack.c.l.b16 %v9246
    %v9279 = vunpack.c.l.b16 %v9247
    %v9280 = vpack.c.b16 %v9265, %v9264
    %v9281 = vpack.c.b16 %v9267, %v9266
    %v9282 = vpack.c.b16 %v9269, %v9268
    %v9283 = vpack.c.b16 %v9271, %v9270
    %v9284 = vpack.c.b16 %v9273, %v9272
    %v9285 = vpack.c.b16 %v9275, %v9274
    %v9286 = vpack.c.b16 %v9277, %v9276
    %v9287 = vpack.c.b16 %v9279, %v9278
    %9296 = vmatprep.subr.bf16.mxu0 0
    %9297 = vmatpush1.bf16.msra.mxu0 %v8252
    %9298 = vmatprep.subr.bf16.mxu0 0
    %9299 = vmatpush1.bf16.msra.mxu0 %v8253
    %9300 = vmatprep.subr.bf16.mxu0 0
    %9301 = vmatpush1.bf16.msra.mxu0 %v8254
    %9302 = vmatprep.subr.bf16.mxu0 0
    %9303 = vmatpush1.bf16.msra.mxu0 %v8255
    %9304 = vmatprep.subr.bf16.mxu0 0
    %9305 = vmatpush1.bf16.msra.mxu0 %v8256
    %9306 = vmatprep.subr.bf16.mxu0 0
    %9307 = vmatpush1.bf16.msra.mxu0 %v8257
    %9308 = vmatprep.subr.bf16.mxu0 0
    %9309 = vmatpush1.bf16.msra.mxu0 %v8258
    %9310 = vmatprep.subr.bf16.mxu0 0
    %9311 = vmatpush1.bf16.msra.mxu0 %v8259
    %9312 = vmatprep.subr.bf16.mxu0 0
    %9313 = vmatpush1.bf16.msra.mxu0 0
    %9314 = vmatprep.subr.bf16.mxu0 0
    %9315 = vmatpush1.bf16.msra.mxu0 0
    %9316 = vmatprep.subr.bf16.mxu0 0
    %9317 = vmatpush1.bf16.msra.mxu0 0
    %9318 = vmatprep.subr.bf16.mxu0 0
    %9319 = vmatpush1.bf16.msra.mxu0 0
    %9320 = vmatprep.subr.bf16.mxu0 0
    %9321 = vmatpush1.bf16.msra.mxu0 0
    %9322 = vmatprep.subr.bf16.mxu0 0
    %9323 = vmatpush1.bf16.msra.mxu0 0
    %9324 = vmatprep.subr.bf16.mxu0 0
    %9325 = vmatpush1.bf16.msra.mxu0 0
    %9326 = vmatprep.subr.bf16.mxu0 0
    %9327 = vmatpush1.bf16.msra.mxu0 0
    %9328 = vmatprep.mubr.bf16.mxu0 0
    %9329 = vmatmul.mubr.bf16.gmra.mrb[0].mxu0 %v9280
    %v9330 = vpop.f32.mrb[0].mxu0
    %v9331 = vadd.f32 0.0, %v9330
    %v9332 = vpop.f32.mrb[0].mxu0
    %v9333 = vpop.f32.mrb[0].mxu0
    %v9334 = vadd.f32 0.0, %v9333
    %v9335 = vpop.f32.mrb[0].mxu0
    %9336 = vmatprep.mubr.bf16.mxu0 0
    %9337 = vmatmul.mubr.bf16.gmra.mrb[0].mxu0 %v9281
    %v9338 = vpop.f32.mrb[0].mxu0
    %v9339 = vadd.f32 0.0, %v9338
    %v9340 = vpop.f32.mrb[0].mxu0
    %v9341 = vpop.f32.mrb[0].mxu0
    %v9342 = vadd.f32 0.0, %v9341
    %v9343 = vpop.f32.mrb[0].mxu0
    %9344 = vmatprep.mubr.bf16.mxu0 0
    %9345 = vmatmul.mubr.bf16.gmra.mrb[0].mxu0 %v9282
    %v9346 = vpop.f32.mrb[0].mxu0
    %v9347 = vadd.f32 0.0, %v9346
    %v9348 = vpop.f32.mrb[0].mxu0
    %v9349 = vpop.f32.mrb[0].mxu0
    %v9350 = vadd.f32 0.0, %v9349
    %v9351 = vpop.f32.mrb[0].mxu0
    %9352 = vmatprep.mubr.bf16.mxu0 0
    %9353 = vmatmul.mubr.bf16.gmra.mrb[0].mxu0 %v9283
    %v9354 = vpop.f32.mrb[0].mxu0
    %v9355 = vadd.f32 0.0, %v9354
    %v9356 = vpop.f32.mrb[0].mxu0
    %v9357 = vpop.f32.mrb[0].mxu0
    %v9358 = vadd.f32 0.0, %v9357
    %v9359 = vpop.f32.mrb[0].mxu0
    %9360 = vmatprep.mubr.bf16.mxu0 0
    %9361 = vmatmul.mubr.bf16.gmra.mrb[0].mxu0 %v9284
    %v9362 = vpop.f32.mrb[0].mxu0
    %v9363 = vadd.f32 0.0, %v9362
    %v9364 = vpop.f32.mrb[0].mxu0
    %v9365 = vpop.f32.mrb[0].mxu0
    %v9366 = vadd.f32 0.0, %v9365
    %v9367 = vpop.f32.mrb[0].mxu0
    %9368 = vmatprep.mubr.bf16.mxu0 0
    %9369 = vmatmul.mubr.bf16.gmra.mrb[0].mxu0 %v9285
    %v9370 = vpop.f32.mrb[0].mxu0
    %v9371 = vadd.f32 0.0, %v9370
    %v9372 = vpop.f32.mrb[0].mxu0
    %v9373 = vpop.f32.mrb[0].mxu0
    %v9374 = vadd.f32 0.0, %v9373
    %v9375 = vpop.f32.mrb[0].mxu0
    %9376 = vmatprep.mubr.bf16.mxu0 0
    %9377 = vmatmul.mubr.bf16.gmra.mrb[0].mxu0 %v9286
    %v9378 = vpop.f32.mrb[0].mxu0
    %v9379 = vadd.f32 0.0, %v9378
    %v9380 = vpop.f32.mrb[0].mxu0
    %v9381 = vpop.f32.mrb[0].mxu0
    %v9382 = vadd.f32 0.0, %v9381
    %v9383 = vpop.f32.mrb[0].mxu0
    %9384 = vmatprep.mubr.bf16.mxu0 0
    %9385 = vmatmul.mubr.bf16.gmra.mrb[0].mxu0 %v9287
    %v9386 = vpop.f32.mrb[0].mxu0
    %v9387 = vadd.f32 0.0, %v9386
    %v9388 = vpop.f32.mrb[0].mxu0
    %v9389 = vpop.f32.mrb[0].mxu0
    %v9390 = vadd.f32 0.0, %v9389
    %v9391 = vpop.f32.mrb[0].mxu0
    %9392 = vdwg.mxu0
    %s9393 = scalar_lea.vmem %s23, 448
    %v9394 = vld [vmem:[%s9393] sm:$0xf]
    %v9395 = vld [vmem:[%s9393 + $0x4] sm:$0xf]
    %v9396 = vld [vmem:[%s9393 + $0x8] sm:$0xf]
    %v9397 = vld [vmem:[%s9393 + $0xc] sm:$0xf]
    %v9398 = vld [vmem:[%s9393 + $0x10] sm:$0xf]
    %v9399 = vld [vmem:[%s9393 + $0x14] sm:$0xf]
    %v9400 = vld [vmem:[%s9393 + $0x18] sm:$0xf]
    %v9401 = vld [vmem:[%s9393 + $0x1c] sm:$0xf]
    %v9402 = vld [vmem:[%s9393 + $0x20] sm:$0xf]
    %v9403 = vld [vmem:[%s9393 + $0x24] sm:$0xf]
    %v9404 = vld [vmem:[%s9393 + $0x28] sm:$0xf]
    %v9405 = vld [vmem:[%s9393 + $0x2c] sm:$0xf]
    %v9406 = vld [vmem:[%s9393 + $0x30] sm:$0xf]
    %v9407 = vld [vmem:[%s9393 + $0x34] sm:$0xf]
    %v9408 = vld [vmem:[%s9393 + $0x38] sm:$0xf]
    %v9409 = vld [vmem:[%s9393 + $0x3c] sm:$0xf]
    %v9426 = vunpack.c.l.b16 %v9394
    %v9427 = vunpack.c.l.b16 %v9395
    %v9428 = vunpack.c.l.b16 %v9396
    %v9429 = vunpack.c.l.b16 %v9397
    %v9430 = vunpack.c.l.b16 %v9398
    %v9431 = vunpack.c.l.b16 %v9399
    %v9432 = vunpack.c.l.b16 %v9400
    %v9433 = vunpack.c.l.b16 %v9401
    %v9434 = vunpack.c.l.b16 %v9402
    %v9435 = vunpack.c.l.b16 %v9403
    %v9436 = vunpack.c.l.b16 %v9404
    %v9437 = vunpack.c.l.b16 %v9405
    %v9438 = vunpack.c.l.b16 %v9406
    %v9439 = vunpack.c.l.b16 %v9407
    %v9440 = vunpack.c.l.b16 %v9408
    %v9441 = vunpack.c.l.b16 %v9409
    %v9442 = vpack.c.b16 %v9427, %v9426
    %v9443 = vpack.c.b16 %v9429, %v9428
    %v9444 = vpack.c.b16 %v9431, %v9430
    %v9445 = vpack.c.b16 %v9433, %v9432
    %v9446 = vpack.c.b16 %v9435, %v9434
    %v9447 = vpack.c.b16 %v9437, %v9436
    %v9448 = vpack.c.b16 %v9439, %v9438
    %v9449 = vpack.c.b16 %v9441, %v9440
    %9458 = vmatprep.subr.bf16.mxu0 0
    %9459 = vmatpush1.bf16.msra.mxu0 %v8252
    %9460 = vmatprep.subr.bf16.mxu0 0
    %9461 = vmatpush1.bf16.msra.mxu0 %v8253
    %9462 = vmatprep.subr.bf16.mxu0 0
    %9463 = vmatpush1.bf16.msra.mxu0 %v8254
    %9464 = vmatprep.subr.bf16.mxu0 0
    %9465 = vmatpush1.bf16.msra.mxu0 %v8255
    %9466 = vmatprep.subr.bf16.mxu0 0
    %9467 = vmatpush1.bf16.msra.mxu0 %v8256
    %9468 = vmatprep.subr.bf16.mxu0 0
    %9469 = vmatpush1.bf16.msra.mxu0 %v8257
    %9470 = vmatprep.subr.bf16.mxu0 0
    %9471 = vmatpush1.bf16.msra.mxu0 %v8258
    %9472 = vmatprep.subr.bf16.mxu0 0
    %9473 = vmatpush1.bf16.msra.mxu0 %v8259
    %9474 = vmatprep.subr.bf16.mxu0 0
    %9475 = vmatpush1.bf16.msra.mxu0 0
    %9476 = vmatprep.subr.bf16.mxu0 0
    %9477 = vmatpush1.bf16.msra.mxu0 0
    %9478 = vmatprep.subr.bf16.mxu0 0
    %9479 = vmatpush1.bf16.msra.mxu0 0
    %9480 = vmatprep.subr.bf16.mxu0 0
    %9481 = vmatpush1.bf16.msra.mxu0 0
    %9482 = vmatprep.subr.bf16.mxu0 0
    %9483 = vmatpush1.bf16.msra.mxu0 0
    %9484 = vmatprep.subr.bf16.mxu0 0
    %9485 = vmatpush1.bf16.msra.mxu0 0
    %9486 = vmatprep.subr.bf16.mxu0 0
    %9487 = vmatpush1.bf16.msra.mxu0 0
    %9488 = vmatprep.subr.bf16.mxu0 0
    %9489 = vmatpush1.bf16.msra.mxu0 0
    %9490 = vmatprep.mubr.bf16.mxu0 0
    %9491 = vmatmul.mubr.bf16.gmra.mrb[0].mxu0 %v9442
    %v9492 = vpop.f32.mrb[0].mxu0
    %v9493 = vadd.f32 0.0, %v9492
    %v9494 = vpop.f32.mrb[0].mxu0
    %v9495 = vpop.f32.mrb[0].mxu0
    %v9496 = vadd.f32 0.0, %v9495
    %v9497 = vpop.f32.mrb[0].mxu0
    %9498 = vmatprep.mubr.bf16.mxu0 0
    %9499 = vmatmul.mubr.bf16.gmra.mrb[0].mxu0 %v9443
    %v9500 = vpop.f32.mrb[0].mxu0
    %v9501 = vadd.f32 0.0, %v9500
    %v9502 = vpop.f32.mrb[0].mxu0
    %v9503 = vpop.f32.mrb[0].mxu0
    %v9504 = vadd.f32 0.0, %v9503
    %v9505 = vpop.f32.mrb[0].mxu0
    %9506 = vmatprep.mubr.bf16.mxu0 0
    %9507 = vmatmul.mubr.bf16.gmra.mrb[0].mxu0 %v9444
    %v9508 = vpop.f32.mrb[0].mxu0
    %v9509 = vadd.f32 0.0, %v9508
    %v9510 = vpop.f32.mrb[0].mxu0
    %v9511 = vpop.f32.mrb[0].mxu0
    %v9512 = vadd.f32 0.0, %v9511
    %v9513 = vpop.f32.mrb[0].mxu0
    %9514 = vmatprep.mubr.bf16.mxu0 0
    %9515 = vmatmul.mubr.bf16.gmra.mrb[0].mxu0 %v9445
    %v9516 = vpop.f32.mrb[0].mxu0
    %v9517 = vadd.f32 0.0, %v9516
    %v9518 = vpop.f32.mrb[0].mxu0
    %v9519 = vpop.f32.mrb[0].mxu0
    %v9520 = vadd.f32 0.0, %v9519
    %v9521 = vpop.f32.mrb[0].mxu0
    %9522 = vmatprep.mubr.bf16.mxu0 0
    %9523 = vmatmul.mubr.bf16.gmra.mrb[0].mxu0 %v9446
    %v9524 = vpop.f32.mrb[0].mxu0
    %v9525 = vadd.f32 0.0, %v9524
    %v9526 = vpop.f32.mrb[0].mxu0
    %v9527 = vpop.f32.mrb[0].mxu0
    %v9528 = vadd.f32 0.0, %v9527
    %v9529 = vpop.f32.mrb[0].mxu0
    %9530 = vmatprep.mubr.bf16.mxu0 0
    %9531 = vmatmul.mubr.bf16.gmra.mrb[0].mxu0 %v9447
    %v9532 = vpop.f32.mrb[0].mxu0
    %v9533 = vadd.f32 0.0, %v9532
    %v9534 = vpop.f32.mrb[0].mxu0
    %v9535 = vpop.f32.mrb[0].mxu0
    %v9536 = vadd.f32 0.0, %v9535
    %v9537 = vpop.f32.mrb[0].mxu0
    %9538 = vmatprep.mubr.bf16.mxu0 0
    %9539 = vmatmul.mubr.bf16.gmra.mrb[0].mxu0 %v9448
    %v9540 = vpop.f32.mrb[0].mxu0
    %v9541 = vadd.f32 0.0, %v9540
    %v9542 = vpop.f32.mrb[0].mxu0
    %v9543 = vpop.f32.mrb[0].mxu0
    %v9544 = vadd.f32 0.0, %v9543
    %v9545 = vpop.f32.mrb[0].mxu0
    %9546 = vmatprep.mubr.bf16.mxu0 0
    %9547 = vmatmul.mubr.bf16.gmra.mrb[0].mxu0 %v9449
    %v9548 = vpop.f32.mrb[0].mxu0
    %v9549 = vadd.f32 0.0, %v9548
    %v9550 = vpop.f32.mrb[0].mxu0
    %v9551 = vpop.f32.mrb[0].mxu0
    %v9552 = vadd.f32 0.0, %v9551
    %v9553 = vpop.f32.mrb[0].mxu0
    %9554 = vdwg.mxu0
    %s9555 = scalar_lea.vmem %s23, 512
    %v9556 = vld [vmem:[%s9555] sm:$0xf]
    %v9557 = vld [vmem:[%s9555 + $0x4] sm:$0xf]
    %v9558 = vld [vmem:[%s9555 + $0x8] sm:$0xf]
    %v9559 = vld [vmem:[%s9555 + $0xc] sm:$0xf]
    %v9560 = vld [vmem:[%s9555 + $0x10] sm:$0xf]
    %v9561 = vld [vmem:[%s9555 + $0x14] sm:$0xf]
    %v9562 = vld [vmem:[%s9555 + $0x18] sm:$0xf]
    %v9563 = vld [vmem:[%s9555 + $0x1c] sm:$0xf]
    %v9564 = vld [vmem:[%s9555 + $0x20] sm:$0xf]
    %v9565 = vld [vmem:[%s9555 + $0x24] sm:$0xf]
    %v9566 = vld [vmem:[%s9555 + $0x28] sm:$0xf]
    %v9567 = vld [vmem:[%s9555 + $0x2c] sm:$0xf]
    %v9568 = vld [vmem:[%s9555 + $0x30] sm:$0xf]
    %v9569 = vld [vmem:[%s9555 + $0x34] sm:$0xf]
    %v9570 = vld [vmem:[%s9555 + $0x38] sm:$0xf]
    %v9571 = vld [vmem:[%s9555 + $0x3c] sm:$0xf]
    %v9588 = vunpack.c.l.b16 %v9556
    %v9589 = vunpack.c.l.b16 %v9557
    %v9590 = vunpack.c.l.b16 %v9558
    %v9591 = vunpack.c.l.b16 %v9559
    %v9592 = vunpack.c.l.b16 %v9560
    %v9593 = vunpack.c.l.b16 %v9561
    %v9594 = vunpack.c.l.b16 %v9562
    %v9595 = vunpack.c.l.b16 %v9563
    %v9596 = vunpack.c.l.b16 %v9564
    %v9597 = vunpack.c.l.b16 %v9565
    %v9598 = vunpack.c.l.b16 %v9566
    %v9599 = vunpack.c.l.b16 %v9567
    %v9600 = vunpack.c.l.b16 %v9568
    %v9601 = vunpack.c.l.b16 %v9569
    %v9602 = vunpack.c.l.b16 %v9570
    %v9603 = vunpack.c.l.b16 %v9571
    %v9604 = vpack.c.b16 %v9589, %v9588
    %v9605 = vpack.c.b16 %v9591, %v9590
    %v9606 = vpack.c.b16 %v9593, %v9592
    %v9607 = vpack.c.b16 %v9595, %v9594
    %v9608 = vpack.c.b16 %v9597, %v9596
    %v9609 = vpack.c.b16 %v9599, %v9598
    %v9610 = vpack.c.b16 %v9601, %v9600
    %v9611 = vpack.c.b16 %v9603, %v9602
    %9620 = vmatprep.subr.bf16.mxu0 0
    %9621 = vmatpush1.bf16.msra.mxu0 %v8252
    %9622 = vmatprep.subr.bf16.mxu0 0
    %9623 = vmatpush1.bf16.msra.mxu0 %v8253
    %9624 = vmatprep.subr.bf16.mxu0 0
    %9625 = vmatpush1.bf16.msra.mxu0 %v8254
    %9626 = vmatprep.subr.bf16.mxu0 0
    %9627 = vmatpush1.bf16.msra.mxu0 %v8255
    %9628 = vmatprep.subr.bf16.mxu0 0
    %9629 = vmatpush1.bf16.msra.mxu0 %v8256
    %9630 = vmatprep.subr.bf16.mxu0 0
    %9631 = vmatpush1.bf16.msra.mxu0 %v8257
    %9632 = vmatprep.subr.bf16.mxu0 0
    %9633 = vmatpush1.bf16.msra.mxu0 %v8258
    %9634 = vmatprep.subr.bf16.mxu0 0
    %9635 = vmatpush1.bf16.msra.mxu0 %v8259
    %9636 = vmatprep.subr.bf16.mxu0 0
    %9637 = vmatpush1.bf16.msra.mxu0 0
    %9638 = vmatprep.subr.bf16.mxu0 0
    %9639 = vmatpush1.bf16.msra.mxu0 0
    %9640 = vmatprep.subr.bf16.mxu0 0
    %9641 = vmatpush1.bf16.msra.mxu0 0
    %9642 = vmatprep.subr.bf16.mxu0 0
    %9643 = vmatpush1.bf16.msra.mxu0 0
    %9644 = vmatprep.subr.bf16.mxu0 0
    %9645 = vmatpush1.bf16.msra.mxu0 0
    %9646 = vmatprep.subr.bf16.mxu0 0
    %9647 = vmatpush1.bf16.msra.mxu0 0
    %9648 = vmatprep.subr.bf16.mxu0 0
    %9649 = vmatpush1.bf16.msra.mxu0 0
    %9650 = vmatprep.subr.bf16.mxu0 0
    %9651 = vmatpush1.bf16.msra.mxu0 0
    %9652 = vmatprep.mubr.bf16.mxu0 0
    %9653 = vmatmul.mubr.bf16.gmra.mrb[0].mxu0 %v9604
    %v9654 = vpop.f32.mrb[0].mxu0
    %v9655 = vadd.f32 0.0, %v9654
    %v9656 = vpop.f32.mrb[0].mxu0
    %v9657 = vpop.f32.mrb[0].mxu0
    %v9658 = vadd.f32 0.0, %v9657
    %v9659 = vpop.f32.mrb[0].mxu0
    %9660 = vmatprep.mubr.bf16.mxu0 0
    %9661 = vmatmul.mubr.bf16.gmra.mrb[0].mxu0 %v9605
    %v9662 = vpop.f32.mrb[0].mxu0
    %v9663 = vadd.f32 0.0, %v9662
    %v9664 = vpop.f32.mrb[0].mxu0
    %v9665 = vpop.f32.mrb[0].mxu0
    %v9666 = vadd.f32 0.0, %v9665
    %v9667 = vpop.f32.mrb[0].mxu0
    %9668 = vmatprep.mubr.bf16.mxu0 0
    %9669 = vmatmul.mubr.bf16.gmra.mrb[0].mxu0 %v9606
    %v9670 = vpop.f32.mrb[0].mxu0
    %v9671 = vadd.f32 0.0, %v9670
    %v9672 = vpop.f32.mrb[0].mxu0
    %v9673 = vpop.f32.mrb[0].mxu0
    %v9674 = vadd.f32 0.0, %v9673
    %v9675 = vpop.f32.mrb[0].mxu0
    %9676 = vmatprep.mubr.bf16.mxu0 0
    %9677 = vmatmul.mubr.bf16.gmra.mrb[0].mxu0 %v9607
    %v9678 = vpop.f32.mrb[0].mxu0
    %v9679 = vadd.f32 0.0, %v9678
    %v9680 = vpop.f32.mrb[0].mxu0
    %v9681 = vpop.f32.mrb[0].mxu0
    %v9682 = vadd.f32 0.0, %v9681
    %v9683 = vpop.f32.mrb[0].mxu0
    %9684 = vmatprep.mubr.bf16.mxu0 0
    %9685 = vmatmul.mubr.bf16.gmra.mrb[0].mxu0 %v9608
    %v9686 = vpop.f32.mrb[0].mxu0
    %v9687 = vadd.f32 0.0, %v9686
    %v9688 = vpop.f32.mrb[0].mxu0
    %v9689 = vpop.f32.mrb[0].mxu0
    %v9690 = vadd.f32 0.0, %v9689
    %v9691 = vpop.f32.mrb[0].mxu0
    %9692 = vmatprep.mubr.bf16.mxu0 0
    %9693 = vmatmul.mubr.bf16.gmra.mrb[0].mxu0 %v9609
    %v9694 = vpop.f32.mrb[0].mxu0
    %v9695 = vadd.f32 0.0, %v9694
    %v9696 = vpop.f32.mrb[0].mxu0
    %v9697 = vpop.f32.mrb[0].mxu0
    %v9698 = vadd.f32 0.0, %v9697
    %v9699 = vpop.f32.mrb[0].mxu0
    %9700 = vmatprep.mubr.bf16.mxu0 0
    %9701 = vmatmul.mubr.bf16.gmra.mrb[0].mxu0 %v9610
    %v9702 = vpop.f32.mrb[0].mxu0
    %v9703 = vadd.f32 0.0, %v9702
    %v9704 = vpop.f32.mrb[0].mxu0
    %v9705 = vpop.f32.mrb[0].mxu0
    %v9706 = vadd.f32 0.0, %v9705
    %v9707 = vpop.f32.mrb[0].mxu0
    %9708 = vmatprep.mubr.bf16.mxu0 0
    %9709 = vmatmul.mubr.bf16.gmra.mrb[0].mxu0 %v9611
    %v9710 = vpop.f32.mrb[0].mxu0
    %v9711 = vadd.f32 0.0, %v9710
    %v9712 = vpop.f32.mrb[0].mxu0
    %v9713 = vpop.f32.mrb[0].mxu0
    %v9714 = vadd.f32 0.0, %v9713
    %v9715 = vpop.f32.mrb[0].mxu0
    %9716 = vdwg.mxu0
    %9733 = vrot.lane.b32.xlu0 %v8521, 32
    %v9734 = vpop.permute.xlu0 %9733
    %9735 = vrot.lane.b32.xlu0 %v8524, 32
    %v9736 = vpop.permute.xlu0 %9735
    %9737 = vrot.lane.b32.xlu0 %v8529, 32
    %v9738 = vpop.permute.xlu0 %9737
    %9739 = vrot.lane.b32.xlu0 %v8532, 32
    %v9740 = vpop.permute.xlu0 %9739
    %9741 = vrot.lane.b32.xlu0 %v8537, 32
    %v9742 = vpop.permute.xlu0 %9741
    %9743 = vrot.lane.b32.xlu0 %v8540, 32
    %v9744 = vpop.permute.xlu0 %9743
    %9745 = vrot.lane.b32.xlu0 %v8545, 32
    %v9746 = vpop.permute.xlu0 %9745
    %9747 = vrot.lane.b32.xlu0 %v8548, 32
    %v9748 = vpop.permute.xlu0 %9747
    %9749 = vrot.lane.b32.xlu0 %v8553, 32
    %v9750 = vpop.permute.xlu0 %9749
    %9751 = vrot.lane.b32.xlu0 %v8556, 32
    %v9752 = vpop.permute.xlu0 %9751
    %9753 = vrot.lane.b32.xlu0 %v8561, 32
    %v9754 = vpop.permute.xlu0 %9753
    %9755 = vrot.lane.b32.xlu0 %v8564, 32
    %v9756 = vpop.permute.xlu0 %9755
    %9757 = vrot.lane.b32.xlu0 %v8569, 32
    %v9758 = vpop.permute.xlu0 %9757
    %9759 = vrot.lane.b32.xlu0 %v8572, 32
    %v9760 = vpop.permute.xlu0 %9759
    %9761 = vrot.lane.b32.xlu0 %v8577, 32
    %v9762 = vpop.permute.xlu0 %9761
    %9763 = vrot.lane.b32.xlu0 %v8580, 32
    %v9764 = vpop.permute.xlu0 %9763
    %9797 = vrot.lane.b32.xlu0 %v8683, 64
    %v9798 = vpop.permute.xlu0 %9797
    %9799 = vrot.lane.b32.xlu0 %v8686, 64
    %v9800 = vpop.permute.xlu0 %9799
    %9801 = vrot.lane.b32.xlu0 %v8691, 64
    %v9802 = vpop.permute.xlu0 %9801
    %9803 = vrot.lane.b32.xlu0 %v8694, 64
    %v9804 = vpop.permute.xlu0 %9803
    %9805 = vrot.lane.b32.xlu0 %v8699, 64
    %v9806 = vpop.permute.xlu0 %9805
    %9807 = vrot.lane.b32.xlu0 %v8702, 64
    %v9808 = vpop.permute.xlu0 %9807
    %9809 = vrot.lane.b32.xlu0 %v8707, 64
    %v9810 = vpop.permute.xlu0 %9809
    %9811 = vrot.lane.b32.xlu0 %v8710, 64
    %v9812 = vpop.permute.xlu0 %9811
    %9813 = vrot.lane.b32.xlu0 %v8715, 64
    %v9814 = vpop.permute.xlu0 %9813
    %9815 = vrot.lane.b32.xlu0 %v8718, 64
    %v9816 = vpop.permute.xlu0 %9815
    %9817 = vrot.lane.b32.xlu0 %v8723, 64
    %v9818 = vpop.permute.xlu0 %9817
    %9819 = vrot.lane.b32.xlu0 %v8726, 64
    %v9820 = vpop.permute.xlu0 %9819
    %9821 = vrot.lane.b32.xlu0 %v8731, 64
    %v9822 = vpop.permute.xlu0 %9821
    %9823 = vrot.lane.b32.xlu0 %v8734, 64
    %v9824 = vpop.permute.xlu0 %9823
    %9825 = vrot.lane.b32.xlu0 %v8739, 64
    %v9826 = vpop.permute.xlu0 %9825
    %9827 = vrot.lane.b32.xlu0 %v8742, 64
    %v9828 = vpop.permute.xlu0 %9827
    %9861 = vrot.lane.b32.xlu0 %v8845, 96
    %v9862 = vpop.permute.xlu0 %9861
    %9863 = vrot.lane.b32.xlu0 %v8848, 96
    %v9864 = vpop.permute.xlu0 %9863
    %9865 = vrot.lane.b32.xlu0 %v8853, 96
    %v9866 = vpop.permute.xlu0 %9865
    %9867 = vrot.lane.b32.xlu0 %v8856, 96
    %v9868 = vpop.permute.xlu0 %9867
    %9869 = vrot.lane.b32.xlu0 %v8861, 96
    %v9870 = vpop.permute.xlu0 %9869
    %9871 = vrot.lane.b32.xlu0 %v8864, 96
    %v9872 = vpop.permute.xlu0 %9871
    %9873 = vrot.lane.b32.xlu0 %v8869, 96
    %v9874 = vpop.permute.xlu0 %9873
    %9875 = vrot.lane.b32.xlu0 %v8872, 96
    %v9876 = vpop.permute.xlu0 %9875
    %9877 = vrot.lane.b32.xlu0 %v8877, 96
    %v9878 = vpop.permute.xlu0 %9877
    %9879 = vrot.lane.b32.xlu0 %v8880, 96
    %v9880 = vpop.permute.xlu0 %9879
    %9881 = vrot.lane.b32.xlu0 %v8885, 96
    %v9882 = vpop.permute.xlu0 %9881
    %9883 = vrot.lane.b32.xlu0 %v8888, 96
    %v9884 = vpop.permute.xlu0 %9883
    %9885 = vrot.lane.b32.xlu0 %v8893, 96
    %v9886 = vpop.permute.xlu0 %9885
    %9887 = vrot.lane.b32.xlu0 %v8896, 96
    %v9888 = vpop.permute.xlu0 %9887
    %9889 = vrot.lane.b32.xlu0 %v8901, 96
    %v9890 = vpop.permute.xlu0 %9889
    %9891 = vrot.lane.b32.xlu0 %v8904, 96
    %v9892 = vpop.permute.xlu0 %9891
    %9925 = vrot.lane.b32.xlu0 %v9169, 32
    %v9926 = vpop.permute.xlu0 %9925
    %9927 = vrot.lane.b32.xlu0 %v9172, 32
    %v9928 = vpop.permute.xlu0 %9927
    %9929 = vrot.lane.b32.xlu0 %v9177, 32
    %v9930 = vpop.permute.xlu0 %9929
    %9931 = vrot.lane.b32.xlu0 %v9180, 32
    %v9932 = vpop.permute.xlu0 %9931
    %9933 = vrot.lane.b32.xlu0 %v9185, 32
    %v9934 = vpop.permute.xlu0 %9933
    %9935 = vrot.lane.b32.xlu0 %v9188, 32
    %v9936 = vpop.permute.xlu0 %9935
    %9937 = vrot.lane.b32.xlu0 %v9193, 32
    %v9938 = vpop.permute.xlu0 %9937
    %9939 = vrot.lane.b32.xlu0 %v9196, 32
    %v9940 = vpop.permute.xlu0 %9939
    %9941 = vrot.lane.b32.xlu0 %v9201, 32
    %v9942 = vpop.permute.xlu0 %9941
    %9943 = vrot.lane.b32.xlu0 %v9204, 32
    %v9944 = vpop.permute.xlu0 %9943
    %9945 = vrot.lane.b32.xlu0 %v9209, 32
    %v9946 = vpop.permute.xlu0 %9945
    %9947 = vrot.lane.b32.xlu0 %v9212, 32
    %v9948 = vpop.permute.xlu0 %9947
    %9949 = vrot.lane.b32.xlu0 %v9217, 32
    %v9950 = vpop.permute.xlu0 %9949
    %9951 = vrot.lane.b32.xlu0 %v9220, 32
    %v9952 = vpop.permute.xlu0 %9951
    %9953 = vrot.lane.b32.xlu0 %v9225, 32
    %v9954 = vpop.permute.xlu0 %9953
    %9955 = vrot.lane.b32.xlu0 %v9228, 32
    %v9956 = vpop.permute.xlu0 %9955
    %9989 = vrot.lane.b32.xlu0 %v9331, 64
    %v9990 = vpop.permute.xlu0 %9989
    %9991 = vrot.lane.b32.xlu0 %v9334, 64
    %v9992 = vpop.permute.xlu0 %9991
    %9993 = vrot.lane.b32.xlu0 %v9339, 64
    %v9994 = vpop.permute.xlu0 %9993
    %9995 = vrot.lane.b32.xlu0 %v9342, 64
    %v9996 = vpop.permute.xlu0 %9995
    %9997 = vrot.lane.b32.xlu0 %v9347, 64
    %v9998 = vpop.permute.xlu0 %9997
    %9999 = vrot.lane.b32.xlu0 %v9350, 64
    %v10000 = vpop.permute.xlu0 %9999
    %10001 = vrot.lane.b32.xlu0 %v9355, 64
    %v10002 = vpop.permute.xlu0 %10001
    %10003 = vrot.lane.b32.xlu0 %v9358, 64
    %v10004 = vpop.permute.xlu0 %10003
    %10005 = vrot.lane.b32.xlu0 %v9363, 64
    %v10006 = vpop.permute.xlu0 %10005
    %10007 = vrot.lane.b32.xlu0 %v9366, 64
    %v10008 = vpop.permute.xlu0 %10007
    %10009 = vrot.lane.b32.xlu0 %v9371, 64
    %v10010 = vpop.permute.xlu0 %10009
    %10011 = vrot.lane.b32.xlu0 %v9374, 64
    %v10012 = vpop.permute.xlu0 %10011
    %10013 = vrot.lane.b32.xlu0 %v9379, 64
    %v10014 = vpop.permute.xlu0 %10013
    %10015 = vrot.lane.b32.xlu0 %v9382, 64
    %v10016 = vpop.permute.xlu0 %10015
    %10017 = vrot.lane.b32.xlu0 %v9387, 64
    %v10018 = vpop.permute.xlu0 %10017
    %10019 = vrot.lane.b32.xlu0 %v9390, 64
    %v10020 = vpop.permute.xlu0 %10019
    %10053 = vrot.lane.b32.xlu0 %v9493, 96
    %v10054 = vpop.permute.xlu0 %10053
    %10055 = vrot.lane.b32.xlu0 %v9496, 96
    %v10056 = vpop.permute.xlu0 %10055
    %10057 = vrot.lane.b32.xlu0 %v9501, 96
    %v10058 = vpop.permute.xlu0 %10057
    %10059 = vrot.lane.b32.xlu0 %v9504, 96
    %v10060 = vpop.permute.xlu0 %10059
    %10061 = vrot.lane.b32.xlu0 %v9509, 96
    %v10062 = vpop.permute.xlu0 %10061
    %10063 = vrot.lane.b32.xlu0 %v9512, 96
    %v10064 = vpop.permute.xlu0 %10063
    %10065 = vrot.lane.b32.xlu0 %v9517, 96
    %v10066 = vpop.permute.xlu0 %10065
    %10067 = vrot.lane.b32.xlu0 %v9520, 96
    %v10068 = vpop.permute.xlu0 %10067
    %10069 = vrot.lane.b32.xlu0 %v9525, 96
    %v10070 = vpop.permute.xlu0 %10069
    %10071 = vrot.lane.b32.xlu0 %v9528, 96
    %v10072 = vpop.permute.xlu0 %10071
    %10073 = vrot.lane.b32.xlu0 %v9533, 96
    %v10074 = vpop.permute.xlu0 %10073
    %10075 = vrot.lane.b32.xlu0 %v9536, 96
    %v10076 = vpop.permute.xlu0 %10075
    %10077 = vrot.lane.b32.xlu0 %v9541, 96
    %v10078 = vpop.permute.xlu0 %10077
    %10079 = vrot.lane.b32.xlu0 %v9544, 96
    %v10080 = vpop.permute.xlu0 %10079
    %10081 = vrot.lane.b32.xlu0 %v9549, 96
    %v10082 = vpop.permute.xlu0 %10081
    %10083 = vrot.lane.b32.xlu0 %v9552, 96
    %v10084 = vpop.permute.xlu0 %10083
    %v10101 = vsel %vm1731, %v8359, %v9734
    %v10102 = vsel %vm1731, %v8362, %v9736
    %v10103 = vsel %vm1731, %v8367, %v9738
    %v10104 = vsel %vm1731, %v8370, %v9740
    %v10105 = vsel %vm1731, %v8375, %v9742
    %v10106 = vsel %vm1731, %v8378, %v9744
    %v10107 = vsel %vm1731, %v8383, %v9746
    %v10108 = vsel %vm1731, %v8386, %v9748
    %v10109 = vsel %vm1731, %v8391, %v9750
    %v10110 = vsel %vm1731, %v8394, %v9752
    %v10111 = vsel %vm1731, %v8399, %v9754
    %v10112 = vsel %vm1731, %v8402, %v9756
    %v10113 = vsel %vm1731, %v8407, %v9758
    %v10114 = vsel %vm1731, %v8410, %v9760
    %v10115 = vsel %vm1731, %v8415, %v9762
    %v10116 = vsel %vm1731, %v8418, %v9764
    %v10117 = vsel %vm1736, %v10101, %v9798
    %v10118 = vsel %vm1736, %v10102, %v9800
    %v10119 = vsel %vm1736, %v10103, %v9802
    %v10120 = vsel %vm1736, %v10104, %v9804
    %v10121 = vsel %vm1736, %v10105, %v9806
    %v10122 = vsel %vm1736, %v10106, %v9808
    %v10123 = vsel %vm1736, %v10107, %v9810
    %v10124 = vsel %vm1736, %v10108, %v9812
    %v10125 = vsel %vm1736, %v10109, %v9814
    %v10126 = vsel %vm1736, %v10110, %v9816
    %v10127 = vsel %vm1736, %v10111, %v9818
    %v10128 = vsel %vm1736, %v10112, %v9820
    %v10129 = vsel %vm1736, %v10113, %v9822
    %v10130 = vsel %vm1736, %v10114, %v9824
    %v10131 = vsel %vm1736, %v10115, %v9826
    %v10132 = vsel %vm1736, %v10116, %v9828
    %v10133 = vsel %vm1741, %v10117, %v9862
    %v10134 = vsel %vm1741, %v10118, %v9864
    %v10135 = vsel %vm1741, %v10119, %v9866
    %v10136 = vsel %vm1741, %v10120, %v9868
    %v10137 = vsel %vm1741, %v10121, %v9870
    %v10138 = vsel %vm1741, %v10122, %v9872
    %v10139 = vsel %vm1741, %v10123, %v9874
    %v10140 = vsel %vm1741, %v10124, %v9876
    %v10141 = vsel %vm1741, %v10125, %v9878
    %v10142 = vsel %vm1741, %v10126, %v9880
    %v10143 = vsel %vm1741, %v10127, %v9882
    %v10144 = vsel %vm1741, %v10128, %v9884
    %v10145 = vsel %vm1741, %v10129, %v9886
    %v10146 = vsel %vm1741, %v10130, %v9888
    %v10147 = vsel %vm1741, %v10131, %v9890
    %v10148 = vsel %vm1741, %v10132, %v9892
    %v10149 = vsel %vm1731, %v9007, %v9926
    %v10150 = vsel %vm1731, %v9010, %v9928
    %v10151 = vsel %vm1731, %v9015, %v9930
    %v10152 = vsel %vm1731, %v9018, %v9932
    %v10153 = vsel %vm1731, %v9023, %v9934
    %v10154 = vsel %vm1731, %v9026, %v9936
    %v10155 = vsel %vm1731, %v9031, %v9938
    %v10156 = vsel %vm1731, %v9034, %v9940
    %v10157 = vsel %vm1731, %v9039, %v9942
    %v10158 = vsel %vm1731, %v9042, %v9944
    %v10159 = vsel %vm1731, %v9047, %v9946
    %v10160 = vsel %vm1731, %v9050, %v9948
    %v10161 = vsel %vm1731, %v9055, %v9950
    %v10162 = vsel %vm1731, %v9058, %v9952
    %v10163 = vsel %vm1731, %v9063, %v9954
    %v10164 = vsel %vm1731, %v9066, %v9956
    %v10165 = vsel %vm1736, %v10149, %v9990
    %v10166 = vsel %vm1736, %v10150, %v9992
    %v10167 = vsel %vm1736, %v10151, %v9994
    %v10168 = vsel %vm1736, %v10152, %v9996
    %v10169 = vsel %vm1736, %v10153, %v9998
    %v10170 = vsel %vm1736, %v10154, %v10000
    %v10171 = vsel %vm1736, %v10155, %v10002
    %v10172 = vsel %vm1736, %v10156, %v10004
    %v10173 = vsel %vm1736, %v10157, %v10006
    %v10174 = vsel %vm1736, %v10158, %v10008
    %v10175 = vsel %vm1736, %v10159, %v10010
    %v10176 = vsel %vm1736, %v10160, %v10012
    %v10177 = vsel %vm1736, %v10161, %v10014
    %v10178 = vsel %vm1736, %v10162, %v10016
    %v10179 = vsel %vm1736, %v10163, %v10018
    %v10180 = vsel %vm1736, %v10164, %v10020
    %v10181 = vsel %vm1741, %v10165, %v10054
    %v10182 = vsel %vm1741, %v10166, %v10056
    %v10183 = vsel %vm1741, %v10167, %v10058
    %v10184 = vsel %vm1741, %v10168, %v10060
    %v10185 = vsel %vm1741, %v10169, %v10062
    %v10186 = vsel %vm1741, %v10170, %v10064
    %v10187 = vsel %vm1741, %v10171, %v10066
    %v10188 = vsel %vm1741, %v10172, %v10068
    %v10189 = vsel %vm1741, %v10173, %v10070
    %v10190 = vsel %vm1741, %v10174, %v10072
    %v10191 = vsel %vm1741, %v10175, %v10074
    %v10192 = vsel %vm1741, %v10176, %v10076
    %v10193 = vsel %vm1741, %v10177, %v10078
    %v10194 = vsel %vm1741, %v10178, %v10080
    %v10195 = vsel %vm1741, %v10179, %v10082
    %v10196 = vsel %vm1741, %v10180, %v10084
    %v10197 = vpack.c.bf16 %v10134, %v10133
    %v10198 = vpack.c.bf16 %v10182, %v10181
    %v10199 = vpack.c.bf16 %v9658, %v9655
    %v10200 = vpack.c.bf16 %v10136, %v10135
    %v10201 = vpack.c.bf16 %v10184, %v10183
    %v10202 = vpack.c.bf16 %v9666, %v9663
    %v10203 = vpack.c.bf16 %v10138, %v10137
    %v10204 = vpack.c.bf16 %v10186, %v10185
    %v10205 = vpack.c.bf16 %v9674, %v9671
    %v10206 = vpack.c.bf16 %v10140, %v10139
    %v10207 = vpack.c.bf16 %v10188, %v10187
    %v10208 = vpack.c.bf16 %v9682, %v9679
    %v10209 = vpack.c.bf16 %v10142, %v10141
    %v10210 = vpack.c.bf16 %v10190, %v10189
    %v10211 = vpack.c.bf16 %v9690, %v9687
    %v10212 = vpack.c.bf16 %v10144, %v10143
    %v10213 = vpack.c.bf16 %v10192, %v10191
    %v10214 = vpack.c.bf16 %v9698, %v9695
    %v10215 = vpack.c.bf16 %v10146, %v10145
    %v10216 = vpack.c.bf16 %v10194, %v10193
    %v10217 = vpack.c.bf16 %v9706, %v9703
    %v10218 = vpack.c.bf16 %v10148, %v10147
    %v10219 = vpack.c.bf16 %v10196, %v10195
    %v10220 = vpack.c.bf16 %v9714, %v9711
    %v10221 = vld [vmem:[%s24] sm:$0xf]
    %v10222 = vld [vmem:[%s24 + $0x4] sm:$0xf]
    %v10223 = vld [vmem:[%s24 + $0x8] sm:$0xf]
    %v10224 = vld [vmem:[%s24 + $0xc] sm:$0xf]
    %v10225 = vld [vmem:[%s24 + $0x10] sm:$0xf]
    %v10226 = vld [vmem:[%s24 + $0x14] sm:$0xf]
    %v10227 = vld [vmem:[%s24 + $0x18] sm:$0xf]
    %v10228 = vld [vmem:[%s24 + $0x1c] sm:$0xf]
    %v10229 = vld [vmem:[%s24 + $0x20] sm:$0xf]
    %v10230 = vld [vmem:[%s24 + $0x24] sm:$0xf]
    %v10231 = vld [vmem:[%s24 + $0x28] sm:$0xf]
    %v10232 = vld [vmem:[%s24 + $0x2c] sm:$0xf]
    %v10233 = vld [vmem:[%s24 + $0x30] sm:$0xf]
    %v10234 = vld [vmem:[%s24 + $0x34] sm:$0xf]
    %v10235 = vld [vmem:[%s24 + $0x38] sm:$0xf]
    %v10236 = vld [vmem:[%s24 + $0x3c] sm:$0xf]
    %v10237 = vld [vmem:[%s24 + $0x40] sm:$0xf]
    %v10238 = vld [vmem:[%s24 + $0x44] sm:$0xf]
    %v10239 = vld [vmem:[%s24 + $0x48] sm:$0xf]
    %v10240 = vld [vmem:[%s24 + $0x4c] sm:$0xf]
    %v10241 = vld [vmem:[%s24 + $0x50] sm:$0xf]
    %v10242 = vld [vmem:[%s24 + $0x54] sm:$0xf]
    %v10243 = vld [vmem:[%s24 + $0x58] sm:$0xf]
    %v10244 = vld [vmem:[%s24 + $0x5c] sm:$0xf]
    %v10245 = vld [vmem:[%s24 + $0x60] sm:$0xf]
    %v10246 = vld [vmem:[%s24 + $0x64] sm:$0xf]
    %v10247 = vld [vmem:[%s24 + $0x68] sm:$0xf]
    %v10248 = vld [vmem:[%s24 + $0x6c] sm:$0xf]
    %v10249 = vld [vmem:[%s24 + $0x70] sm:$0xf]
    %v10250 = vld [vmem:[%s24 + $0x74] sm:$0xf]
    %v10251 = vld [vmem:[%s24 + $0x78] sm:$0xf]
    %v10252 = vld [vmem:[%s24 + $0x7c] sm:$0xf]
    %v10253 = vld [vmem:[%s24 + $0x80] sm:$0xf]
    %v10254 = vld [vmem:[%s24 + $0x84] sm:$0xf]
    %v10255 = vld [vmem:[%s24 + $0x88] sm:$0xf]
    %v10256 = vld [vmem:[%s24 + $0x8c] sm:$0xf]
    %v10257 = vld [vmem:[#allocation19] sm:$0x1]
    %v10259 = vlaneseq
    %v10260 = vshrl.u32 %v10259, 7
    %v10261 = vsub.s32 0, %v10260
    %v10262 = vrot.slane %v10257, %v10261
    %v10300 = vunpack.c.l.b16 %v10221
    %v10301 = vunpack.c.l.b16 %v10222
    %v10302 = vunpack.c.l.b16 %v10223
    %v10303 = vunpack.c.l.b16 %v10224
    %v10304 = vunpack.c.l.b16 %v10225
    %v10305 = vunpack.c.l.b16 %v10226
    %v10306 = vunpack.c.l.b16 %v10227
    %v10307 = vunpack.c.l.b16 %v10228
    %v10308 = vunpack.c.l.b16 %v10229
    %v10309 = vunpack.c.l.b16 %v10230
    %v10310 = vunpack.c.l.b16 %v10231
    %v10311 = vunpack.c.l.b16 %v10232
    %v10312 = vunpack.c.l.b16 %v10233
    %v10313 = vunpack.c.l.b16 %v10234
    %v10314 = vunpack.c.l.b16 %v10235
    %v10315 = vunpack.c.l.b16 %v10236
    %v10316 = vunpack.c.l.b16 %v10237
    %v10317 = vunpack.c.l.b16 %v10238
    %v10318 = vunpack.c.l.b16 %v10239
    %v10319 = vunpack.c.l.b16 %v10240
    %v10320 = vunpack.c.l.b16 %v10241
    %v10321 = vunpack.c.l.b16 %v10242
    %v10322 = vunpack.c.l.b16 %v10243
    %v10323 = vunpack.c.l.b16 %v10244
    %v10324 = vunpack.c.l.b16 %v10245
    %v10325 = vunpack.c.l.b16 %v10246
    %v10326 = vunpack.c.l.b16 %v10247
    %v10327 = vunpack.c.l.b16 %v10248
    %v10328 = vunpack.c.l.b16 %v10249
    %v10329 = vunpack.c.l.b16 %v10250
    %v10330 = vunpack.c.l.b16 %v10251
    %v10331 = vunpack.c.l.b16 %v10252
    %v10332 = vunpack.c.l.b16 %v10253
    %v10333 = vunpack.c.l.b16 %v10254
    %v10334 = vunpack.c.l.b16 %v10255
    %v10335 = vunpack.c.l.b16 %v10256
    %v10336 = vpack.c.b16 %v10301, %v10300
    %v10337 = vpack.c.b16 %v10303, %v10302
    %v10338 = vpack.c.b16 %v10305, %v10304
    %v10339 = vpack.c.b16 %v10307, %v10306
    %v10340 = vpack.c.b16 %v10309, %v10308
    %v10341 = vpack.c.b16 %v10311, %v10310
    %v10342 = vpack.c.b16 %v10313, %v10312
    %v10343 = vpack.c.b16 %v10315, %v10314
    %v10344 = vpack.c.b16 %v10317, %v10316
    %v10345 = vpack.c.b16 %v10319, %v10318
    %v10346 = vpack.c.b16 %v10321, %v10320
    %v10347 = vpack.c.b16 %v10323, %v10322
    %v10348 = vpack.c.b16 %v10325, %v10324
    %v10349 = vpack.c.b16 %v10327, %v10326
    %v10350 = vpack.c.b16 %v10329, %v10328
    %v10351 = vpack.c.b16 %v10331, %v10330
    %v10352 = vpack.c.b16 %v10333, %v10332
    %v10353 = vpack.c.b16 %v10335, %v10334
    %v10373 = vsel %vm1731, %v10199, 0
    %v10376 = vsel %vm1731, %v10202, 0
    %v10379 = vsel %vm1731, %v10205, 0
    %v10382 = vsel %vm1731, %v10208, 0
    %v10385 = vsel %vm1731, %v10211, 0
    %v10388 = vsel %vm1731, %v10214, 0
    %v10391 = vsel %vm1731, %v10217, 0
    %v10394 = vsel %vm1731, %v10220, 0
    %10396 = vmatprep.subr.bf16.mxu0 0
    %10397 = vmatpush1.bf16.msra.mxu0 %v10336
    %10398 = vmatprep.subr.bf16.mxu0 0
    %10399 = vmatpush1.bf16.msra.mxu0 %v10337
    %10400 = vmatprep.subr.bf16.mxu0 0
    %10401 = vmatpush1.bf16.msra.mxu0 %v10338
    %10402 = vmatprep.subr.bf16.mxu0 0
    %10403 = vmatpush1.bf16.msra.mxu0 %v10339
    %10404 = vmatprep.subr.bf16.mxu0 0
    %10405 = vmatpush1.bf16.msra.mxu0 %v10340
    %10406 = vmatprep.subr.bf16.mxu0 0
    %10407 = vmatpush1.bf16.msra.mxu0 %v10341
    %10408 = vmatprep.subr.bf16.mxu0 0
    %10409 = vmatpush1.bf16.msra.mxu0 %v10342
    %10410 = vmatprep.subr.bf16.mxu0 0
    %10411 = vmatpush1.bf16.msra.mxu0 %v10343
    %10412 = vmatprep.subr.bf16.mxu0 0
    %10413 = vmatpush1.bf16.msra.mxu0 %v10344
    %10414 = vmatprep.subr.bf16.mxu0 0
    %10415 = vmatpush1.bf16.msra.mxu0 %v10345
    %10416 = vmatprep.subr.bf16.mxu0 0
    %10417 = vmatpush1.bf16.msra.mxu0 %v10346
    %10418 = vmatprep.subr.bf16.mxu0 0
    %10419 = vmatpush1.bf16.msra.mxu0 %v10347
    %10420 = vmatprep.subr.bf16.mxu0 0
    %10421 = vmatpush1.bf16.msra.mxu0 %v10348
    %10422 = vmatprep.subr.bf16.mxu0 0
    %10423 = vmatpush1.bf16.msra.mxu0 %v10349
    %10424 = vmatprep.subr.bf16.mxu0 0
    %10425 = vmatpush1.bf16.msra.mxu0 %v10350
    %10426 = vmatprep.subr.bf16.mxu0 0
    %10427 = vmatpush1.bf16.msra.mxu0 %v10351
    %10428 = vmatprep.mubr.bf16.mxu0 %v10198
    %10429 = vmatmul.mubr.bf16.gmra.mrb[0].mxu0 %v10197
    %v10430 = vpop.f32.mrb[0].mxu0
    %v10431 = vadd.f32 %v10262, %v10430
    %v10432 = vpop.f32.mrb[0].mxu0
    %v10433 = vpop.f32.mrb[0].mxu0
    %v10434 = vadd.f32 %v10262, %v10433
    %v10435 = vpop.f32.mrb[0].mxu0
    %10436 = vmatprep.mubr.bf16.mxu0 %v10201
    %10437 = vmatmul.mubr.bf16.gmra.mrb[0].mxu0 %v10200
    %v10438 = vpop.f32.mrb[0].mxu0
    %v10439 = vadd.f32 %v10262, %v10438
    %v10440 = vpop.f32.mrb[0].mxu0
    %v10441 = vpop.f32.mrb[0].mxu0
    %v10442 = vadd.f32 %v10262, %v10441
    %v10443 = vpop.f32.mrb[0].mxu0
    %10444 = vmatprep.mubr.bf16.mxu0 %v10204
    %10445 = vmatmul.mubr.bf16.gmra.mrb[0].mxu0 %v10203
    %v10446 = vpop.f32.mrb[0].mxu0
    %v10447 = vadd.f32 %v10262, %v10446
    %v10448 = vpop.f32.mrb[0].mxu0
    %v10449 = vpop.f32.mrb[0].mxu0
    %v10450 = vadd.f32 %v10262, %v10449
    %v10451 = vpop.f32.mrb[0].mxu0
    %10452 = vmatprep.mubr.bf16.mxu0 %v10207
    %10453 = vmatmul.mubr.bf16.gmra.mrb[0].mxu0 %v10206
    %v10454 = vpop.f32.mrb[0].mxu0
    %v10455 = vadd.f32 %v10262, %v10454
    %v10456 = vpop.f32.mrb[0].mxu0
    %v10457 = vpop.f32.mrb[0].mxu0
    %v10458 = vadd.f32 %v10262, %v10457
    %v10459 = vpop.f32.mrb[0].mxu0
    %10460 = vmatprep.mubr.bf16.mxu0 %v10210
    %10461 = vmatmul.mubr.bf16.gmra.mrb[0].mxu0 %v10209
    %v10462 = vpop.f32.mrb[0].mxu0
    %v10463 = vadd.f32 %v10262, %v10462
    %v10464 = vpop.f32.mrb[0].mxu0
    %v10465 = vpop.f32.mrb[0].mxu0
    %v10466 = vadd.f32 %v10262, %v10465
    %v10467 = vpop.f32.mrb[0].mxu0
    %10468 = vmatprep.mubr.bf16.mxu0 %v10213
    %10469 = vmatmul.mubr.bf16.gmra.mrb[0].mxu0 %v10212
    %v10470 = vpop.f32.mrb[0].mxu0
    %v10471 = vadd.f32 %v10262, %v10470
    %v10472 = vpop.f32.mrb[0].mxu0
    %v10473 = vpop.f32.mrb[0].mxu0
    %v10474 = vadd.f32 %v10262, %v10473
    %v10475 = vpop.f32.mrb[0].mxu0
    %10476 = vmatprep.mubr.bf16.mxu0 %v10216
    %10477 = vmatmul.mubr.bf16.gmra.mrb[0].mxu0 %v10215
    %v10478 = vpop.f32.mrb[0].mxu0
    %v10479 = vadd.f32 %v10262, %v10478
    %v10480 = vpop.f32.mrb[0].mxu0
    %v10481 = vpop.f32.mrb[0].mxu0
    %v10482 = vadd.f32 %v10262, %v10481
    %v10483 = vpop.f32.mrb[0].mxu0
    %10484 = vmatprep.mubr.bf16.mxu0 %v10219
    %10485 = vmatmul.mubr.bf16.gmra.mrb[0].mxu0 %v10218
    %v10486 = vpop.f32.mrb[0].mxu0
    %v10487 = vadd.f32 %v10262, %v10486
    %v10488 = vpop.f32.mrb[0].mxu0
    %v10489 = vpop.f32.mrb[0].mxu0
    %v10490 = vadd.f32 %v10262, %v10489
    %v10491 = vpop.f32.mrb[0].mxu0
    %10492 = vdwg.mxu0
    %10493 = vmatprep.subr.bf16.mxu0 0
    %10494 = vmatpush1.bf16.msra.mxu0 %v10352
    %10495 = vmatprep.subr.bf16.mxu0 0
    %10496 = vmatpush1.bf16.msra.mxu0 %v10353
    %10497 = vmatprep.subr.bf16.mxu0 0
    %10498 = vmatpush1.bf16.msra.mxu0 0
    %10499 = vmatprep.subr.bf16.mxu0 0
    %10500 = vmatpush1.bf16.msra.mxu0 0
    %10501 = vmatprep.subr.bf16.mxu0 0
    %10502 = vmatpush1.bf16.msra.mxu0 0
    %10503 = vmatprep.subr.bf16.mxu0 0
    %10504 = vmatpush1.bf16.msra.mxu0 0
    %10505 = vmatprep.subr.bf16.mxu0 0
    %10506 = vmatpush1.bf16.msra.mxu0 0
    %10507 = vmatprep.subr.bf16.mxu0 0
    %10508 = vmatpush1.bf16.msra.mxu0 0
    %10509 = vmatprep.subr.bf16.mxu0 0
    %10510 = vmatpush1.bf16.msra.mxu0 0
    %10511 = vmatprep.subr.bf16.mxu0 0
    %10512 = vmatpush1.bf16.msra.mxu0 0
    %10513 = vmatprep.subr.bf16.mxu0 0
    %10514 = vmatpush1.bf16.msra.mxu0 0
    %10515 = vmatprep.subr.bf16.mxu0 0
    %10516 = vmatpush1.bf16.msra.mxu0 0
    %10517 = vmatprep.subr.bf16.mxu0 0
    %10518 = vmatpush1.bf16.msra.mxu0 0
    %10519 = vmatprep.subr.bf16.mxu0 0
    %10520 = vmatpush1.bf16.msra.mxu0 0
    %10521 = vmatprep.subr.bf16.mxu0 0
    %10522 = vmatpush1.bf16.msra.mxu0 0
    %10523 = vmatprep.subr.bf16.mxu0 0
    %10524 = vmatpush1.bf16.msra.mxu0 0
    %10525 = vmatprep.mubr.bf16.mxu0 0
    %10526 = vmatmul.mubr.bf16.gmra.mrb[0].mxu0 %v10373
    %v10527 = vpop.f32.mrb[0].mxu0
    %v10528 = vadd.f32 %v10431, %v10527
    %v10529 = vpop.f32.mrb[0].mxu0
    %v10530 = vpop.f32.mrb[0].mxu0
    %v10531 = vadd.f32 %v10434, %v10530
    %v10532 = vpop.f32.mrb[0].mxu0
    %10533 = vmatprep.mubr.bf16.mxu0 0
    %10534 = vmatmul.mubr.bf16.gmra.mrb[0].mxu0 %v10376
    %v10535 = vpop.f32.mrb[0].mxu0
    %v10536 = vadd.f32 %v10439, %v10535
    %v10537 = vpop.f32.mrb[0].mxu0
    %v10538 = vpop.f32.mrb[0].mxu0
    %v10539 = vadd.f32 %v10442, %v10538
    %v10540 = vpop.f32.mrb[0].mxu0
    %10541 = vmatprep.mubr.bf16.mxu0 0
    %10542 = vmatmul.mubr.bf16.gmra.mrb[0].mxu0 %v10379
    %v10543 = vpop.f32.mrb[0].mxu0
    %v10544 = vadd.f32 %v10447, %v10543
    %v10545 = vpop.f32.mrb[0].mxu0
    %v10546 = vpop.f32.mrb[0].mxu0
    %v10547 = vadd.f32 %v10450, %v10546
    %v10548 = vpop.f32.mrb[0].mxu0
    %10549 = vmatprep.mubr.bf16.mxu0 0
    %10550 = vmatmul.mubr.bf16.gmra.mrb[0].mxu0 %v10382
    %v10551 = vpop.f32.mrb[0].mxu0
    %v10552 = vadd.f32 %v10455, %v10551
    %v10553 = vpop.f32.mrb[0].mxu0
    %v10554 = vpop.f32.mrb[0].mxu0
    %v10555 = vadd.f32 %v10458, %v10554
    %v10556 = vpop.f32.mrb[0].mxu0
    %10557 = vmatprep.mubr.bf16.mxu0 0
    %10558 = vmatmul.mubr.bf16.gmra.mrb[0].mxu0 %v10385
    %v10559 = vpop.f32.mrb[0].mxu0
    %v10560 = vadd.f32 %v10463, %v10559
    %v10561 = vpop.f32.mrb[0].mxu0
    %v10562 = vpop.f32.mrb[0].mxu0
    %v10563 = vadd.f32 %v10466, %v10562
    %v10564 = vpop.f32.mrb[0].mxu0
    %10565 = vmatprep.mubr.bf16.mxu0 0
    %10566 = vmatmul.mubr.bf16.gmra.mrb[0].mxu0 %v10388
    %v10567 = vpop.f32.mrb[0].mxu0
    %v10568 = vadd.f32 %v10471, %v10567
    %v10569 = vpop.f32.mrb[0].mxu0
    %v10570 = vpop.f32.mrb[0].mxu0
    %v10571 = vadd.f32 %v10474, %v10570
    %v10572 = vpop.f32.mrb[0].mxu0
    %10573 = vmatprep.mubr.bf16.mxu0 0
    %10574 = vmatmul.mubr.bf16.gmra.mrb[0].mxu0 %v10391
    %v10575 = vpop.f32.mrb[0].mxu0
    %v10576 = vadd.f32 %v10479, %v10575
    %v10577 = vpop.f32.mrb[0].mxu0
    %v10578 = vpop.f32.mrb[0].mxu0
    %v10579 = vadd.f32 %v10482, %v10578
    %v10580 = vpop.f32.mrb[0].mxu0
    %10581 = vmatprep.mubr.bf16.mxu0 0
    %10582 = vmatmul.mubr.bf16.gmra.mrb[0].mxu0 %v10394
    %v10583 = vpop.f32.mrb[0].mxu0
    %v10584 = vadd.f32 %v10487, %v10583
    %v10585 = vpop.f32.mrb[0].mxu0
    %v10586 = vpop.f32.mrb[0].mxu0
    %v10587 = vadd.f32 %v10490, %v10586
    %v10588 = vpop.f32.mrb[0].mxu0
    %10589 = vdwg.mxu0
    %v10590 = vxor.u32 %v10528, 2147483648
    %v10591 = vxor.u32 %v10531, 2147483648
    %v10592 = vxor.u32 %v10536, 2147483648
    %v10593 = vxor.u32 %v10539, 2147483648
    %v10594 = vxor.u32 %v10544, 2147483648
    %v10595 = vxor.u32 %v10547, 2147483648
    %v10596 = vxor.u32 %v10552, 2147483648
    %v10597 = vxor.u32 %v10555, 2147483648
    %v10598 = vxor.u32 %v10560, 2147483648
    %v10599 = vxor.u32 %v10563, 2147483648
    %v10600 = vxor.u32 %v10568, 2147483648
    %v10601 = vxor.u32 %v10571, 2147483648
    %v10602 = vxor.u32 %v10576, 2147483648
    %v10603 = vxor.u32 %v10579, 2147483648
    %v10604 = vxor.u32 %v10584, 2147483648
    %v10605 = vxor.u32 %v10587, 2147483648
    %v10606 = vmul.f32 %v10590, 1.442695
    %v10607 = vpow.pop %v10606
    %v10608 = vmul.f32 %v10591, 1.442695
    %v10609 = vpow.pop %v10608
    %v10610 = vmul.f32 %v10592, 1.442695
    %v10611 = vpow.pop %v10610
    %v10612 = vmul.f32 %v10593, 1.442695
    %v10613 = vpow.pop %v10612
    %v10614 = vmul.f32 %v10594, 1.442695
    %v10615 = vpow.pop %v10614
    %v10616 = vmul.f32 %v10595, 1.442695
    %v10617 = vpow.pop %v10616
    %v10618 = vmul.f32 %v10596, 1.442695
    %v10619 = vpow.pop %v10618
    %v10620 = vmul.f32 %v10597, 1.442695
    %v10621 = vpow.pop %v10620
    %v10622 = vmul.f32 %v10598, 1.442695
    %v10623 = vpow.pop %v10622
    %v10624 = vmul.f32 %v10599, 1.442695
    %v10625 = vpow.pop %v10624
    %v10626 = vmul.f32 %v10600, 1.442695
    %v10627 = vpow.pop %v10626
    %v10628 = vmul.f32 %v10601, 1.442695
    %v10629 = vpow.pop %v10628
    %v10630 = vmul.f32 %v10602, 1.442695
    %v10631 = vpow.pop %v10630
    %v10632 = vmul.f32 %v10603, 1.442695
    %v10633 = vpow.pop %v10632
    %v10634 = vmul.f32 %v10604, 1.442695
    %v10635 = vpow.pop %v10634
    %v10636 = vmul.f32 %v10605, 1.442695
    %v10637 = vpow.pop %v10636
    %v10638 = vadd.f32 %v10607, 1.0
    %v10639 = vadd.f32 %v10609, 1.0
    %v10640 = vadd.f32 %v10611, 1.0
    %v10641 = vadd.f32 %v10613, 1.0
    %v10642 = vadd.f32 %v10615, 1.0
    %v10643 = vadd.f32 %v10617, 1.0
    %v10644 = vadd.f32 %v10619, 1.0
    %v10645 = vadd.f32 %v10621, 1.0
    %v10646 = vadd.f32 %v10623, 1.0
    %v10647 = vadd.f32 %v10625, 1.0
    %v10648 = vadd.f32 %v10627, 1.0
    %v10649 = vadd.f32 %v10629, 1.0
    %v10650 = vadd.f32 %v10631, 1.0
    %v10651 = vadd.f32 %v10633, 1.0
    %v10652 = vadd.f32 %v10635, 1.0
    %v10653 = vadd.f32 %v10637, 1.0
    %v10654 = vrcp.pop %v10638
    %v10655 = vmul.f32 1.0, %v10654
    %v10656 = vrcp.pop %v10639
    %v10657 = vmul.f32 1.0, %v10656
    %v10658 = vrcp.pop %v10640
    %v10659 = vmul.f32 1.0, %v10658
    %v10660 = vrcp.pop %v10641
    %v10661 = vmul.f32 1.0, %v10660
    %v10662 = vrcp.pop %v10642
    %v10663 = vmul.f32 1.0, %v10662
    %v10664 = vrcp.pop %v10643
    %v10665 = vmul.f32 1.0, %v10664
    %v10666 = vrcp.pop %v10644
    %v10667 = vmul.f32 1.0, %v10666
    %v10668 = vrcp.pop %v10645
    %v10669 = vmul.f32 1.0, %v10668
    %v10670 = vrcp.pop %v10646
    %v10671 = vmul.f32 1.0, %v10670
    %v10672 = vrcp.pop %v10647
    %v10673 = vmul.f32 1.0, %v10672
    %v10674 = vrcp.pop %v10648
    %v10675 = vmul.f32 1.0, %v10674
    %v10676 = vrcp.pop %v10649
    %v10677 = vmul.f32 1.0, %v10676
    %v10678 = vrcp.pop %v10650
    %v10679 = vmul.f32 1.0, %v10678
    %v10680 = vrcp.pop %v10651
    %v10681 = vmul.f32 1.0, %v10680
    %v10682 = vrcp.pop %v10652
    %v10683 = vmul.f32 1.0, %v10682
    %v10684 = vrcp.pop %v10653
    %v10685 = vmul.f32 1.0, %v10684
    %vm10686 = vcmask 31744
    %10687 = vst.msk [vmem:[%s27] sm:$0xff] %vm10686, %v10655
    %10688 = vst.msk [vmem:[%s27 + $0x8] sm:$0xff] %vm10686, %v10657
    %10689 = vst.msk [vmem:[%s27 + $0x10] sm:$0xff] %vm10686, %v10659
    %10690 = vst.msk [vmem:[%s27 + $0x18] sm:$0xff] %vm10686, %v10661
    %10691 = vst.msk [vmem:[%s27 + $0x20] sm:$0xff] %vm10686, %v10663
    %10692 = vst.msk [vmem:[%s27 + $0x28] sm:$0xff] %vm10686, %v10665
    %10693 = vst.msk [vmem:[%s27 + $0x30] sm:$0xff] %vm10686, %v10667
    %10694 = vst.msk [vmem:[%s27 + $0x38] sm:$0xff] %vm10686, %v10669
    %10695 = vst.msk [vmem:[%s27 + $0x40] sm:$0xff] %vm10686, %v10671
    %10696 = vst.msk [vmem:[%s27 + $0x48] sm:$0xff] %vm10686, %v10673
    %10697 = vst.msk [vmem:[%s27 + $0x50] sm:$0xff] %vm10686, %v10675
    %10698 = vst.msk [vmem:[%s27 + $0x58] sm:$0xff] %vm10686, %v10677
    %10699 = vst.msk [vmem:[%s27 + $0x60] sm:$0xff] %vm10686, %v10679
    %10700 = vst.msk [vmem:[%s27 + $0x68] sm:$0xff] %vm10686, %v10681
    %10701 = vst.msk [vmem:[%s27 + $0x70] sm:$0xff] %vm10686, %v10683
    %10702 = vst.msk [vmem:[%s27 + $0x78] sm:$0xff] %vm10686, %v10685
    // Predicated region
    $region154: #{vae_forward.1} parent=1 // pred_check
      _
    $region155: #{vae_forward.1} parent=1 // pred_check_branch
      %10704 = sbr.rel (0) target = $region157
    $region156: #{vae_forward.1} parent=1 // pred_region
      _
    $region157: #{vae_forward.1} parent=1 // pred_fallthru
      _
    // Predicated region
    $region158: #{vae_forward.1} parent=1 // pred_check
      _
    $region159: #{vae_forward.1} parent=1 // pred_check_branch
      %10706 = sbr.rel (0) target = $region161
    $region160: #{vae_forward.1} parent=1 // pred_region
      _
    $region161: #{vae_forward.1} parent=1 // pred_fallthru
      _
    // Predicated region
    $region162: #{vae_forward.1} parent=1 // pred_check
      _
    $region163: #{vae_forward.1} parent=1 // pred_check_branch
      %10708 = sbr.rel (0) target = $region165
    $region164: #{vae_forward.1} parent=1 // pred_region
      _
    $region165: #{vae_forward.1} parent=1 // pred_fallthru
      _
    // Predicated region
    $region166: #{vae_forward.1} parent=1 // pred_check
      _
    $region167: #{vae_forward.1} parent=1 // pred_check_branch
      %10710 = sbr.rel (0) target = $region169
    $region168: #{vae_forward.1} parent=1 // pred_region
      _
    $region169: #{vae_forward.1} parent=1 // pred_fallthru
      _
    %10711 = vsyncpa [#allocation3], 1
    %10712 = vsyncpa [#allocation5], 1
    %10713 = vsyncpa [#allocation8], 1
    %10714 = vsyncpa [#allocation11], 1
    %10715 = vsyncpa [#allocation14], 1
    %10716 = vsyncpa [#allocation17], 1
    %10717 = vsyncpa [#allocation20], 1

</llo_original>
